<compile_context>
chip_gen: v6e
topology: v6e:2x2x1
jax: 0.10.0
libtpu: 0.0.40
codegen_flags: <defaults>
</compile_context>

<pallas_src>
import functools

import jax
import jax.numpy as jnp
from jax.experimental import pallas as pl
from jax.experimental.pallas import tpu as pltpu


def _mha_kernel(q_ref, k_ref, v_ref, wq_ref, wk_ref, wv_ref, wo_ref, bo_ref,
                o_ref, kp_ref, vp_ref, acc_ref, *,
                num_heads, heads_per_group, seq_len, compute_dtype):
    """One (batch, Q-tile) grid step.

    q_ref:  (1, TQ, E)     current Q tile
    k_ref:  (1, S_pad, E)  full (padded) K for this batch element
    v_ref:  (1, S_pad, E)  full (padded) V for this batch element
    wq/wk/wv_ref: (GW, GW) head-group block-diagonal W.T (Wq pre-scaled)
    wo_ref: (E, E)  Wo.T;  bo_ref: (1, E) output bias (f32)
    kp_ref/vp_ref: (S_pad, E) persistent projected K/V scratch (compute dtype)
    acc_ref: (TQ, E) f32 output accumulator
    """
    TQ = q_ref.shape[1]
    E = q_ref.shape[2]
    S_pad = k_ref.shape[1]
    Dh = E // num_heads
    GW = heads_per_group * Dh
    n_groups = num_heads // heads_per_group
    cdt = compute_dtype
    approx_recip = jnp.dtype(cdt) != jnp.dtype(jnp.float32)

    # ---- K/V projection: once per batch element (qi == 0 only). -----------
    @pl.when(pl.program_id(1) == 0)
    def _project_kv():
        for g in range(n_groups):
            lo = g * GW
            kg = k_ref[0, :, lo:lo + GW].astype(cdt)        # (S_pad, GW)
            vg = v_ref[0, :, lo:lo + GW].astype(cdt)
            kp_ref[:, lo:lo + GW] = jnp.dot(
                kg, wk_ref[...], preferred_element_type=jnp.float32
            ).astype(kp_ref.dtype)
            vp_ref[:, lo:lo + GW] = jnp.dot(
                vg, wv_ref[...], preferred_element_type=jnp.float32
            ).astype(vp_ref.dtype)

    # ---- Output accumulator: init with the output-projection bias. --------
    acc_ref[...] = jnp.broadcast_to(bo_ref[...], acc_ref.shape).astype(jnp.float32)

    # Key-padding mask (only built when the wrapper actually padded S).
    key_valid = None
    if S_pad != seq_len:
        key_pos = jax.lax.broadcasted_iota(jnp.int32, (TQ, S_pad), 1)
        key_valid = key_pos < seq_len

    # ---- Per-head attention, fused with the output projection. ------------
    for g in range(n_groups):
        glo = g * GW
        qg = q_ref[0, :, glo:glo + GW].astype(cdt)          # (TQ, GW)
        # Wq already carries 1/sqrt(Dh); f32 accumulation on the MXU.
        qp_g = jnp.dot(qg, wq_ref[...],
                       preferred_element_type=jnp.float32).astype(cdt)
        for j in range(heads_per_group):
            lo = glo + j * Dh
            qh = qp_g[:, j * Dh:(j + 1) * Dh]               # (TQ, Dh)    cdt
            kh = kp_ref[:, lo:lo + Dh]                      # (S_pad, Dh) cdt
            vh = vp_ref[:, lo:lo + Dh]                      # (S_pad, Dh) cdt

            # Scores: contract the head dim (scale folded into Wq).
            s = jax.lax.dot_general(
                qh, kh, (((1,), (1,)), ((), ())),
                preferred_element_type=jnp.float32)         # (TQ, S_pad) f32
            if key_valid is not None:
                s = jnp.where(key_valid, s, -1e30)

            s_max = jnp.max(s, axis=-1, keepdims=True)      # f32 softmax stats
            p = jnp.exp(s - s_max)
            denom = jnp.sum(p, axis=-1, keepdims=True)
            p = p * pl.reciprocal(denom, approx=approx_recip)   # EUP, not VALU

            attn = jnp.dot(p.astype(cdt), vh,
                           preferred_element_type=jnp.float32)  # (TQ, Dh)
            # Fold straight into the output projection: lane-dense (TQ, E)
            # accumulation, no sub-128-lane concat stores, and the per-head
            # intermediates (s, p, attn) die at this store.
            acc_ref[...] += jnp.dot(attn.astype(cdt), wo_ref[lo:lo + Dh, :],
                                    preferred_element_type=jnp.float32)

    o_ref[0] = acc_ref[...].astype(o_ref.dtype)


def _choose_q_tile(padded_seq_len):
    # Prefer large, 128-aligned Q tiles for deep pipelining / MXU amortization.
    for t in (512, 256, 128):
        if padded_seq_len >= t and padded_seq_len % t == 0:
            return t
    return padded_seq_len  # unreachable: padded_seq_len is a multiple of 128


def _vmem_limit_bytes():
    # Generation-aware VMEM budget (~80% of physical: ~102 MiB on v5e/v6e,
    # ~51 MiB on v7x) instead of a fixed value.
    try:
        cap = pltpu.get_tpu_info().vmem_capacity_bytes
        return max(32 * 1024 * 1024, int(cap * 0.8))
    except Exception:
        return 64 * 1024 * 1024


def multi_head_attention(query, key, value, params, *, num_heads,
                         compute_dtype=jnp.float32, mxu_lanes=256):
    """query/key/value: (B, S, E). params = (wq, wk, wv, wo, bo) in the
    PyTorch nn.Linear (out, in) layout: wq/wk/wv are (Dh, Dh), wo is (E, E),
    bo is (E,). Returns (B, S, E) in query.dtype.

    mxu_lanes: lane width of the head-group block-diagonal projection weights;
    use 256 on v6e/v7x (256x256 MXU), 128 on v5e (128x128 MXU).
    """
    B, S, E = query.shape
    assert E % num_heads == 0
    Dh = E // num_heads
    wq, wk, wv, wo, bo = params
    cdt = compute_dtype

    # Head groups sized to the MXU width: per-group block-diagonal weights get
    # full array fill with only heads_per_group x FLOP inflation (vs H x for a
    # full-E block diagonal).
    heads_per_group = max(1, min(num_heads, max(1, mxu_lanes // Dh)))
    while num_heads % heads_per_group != 0:
        heads_per_group -= 1
    GW = heads_per_group * Dh

    inv_scale = 1.0 / float(Dh) ** 0.5
    eye = jnp.eye(heads_per_group, dtype=jnp.float32)
    # Block h == W.T; Wq also carries the 1/sqrt(Dh) softmax scale.
    wq_g = jnp.kron(eye, (wq.astype(jnp.float32) * inv_scale).T).astype(cdt)
    wk_g = jnp.kron(eye, wk.astype(jnp.float32).T).astype(cdt)
    wv_g = jnp.kron(eye, wv.astype(jnp.float32).T).astype(cdt)
    wo_t = wo.T.astype(cdt)
    bo2d = bo.reshape(1, E).astype(jnp.float32)

    # Pad S to a multiple of 128: lane-dense score matrices, (8,128)-aligned
    # Q tiles, and a pipelined qi axis even for ViT lengths like 197.  Padded
    # keys are masked inside the kernel; padded query rows are sliced off.
    S_pad = ((S + 127) // 128) * 128
    if S_pad != S:
        pad = ((0, 0), (0, S_pad - S), (0, 0))
        q_in = jnp.pad(query, pad)
        k_in = jnp.pad(key, pad)
        v_in = jnp.pad(value, pad)
    else:
        q_in, k_in, v_in = query, key, value

    TQ = _choose_q_tile(S_pad)
    grid = (B, S_pad // TQ)

    kernel = functools.partial(
        _mha_kernel, num_heads=num_heads, heads_per_group=heads_per_group,
        seq_len=S, compute_dtype=cdt)

    q_spec = pl.BlockSpec((1, TQ, E), lambda b, qi: (b, qi, 0))
    kv_spec = pl.BlockSpec((1, S_pad, E), lambda b, qi: (b, 0, 0))

    def build_call(single_buffer_weights):
        def const_spec(shape):
            # Constant-index weights/bias never re-DMA; the second pipeline
            # buffer is pure VMEM waste (matters most under v7x's 64 MiB).
            if single_buffer_weights:
                return pl.BlockSpec(shape, lambda b, qi: (0, 0),
                                    pipeline_mode=pl.Buffered(1))
            return pl.BlockSpec(shape, lambda b, qi: (0, 0))

        return pl.pallas_call(
            kernel,
            out_shape=jax.ShapeDtypeStruct((B, S_pad, E), query.dtype),
            grid_spec=pltpu.PrefetchScalarGridSpec(
                num_scalar_prefetch=0,
                grid=grid,
                in_specs=[q_spec, kv_spec, kv_spec,
                          const_spec((GW, GW)), const_spec((GW, GW)),
                          const_spec((GW, GW)), const_spec((E, E)),
                          const_spec((1, E))],
                out_specs=q_spec,
                scratch_shapes=[pltpu.VMEM((S_pad, E), cdt),        # projected K
                                pltpu.VMEM((S_pad, E), cdt),        # projected V
                                pltpu.VMEM((TQ, E), jnp.float32)],  # out acc
            ),
            compiler_params=pltpu.CompilerParams(
                # Batch axis is megacore-shardable; qi must stay sequential
                # (it carries the projected-K/V scratch across Q tiles).
                dimension_semantics=("parallel", "arbitrary"),
                vmem_limit_bytes=_vmem_limit_bytes()),
        )(q_in, k_in, v_in, wq_g, wk_g, wv_g, wo_t, bo2d)

    try:
        out = build_call(single_buffer_weights=hasattr(pl, "Buffered"))
    except Exception:
        # pl.Buffered(1) / pipeline_mode unsupported on this jax version.
        out = build_call(single_buffer_weights=False)

    if S_pad != S:
        out = out[:, :S, :]
    return out


def _reference(query, key, value, params, *, num_heads):
    """Pure-JAX replica of the PyTorch forward (for verification)."""
    B, S, E = query.shape
    Dh = E // num_heads
    wq, wk, wv, wo, bo = params
    q = query.reshape(B, S, num_heads, Dh) @ wq.T
    k = key.reshape(B, S, num_heads, Dh) @ wk.T
    v = value.reshape(B, S, num_heads, Dh) @ wv.T
    q = q.transpose(0, 2, 1, 3)  # (B, H, S, Dh)
    k = k.transpose(0, 2, 1, 3)
    v = v.transpose(0, 2, 1, 3)
    s = jnp.einsum("bhqd,bhkd->bhqk", q, k) / (Dh ** 0.5)
    p = jax.nn.softmax(s, axis=-1)
    attn = jnp.einsum("bhqk,bhkd->bhqd", p, v)
    attn = attn.transpose(0, 2, 1, 3).reshape(B, S, E)
    return attn @ wo.T + bo


if __name__ == "__main__":
    # Small shapes consistent with the module: embed_size % num_heads == 0.
    B, S, E, H = 2, 8, 32, 4
    Dh = E // H

    key0 = jax.random.PRNGKey(0)
    kq, kk, kv, k_wq, k_wk, k_wv, k_wo, k_bo = jax.random.split(key0, 8)

    query = jax.random.normal(kq, (B, S, E), dtype=jnp.float32)
    key_in = jax.random.normal(kk, (B, S, E), dtype=jnp.float32)
    value = jax.random.normal(kv, (B, S, E), dtype=jnp.float32)

    # Deterministic parameter init (PyTorch Linear weight layout: (out, in)).
    wq = jax.random.normal(k_wq, (Dh, Dh), dtype=jnp.float32) * 0.1
    wk = jax.random.normal(k_wk, (Dh, Dh), dtype=jnp.float32) * 0.1
    wv = jax.random.normal(k_wv, (Dh, Dh), dtype=jnp.float32) * 0.1
    wo = jax.random.normal(k_wo, (E, E), dtype=jnp.float32) * 0.1
    bo = jax.random.normal(k_bo, (E,), dtype=jnp.float32) * 0.1
    params = (wq, wk, wv, wo, bo)

    ref = _reference(query, key_in, value, params, num_heads=H)

    # Full-precision path: matches the f32 PyTorch module numerics tightly.
    out_f32 = multi_head_attention(query, key_in, value, params, num_heads=H,
                                   compute_dtype=jnp.float32)
    out_f32 = jax.block_until_ready(out_f32)
    assert out_f32.shape == (B, S, E)
    assert jnp.allclose(out_f32, ref, atol=1e-4, rtol=1e-4), "f32 mismatch"

    # Mixed-precision fast path: bf16 MXU operands, f32 accumulation/softmax.
    out_bf16 = multi_head_attention(query, key_in, value, params, num_heads=H,
                                    compute_dtype=jnp.bfloat16)
    out_bf16 = jax.block_until_ready(out_bf16)
    assert jnp.allclose(out_bf16, ref, atol=5e-2, rtol=5e-2), "bf16 mismatch"

    print("KERNEL_OK")
</pallas_src>

<mosaic_0001>
module attributes {stable_mosaic.version = 11 : i64} {
  func.func @_mha_kernel(%arg0: i32, %arg1: i32, %arg2: memref<1x128x32xf32, #tpu.memory_space<vmem>>, %arg3: memref<1x128x32xf32, #tpu.memory_space<vmem>>, %arg4: memref<1x128x32xf32, #tpu.memory_space<vmem>>, %arg5: memref<32x32xf32, #tpu.memory_space<vmem>>, %arg6: memref<32x32xf32, #tpu.memory_space<vmem>>, %arg7: memref<32x32xf32, #tpu.memory_space<vmem>>, %arg8: memref<32x32xf32, #tpu.memory_space<vmem>>, %arg9: memref<1x32xf32, #tpu.memory_space<vmem>>, %arg10: memref<1x128x32xf32, #tpu.memory_space<vmem>>, %arg11: memref<128x32xf32, #tpu.memory_space<vmem>>, %arg12: memref<128x32xf32, #tpu.memory_space<vmem>>, %arg13: memref<128x32xf32, #tpu.memory_space<vmem>>) attributes {dimension_semantics = [#tpu.dimension_semantics<parallel>, #tpu.dimension_semantics<arbitrary>], iteration_bounds = array<i64: 2, 1>, scalar_prefetch = 0 : i64, scratch_operands = 3 : i64, tpu.core_type = #tpu.core_type<tc>, window_params = [{transform_indices = @transform_0, window_bounds = array<i64: 1, 128, 32>}, {transform_indices = @transform_1, window_bounds = array<i64: 1, 128, 32>}, {transform_indices = @transform_2, window_bounds = array<i64: 1, 128, 32>}, {pipeline_mode = #tpu.pipeline_mode<synchronous>, transform_indices = @transform_3, window_bounds = array<i64: 32, 32>}, {pipeline_mode = #tpu.pipeline_mode<synchronous>, transform_indices = @transform_4, window_bounds = array<i64: 32, 32>}, {pipeline_mode = #tpu.pipeline_mode<synchronous>, transform_indices = @transform_5, window_bounds = array<i64: 32, 32>}, {pipeline_mode = #tpu.pipeline_mode<synchronous>, transform_indices = @transform_6, window_bounds = array<i64: 32, 32>}, {pipeline_mode = #tpu.pipeline_mode<synchronous>, transform_indices = @transform_7, window_bounds = array<i64: 1, 32>}, {transform_indices = @transform_8, window_bounds = array<i64: 1, 128, 32>}]} {
    %c0_i32 = arith.constant 0 : i32
    %0 = arith.cmpi eq, %arg1, %c0_i32 : i32
    %1 = arith.extui %0 : i1 to i32
    %c0_i32_0 = arith.constant 0 : i32
    %2 = arith.cmpi ne, %1, %c0_i32_0 : i32
    scf.if %2 {
      %c0_75 = arith.constant 0 : index
      %c0_76 = arith.constant 0 : index
      %c0_77 = arith.constant 0 : index
      %106 = vector.load %arg3[%c0_75, %c0_76, %c0_77] : memref<1x128x32xf32, #tpu.memory_space<vmem>>, vector<1x128x32xf32>
      %107 = vector.shape_cast %106 : vector<1x128x32xf32> to vector<128x32xf32>
      %c0_78 = arith.constant 0 : index
      %c0_79 = arith.constant 0 : index
      %c0_80 = arith.constant 0 : index
      %108 = vector.load %arg4[%c0_78, %c0_79, %c0_80] : memref<1x128x32xf32, #tpu.memory_space<vmem>>, vector<1x128x32xf32>
      %109 = vector.shape_cast %108 : vector<1x128x32xf32> to vector<128x32xf32>
      %c0_81 = arith.constant 0 : index
      %c0_82 = arith.constant 0 : index
      %110 = vector.load %arg6[%c0_81, %c0_82] : memref<32x32xf32, #tpu.memory_space<vmem>>, vector<32x32xf32>
      %cst_83 = arith.constant dense<0.000000e+00> : vector<128x32xf32>
      %111 = tpu.matmul %107, %110, %cst_83 {dimension_numbers = #tpu.dot_dimension_numbers<[1], [0], [0], [1], [0, 0, 1, 1], [], []>} : vector<128x32xf32>, vector<32x32xf32>, vector<128x32xf32> -> vector<128x32xf32>
      %c0_84 = arith.constant 0 : index
      %c0_85 = arith.constant 0 : index
      %112 = vector.load %arg11[%c0_84, %c0_85] : memref<128x32xf32, #tpu.memory_space<vmem>>, vector<128x32xf32>
      tpu.vector_store %arg11[%c0_84, %c0_85], %111 {strides = array<i32>} : memref<128x32xf32, #tpu.memory_space<vmem>>, vector<128x32xf32>,
      %c0_86 = arith.constant 0 : index
      %c0_87 = arith.constant 0 : index
      %113 = vector.load %arg7[%c0_86, %c0_87] : memref<32x32xf32, #tpu.memory_space<vmem>>, vector<32x32xf32>
      %cst_88 = arith.constant dense<0.000000e+00> : vector<128x32xf32>
      %114 = tpu.matmul %109, %113, %cst_88 {dimension_numbers = #tpu.dot_dimension_numbers<[1], [0], [0], [1], [0, 0, 1, 1], [], []>} : vector<128x32xf32>, vector<32x32xf32>, vector<128x32xf32> -> vector<128x32xf32>
      %c0_89 = arith.constant 0 : index
      %c0_90 = arith.constant 0 : index
      %115 = vector.load %arg12[%c0_89, %c0_90] : memref<128x32xf32, #tpu.memory_space<vmem>>, vector<128x32xf32>
      tpu.vector_store %arg12[%c0_89, %c0_90], %114 {strides = array<i32>} : memref<128x32xf32, #tpu.memory_space<vmem>>, vector<128x32xf32>,
    } else {
    }
    %c0 = arith.constant 0 : index
    %c0_1 = arith.constant 0 : index
    %3 = vector.load %arg9[%c0, %c0_1] : memref<1x32xf32, #tpu.memory_space<vmem>>, vector<1x32xf32>
    %4 = vector.shape_cast %3 : vector<1x32xf32> to vector<1x32xf32>
    %5 = vector.broadcast %4 : vector<1x32xf32> to vector<128x32xf32>
    %c0_2 = arith.constant 0 : index
    %c0_3 = arith.constant 0 : index
    %6 = vector.load %arg13[%c0_2, %c0_3] : memref<128x32xf32, #tpu.memory_space<vmem>>, vector<128x32xf32>
    tpu.vector_store %arg13[%c0_2, %c0_3], %5 {strides = array<i32>} : memref<128x32xf32, #tpu.memory_space<vmem>>, vector<128x32xf32>,
    %7 = tpu.iota {dimensions = array<i32: 1>} : vector<128x128xi32>
    %c8_i32 = arith.constant 8 : i32
    %8 = vector.broadcast %c8_i32 : i32 to vector<128x128xi32>
    %9 = arith.cmpi slt, %7, %8 : vector<128x128xi32>
    %c0_4 = arith.constant 0 : index
    %c0_5 = arith.constant 0 : index
    %c0_6 = arith.constant 0 : index
    %10 = vector.load %arg2[%c0_4, %c0_5, %c0_6] : memref<1x128x32xf32, #tpu.memory_space<vmem>>, vector<1x128x32xf32>
    %11 = vector.shape_cast %10 : vector<1x128x32xf32> to vector<128x32xf32>
    %c0_7 = arith.constant 0 : index
    %c0_8 = arith.constant 0 : index
    %12 = vector.load %arg5[%c0_7, %c0_8] : memref<32x32xf32, #tpu.memory_space<vmem>>, vector<32x32xf32>
    %cst = arith.constant dense<0.000000e+00> : vector<128x32xf32>
    %13 = tpu.matmul %11, %12, %cst {dimension_numbers = #tpu.dot_dimension_numbers<[1], [0], [0], [1], [0, 0, 1, 1], [], []>} : vector<128x32xf32>, vector<32x32xf32>, vector<128x32xf32> -> vector<128x32xf32>
    %14 = vector.extract_strided_slice %13 {offsets = [0, 0], sizes = [128, 8], strides = [1, 1]} : vector<128x32xf32> to vector<128x8xf32>
    %c0_9 = arith.constant 0 : index
    %c0_10 = arith.constant 0 : index
    %15 = vector.load %arg11[%c0_9, %c0_10] : memref<128x32xf32, #tpu.memory_space<vmem>>, vector<128x8xf32>
    %c0_11 = arith.constant 0 : index
    %c0_12 = arith.constant 0 : index
    %16 = vector.load %arg12[%c0_11, %c0_12] : memref<128x32xf32, #tpu.memory_space<vmem>>, vector<128x8xf32>
    %cst_13 = arith.constant dense<0.000000e+00> : vector<128x128xf32>
    %17 = tpu.matmul %14, %15, %cst_13 {dimension_numbers = #tpu.dot_dimension_numbers<[1], [1], [0], [0], [0, 0, 1, 0], [], []>} : vector<128x8xf32>, vector<128x8xf32>, vector<128x128xf32> -> vector<128x128xf32>
    %cst_14 = arith.constant -1.000000e+30 : f32
    %18 = vector.broadcast %cst_14 : f32 to vector<128x128xf32>
    %19 = arith.select %9, %17, %18 : vector<128x128xi1>, vector<128x128xf32>
    %cst_15 = arith.constant dense<0xFF800000> : vector<128xf32>
    %20 = vector.multi_reduction <maximumf>, %19, %cst_15 [1] : vector<128x128xf32> to vector<128xf32>
    %21 = vector.shape_cast %20 : vector<128xf32> to vector<128x1xf32>
    %22 = vector.broadcast %21 : vector<128x1xf32> to vector<128x128xf32>
    %23 = arith.subf %19, %22 : vector<128x128xf32>
    %24 = math.exp %23 : vector<128x128xf32>
    %cst_16 = arith.constant dense<0.000000e+00> : vector<128xf32>
    %25 = vector.multi_reduction <add>, %24, %cst_16 [1] : vector<128x128xf32> to vector<128xf32>
    %26 = vector.shape_cast %25 : vector<128xf32> to vector<128x1xf32>
    %27 = tpu.reciprocal %26 : vector<128x1xf32> -> vector<128x1xf32>
    %28 = vector.broadcast %27 : vector<128x1xf32> to vector<128x128xf32>
    %29 = arith.mulf %24, %28 : vector<128x128xf32>
    %cst_17 = arith.constant dense<0.000000e+00> : vector<128x8xf32>
    %30 = tpu.matmul %29, %16, %cst_17 {dimension_numbers = #tpu.dot_dimension_numbers<[1], [0], [0], [1], [0, 0, 1, 1], [], []>} : vector<128x128xf32>, vector<128x8xf32>, vector<128x8xf32> -> vector<128x8xf32>
    %c0_18 = arith.constant 0 : index
    %c0_19 = arith.constant 0 : index
    %31 = vector.load %arg13[%c0_18, %c0_19] : memref<128x32xf32, #tpu.memory_space<vmem>>, vector<128x32xf32>
    %c0_20 = arith.constant 0 : index
    %c0_21 = arith.constant 0 : index
    %32 = vector.load %arg8[%c0_20, %c0_21] : memref<32x32xf32, #tpu.memory_space<vmem>>, vector<8x32xf32>
    %cst_22 = arith.constant dense<0.000000e+00> : vector<128x32xf32>
    %33 = tpu.matmul %30, %32, %cst_22 {dimension_numbers = #tpu.dot_dimension_numbers<[1], [0], [0], [1], [0, 0, 1, 1], [], []>} : vector<128x8xf32>, vector<8x32xf32>, vector<128x32xf32> -> vector<128x32xf32>
    %34 = arith.addf %31, %33 : vector<128x32xf32>
    %c0_23 = arith.constant 0 : index
    %c0_24 = arith.constant 0 : index
    %35 = vector.load %arg13[%c0_23, %c0_24] : memref<128x32xf32, #tpu.memory_space<vmem>>, vector<128x32xf32>
    tpu.vector_store %arg13[%c0_23, %c0_24], %34 {strides = array<i32>} : memref<128x32xf32, #tpu.memory_space<vmem>>, vector<128x32xf32>,
    %36 = vector.extract_strided_slice %13 {offsets = [0, 8], sizes = [128, 8], strides = [1, 1]} : vector<128x32xf32> to vector<128x8xf32>
    %c0_25 = arith.constant 0 : index
    %c8 = arith.constant 8 : index
    %37 = vector.load %arg11[%c0_25, %c8] : memref<128x32xf32, #tpu.memory_space<vmem>>, vector<128x8xf32>
    %c0_26 = arith.constant 0 : index
    %c8_27 = arith.constant 8 : index
    %38 = vector.load %arg12[%c0_26, %c8_27] : memref<128x32xf32, #tpu.memory_space<vmem>>, vector<128x8xf32>
    %cst_28 = arith.constant dense<0.000000e+00> : vector<128x128xf32>
    %39 = tpu.matmul %36, %37, %cst_28 {dimension_numbers = #tpu.dot_dimension_numbers<[1], [1], [0], [0], [0, 0, 1, 0], [], []>} : vector<128x8xf32>, vector<128x8xf32>, vector<128x128xf32> -> vector<128x128xf32>
    %cst_29 = arith.constant -1.000000e+30 : f32
    %40 = vector.broadcast %cst_29 : f32 to vector<128x128xf32>
    %41 = arith.select %9, %39, %40 : vector<128x128xi1>, vector<128x128xf32>
    %cst_30 = arith.constant dense<0xFF800000> : vector<128xf32>
    %42 = vector.multi_reduction <maximumf>, %41, %cst_30 [1] : vector<128x128xf32> to vector<128xf32>
    %43 = vector.shape_cast %42 : vector<128xf32> to vector<128x1xf32>
    %44 = vector.broadcast %43 : vector<128x1xf32> to vector<128x128xf32>
    %45 = arith.subf %41, %44 : vector<128x128xf32>
    %46 = math.exp %45 : vector<128x128xf32>
    %cst_31 = arith.constant dense<0.000000e+00> : vector<128xf32>
    %47 = vector.multi_reduction <add>, %46, %cst_31 [1] : vector<128x128xf32> to vector<128xf32>
    %48 = vector.shape_cast %47 : vector<128xf32> to vector<128x1xf32>
    %49 = tpu.reciprocal %48 : vector<128x1xf32> -> vector<128x1xf32>
    %50 = vector.broadcast %49 : vector<128x1xf32> to vector<128x128xf32>
    %51 = arith.mulf %46, %50 : vector<128x128xf32>
    %cst_32 = arith.constant dense<0.000000e+00> : vector<128x8xf32>
    %52 = tpu.matmul %51, %38, %cst_32 {dimension_numbers = #tpu.dot_dimension_numbers<[1], [0], [0], [1], [0, 0, 1, 1], [], []>} : vector<128x128xf32>, vector<128x8xf32>, vector<128x8xf32> -> vector<128x8xf32>
    %c0_33 = arith.constant 0 : index
    %c0_34 = arith.constant 0 : index
    %53 = vector.load %arg13[%c0_33, %c0_34] : memref<128x32xf32, #tpu.memory_space<vmem>>, vector<128x32xf32>
    %c8_35 = arith.constant 8 : index
    %c0_36 = arith.constant 0 : index
    %54 = vector.load %arg8[%c8_35, %c0_36] : memref<32x32xf32, #tpu.memory_space<vmem>>, vector<8x32xf32>
    %cst_37 = arith.constant dense<0.000000e+00> : vector<128x32xf32>
    %55 = tpu.matmul %52, %54, %cst_37 {dimension_numbers = #tpu.dot_dimension_numbers<[1], [0], [0], [1], [0, 0, 1, 1], [], []>} : vector<128x8xf32>, vector<8x32xf32>, vector<128x32xf32> -> vector<128x32xf32>
    %56 = arith.addf %53, %55 : vector<128x32xf32>
    %c0_38 = arith.constant 0 : index
    %c0_39 = arith.constant 0 : index
    %57 = vector.load %arg13[%c0_38, %c0_39] : memref<128x32xf32, #tpu.memory_space<vmem>>, vector<128x32xf32>
    tpu.vector_store %arg13[%c0_38, %c0_39], %56 {strides = array<i32>} : memref<128x32xf32, #tpu.memory_space<vmem>>, vector<128x32xf32>,
    %58 = vector.extract_strided_slice %13 {offsets = [0, 16], sizes = [128, 8], strides = [1, 1]} : vector<128x32xf32> to vector<128x8xf32>
    %c0_40 = arith.constant 0 : index
    %c16 = arith.constant 16 : index
    %59 = vector.load %arg11[%c0_40, %c16] : memref<128x32xf32, #tpu.memory_space<vmem>>, vector<128x8xf32>
    %c0_41 = arith.constant 0 : index
    %c16_42 = arith.constant 16 : index
    %60 = vector.load %arg12[%c0_41, %c16_42] : memref<128x32xf32, #tpu.memory_space<vmem>>, vector<128x8xf32>
    %cst_43 = arith.constant dense<0.000000e+00> : vector<128x128xf32>
    %61 = tpu.matmul %58, %59, %cst_43 {dimension_numbers = #tpu.dot_dimension_numbers<[1], [1], [0], [0], [0, 0, 1, 0], [], []>} : vector<128x8xf32>, vector<128x8xf32>, vector<128x128xf32> -> vector<128x128xf32>
    %cst_44 = arith.constant -1.000000e+30 : f32
    %62 = vector.broadcast %cst_44 : f32 to vector<128x128xf32>
    %63 = arith.select %9, %61, %62 : vector<128x128xi1>, vector<128x128xf32>
    %cst_45 = arith.constant dense<0xFF800000> : vector<128xf32>
    %64 = vector.multi_reduction <maximumf>, %63, %cst_45 [1] : vector<128x128xf32> to vector<128xf32>
    %65 = vector.shape_cast %64 : vector<128xf32> to vector<128x1xf32>
    %66 = vector.broadcast %65 : vector<128x1xf32> to vector<128x128xf32>
    %67 = arith.subf %63, %66 : vector<128x128xf32>
    %68 = math.exp %67 : vector<128x128xf32>
    %cst_46 = arith.constant dense<0.000000e+00> : vector<128xf32>
    %69 = vector.multi_reduction <add>, %68, %cst_46 [1] : vector<128x128xf32> to vector<128xf32>
    %70 = vector.shape_cast %69 : vector<128xf32> to vector<128x1xf32>
    %71 = tpu.reciprocal %70 : vector<128x1xf32> -> vector<128x1xf32>
    %72 = vector.broadcast %71 : vector<128x1xf32> to vector<128x128xf32>
    %73 = arith.mulf %68, %72 : vector<128x128xf32>
    %cst_47 = arith.constant dense<0.000000e+00> : vector<128x8xf32>
    %74 = tpu.matmul %73, %60, %cst_47 {dimension_numbers = #tpu.dot_dimension_numbers<[1], [0], [0], [1], [0, 0, 1, 1], [], []>} : vector<128x128xf32>, vector<128x8xf32>, vector<128x8xf32> -> vector<128x8xf32>
    %c0_48 = arith.constant 0 : index
    %c0_49 = arith.constant 0 : index
    %75 = vector.load %arg13[%c0_48, %c0_49] : memref<128x32xf32, #tpu.memory_space<vmem>>, vector<128x32xf32>
    %c16_50 = arith.constant 16 : index
    %c0_51 = arith.constant 0 : index
    %76 = vector.load %arg8[%c16_50, %c0_51] : memref<32x32xf32, #tpu.memory_space<vmem>>, vector<8x32xf32>
    %cst_52 = arith.constant dense<0.000000e+00> : vector<128x32xf32>
    %77 = tpu.matmul %74, %76, %cst_52 {dimension_numbers = #tpu.dot_dimension_numbers<[1], [0], [0], [1], [0, 0, 1, 1], [], []>} : vector<128x8xf32>, vector<8x32xf32>, vector<128x32xf32> -> vector<128x32xf32>
    %78 = arith.addf %75, %77 : vector<128x32xf32>
    %c0_53 = arith.constant 0 : index
    %c0_54 = arith.constant 0 : index
    %79 = vector.load %arg13[%c0_53, %c0_54] : memref<128x32xf32, #tpu.memory_space<vmem>>, vector<128x32xf32>
    tpu.vector_store %arg13[%c0_53, %c0_54], %78 {strides = array<i32>} : memref<128x32xf32, #tpu.memory_space<vmem>>, vector<128x32xf32>,
    %80 = vector.extract_strided_slice %13 {offsets = [0, 24], sizes = [128, 8], strides = [1, 1]} : vector<128x32xf32> to vector<128x8xf32>
    %c0_55 = arith.constant 0 : index
    %c24 = arith.constant 24 : index
    %81 = vector.load %arg11[%c0_55, %c24] : memref<128x32xf32, #tpu.memory_space<vmem>>, vector<128x8xf32>
    %c0_56 = arith.constant 0 : index
    %c24_57 = arith.constant 24 : index
    %82 = vector.load %arg12[%c0_56, %c24_57] : memref<128x32xf32, #tpu.memory_space<vmem>>, vector<128x8xf32>
    %cst_58 = arith.constant dense<0.000000e+00> : vector<128x128xf32>
    %83 = tpu.matmul %80, %81, %cst_58 {dimension_numbers = #tpu.dot_dimension_numbers<[1], [1], [0], [0], [0, 0, 1, 0], [], []>} : vector<128x8xf32>, vector<128x8xf32>, vector<128x128xf32> -> vector<128x128xf32>
    %cst_59 = arith.constant -1.000000e+30 : f32
    %84 = vector.broadcast %cst_59 : f32 to vector<128x128xf32>
    %85 = arith.select %9, %83, %84 : vector<128x128xi1>, vector<128x128xf32>
    %cst_60 = arith.constant dense<0xFF800000> : vector<128xf32>
    %86 = vector.multi_reduction <maximumf>, %85, %cst_60 [1] : vector<128x128xf32> to vector<128xf32>
    %87 = vector.shape_cast %86 : vector<128xf32> to vector<128x1xf32>
    %88 = vector.broadcast %87 : vector<128x1xf32> to vector<128x128xf32>
    %89 = arith.subf %85, %88 : vector<128x128xf32>
    %90 = math.exp %89 : vector<128x128xf32>
    %cst_61 = arith.constant dense<0.000000e+00> : vector<128xf32>
    %91 = vector.multi_reduction <add>, %90, %cst_61 [1] : vector<128x128xf32> to vector<128xf32>
    %92 = vector.shape_cast %91 : vector<128xf32> to vector<128x1xf32>
    %93 = tpu.reciprocal %92 : vector<128x1xf32> -> vector<128x1xf32>
    %94 = vector.broadcast %93 : vector<128x1xf32> to vector<128x128xf32>
    %95 = arith.mulf %90, %94 : vector<128x128xf32>
    %cst_62 = arith.constant dense<0.000000e+00> : vector<128x8xf32>
    %96 = tpu.matmul %95, %82, %cst_62 {dimension_numbers = #tpu.dot_dimension_numbers<[1], [0], [0], [1], [0, 0, 1, 1], [], []>} : vector<128x128xf32>, vector<128x8xf32>, vector<128x8xf32> -> vector<128x8xf32>
    %c0_63 = arith.constant 0 : index
    %c0_64 = arith.constant 0 : index
    %97 = vector.load %arg13[%c0_63, %c0_64] : memref<128x32xf32, #tpu.memory_space<vmem>>, vector<128x32xf32>
    %c24_65 = arith.constant 24 : index
    %c0_66 = arith.constant 0 : index
    %98 = vector.load %arg8[%c24_65, %c0_66] : memref<32x32xf32, #tpu.memory_space<vmem>>, vector<8x32xf32>
    %cst_67 = arith.constant dense<0.000000e+00> : vector<128x32xf32>
    %99 = tpu.matmul %96, %98, %cst_67 {dimension_numbers = #tpu.dot_dimension_numbers<[1], [0], [0], [1], [0, 0, 1, 1], [], []>} : vector<128x8xf32>, vector<8x32xf32>, vector<128x32xf32> -> vector<128x32xf32>
    %100 = arith.addf %97, %99 : vector<128x32xf32>
    %c0_68 = arith.constant 0 : index
    %c0_69 = arith.constant 0 : index
    %101 = vector.load %arg13[%c0_68, %c0_69] : memref<128x32xf32, #tpu.memory_space<vmem>>, vector<128x32xf32>
    tpu.vector_store %arg13[%c0_68, %c0_69], %100 {strides = array<i32>} : memref<128x32xf32, #tpu.memory_space<vmem>>, vector<128x32xf32>,
    %c0_70 = arith.constant 0 : index
    %c0_71 = arith.constant 0 : index
    %102 = vector.load %arg13[%c0_70, %c0_71] : memref<128x32xf32, #tpu.memory_space<vmem>>, vector<128x32xf32>
    %c0_72 = arith.constant 0 : index
    %c0_73 = arith.constant 0 : index
    %c0_74 = arith.constant 0 : index
    %103 = vector.load %arg10[%c0_72, %c0_73, %c0_74] : memref<1x128x32xf32, #tpu.memory_space<vmem>>, vector<1x128x32xf32>
    %104 = vector.shape_cast %103 : vector<1x128x32xf32> to vector<128x32xf32>
    %105 = vector.shape_cast %102 : vector<128x32xf32> to vector<1x128x32xf32>
    tpu.vector_store %arg10[%c0_72, %c0_73, %c0_74], %105 {strides = array<i32>} : memref<1x128x32xf32, #tpu.memory_space<vmem>>, vector<1x128x32xf32>,
    return
  }
  func.func @transform_0(%arg0: i32, %arg1: i32) -> (i32, i32, i32) {
    %c0_i32 = arith.constant 0 : i32
    %c0_i32_0 = arith.constant 0 : i32
    return %arg0, %arg1, %c0_i32 : i32, i32, i32
  }
  func.func @transform_1(%arg0: i32, %arg1: i32) -> (i32, i32, i32) {
    %c0_i32 = arith.constant 0 : i32
    %c0_i32_0 = arith.constant 0 : i32
    %c0_i32_1 = arith.constant 0 : i32
    return %arg0, %c0_i32, %c0_i32_0 : i32, i32, i32
  }
  func.func @transform_2(%arg0: i32, %arg1: i32) -> (i32, i32, i32) {
    %c0_i32 = arith.constant 0 : i32
    %c0_i32_0 = arith.constant 0 : i32
    %c0_i32_1 = arith.constant 0 : i32
    return %arg0, %c0_i32, %c0_i32_0 : i32, i32, i32
  }
  func.func @transform_3(%arg0: i32, %arg1: i32) -> (i32, i32) {
    %c0_i32 = arith.constant 0 : i32
    %c0_i32_0 = arith.constant 0 : i32
    %c0_i32_1 = arith.constant 0 : i32
    return %c0_i32, %c0_i32_0 : i32, i32
  }
  func.func @transform_4(%arg0: i32, %arg1: i32) -> (i32, i32) {
    %c0_i32 = arith.constant 0 : i32
    %c0_i32_0 = arith.constant 0 : i32
    %c0_i32_1 = arith.constant 0 : i32
    return %c0_i32, %c0_i32_0 : i32, i32
  }
  func.func @transform_5(%arg0: i32, %arg1: i32) -> (i32, i32) {
    %c0_i32 = arith.constant 0 : i32
    %c0_i32_0 = arith.constant 0 : i32
    %c0_i32_1 = arith.constant 0 : i32
    return %c0_i32, %c0_i32_0 : i32, i32
  }
  func.func @transform_6(%arg0: i32, %arg1: i32) -> (i32, i32) {
    %c0_i32 = arith.constant 0 : i32
    %c0_i32_0 = arith.constant 0 : i32
    %c0_i32_1 = arith.constant 0 : i32
    return %c0_i32, %c0_i32_0 : i32, i32
  }
  func.func @transform_7(%arg0: i32, %arg1: i32) -> (i32, i32) {
    %c0_i32 = arith.constant 0 : i32
    %c0_i32_0 = arith.constant 0 : i32
    %c0_i32_1 = arith.constant 0 : i32
    return %c0_i32, %c0_i32_0 : i32, i32
  }
  func.func @transform_8(%arg0: i32, %arg1: i32) -> (i32, i32, i32) {
    %c0_i32 = arith.constant 0 : i32
    %c0_i32_0 = arith.constant 0 : i32
    return %arg0, %arg1, %c0_i32 : i32, i32, i32
  }
}

module attributes {stable_mosaic.version = 11 : i64} {
  func.func @_mha_kernel(%arg0: i32, %arg1: i32, %arg2: memref<1x128x32xf32, #tpu.memory_space<vmem>>, %arg3: memref<1x128x32xf32, #tpu.memory_space<vmem>>, %arg4: memref<1x128x32xf32, #tpu.memory_space<vmem>>, %arg5: memref<32x32xf32, #tpu.memory_space<vmem>>, %arg6: memref<32x32xf32, #tpu.memory_space<vmem>>, %arg7: memref<32x32xf32, #tpu.memory_space<vmem>>, %arg8: memref<32x32xf32, #tpu.memory_space<vmem>>, %arg9: memref<1x32xf32, #tpu.memory_space<vmem>>, %arg10: memref<1x128x32xf32, #tpu.memory_space<vmem>>, %arg11: memref<128x32xf32, #tpu.memory_space<vmem>>, %arg12: memref<128x32xf32, #tpu.memory_space<vmem>>, %arg13: memref<128x32xf32, #tpu.memory_space<vmem>>) attributes {dimension_semantics = [#tpu.dimension_semantics<parallel>, #tpu.dimension_semantics<arbitrary>], iteration_bounds = array<i64: 2, 1>, scalar_prefetch = 0 : i64, scratch_operands = 3 : i64, tpu.core_type = #tpu.core_type<tc>, window_params = [{transform_indices = @transform_0, window_bounds = array<i64: 1, 128, 32>}, {transform_indices = @transform_1, window_bounds = array<i64: 1, 128, 32>}, {transform_indices = @transform_2, window_bounds = array<i64: 1, 128, 32>}, {pipeline_mode = #tpu.pipeline_mode<synchronous>, transform_indices = @transform_3, window_bounds = array<i64: 32, 32>}, {pipeline_mode = #tpu.pipeline_mode<synchronous>, transform_indices = @transform_4, window_bounds = array<i64: 32, 32>}, {pipeline_mode = #tpu.pipeline_mode<synchronous>, transform_indices = @transform_5, window_bounds = array<i64: 32, 32>}, {pipeline_mode = #tpu.pipeline_mode<synchronous>, transform_indices = @transform_6, window_bounds = array<i64: 32, 32>}, {pipeline_mode = #tpu.pipeline_mode<synchronous>, transform_indices = @transform_7, window_bounds = array<i64: 1, 32>}, {transform_indices = @transform_8, window_bounds = array<i64: 1, 128, 32>}]} {
    %c0_i32 = arith.constant 0 : i32
    %0 = arith.cmpi eq, %arg1, %c0_i32 : i32
    %1 = arith.extui %0 : i1 to i32
    %c0_i32_0 = arith.constant 0 : i32
    %2 = arith.cmpi ne, %1, %c0_i32_0 : i32
    scf.if %2 {
      %c0_75 = arith.constant 0 : index
      %c0_76 = arith.constant 0 : index
      %c0_77 = arith.constant 0 : index
      %106 = vector.load %arg3[%c0_75, %c0_76, %c0_77] : memref<1x128x32xf32, #tpu.memory_space<vmem>>, vector<1x128x32xf32>
      %107 = vector.shape_cast %106 : vector<1x128x32xf32> to vector<128x32xf32>
      %c0_78 = arith.constant 0 : index
      %c0_79 = arith.constant 0 : index
      %c0_80 = arith.constant 0 : index
      %108 = vector.load %arg4[%c0_78, %c0_79, %c0_80] : memref<1x128x32xf32, #tpu.memory_space<vmem>>, vector<1x128x32xf32>
      %109 = vector.shape_cast %108 : vector<1x128x32xf32> to vector<128x32xf32>
      %c0_81 = arith.constant 0 : index
      %c0_82 = arith.constant 0 : index
      %110 = vector.load %arg6[%c0_81, %c0_82] : memref<32x32xf32, #tpu.memory_space<vmem>>, vector<32x32xf32>
      %cst_83 = arith.constant dense<0.000000e+00> : vector<128x32xf32>
      %111 = tpu.matmul %107, %110, %cst_83 {dimension_numbers = #tpu.dot_dimension_numbers<[1], [0], [0], [1], [0, 0, 1, 1], [], []>} : vector<128x32xf32>, vector<32x32xf32>, vector<128x32xf32> -> vector<128x32xf32>
      %c0_84 = arith.constant 0 : index
      %c0_85 = arith.constant 0 : index
      %112 = vector.load %arg11[%c0_84, %c0_85] : memref<128x32xf32, #tpu.memory_space<vmem>>, vector<128x32xf32>
      tpu.vector_store %arg11[%c0_84, %c0_85], %111 {strides = array<i32>} : memref<128x32xf32, #tpu.memory_space<vmem>>, vector<128x32xf32>,
      %c0_86 = arith.constant 0 : index
      %c0_87 = arith.constant 0 : index
      %113 = vector.load %arg7[%c0_86, %c0_87] : memref<32x32xf32, #tpu.memory_space<vmem>>, vector<32x32xf32>
      %cst_88 = arith.constant dense<0.000000e+00> : vector<128x32xf32>
      %114 = tpu.matmul %109, %113, %cst_88 {dimension_numbers = #tpu.dot_dimension_numbers<[1], [0], [0], [1], [0, 0, 1, 1], [], []>} : vector<128x32xf32>, vector<32x32xf32>, vector<128x32xf32> -> vector<128x32xf32>
      %c0_89 = arith.constant 0 : index
      %c0_90 = arith.constant 0 : index
      %115 = vector.load %arg12[%c0_89, %c0_90] : memref<128x32xf32, #tpu.memory_space<vmem>>, vector<128x32xf32>
      tpu.vector_store %arg12[%c0_89, %c0_90], %114 {strides = array<i32>} : memref<128x32xf32, #tpu.memory_space<vmem>>, vector<128x32xf32>,
    } else {
    }
    %c0 = arith.constant 0 : index
    %c0_1 = arith.constant 0 : index
    %3 = vector.load %arg9[%c0, %c0_1] : memref<1x32xf32, #tpu.memory_space<vmem>>, vector<1x32xf32>
    %4 = vector.shape_cast %3 : vector<1x32xf32> to vector<1x32xf32>
    %5 = vector.broadcast %4 : vector<1x32xf32> to vector<128x32xf32>
    %c0_2 = arith.constant 0 : index
    %c0_3 = arith.constant 0 : index
    %6 = vector.load %arg13[%c0_2, %c0_3] : memref<128x32xf32, #tpu.memory_space<vmem>>, vector<128x32xf32>
    tpu.vector_store %arg13[%c0_2, %c0_3], %5 {strides = array<i32>} : memref<128x32xf32, #tpu.memory_space<vmem>>, vector<128x32xf32>,
    %7 = tpu.iota {dimensions = array<i32: 1>} : vector<128x128xi32>
    %c8_i32 = arith.constant 8 : i32
    %8 = vector.broadcast %c8_i32 : i32 to vector<128x128xi32>
    %9 = arith.cmpi slt, %7, %8 : vector<128x128xi32>
    %c0_4 = arith.constant 0 : index
    %c0_5 = arith.constant 0 : index
    %c0_6 = arith.constant 0 : index
    %10 = vector.load %arg2[%c0_4, %c0_5, %c0_6] : memref<1x128x32xf32, #tpu.memory_space<vmem>>, vector<1x128x32xf32>
    %11 = vector.shape_cast %10 : vector<1x128x32xf32> to vector<128x32xf32>
    %c0_7 = arith.constant 0 : index
    %c0_8 = arith.constant 0 : index
    %12 = vector.load %arg5[%c0_7, %c0_8] : memref<32x32xf32, #tpu.memory_space<vmem>>, vector<32x32xf32>
    %cst = arith.constant dense<0.000000e+00> : vector<128x32xf32>
    %13 = tpu.matmul %11, %12, %cst {dimension_numbers = #tpu.dot_dimension_numbers<[1], [0], [0], [1], [0, 0, 1, 1], [], []>} : vector<128x32xf32>, vector<32x32xf32>, vector<128x32xf32> -> vector<128x32xf32>
    %14 = vector.extract_strided_slice %13 {offsets = [0, 0], sizes = [128, 8], strides = [1, 1]} : vector<128x32xf32> to vector<128x8xf32>
    %c0_9 = arith.constant 0 : index
    %c0_10 = arith.constant 0 : index
    %15 = vector.load %arg11[%c0_9, %c0_10] : memref<128x32xf32, #tpu.memory_space<vmem>>, vector<128x8xf32>
    %c0_11 = arith.constant 0 : index
    %c0_12 = arith.constant 0 : index
    %16 = vector.load %arg12[%c0_11, %c0_12] : memref<128x32xf32, #tpu.memory_space<vmem>>, vector<128x8xf32>
    %cst_13 = arith.constant dense<0.000000e+00> : vector<128x128xf32>
    %17 = tpu.matmul %14, %15, %cst_13 {dimension_numbers = #tpu.dot_dimension_numbers<[1], [1], [0], [0], [0, 0, 1, 0], [], []>} : vector<128x8xf32>, vector<128x8xf32>, vector<128x128xf32> -> vector<128x128xf32>
    %cst_14 = arith.constant -1.000000e+30 : f32
    %18 = vector.broadcast %cst_14 : f32 to vector<128x128xf32>
    %19 = arith.select %9, %17, %18 : vector<128x128xi1>, vector<128x128xf32>
    %cst_15 = arith.constant dense<0xFF800000> : vector<128xf32>
    %20 = vector.multi_reduction <maximumf>, %19, %cst_15 [1] : vector<128x128xf32> to vector<128xf32>
    %21 = vector.shape_cast %20 : vector<128xf32> to vector<128x1xf32>
    %22 = vector.broadcast %21 : vector<128x1xf32> to vector<128x128xf32>
    %23 = arith.subf %19, %22 : vector<128x128xf32>
    %24 = math.exp %23 : vector<128x128xf32>
    %cst_16 = arith.constant dense<0.000000e+00> : vector<128xf32>
    %25 = vector.multi_reduction <add>, %24, %cst_16 [1] : vector<128x128xf32> to vector<128xf32>
    %26 = vector.shape_cast %25 : vector<128xf32> to vector<128x1xf32>
    %27 = tpu.reciprocal %26 : vector<128x1xf32> -> vector<128x1xf32>
    %28 = vector.broadcast %27 : vector<128x1xf32> to vector<128x128xf32>
    %29 = arith.mulf %24, %28 : vector<128x128xf32>
    %cst_17 = arith.constant dense<0.000000e+00> : vector<128x8xf32>
    %30 = tpu.matmul %29, %16, %cst_17 {dimension_numbers = #tpu.dot_dimension_numbers<[1], [0], [0], [1], [0, 0, 1, 1], [], []>} : vector<128x128xf32>, vector<128x8xf32>, vector<128x8xf32> -> vector<128x8xf32>
    %c0_18 = arith.constant 0 : index
    %c0_19 = arith.constant 0 : index
    %31 = vector.load %arg13[%c0_18, %c0_19] : memref<128x32xf32, #tpu.memory_space<vmem>>, vector<128x32xf32>
    %c0_20 = arith.constant 0 : index
    %c0_21 = arith.constant 0 : index
    %32 = vector.load %arg8[%c0_20, %c0_21] : memref<32x32xf32, #tpu.memory_space<vmem>>, vector<8x32xf32>
    %cst_22 = arith.constant dense<0.000000e+00> : vector<128x32xf32>
    %33 = tpu.matmul %30, %32, %cst_22 {dimension_numbers = #tpu.dot_dimension_numbers<[1], [0], [0], [1], [0, 0, 1, 1], [], []>} : vector<128x8xf32>, vector<8x32xf32>, vector<128x32xf32> -> vector<128x32xf32>
    %34 = arith.addf %31, %33 : vector<128x32xf32>
    %c0_23 = arith.constant 0 : index
    %c0_24 = arith.constant 0 : index
    %35 = vector.load %arg13[%c0_23, %c0_24] : memref<128x32xf32, #tpu.memory_space<vmem>>, vector<128x32xf32>
    tpu.vector_store %arg13[%c0_23, %c0_24], %34 {strides = array<i32>} : memref<128x32xf32, #tpu.memory_space<vmem>>, vector<128x32xf32>,
    %36 = vector.extract_strided_slice %13 {offsets = [0, 8], sizes = [128, 8], strides = [1, 1]} : vector<128x32xf32> to vector<128x8xf32>
    %c0_25 = arith.constant 0 : index
    %c8 = arith.constant 8 : index
    %37 = vector.load %arg11[%c0_25, %c8] : memref<128x32xf32, #tpu.memory_space<vmem>>, vector<128x8xf32>
    %c0_26 = arith.constant 0 : index
    %c8_27 = arith.constant 8 : index
    %38 = vector.load %arg12[%c0_26, %c8_27] : memref<128x32xf32, #tpu.memory_space<vmem>>, vector<128x8xf32>
    %cst_28 = arith.constant dense<0.000000e+00> : vector<128x128xf32>
    %39 = tpu.matmul %36, %37, %cst_28 {dimension_numbers = #tpu.dot_dimension_numbers<[1], [1], [0], [0], [0, 0, 1, 0], [], []>} : vector<128x8xf32>, vector<128x8xf32>, vector<128x128xf32> -> vector<128x128xf32>
    %cst_29 = arith.constant -1.000000e+30 : f32
    %40 = vector.broadcast %cst_29 : f32 to vector<128x128xf32>
    %41 = arith.select %9, %39, %40 : vector<128x128xi1>, vector<128x128xf32>
    %cst_30 = arith.constant dense<0xFF800000> : vector<128xf32>
    %42 = vector.multi_reduction <maximumf>, %41, %cst_30 [1] : vector<128x128xf32> to vector<128xf32>
    %43 = vector.shape_cast %42 : vector<128xf32> to vector<128x1xf32>
    %44 = vector.broadcast %43 : vector<128x1xf32> to vector<128x128xf32>
    %45 = arith.subf %41, %44 : vector<128x128xf32>
    %46 = math.exp %45 : vector<128x128xf32>
    %cst_31 = arith.constant dense<0.000000e+00> : vector<128xf32>
    %47 = vector.multi_reduction <add>, %46, %cst_31 [1] : vector<128x128xf32> to vector<128xf32>
    %48 = vector.shape_cast %47 : vector<128xf32> to vector<128x1xf32>
    %49 = tpu.reciprocal %48 : vector<128x1xf32> -> vector<128x1xf32>
    %50 = vector.broadcast %49 : vector<128x1xf32> to vector<128x128xf32>
    %51 = arith.mulf %46, %50 : vector<128x128xf32>
    %cst_32 = arith.constant dense<0.000000e+00> : vector<128x8xf32>
    %52 = tpu.matmul %51, %38, %cst_32 {dimension_numbers = #tpu.dot_dimension_numbers<[1], [0], [0], [1], [0, 0, 1, 1], [], []>} : vector<128x128xf32>, vector<128x8xf32>, vector<128x8xf32> -> vector<128x8xf32>
    %c0_33 = arith.constant 0 : index
    %c0_34 = arith.constant 0 : index
    %53 = vector.load %arg13[%c0_33, %c0_34] : memref<128x32xf32, #tpu.memory_space<vmem>>, vector<128x32xf32>
    %c8_35 = arith.constant 8 : index
    %c0_36 = arith.constant 0 : index
    %54 = vector.load %arg8[%c8_35, %c0_36] : memref<32x32xf32, #tpu.memory_space<vmem>>, vector<8x32xf32>
    %cst_37 = arith.constant dense<0.000000e+00> : vector<128x32xf32>
    %55 = tpu.matmul %52, %54, %cst_37 {dimension_numbers = #tpu.dot_dimension_numbers<[1], [0], [0], [1], [0, 0, 1, 1], [], []>} : vector<128x8xf32>, vector<8x32xf32>, vector<128x32xf32> -> vector<128x32xf32>
    %56 = arith.addf %53, %55 : vector<128x32xf32>
    %c0_38 = arith.constant 0 : index
    %c0_39 = arith.constant 0 : index
    %57 = vector.load %arg13[%c0_38, %c0_39] : memref<128x32xf32, #tpu.memory_space<vmem>>, vector<128x32xf32>
    tpu.vector_store %arg13[%c0_38, %c0_39], %56 {strides = array<i32>} : memref<128x32xf32, #tpu.memory_space<vmem>>, vector<128x32xf32>,
    %58 = vector.extract_strided_slice %13 {offsets = [0, 16], sizes = [128, 8], strides = [1, 1]} : vector<128x32xf32> to vector<128x8xf32>
    %c0_40 = arith.constant 0 : index
    %c16 = arith.constant 16 : index
    %59 = vector.load %arg11[%c0_40, %c16] : memref<128x32xf32, #tpu.memory_space<vmem>>, vector<128x8xf32>
    %c0_41 = arith.constant 0 : index
    %c16_42 = arith.constant 16 : index
    %60 = vector.load %arg12[%c0_41, %c16_42] : memref<128x32xf32, #tpu.memory_space<vmem>>, vector<128x8xf32>
    %cst_43 = arith.constant dense<0.000000e+00> : vector<128x128xf32>
    %61 = tpu.matmul %58, %59, %cst_43 {dimension_numbers = #tpu.dot_dimension_numbers<[1], [1], [0], [0], [0, 0, 1, 0], [], []>} : vector<128x8xf32>, vector<128x8xf32>, vector<128x128xf32> -> vector<128x128xf32>
    %cst_44 = arith.constant -1.000000e+30 : f32
    %62 = vector.broadcast %cst_44 : f32 to vector<128x128xf32>
    %63 = arith.select %9, %61, %62 : vector<128x128xi1>, vector<128x128xf32>
    %cst_45 = arith.constant dense<0xFF800000> : vector<128xf32>
    %64 = vector.multi_reduction <maximumf>, %63, %cst_45 [1] : vector<128x128xf32> to vector<128xf32>
    %65 = vector.shape_cast %64 : vector<128xf32> to vector<128x1xf32>
    %66 = vector.broadcast %65 : vector<128x1xf32> to vector<128x128xf32>
    %67 = arith.subf %63, %66 : vector<128x128xf32>
    %68 = math.exp %67 : vector<128x128xf32>
    %cst_46 = arith.constant dense<0.000000e+00> : vector<128xf32>
    %69 = vector.multi_reduction <add>, %68, %cst_46 [1] : vector<128x128xf32> to vector<128xf32>
    %70 = vector.shape_cast %69 : vector<128xf32> to vector<128x1xf32>
    %71 = tpu.reciprocal %70 : vector<128x1xf32> -> vector<128x1xf32>
    %72 = vector.broadcast %71 : vector<128x1xf32> to vector<128x128xf32>
    %73 = arith.mulf %68, %72 : vector<128x128xf32>
    %cst_47 = arith.constant dense<0.000000e+00> : vector<128x8xf32>
    %74 = tpu.matmul %73, %60, %cst_47 {dimension_numbers = #tpu.dot_dimension_numbers<[1], [0], [0], [1], [0, 0, 1, 1], [], []>} : vector<128x128xf32>, vector<128x8xf32>, vector<128x8xf32> -> vector<128x8xf32>
    %c0_48 = arith.constant 0 : index
    %c0_49 = arith.constant 0 : index
    %75 = vector.load %arg13[%c0_48, %c0_49] : memref<128x32xf32, #tpu.memory_space<vmem>>, vector<128x32xf32>
    %c16_50 = arith.constant 16 : index
    %c0_51 = arith.constant 0 : index
    %76 = vector.load %arg8[%c16_50, %c0_51] : memref<32x32xf32, #tpu.memory_space<vmem>>, vector<8x32xf32>
    %cst_52 = arith.constant dense<0.000000e+00> : vector<128x32xf32>
    %77 = tpu.matmul %74, %76, %cst_52 {dimension_numbers = #tpu.dot_dimension_numbers<[1], [0], [0], [1], [0, 0, 1, 1], [], []>} : vector<128x8xf32>, vector<8x32xf32>, vector<128x32xf32> -> vector<128x32xf32>
    %78 = arith.addf %75, %77 : vector<128x32xf32>
    %c0_53 = arith.constant 0 : index
    %c0_54 = arith.constant 0 : index
    %79 = vector.load %arg13[%c0_53, %c0_54] : memref<128x32xf32, #tpu.memory_space<vmem>>, vector<128x32xf32>
    tpu.vector_store %arg13[%c0_53, %c0_54], %78 {strides = array<i32>} : memref<128x32xf32, #tpu.memory_space<vmem>>, vector<128x32xf32>,
    %80 = vector.extract_strided_slice %13 {offsets = [0, 24], sizes = [128, 8], strides = [1, 1]} : vector<128x32xf32> to vector<128x8xf32>
    %c0_55 = arith.constant 0 : index
    %c24 = arith.constant 24 : index
    %81 = vector.load %arg11[%c0_55, %c24] : memref<128x32xf32, #tpu.memory_space<vmem>>, vector<128x8xf32>
    %c0_56 = arith.constant 0 : index
    %c24_57 = arith.constant 24 : index
    %82 = vector.load %arg12[%c0_56, %c24_57] : memref<128x32xf32, #tpu.memory_space<vmem>>, vector<128x8xf32>
    %cst_58 = arith.constant dense<0.000000e+00> : vector<128x128xf32>
    %83 = tpu.matmul %80, %81, %cst_58 {dimension_numbers = #tpu.dot_dimension_numbers<[1], [1], [0], [0], [0, 0, 1, 0], [], []>} : vector<128x8xf32>, vector<128x8xf32>, vector<128x128xf32> -> vector<128x128xf32>
    %cst_59 = arith.constant -1.000000e+30 : f32
    %84 = vector.broadcast %cst_59 : f32 to vector<128x128xf32>
    %85 = arith.select %9, %83, %84 : vector<128x128xi1>, vector<128x128xf32>
    %cst_60 = arith.constant dense<0xFF800000> : vector<128xf32>
    %86 = vector.multi_reduction <maximumf>, %85, %cst_60 [1] : vector<128x128xf32> to vector<128xf32>
    %87 = vector.shape_cast %86 : vector<128xf32> to vector<128x1xf32>
    %88 = vector.broadcast %87 : vector<128x1xf32> to vector<128x128xf32>
    %89 = arith.subf %85, %88 : vector<128x128xf32>
    %90 = math.exp %89 : vector<128x128xf32>
    %cst_61 = arith.constant dense<0.000000e+00> : vector<128xf32>
    %91 = vector.multi_reduction <add>, %90, %cst_61 [1] : vector<128x128xf32> to vector<128xf32>
    %92 = vector.shape_cast %91 : vector<128xf32> to vector<128x1xf32>
    %93 = tpu.reciprocal %92 : vector<128x1xf32> -> vector<128x1xf32>
    %94 = vector.broadcast %93 : vector<128x1xf32> to vector<128x128xf32>
    %95 = arith.mulf %90, %94 : vector<128x128xf32>
    %cst_62 = arith.constant dense<0.000000e+00> : vector<128x8xf32>
    %96 = tpu.matmul %95, %82, %cst_62 {dimension_numbers = #tpu.dot_dimension_numbers<[1], [0], [0], [1], [0, 0, 1, 1], [], []>} : vector<128x128xf32>, vector<128x8xf32>, vector<128x8xf32> -> vector<128x8xf32>
    %c0_63 = arith.constant 0 : index
    %c0_64 = arith.constant 0 : index
    %97 = vector.load %arg13[%c0_63, %c0_64] : memref<128x32xf32, #tpu.memory_space<vmem>>, vector<128x32xf32>
    %c24_65 = arith.constant 24 : index
    %c0_66 = arith.constant 0 : index
    %98 = vector.load %arg8[%c24_65, %c0_66] : memref<32x32xf32, #tpu.memory_space<vmem>>, vector<8x32xf32>
    %cst_67 = arith.constant dense<0.000000e+00> : vector<128x32xf32>
    %99 = tpu.matmul %96, %98, %cst_67 {dimension_numbers = #tpu.dot_dimension_numbers<[1], [0], [0], [1], [0, 0, 1, 1], [], []>} : vector<128x8xf32>, vector<8x32xf32>, vector<128x32xf32> -> vector<128x32xf32>
    %100 = arith.addf %97, %99 : vector<128x32xf32>
    %c0_68 = arith.constant 0 : index
    %c0_69 = arith.constant 0 : index
    %101 = vector.load %arg13[%c0_68, %c0_69] : memref<128x32xf32, #tpu.memory_space<vmem>>, vector<128x32xf32>
    tpu.vector_store %arg13[%c0_68, %c0_69], %100 {strides = array<i32>} : memref<128x32xf32, #tpu.memory_space<vmem>>, vector<128x32xf32>,
    %c0_70 = arith.constant 0 : index
    %c0_71 = arith.constant 0 : index
    %102 = vector.load %arg13[%c0_70, %c0_71] : memref<128x32xf32, #tpu.memory_space<vmem>>, vector<128x32xf32>
    %c0_72 = arith.constant 0 : index
    %c0_73 = arith.constant 0 : index
    %c0_74 = arith.constant 0 : index
    %103 = vector.load %arg10[%c0_72, %c0_73, %c0_74] : memref<1x128x32xf32, #tpu.memory_space<vmem>>, vector<1x128x32xf32>
    %104 = vector.shape_cast %103 : vector<1x128x32xf32> to vector<128x32xf32>
    %105 = vector.shape_cast %102 : vector<128x32xf32> to vector<1x128x32xf32>
    tpu.vector_store %arg10[%c0_72, %c0_73, %c0_74], %105 {strides = array<i32>} : memref<1x128x32xf32, #tpu.memory_space<vmem>>, vector<1x128x32xf32>,
    return
  }
  func.func @transform_0(%arg0: i32, %arg1: i32) -> (i32, i32, i32) {
    %c0_i32 = arith.constant 0 : i32
    %c0_i32_0 = arith.constant 0 : i32
    return %arg0, %arg1, %c0_i32 : i32, i32, i32
  }
  func.func @transform_1(%arg0: i32, %arg1: i32) -> (i32, i32, i32) {
    %c0_i32 = arith.constant 0 : i32
    %c0_i32_0 = arith.constant 0 : i32
    %c0_i32_1 = arith.constant 0 : i32
    return %arg0, %c0_i32, %c0_i32_0 : i32, i32, i32
  }
  func.func @transform_2(%arg0: i32, %arg1: i32) -> (i32, i32, i32) {
    %c0_i32 = arith.constant 0 : i32
    %c0_i32_0 = arith.constant 0 : i32
    %c0_i32_1 = arith.constant 0 : i32
    return %arg0, %c0_i32, %c0_i32_0 : i32, i32, i32
  }
  func.func @transform_3(%arg0: i32, %arg1: i32) -> (i32, i32) {
    %c0_i32 = arith.constant 0 : i32
    %c0_i32_0 = arith.constant 0 : i32
    %c0_i32_1 = arith.constant 0 : i32
    return %c0_i32, %c0_i32_0 : i32, i32
  }
  func.func @transform_4(%arg0: i32, %arg1: i32) -> (i32, i32) {
    %c0_i32 = arith.constant 0 : i32
    %c0_i32_0 = arith.constant 0 : i32
    %c0_i32_1 = arith.constant 0 : i32
    return %c0_i32, %c0_i32_0 : i32, i32
  }
  func.func @transform_5(%arg0: i32, %arg1: i32) -> (i32, i32) {
    %c0_i32 = arith.constant 0 : i32
    %c0_i32_0 = arith.constant 0 : i32
    %c0_i32_1 = arith.constant 0 : i32
    return %c0_i32, %c0_i32_0 : i32, i32
  }
  func.func @transform_6(%arg0: i32, %arg1: i32) -> (i32, i32) {
    %c0_i32 = arith.constant 0 : i32
    %c0_i32_0 = arith.constant 0 : i32
    %c0_i32_1 = arith.constant 0 : i32
    return %c0_i32, %c0_i32_0 : i32, i32
  }
  func.func @transform_7(%arg0: i32, %arg1: i32) -> (i32, i32) {
    %c0_i32 = arith.constant 0 : i32
    %c0_i32_0 = arith.constant 0 : i32
    %c0_i32_1 = arith.constant 0 : i32
    return %c0_i32, %c0_i32_0 : i32, i32
  }
  func.func @transform_8(%arg0: i32, %arg1: i32) -> (i32, i32, i32) {
    %c0_i32 = arith.constant 0 : i32
    %c0_i32_0 = arith.constant 0 : i32
    return %arg0, %arg1, %c0_i32 : i32, i32, i32
  }
}

</mosaic_0001>

<llo_original>
// kernel: tpu_custom_call.1
$region0: #{tpu_custom_call.1}
  #allocation0 [shape = 'u32[]', space=smem, size = 0x4, offset = 0x4, fixed_abs, tag = 'smem constant byte address 0x4 - core index']
  #allocation1 [shape = 'u32[144,128]{1,0:T(1,128)}', space=vmem, size = 0x12000, scoped, tag = 'internal scratch']
  #allocation2 [shape = 'f32[128,32]{1,0:T(8,128)}', space=vmem, size = 0x10000, scoped, tag = 'scratch operand']
  #allocation3 [shape = 'f32[128,32]{1,0:T(8,128)}', space=vmem, size = 0x10000, scoped, tag = 'scratch operand']
  #allocation4 [shape = 'f32[128,32]{1,0:T(8,128)}', space=vmem, size = 0x10000, scoped, tag = 'scratch operand']
  %s0 = inlined_call_operand.vmem [shape: f32[2,128,32], index: 0, kind: input, shape index: {}]
  %s1 = inlined_call_operand.vmem [shape: f32[2,128,32], index: 1, kind: input, shape index: {}]
  %s2 = inlined_call_operand.vmem [shape: f32[2,128,32], index: 2, kind: input, shape index: {}]
  %s3 = inlined_call_operand.vmem [shape: f32[32,32], index: 3, kind: input, shape index: {}]
  %s4 = inlined_call_operand.vmem [shape: f32[32,32], index: 4, kind: input, shape index: {}]
  %s5 = inlined_call_operand.vmem [shape: f32[32,32], index: 5, kind: input, shape index: {}]
  %s6 = inlined_call_operand.vmem [shape: f32[32,32], index: 6, kind: input, shape index: {}]
  %s7 = inlined_call_operand.vmem [shape: f32[1,32], index: 7, kind: input, shape index: {}]
  %s8 = inlined_call_operand.vmem [shape: f32[2,128,32], index: 8, kind: output, shape index: {}]
  %s9 = sld [smem:[#allocation0]]
  $region69: #{tpu_custom_call.1} parent=0
    _
  %s11 = ssub.s32 1, %s9
  %s12 = scalar_select 0, %s11, %s9
  loop: start=0, step=1, limit=4
  $region2: #{tpu_custom_call.1} parent=0 // loop_pre_header
    _
  $region3: #{tpu_custom_call.1} parent=0 // loop_header
    %s14 = sphi 0, %s18
    %p15 = scmp.ge.s32.totalorder %s14, 4
    %s21 = sphi 0, %s33
    %s22 = sphi 0, %s29
    %s23 = sphi 0, %s21
    %s24 = sphi 0, %s22
    %s25 = sphi 0, %s23
    %s26 = sphi 0, %s24
    %s38 = sphi 0, %s40
    %s41 = sphi 0, %s38
    %s42 = sphi 0, %s41
    %s58 = sphi 0, %s42
    %s64 = sphi 0, %s66
    %s67 = sphi 0, %s64
    %s68 = sphi 0, %s67
    %s84 = sphi 0, %s68
    %s90 = sphi 0, %s92
    %s93 = sphi 0, %s90
    %s94 = sphi 0, %s93
    %s110 = sphi 0, %s94
    %s114 = sphi 0, %s114
    %s116 = sphi 0, %s114
    %s117 = sphi 0, %s116
    %s131 = sphi 0, %s117
    %s135 = sphi 0, %s135
    %s137 = sphi 0, %s135
    %s138 = sphi 0, %s137
    %s152 = sphi 0, %s138
    %s156 = sphi 0, %s156
    %s158 = sphi 0, %s156
    %s159 = sphi 0, %s158
    %s173 = sphi 0, %s159
    %s177 = sphi 0, %s177
    %s179 = sphi 0, %s177
    %s180 = sphi 0, %s179
    %s194 = sphi 0, %s180
    %s198 = sphi 0, %s198
    %s200 = sphi 0, %s198
    %s201 = sphi 0, %s200
    %s215 = sphi 0, %s201
    %s223 = sphi 0, %s225
    %s226 = sphi 0, %s223
    %s227 = sphi 0, %s226
    %s243 = sphi 0, %s227
  $region4: #{tpu_custom_call.1} parent=0 // loop_header_branch
    %17 = sbr.rel (%p15) target = $region8
  $region5: #{tpu_custom_call.1} parent=0 // loop_body
    %s19 = ssub.s32 %s14, 1
    %s20 = ssub.s32 %s14, 2
    %s27 = sadd.s32 1, %s22
    %p28 = scmp.ge.s32.totalorder %s27, 1
    %s29 = scalar_select %p28, 0, %s27
    %s30 = sadd.s32 1, %s21
    %s31 = scalar_select %p28, %s30, %s21
    %p32 = scmp.ge.s32.totalorder %s31, 2
    %s33 = scalar_select %p32, 0, %s31
    %s34 = ssub.s32 %s21, %s33
    %s35 = ssub.s32 %s22, %s29
    %s36 = sor.u32 %s34, %s35
    %p37 = scmp.eq.s32.totalorder %s36, 0
    %s39 = sadd.s32 %s38, 1
    %s40 = scalar_select %p37, %s38, %s39
    %p43 = pneg %p37
    %p44 = scmp.eq.s32.totalorder %s14, 1
    %p45 = por %p43, %p44
    %p46 = scmp.ne.s32.totalorder %s38, %s41
    %p47 = scmp.eq.s32.totalorder %s14, 0
    %p48 = por %p46, %p47
    %p49 = scmp.ne.s32.totalorder %s38, %s41
    %p50 = scmp.eq.s32.totalorder %s19, 1
    %p51 = por %p49, %p50
    %p52 = scmp.ne.s32.totalorder %s41, %s42
    %p53 = scmp.eq.s32.totalorder %s19, 0
    %p54 = por %p52, %p53
    %p55 = scmp.ne.s32.totalorder %s41, %s42
    %p56 = scmp.eq.s32.totalorder %s20, 1
    %p57 = por %p55, %p56
    %p59 = scmp.ne.s32.totalorder %s42, %s58
    %p60 = scmp.eq.s32.totalorder %s20, 0
    %p61 = por %p59, %p60
    %s62 = ssub.s32 %s21, %s33
    %p63 = scmp.eq.s32.totalorder %s62, 0
    %s65 = sadd.s32 %s64, 1
    %s66 = scalar_select %p63, %s64, %s65
    %p69 = pneg %p63
    %p70 = scmp.eq.s32.totalorder %s14, 1
    %p71 = por %p69, %p70
    %p72 = scmp.ne.s32.totalorder %s64, %s67
    %p73 = scmp.eq.s32.totalorder %s14, 0
    %p74 = por %p72, %p73
    %p75 = scmp.ne.s32.totalorder %s64, %s67
    %p76 = scmp.eq.s32.totalorder %s19, 1
    %p77 = por %p75, %p76
    %p78 = scmp.ne.s32.totalorder %s67, %s68
    %p79 = scmp.eq.s32.totalorder %s19, 0
    %p80 = por %p78, %p79
    %p81 = scmp.ne.s32.totalorder %s67, %s68
    %p82 = scmp.eq.s32.totalorder %s20, 1
    %p83 = por %p81, %p82
    %p85 = scmp.ne.s32.totalorder %s68, %s84
    %p86 = scmp.eq.s32.totalorder %s20, 0
    %p87 = por %p85, %p86
    %s88 = ssub.s32 %s21, %s33
    %p89 = scmp.eq.s32.totalorder %s88, 0
    %s91 = sadd.s32 %s90, 1
    %s92 = scalar_select %p89, %s90, %s91
    %p95 = pneg %p89
    %p96 = scmp.eq.s32.totalorder %s14, 1
    %p97 = por %p95, %p96
    %p98 = scmp.ne.s32.totalorder %s90, %s93
    %p99 = scmp.eq.s32.totalorder %s14, 0
    %p100 = por %p98, %p99
    %p101 = scmp.ne.s32.totalorder %s90, %s93
    %p102 = scmp.eq.s32.totalorder %s19, 1
    %p103 = por %p101, %p102
    %p104 = scmp.ne.s32.totalorder %s93, %s94
    %p105 = scmp.eq.s32.totalorder %s19, 0
    %p106 = por %p104, %p105
    %p107 = scmp.ne.s32.totalorder %s93, %s94
    %p108 = scmp.eq.s32.totalorder %s20, 1
    %p109 = por %p107, %p108
    %p111 = scmp.ne.s32.totalorder %s94, %s110
    %p112 = scmp.eq.s32.totalorder %s20, 0
    %p113 = por %p111, %p112
    %s115 = sadd.s32 %s114, 1
    %p118 = scmp.eq.s32.totalorder %s14, 1
    %p119 = scmp.ne.s32.totalorder %s114, %s116
    %p120 = scmp.eq.s32.totalorder %s14, 0
    %p121 = por %p119, %p120
    %p122 = scmp.ne.s32.totalorder %s114, %s116
    %p123 = scmp.eq.s32.totalorder %s19, 1
    %p124 = por %p122, %p123
    %p125 = scmp.ne.s32.totalorder %s116, %s117
    %p126 = scmp.eq.s32.totalorder %s19, 0
    %p127 = por %p125, %p126
    %p128 = scmp.ne.s32.totalorder %s116, %s117
    %p129 = scmp.eq.s32.totalorder %s20, 1
    %p130 = por %p128, %p129
    %p132 = scmp.ne.s32.totalorder %s117, %s131
    %p133 = scmp.eq.s32.totalorder %s20, 0
    %p134 = por %p132, %p133
    %s136 = sadd.s32 %s135, 1
    %p139 = scmp.eq.s32.totalorder %s14, 1
    %p140 = scmp.ne.s32.totalorder %s135, %s137
    %p141 = scmp.eq.s32.totalorder %s14, 0
    %p142 = por %p140, %p141
    %p143 = scmp.ne.s32.totalorder %s135, %s137
    %p144 = scmp.eq.s32.totalorder %s19, 1
    %p145 = por %p143, %p144
    %p146 = scmp.ne.s32.totalorder %s137, %s138
    %p147 = scmp.eq.s32.totalorder %s19, 0
    %p148 = por %p146, %p147
    %p149 = scmp.ne.s32.totalorder %s137, %s138
    %p150 = scmp.eq.s32.totalorder %s20, 1
    %p151 = por %p149, %p150
    %p153 = scmp.ne.s32.totalorder %s138, %s152
    %p154 = scmp.eq.s32.totalorder %s20, 0
    %p155 = por %p153, %p154
    %s157 = sadd.s32 %s156, 1
    %p160 = scmp.eq.s32.totalorder %s14, 1
    %p161 = scmp.ne.s32.totalorder %s156, %s158
    %p162 = scmp.eq.s32.totalorder %s14, 0
    %p163 = por %p161, %p162
    %p164 = scmp.ne.s32.totalorder %s156, %s158
    %p165 = scmp.eq.s32.totalorder %s19, 1
    %p166 = por %p164, %p165
    %p167 = scmp.ne.s32.totalorder %s158, %s159
    %p168 = scmp.eq.s32.totalorder %s19, 0
    %p169 = por %p167, %p168
    %p170 = scmp.ne.s32.totalorder %s158, %s159
    %p171 = scmp.eq.s32.totalorder %s20, 1
    %p172 = por %p170, %p171
    %p174 = scmp.ne.s32.totalorder %s159, %s173
    %p175 = scmp.eq.s32.totalorder %s20, 0
    %p176 = por %p174, %p175
    %s178 = sadd.s32 %s177, 1
    %p181 = scmp.eq.s32.totalorder %s14, 1
    %p182 = scmp.ne.s32.totalorder %s177, %s179
    %p183 = scmp.eq.s32.totalorder %s14, 0
    %p184 = por %p182, %p183
    %p185 = scmp.ne.s32.totalorder %s177, %s179
    %p186 = scmp.eq.s32.totalorder %s19, 1
    %p187 = por %p185, %p186
    %p188 = scmp.ne.s32.totalorder %s179, %s180
    %p189 = scmp.eq.s32.totalorder %s19, 0
    %p190 = por %p188, %p189
    %p191 = scmp.ne.s32.totalorder %s179, %s180
    %p192 = scmp.eq.s32.totalorder %s20, 1
    %p193 = por %p191, %p192
    %p195 = scmp.ne.s32.totalorder %s180, %s194
    %p196 = scmp.eq.s32.totalorder %s20, 0
    %p197 = por %p195, %p196
    %s199 = sadd.s32 %s198, 1
    %p202 = scmp.eq.s32.totalorder %s14, 1
    %p203 = scmp.ne.s32.totalorder %s198, %s200
    %p204 = scmp.eq.s32.totalorder %s14, 0
    %p205 = por %p203, %p204
    %p206 = scmp.ne.s32.totalorder %s198, %s200
    %p207 = scmp.eq.s32.totalorder %s19, 1
    %p208 = por %p206, %p207
    %p209 = scmp.ne.s32.totalorder %s200, %s201
    %p210 = scmp.eq.s32.totalorder %s19, 0
    %p211 = por %p209, %p210
    %p212 = scmp.ne.s32.totalorder %s200, %s201
    %p213 = scmp.eq.s32.totalorder %s20, 1
    %p214 = por %p212, %p213
    %p216 = scmp.ne.s32.totalorder %s201, %s215
    %p217 = scmp.eq.s32.totalorder %s20, 0
    %p218 = por %p216, %p217
    %s219 = ssub.s32 %s21, %s33
    %s220 = ssub.s32 %s22, %s29
    %s221 = sor.u32 %s219, %s220
    %p222 = scmp.eq.s32.totalorder %s221, 0
    %s224 = sadd.s32 %s223, 1
    %s225 = scalar_select %p222, %s223, %s224
    %p228 = pneg %p222
    %p229 = scmp.eq.s32.totalorder %s14, 1
    %p230 = por %p228, %p229
    %p231 = scmp.ne.s32.totalorder %s223, %s226
    %p232 = scmp.eq.s32.totalorder %s14, 0
    %p233 = por %p231, %p232
    %p234 = scmp.ne.s32.totalorder %s223, %s226
    %p235 = scmp.eq.s32.totalorder %s19, 1
    %p236 = por %p234, %p235
    %p237 = scmp.ne.s32.totalorder %s226, %s227
    %p238 = scmp.eq.s32.totalorder %s19, 0
    %p239 = por %p237, %p238
    %p240 = scmp.ne.s32.totalorder %s226, %s227
    %p241 = scmp.eq.s32.totalorder %s20, 1
    %p242 = por %p240, %p241
    %p244 = scmp.ne.s32.totalorder %s227, %s243
    %p245 = scmp.eq.s32.totalorder %s20, 0
    %p246 = por %p244, %p245
    %p247 = scmp.le.s32.totalorder 1, %s14
    %p248 = scmp.lt.s32.totalorder %s14, 3
    %p249 = pnand %p247, %p248
    %p250 = pneg %p249
    // Predicated region
    $region9: #{tpu_custom_call.1} parent=5 // pred_check
      _
    $region10: #{tpu_custom_call.1} parent=5 // pred_check_branch
      %252 = sbr.rel (%p249) target = $region12
    $region11: #{tpu_custom_call.1} parent=5 // pred_region
      %s253 = ssub.s32 %s14, 1
      // Predicated region
      $region13: #{tpu_custom_call.1} parent=11 // pred_check
        %p254 = pneg %p127
      $region14: #{tpu_custom_call.1} parent=11 // pred_check_branch
        %256 = sbr.rel (%p254) target = $region16
      $region15: #{tpu_custom_call.1} parent=11 // pred_region
        _
      $region16: #{tpu_custom_call.1} parent=11 // pred_fallthru
        _
      // Predicated region
      $region17: #{tpu_custom_call.1} parent=11 // pred_check
        %p257 = pneg %p148
      $region18: #{tpu_custom_call.1} parent=11 // pred_check_branch
        %259 = sbr.rel (%p257) target = $region20
      $region19: #{tpu_custom_call.1} parent=11 // pred_region
        _
      $region20: #{tpu_custom_call.1} parent=11 // pred_fallthru
        _
      // Predicated region
      $region21: #{tpu_custom_call.1} parent=11 // pred_check
        %p260 = pneg %p169
      $region22: #{tpu_custom_call.1} parent=11 // pred_check_branch
        %262 = sbr.rel (%p260) target = $region24
      $region23: #{tpu_custom_call.1} parent=11 // pred_region
        _
      $region24: #{tpu_custom_call.1} parent=11 // pred_fallthru
        _
      // Predicated region
      $region25: #{tpu_custom_call.1} parent=11 // pred_check
        %p263 = pneg %p190
      $region26: #{tpu_custom_call.1} parent=11 // pred_check_branch
        %265 = sbr.rel (%p263) target = $region28
      $region27: #{tpu_custom_call.1} parent=11 // pred_region
        _
      $region28: #{tpu_custom_call.1} parent=11 // pred_fallthru
        _
      // Predicated region
      $region29: #{tpu_custom_call.1} parent=11 // pred_check
        %p266 = pneg %p211
      $region30: #{tpu_custom_call.1} parent=11 // pred_check_branch
        %268 = sbr.rel (%p266) target = $region32
      $region31: #{tpu_custom_call.1} parent=11 // pred_region
        _
      $region32: #{tpu_custom_call.1} parent=11 // pred_fallthru
        _
    $region12: #{tpu_custom_call.1} parent=5 // pred_fallthru
      _
    %p269 = scmp.lt.s32.totalorder %s14, 2
    // Predicated region
    $region33: #{tpu_custom_call.1} parent=5 // pred_check
      %p270 = pneg %p269
    $region34: #{tpu_custom_call.1} parent=5 // pred_check_branch
      %272 = sbr.rel (%p270) target = $region36
    $region35: #{tpu_custom_call.1} parent=5 // pred_region
      // Predicated region
      $region37: #{tpu_custom_call.1} parent=35 // pred_check
        %p273 = pneg %p48
      $region38: #{tpu_custom_call.1} parent=35 // pred_check_branch
        %275 = sbr.rel (%p273) target = $region40
      $region39: #{tpu_custom_call.1} parent=35 // pred_region
        %s276 = smul.u32 16, %s22
        %p277 = scmp.lt.s32.totalorder %s21, 1
        %s278 = scalar_select %p277, %s21, 1
        %p279 = scmp.lt.s32.totalorder %s276, 15
        %s280 = scalar_select %p279, %s276, 15
        %s281 = smul.addr %s278, 16
        %s282 = sadd.s32 %s280, %s281
        %s283 = smul.addr %s282, 8
        %s284 = scalar_lea.vmem %s0, %s283
        %s285 = smul.u32 16, %s22
      $region40: #{tpu_custom_call.1} parent=35 // pred_fallthru
        _
      // Predicated region
      $region41: #{tpu_custom_call.1} parent=35 // pred_check
        %p286 = pneg %p74
      $region42: #{tpu_custom_call.1} parent=35 // pred_check_branch
        %288 = sbr.rel (%p286) target = $region44
      $region43: #{tpu_custom_call.1} parent=35 // pred_region
        %p289 = scmp.lt.s32.totalorder %s21, 1
        %s290 = scalar_select %p289, %s21, 1
        %s291 = smul.addr %s290, 16
        %s292 = smul.addr %s291, 8
        %s293 = scalar_lea.vmem %s1, %s292
      $region44: #{tpu_custom_call.1} parent=35 // pred_fallthru
        _
      // Predicated region
      $region45: #{tpu_custom_call.1} parent=35 // pred_check
        %p294 = pneg %p100
      $region46: #{tpu_custom_call.1} parent=35 // pred_check_branch
        %296 = sbr.rel (%p294) target = $region48
      $region47: #{tpu_custom_call.1} parent=35 // pred_region
        %p297 = scmp.lt.s32.totalorder %s21, 1
        %s298 = scalar_select %p297, %s21, 1
        %s299 = smul.addr %s298, 16
        %s300 = smul.addr %s299, 8
        %s301 = scalar_lea.vmem %s2, %s300
      $region48: #{tpu_custom_call.1} parent=35 // pred_fallthru
        _
    $region36: #{tpu_custom_call.1} parent=5 // pred_fallthru
      _
    %p302 = scmp.le.s32.totalorder 1, %s14
    %p303 = scmp.lt.s32.totalorder %s14, 3
    %p304 = pnand %p302, %p303
    %p305 = pneg %p304
    // Predicated region
    $region49: #{tpu_custom_call.1} parent=5 // pred_check
      _
    $region50: #{tpu_custom_call.1} parent=5 // pred_check_branch
      %307 = sbr.rel (%p304) target = $region52
    $region51: #{tpu_custom_call.1} parent=5 // pred_region
      %s308 = ssub.s32 %s14, 1
      %s309 = smul.u32 16, %s24
      %p310 = scmp.lt.s32.totalorder %s23, 1
      %s311 = scalar_select %p310, %s23, 1
      %p312 = scmp.lt.s32.totalorder %s309, 15
      %s313 = scalar_select %p312, %s309, 15
      %s314 = smul.addr %s311, 16
      %s315 = sadd.s32 %s313, %s314
      %s316 = smul.addr %s315, 8
      %s317 = scalar_lea.vmem %s0, %s316
      %p318 = pneg %p54
      %p319 = pneg %p51
      %p320 = scmp.lt.s32.totalorder %s23, 1
      %s321 = scalar_select %p320, %s23, 1
      %s322 = smul.addr %s321, 16
      %s323 = smul.addr %s322, 8
      %s324 = scalar_lea.vmem %s1, %s323
      %p325 = pneg %p80
      %p326 = pneg %p77
      %p327 = scmp.lt.s32.totalorder %s23, 1
      %s328 = scalar_select %p327, %s23, 1
      %s329 = smul.addr %s328, 16
      %s330 = smul.addr %s329, 8
      %s331 = scalar_lea.vmem %s2, %s330
      %p332 = pneg %p106
      %p333 = pneg %p103
      %p334 = pneg %p127
      %p335 = pneg %p124
      %p336 = pneg %p148
      %p337 = pneg %p145
      %p338 = pneg %p169
      %p339 = pneg %p166
      %p340 = pneg %p190
      %p341 = pneg %p187
      %p342 = pneg %p211
      %p343 = pneg %p208
      %p344 = pneg %p239
      %p345 = pneg %p236
      %s346 = smul.u32 16, %s24
      %p347 = scmp.lt.s32.totalorder %s23, 1
      %s348 = scalar_select %p347, %s23, 1
      %p349 = scmp.lt.s32.totalorder %s346, 15
      %s350 = scalar_select %p349, %s346, 15
      %s351 = smul.addr %s348, 16
      %s352 = sadd.s32 %s350, %s351
      %s353 = smul.addr %s352, 8
      %s354 = scalar_lea.vmem %s8, %s353
      %s355 = smul.u32 16, %s24
      %p356 = scmp.lt.s32.totalorder %s23, 1
      %s357 = scalar_select %p356, %s23, 1
      %p358 = scmp.lt.s32.totalorder %s355, 15
      %s359 = scalar_select %p358, %s355, 15
      %s360 = smul.addr %s357, 16
      %s361 = sadd.s32 %s359, %s360
      %s362 = smul.addr %s361, 8
      %s363 = scalar_lea.vmem %s0, %s362
      %s364 = smul.u32 16, %s24
      %p365 = scmp.lt.s32.totalorder %s23, 1
      %s366 = scalar_select %p365, %s23, 1
      %s367 = smul.addr %s366, 16
      %s368 = smul.addr %s367, 8
      %s369 = scalar_lea.vmem %s1, %s368
      %p370 = scmp.lt.s32.totalorder %s23, 1
      %s371 = scalar_select %p370, %s23, 1
      %s372 = smul.addr %s371, 16
      %s373 = smul.addr %s372, 8
      %s374 = scalar_lea.vmem %s2, %s373
      %s375 = smul.u32 16, %s24
      %p376 = scmp.lt.s32.totalorder %s23, 1
      %s377 = scalar_select %p376, %s23, 1
      %p378 = scmp.lt.s32.totalorder %s375, 15
      %s379 = scalar_select %p378, %s375, 15
      %s380 = smul.addr %s377, 16
      %s381 = sadd.s32 %s379, %s380
      %s382 = smul.addr %s381, 8
      %s383 = scalar_lea.vmem %s8, %s382
      %s384 = smul.u32 16, %s24
      %p385 = scmp.eq.s32.totalorder %s24, 0
      // Predicated region
      $region53: #{tpu_custom_call.1} parent=51 // pred_check
        %p386 = pneg %p385
      $region54: #{tpu_custom_call.1} parent=51 // pred_check_branch
        %388 = sbr.rel (%p386) target = $region56
      $region55: #{tpu_custom_call.1} parent=51 // pred_region
        %v389 = vld [vmem:[%s369] sm:$0xff]
        %v390 = vld [vmem:[%s369 + $0x8] sm:$0xff]
        %v391 = vld [vmem:[%s369 + $0x10] sm:$0xff]
        %v392 = vld [vmem:[%s369 + $0x18] sm:$0xff]
        %v393 = vld [vmem:[%s369 + $0x20] sm:$0xff]
        %v394 = vld [vmem:[%s369 + $0x28] sm:$0xff]
        %v395 = vld [vmem:[%s369 + $0x30] sm:$0xff]
        %v396 = vld [vmem:[%s369 + $0x38] sm:$0xff]
        %v397 = vld [vmem:[%s369 + $0x40] sm:$0xff]
        %v398 = vld [vmem:[%s369 + $0x48] sm:$0xff]
        %v399 = vld [vmem:[%s369 + $0x50] sm:$0xff]
        %v400 = vld [vmem:[%s369 + $0x58] sm:$0xff]
        %v401 = vld [vmem:[%s369 + $0x60] sm:$0xff]
        %v402 = vld [vmem:[%s369 + $0x68] sm:$0xff]
        %v403 = vld [vmem:[%s369 + $0x70] sm:$0xff]
        %v404 = vld [vmem:[%s369 + $0x78] sm:$0xff]
        %v405 = vld [vmem:[%s374] sm:$0xff]
        %v406 = vld [vmem:[%s374 + $0x8] sm:$0xff]
        %v407 = vld [vmem:[%s374 + $0x10] sm:$0xff]
        %v408 = vld [vmem:[%s374 + $0x18] sm:$0xff]
        %v409 = vld [vmem:[%s374 + $0x20] sm:$0xff]
        %v410 = vld [vmem:[%s374 + $0x28] sm:$0xff]
        %v411 = vld [vmem:[%s374 + $0x30] sm:$0xff]
        %v412 = vld [vmem:[%s374 + $0x38] sm:$0xff]
        %v413 = vld [vmem:[%s374 + $0x40] sm:$0xff]
        %v414 = vld [vmem:[%s374 + $0x48] sm:$0xff]
        %v415 = vld [vmem:[%s374 + $0x50] sm:$0xff]
        %v416 = vld [vmem:[%s374 + $0x58] sm:$0xff]
        %v417 = vld [vmem:[%s374 + $0x60] sm:$0xff]
        %v418 = vld [vmem:[%s374 + $0x68] sm:$0xff]
        %v419 = vld [vmem:[%s374 + $0x70] sm:$0xff]
        %v420 = vld [vmem:[%s374 + $0x78] sm:$0xff]
        %v421 = vld [vmem:[%s4] sm:$0xff]
        %v422 = vld [vmem:[%s4 + $0x8] sm:$0xff]
        %v423 = vld [vmem:[%s4 + $0x10] sm:$0xff]
        %v424 = vld [vmem:[%s4 + $0x18] sm:$0xff]
        %vm425 = vcmask 261120
        %v427 = vsel %vm425, %v389, 0
        %v430 = vsel %vm425, %v390, 0
        %v433 = vsel %vm425, %v391, 0
        %v436 = vsel %vm425, %v392, 0
        %v439 = vsel %vm425, %v393, 0
        %v442 = vsel %vm425, %v394, 0
        %v445 = vsel %vm425, %v395, 0
        %v448 = vsel %vm425, %v396, 0
        %v451 = vsel %vm425, %v397, 0
        %v454 = vsel %vm425, %v398, 0
        %v457 = vsel %vm425, %v399, 0
        %v460 = vsel %vm425, %v400, 0
        %v463 = vsel %vm425, %v401, 0
        %v466 = vsel %vm425, %v402, 0
        %v469 = vsel %vm425, %v403, 0
        %v472 = vsel %vm425, %v404, 0
        %474 = vmatprep.subr.mxu0 0.0
        %475 = vmatpush1.msra.mxu0 0.0
        %476 = vmatprep.subr.mxu0 0.0
        %477 = vmatpush1.msra.mxu0 0.0
        %478 = vmatprep.subr.mxu0 0.0
        %479 = vmatpush1.msra.mxu0 0.0
        %480 = vmatprep.subr.mxu0 0.0
        %481 = vmatpush1.msra.mxu0 0.0
        %482 = vmatprep.subr.mxu0 0.0
        %483 = vmatpush1.msra.mxu0 0.0
        %484 = vmatprep.subr.mxu0 0.0
        %485 = vmatpush1.msra.mxu0 0.0
        %486 = vmatprep.subr.mxu0 0.0
        %487 = vmatpush1.msra.mxu0 0.0
        %488 = vmatprep.subr.mxu0 0.0
        %489 = vmatpush1.msra.mxu0 0.0
        %490 = vmatprep.subr.mxu0 0.0
        %491 = vmatpush1.msra.mxu0 0.0
        %492 = vmatprep.subr.mxu0 0.0
        %493 = vmatpush1.msra.mxu0 0.0
        %494 = vmatprep.subr.mxu0 0.0
        %495 = vmatpush1.msra.mxu0 0.0
        %496 = vmatprep.subr.mxu0 0.0
        %497 = vmatpush1.msra.mxu0 0.0
        %498 = vmatprep.subr.mxu0 0.0
        %499 = vmatpush1.msra.mxu0 %v424
        %500 = vmatprep.subr.mxu0 0.0
        %501 = vmatpush1.msra.mxu0 %v423
        %502 = vmatprep.subr.mxu0 0.0
        %503 = vmatpush1.msra.mxu0 %v422
        %504 = vmatprep.subr.mxu0 0.0
        %505 = vmatpush1.msra.mxu0 %v421
        %506 = vmatprep.subr.mxu0 0.0
        %507 = vmatpush2.msra.mxu0 0.0
        %508 = vmatprep.subr.mxu0 0.0
        %509 = vmatpush2.msra.mxu0 0.0
        %510 = vmatprep.subr.mxu0 0.0
        %511 = vmatpush2.msra.mxu0 0.0
        %512 = vmatprep.subr.mxu0 0.0
        %513 = vmatpush2.msra.mxu0 0.0
        %514 = vmatprep.subr.mxu0 0.0
        %515 = vmatpush2.msra.mxu0 0.0
        %516 = vmatprep.subr.mxu0 0.0
        %517 = vmatpush2.msra.mxu0 0.0
        %518 = vmatprep.subr.mxu0 0.0
        %519 = vmatpush2.msra.mxu0 0.0
        %520 = vmatprep.subr.mxu0 0.0
        %521 = vmatpush2.msra.mxu0 0.0
        %522 = vmatprep.subr.mxu0 0.0
        %523 = vmatpush2.msra.mxu0 0.0
        %524 = vmatprep.subr.mxu0 0.0
        %525 = vmatpush2.msra.mxu0 0.0
        %526 = vmatprep.subr.mxu0 0.0
        %527 = vmatpush2.msra.mxu0 0.0
        %528 = vmatprep.subr.mxu0 0.0
        %529 = vmatpush2.msra.mxu0 0.0
        %530 = vmatprep.subr.mxu0 0.0
        %531 = vmatpush2.msra.mxu0 0.0
        %532 = vmatprep.subr.mxu0 0.0
        %533 = vmatpush2.msra.mxu0 0.0
        %534 = vmatprep.subr.mxu0 0.0
        %535 = vmatpush2.msra.mxu0 0.0
        %536 = vmatprep.subr.mxu0 0.0
        %537 = vmatpush2.msra.mxu0 0.0
        %538 = vmatprep.mubr.f32.mxu0 0.0
        %539 = vmatmul.mubr.f32.gmra.mxu0 %v427
        %v540 = vpop.f32.mrf.mxu0
        %v541 = vadd.f32 0.0, %v540
        %v542 = vpop.f32.mrf.mxu0
        %543 = vmatprep.mubr.f32.mxu0 0.0
        %544 = vmatmul.mubr.f32.gmra.mxu0 %v430
        %v545 = vpop.f32.mrf.mxu0
        %v546 = vadd.f32 0.0, %v545
        %v547 = vpop.f32.mrf.mxu0
        %548 = vmatprep.mubr.f32.mxu0 0.0
        %549 = vmatmul.mubr.f32.gmra.mxu0 %v433
        %v550 = vpop.f32.mrf.mxu0
        %v551 = vadd.f32 0.0, %v550
        %v552 = vpop.f32.mrf.mxu0
        %553 = vmatprep.mubr.f32.mxu0 0.0
        %554 = vmatmul.mubr.f32.gmra.mxu0 %v436
        %v555 = vpop.f32.mrf.mxu0
        %v556 = vadd.f32 0.0, %v555
        %v557 = vpop.f32.mrf.mxu0
        %558 = vmatprep.mubr.f32.mxu0 0.0
        %559 = vmatmul.mubr.f32.gmra.mxu0 %v439
        %v560 = vpop.f32.mrf.mxu0
        %v561 = vadd.f32 0.0, %v560
        %v562 = vpop.f32.mrf.mxu0
        %563 = vmatprep.mubr.f32.mxu0 0.0
        %564 = vmatmul.mubr.f32.gmra.mxu0 %v442
        %v565 = vpop.f32.mrf.mxu0
        %v566 = vadd.f32 0.0, %v565
        %v567 = vpop.f32.mrf.mxu0
        %568 = vmatprep.mubr.f32.mxu0 0.0
        %569 = vmatmul.mubr.f32.gmra.mxu0 %v445
        %v570 = vpop.f32.mrf.mxu0
        %v571 = vadd.f32 0.0, %v570
        %v572 = vpop.f32.mrf.mxu0
        %573 = vmatprep.mubr.f32.mxu0 0.0
        %574 = vmatmul.mubr.f32.gmra.mxu0 %v448
        %v575 = vpop.f32.mrf.mxu0
        %v576 = vadd.f32 0.0, %v575
        %v577 = vpop.f32.mrf.mxu0
        %578 = vmatprep.mubr.f32.mxu0 0.0
        %579 = vmatmul.mubr.f32.gmra.mxu0 %v451
        %v580 = vpop.f32.mrf.mxu0
        %v581 = vadd.f32 0.0, %v580
        %v582 = vpop.f32.mrf.mxu0
        %583 = vmatprep.mubr.f32.mxu0 0.0
        %584 = vmatmul.mubr.f32.gmra.mxu0 %v454
        %v585 = vpop.f32.mrf.mxu0
        %v586 = vadd.f32 0.0, %v585
        %v587 = vpop.f32.mrf.mxu0
        %588 = vmatprep.mubr.f32.mxu0 0.0
        %589 = vmatmul.mubr.f32.gmra.mxu0 %v457
        %v590 = vpop.f32.mrf.mxu0
        %v591 = vadd.f32 0.0, %v590
        %v592 = vpop.f32.mrf.mxu0
        %593 = vmatprep.mubr.f32.mxu0 0.0
        %594 = vmatmul.mubr.f32.gmra.mxu0 %v460
        %v595 = vpop.f32.mrf.mxu0
        %v596 = vadd.f32 0.0, %v595
        %v597 = vpop.f32.mrf.mxu0
        %598 = vmatprep.mubr.f32.mxu0 0.0
        %599 = vmatmul.mubr.f32.gmra.mxu0 %v463
        %v600 = vpop.f32.mrf.mxu0
        %v601 = vadd.f32 0.0, %v600
        %v602 = vpop.f32.mrf.mxu0
        %603 = vmatprep.mubr.f32.mxu0 0.0
        %604 = vmatmul.mubr.f32.gmra.mxu0 %v466
        %v605 = vpop.f32.mrf.mxu0
        %v606 = vadd.f32 0.0, %v605
        %v607 = vpop.f32.mrf.mxu0
        %608 = vmatprep.mubr.f32.mxu0 0.0
        %609 = vmatmul.mubr.f32.gmra.mxu0 %v469
        %v610 = vpop.f32.mrf.mxu0
        %v611 = vadd.f32 0.0, %v610
        %v612 = vpop.f32.mrf.mxu0
        %613 = vmatprep.mubr.f32.mxu0 0.0
        %614 = vmatmul.mubr.f32.gmra.mxu0 %v472
        %v615 = vpop.f32.mrf.mxu0
        %v616 = vadd.f32 0.0, %v615
        %v617 = vpop.f32.mrf.mxu0
        %618 = vdwg.mxu0
        %619 = vst.msk [vmem:[#allocation2] sm:$0xff] %vm425, %v541
        %620 = vst.msk [vmem:[#allocation2 + $0x8] sm:$0xff] %vm425, %v546
        %621 = vst.msk [vmem:[#allocation2 + $0x10] sm:$0xff] %vm425, %v551
        %622 = vst.msk [vmem:[#allocation2 + $0x18] sm:$0xff] %vm425, %v556
        %623 = vst.msk [vmem:[#allocation2 + $0x20] sm:$0xff] %vm425, %v561
        %624 = vst.msk [vmem:[#allocation2 + $0x28] sm:$0xff] %vm425, %v566
        %625 = vst.msk [vmem:[#allocation2 + $0x30] sm:$0xff] %vm425, %v571
        %626 = vst.msk [vmem:[#allocation2 + $0x38] sm:$0xff] %vm425, %v576
        %627 = vst.msk [vmem:[#allocation2 + $0x40] sm:$0xff] %vm425, %v581
        %628 = vst.msk [vmem:[#allocation2 + $0x48] sm:$0xff] %vm425, %v586
        %629 = vst.msk [vmem:[#allocation2 + $0x50] sm:$0xff] %vm425, %v591
        %630 = vst.msk [vmem:[#allocation2 + $0x58] sm:$0xff] %vm425, %v596
        %631 = vst.msk [vmem:[#allocation2 + $0x60] sm:$0xff] %vm425, %v601
        %632 = vst.msk [vmem:[#allocation2 + $0x68] sm:$0xff] %vm425, %v606
        %633 = vst.msk [vmem:[#allocation2 + $0x70] sm:$0xff] %vm425, %v611
        %634 = vst.msk [vmem:[#allocation2 + $0x78] sm:$0xff] %vm425, %v616
        %v635 = vld [vmem:[%s5] sm:$0xff]
        %v636 = vld [vmem:[%s5 + $0x8] sm:$0xff]
        %v637 = vld [vmem:[%s5 + $0x10] sm:$0xff]
        %v638 = vld [vmem:[%s5 + $0x18] sm:$0xff]
        %v640 = vsel %vm425, %v405, 0
        %v643 = vsel %vm425, %v406, 0
        %v646 = vsel %vm425, %v407, 0
        %v649 = vsel %vm425, %v408, 0
        %v652 = vsel %vm425, %v409, 0
        %v655 = vsel %vm425, %v410, 0
        %v658 = vsel %vm425, %v411, 0
        %v661 = vsel %vm425, %v412, 0
        %v664 = vsel %vm425, %v413, 0
        %v667 = vsel %vm425, %v414, 0
        %v670 = vsel %vm425, %v415, 0
        %v673 = vsel %vm425, %v416, 0
        %v676 = vsel %vm425, %v417, 0
        %v679 = vsel %vm425, %v418, 0
        %v682 = vsel %vm425, %v419, 0
        %v685 = vsel %vm425, %v420, 0
        %687 = vmatprep.subr.mxu0 0.0
        %688 = vmatpush1.msra.mxu0 0.0
        %689 = vmatprep.subr.mxu0 0.0
        %690 = vmatpush1.msra.mxu0 0.0
        %691 = vmatprep.subr.mxu0 0.0
        %692 = vmatpush1.msra.mxu0 0.0
        %693 = vmatprep.subr.mxu0 0.0
        %694 = vmatpush1.msra.mxu0 0.0
        %695 = vmatprep.subr.mxu0 0.0
        %696 = vmatpush1.msra.mxu0 0.0
        %697 = vmatprep.subr.mxu0 0.0
        %698 = vmatpush1.msra.mxu0 0.0
        %699 = vmatprep.subr.mxu0 0.0
        %700 = vmatpush1.msra.mxu0 0.0
        %701 = vmatprep.subr.mxu0 0.0
        %702 = vmatpush1.msra.mxu0 0.0
        %703 = vmatprep.subr.mxu0 0.0
        %704 = vmatpush1.msra.mxu0 0.0
        %705 = vmatprep.subr.mxu0 0.0
        %706 = vmatpush1.msra.mxu0 0.0
        %707 = vmatprep.subr.mxu0 0.0
        %708 = vmatpush1.msra.mxu0 0.0
        %709 = vmatprep.subr.mxu0 0.0
        %710 = vmatpush1.msra.mxu0 0.0
        %711 = vmatprep.subr.mxu0 0.0
        %712 = vmatpush1.msra.mxu0 %v638
        %713 = vmatprep.subr.mxu0 0.0
        %714 = vmatpush1.msra.mxu0 %v637
        %715 = vmatprep.subr.mxu0 0.0
        %716 = vmatpush1.msra.mxu0 %v636
        %717 = vmatprep.subr.mxu0 0.0
        %718 = vmatpush1.msra.mxu0 %v635
        %719 = vmatprep.subr.mxu0 0.0
        %720 = vmatpush2.msra.mxu0 0.0
        %721 = vmatprep.subr.mxu0 0.0
        %722 = vmatpush2.msra.mxu0 0.0
        %723 = vmatprep.subr.mxu0 0.0
        %724 = vmatpush2.msra.mxu0 0.0
        %725 = vmatprep.subr.mxu0 0.0
        %726 = vmatpush2.msra.mxu0 0.0
        %727 = vmatprep.subr.mxu0 0.0
        %728 = vmatpush2.msra.mxu0 0.0
        %729 = vmatprep.subr.mxu0 0.0
        %730 = vmatpush2.msra.mxu0 0.0
        %731 = vmatprep.subr.mxu0 0.0
        %732 = vmatpush2.msra.mxu0 0.0
        %733 = vmatprep.subr.mxu0 0.0
        %734 = vmatpush2.msra.mxu0 0.0
        %735 = vmatprep.subr.mxu0 0.0
        %736 = vmatpush2.msra.mxu0 0.0
        %737 = vmatprep.subr.mxu0 0.0
        %738 = vmatpush2.msra.mxu0 0.0
        %739 = vmatprep.subr.mxu0 0.0
        %740 = vmatpush2.msra.mxu0 0.0
        %741 = vmatprep.subr.mxu0 0.0
        %742 = vmatpush2.msra.mxu0 0.0
        %743 = vmatprep.subr.mxu0 0.0
        %744 = vmatpush2.msra.mxu0 0.0
        %745 = vmatprep.subr.mxu0 0.0
        %746 = vmatpush2.msra.mxu0 0.0
        %747 = vmatprep.subr.mxu0 0.0
        %748 = vmatpush2.msra.mxu0 0.0
        %749 = vmatprep.subr.mxu0 0.0
        %750 = vmatpush2.msra.mxu0 0.0
        %751 = vmatprep.mubr.f32.mxu0 0.0
        %752 = vmatmul.mubr.f32.gmra.mxu0 %v640
        %v753 = vpop.f32.mrf.mxu0
        %v754 = vadd.f32 0.0, %v753
        %v755 = vpop.f32.mrf.mxu0
        %756 = vmatprep.mubr.f32.mxu0 0.0
        %757 = vmatmul.mubr.f32.gmra.mxu0 %v643
        %v758 = vpop.f32.mrf.mxu0
        %v759 = vadd.f32 0.0, %v758
        %v760 = vpop.f32.mrf.mxu0
        %761 = vmatprep.mubr.f32.mxu0 0.0
        %762 = vmatmul.mubr.f32.gmra.mxu0 %v646
        %v763 = vpop.f32.mrf.mxu0
        %v764 = vadd.f32 0.0, %v763
        %v765 = vpop.f32.mrf.mxu0
        %766 = vmatprep.mubr.f32.mxu0 0.0
        %767 = vmatmul.mubr.f32.gmra.mxu0 %v649
        %v768 = vpop.f32.mrf.mxu0
        %v769 = vadd.f32 0.0, %v768
        %v770 = vpop.f32.mrf.mxu0
        %771 = vmatprep.mubr.f32.mxu0 0.0
        %772 = vmatmul.mubr.f32.gmra.mxu0 %v652
        %v773 = vpop.f32.mrf.mxu0
        %v774 = vadd.f32 0.0, %v773
        %v775 = vpop.f32.mrf.mxu0
        %776 = vmatprep.mubr.f32.mxu0 0.0
        %777 = vmatmul.mubr.f32.gmra.mxu0 %v655
        %v778 = vpop.f32.mrf.mxu0
        %v779 = vadd.f32 0.0, %v778
        %v780 = vpop.f32.mrf.mxu0
        %781 = vmatprep.mubr.f32.mxu0 0.0
        %782 = vmatmul.mubr.f32.gmra.mxu0 %v658
        %v783 = vpop.f32.mrf.mxu0
        %v784 = vadd.f32 0.0, %v783
        %v785 = vpop.f32.mrf.mxu0
        %786 = vmatprep.mubr.f32.mxu0 0.0
        %787 = vmatmul.mubr.f32.gmra.mxu0 %v661
        %v788 = vpop.f32.mrf.mxu0
        %v789 = vadd.f32 0.0, %v788
        %v790 = vpop.f32.mrf.mxu0
        %791 = vmatprep.mubr.f32.mxu0 0.0
        %792 = vmatmul.mubr.f32.gmra.mxu0 %v664
        %v793 = vpop.f32.mrf.mxu0
        %v794 = vadd.f32 0.0, %v793
        %v795 = vpop.f32.mrf.mxu0
        %796 = vmatprep.mubr.f32.mxu0 0.0
        %797 = vmatmul.mubr.f32.gmra.mxu0 %v667
        %v798 = vpop.f32.mrf.mxu0
        %v799 = vadd.f32 0.0, %v798
        %v800 = vpop.f32.mrf.mxu0
        %801 = vmatprep.mubr.f32.mxu0 0.0
        %802 = vmatmul.mubr.f32.gmra.mxu0 %v670
        %v803 = vpop.f32.mrf.mxu0
        %v804 = vadd.f32 0.0, %v803
        %v805 = vpop.f32.mrf.mxu0
        %806 = vmatprep.mubr.f32.mxu0 0.0
        %807 = vmatmul.mubr.f32.gmra.mxu0 %v673
        %v808 = vpop.f32.mrf.mxu0
        %v809 = vadd.f32 0.0, %v808
        %v810 = vpop.f32.mrf.mxu0
        %811 = vmatprep.mubr.f32.mxu0 0.0
        %812 = vmatmul.mubr.f32.gmra.mxu0 %v676
        %v813 = vpop.f32.mrf.mxu0
        %v814 = vadd.f32 0.0, %v813
        %v815 = vpop.f32.mrf.mxu0
        %816 = vmatprep.mubr.f32.mxu0 0.0
        %817 = vmatmul.mubr.f32.gmra.mxu0 %v679
        %v818 = vpop.f32.mrf.mxu0
        %v819 = vadd.f32 0.0, %v818
        %v820 = vpop.f32.mrf.mxu0
        %821 = vmatprep.mubr.f32.mxu0 0.0
        %822 = vmatmul.mubr.f32.gmra.mxu0 %v682
        %v823 = vpop.f32.mrf.mxu0
        %v824 = vadd.f32 0.0, %v823
        %v825 = vpop.f32.mrf.mxu0
        %826 = vmatprep.mubr.f32.mxu0 0.0
        %827 = vmatmul.mubr.f32.gmra.mxu0 %v685
        %v828 = vpop.f32.mrf.mxu0
        %v829 = vadd.f32 0.0, %v828
        %v830 = vpop.f32.mrf.mxu0
        %831 = vdwg.mxu0
        %832 = vst.msk [vmem:[#allocation3] sm:$0xff] %vm425, %v754
        %833 = vst.msk [vmem:[#allocation3 + $0x8] sm:$0xff] %vm425, %v759
        %834 = vst.msk [vmem:[#allocation3 + $0x10] sm:$0xff] %vm425, %v764
        %835 = vst.msk [vmem:[#allocation3 + $0x18] sm:$0xff] %vm425, %v769
        %836 = vst.msk [vmem:[#allocation3 + $0x20] sm:$0xff] %vm425, %v774
        %837 = vst.msk [vmem:[#allocation3 + $0x28] sm:$0xff] %vm425, %v779
        %838 = vst.msk [vmem:[#allocation3 + $0x30] sm:$0xff] %vm425, %v784
        %839 = vst.msk [vmem:[#allocation3 + $0x38] sm:$0xff] %vm425, %v789
        %840 = vst.msk [vmem:[#allocation3 + $0x40] sm:$0xff] %vm425, %v794
        %841 = vst.msk [vmem:[#allocation3 + $0x48] sm:$0xff] %vm425, %v799
        %842 = vst.msk [vmem:[#allocation3 + $0x50] sm:$0xff] %vm425, %v804
        %843 = vst.msk [vmem:[#allocation3 + $0x58] sm:$0xff] %vm425, %v809
        %844 = vst.msk [vmem:[#allocation3 + $0x60] sm:$0xff] %vm425, %v814
        %845 = vst.msk [vmem:[#allocation3 + $0x68] sm:$0xff] %vm425, %v819
        %846 = vst.msk [vmem:[#allocation3 + $0x70] sm:$0xff] %vm425, %v824
        %847 = vst.msk [vmem:[#allocation3 + $0x78] sm:$0xff] %vm425, %v829
      $region56: #{tpu_custom_call.1} parent=51 // pred_fallthru
        _
      %v848 = vld [vmem:[%s7] sm:$0x1]
      %v850 = vlaneseq
      %v851 = vshrl.u32 %v850, 7
      %v852 = vsub.s32 0, %v851
      %v853 = vrot.slane %v848, %v852
      %vm855 = vcmask 261120
      %856 = vst.msk [vmem:[#allocation4] sm:$0xff] %vm855, %v853
      %857 = vst.msk [vmem:[#allocation4 + $0x8] sm:$0xff] %vm855, %v853
      %858 = vst.msk [vmem:[#allocation4 + $0x10] sm:$0xff] %vm855, %v853
      %859 = vst.msk [vmem:[#allocation4 + $0x18] sm:$0xff] %vm855, %v853
      %860 = vst.msk [vmem:[#allocation4 + $0x20] sm:$0xff] %vm855, %v853
      %861 = vst.msk [vmem:[#allocation4 + $0x28] sm:$0xff] %vm855, %v853
      %862 = vst.msk [vmem:[#allocation4 + $0x30] sm:$0xff] %vm855, %v853
      %863 = vst.msk [vmem:[#allocation4 + $0x38] sm:$0xff] %vm855, %v853
      %864 = vst.msk [vmem:[#allocation4 + $0x40] sm:$0xff] %vm855, %v853
      %865 = vst.msk [vmem:[#allocation4 + $0x48] sm:$0xff] %vm855, %v853
      %866 = vst.msk [vmem:[#allocation4 + $0x50] sm:$0xff] %vm855, %v853
      %867 = vst.msk [vmem:[#allocation4 + $0x58] sm:$0xff] %vm855, %v853
      %868 = vst.msk [vmem:[#allocation4 + $0x60] sm:$0xff] %vm855, %v853
      %869 = vst.msk [vmem:[#allocation4 + $0x68] sm:$0xff] %vm855, %v853
      %870 = vst.msk [vmem:[#allocation4 + $0x70] sm:$0xff] %vm855, %v853
      %871 = vst.msk [vmem:[#allocation4 + $0x78] sm:$0xff] %vm855, %v853
      %v872 = vlaneseq
      %v873 = vand.u32 %v872, 127
      %vm874 = vcmp.lt.s32.totalorder %v873, 8
      %v875 = vld [vmem:[%s363] sm:$0xff]
      %v876 = vld [vmem:[%s363 + $0x8] sm:$0xff]
      %v877 = vld [vmem:[%s363 + $0x10] sm:$0xff]
      %v878 = vld [vmem:[%s363 + $0x18] sm:$0xff]
      %v879 = vld [vmem:[%s363 + $0x20] sm:$0xff]
      %v880 = vld [vmem:[%s363 + $0x28] sm:$0xff]
      %v881 = vld [vmem:[%s363 + $0x30] sm:$0xff]
      %v882 = vld [vmem:[%s363 + $0x38] sm:$0xff]
      %v883 = vld [vmem:[%s363 + $0x40] sm:$0xff]
      %v884 = vld [vmem:[%s363 + $0x48] sm:$0xff]
      %v885 = vld [vmem:[%s363 + $0x50] sm:$0xff]
      %v886 = vld [vmem:[%s363 + $0x58] sm:$0xff]
      %v887 = vld [vmem:[%s363 + $0x60] sm:$0xff]
      %v888 = vld [vmem:[%s363 + $0x68] sm:$0xff]
      %v889 = vld [vmem:[%s363 + $0x70] sm:$0xff]
      %v890 = vld [vmem:[%s363 + $0x78] sm:$0xff]
      %v891 = vld [vmem:[%s3] sm:$0xff]
      %v892 = vld [vmem:[%s3 + $0x8] sm:$0xff]
      %v893 = vld [vmem:[%s3 + $0x10] sm:$0xff]
      %v894 = vld [vmem:[%s3 + $0x18] sm:$0xff]
      %v896 = vsel %vm855, %v875, 0
      %v899 = vsel %vm855, %v876, 0
      %v902 = vsel %vm855, %v877, 0
      %v905 = vsel %vm855, %v878, 0
      %v908 = vsel %vm855, %v879, 0
      %v911 = vsel %vm855, %v880, 0
      %v914 = vsel %vm855, %v881, 0
      %v917 = vsel %vm855, %v882, 0
      %v920 = vsel %vm855, %v883, 0
      %v923 = vsel %vm855, %v884, 0
      %v926 = vsel %vm855, %v885, 0
      %v929 = vsel %vm855, %v886, 0
      %v932 = vsel %vm855, %v887, 0
      %v935 = vsel %vm855, %v888, 0
      %v938 = vsel %vm855, %v889, 0
      %v941 = vsel %vm855, %v890, 0
      %943 = vmatprep.subr.mxu0 0.0
      %944 = vmatpush1.msra.mxu0 0.0
      %945 = vmatprep.subr.mxu0 0.0
      %946 = vmatpush1.msra.mxu0 0.0
      %947 = vmatprep.subr.mxu0 0.0
      %948 = vmatpush1.msra.mxu0 0.0
      %949 = vmatprep.subr.mxu0 0.0
      %950 = vmatpush1.msra.mxu0 0.0
      %951 = vmatprep.subr.mxu0 0.0
      %952 = vmatpush1.msra.mxu0 0.0
      %953 = vmatprep.subr.mxu0 0.0
      %954 = vmatpush1.msra.mxu0 0.0
      %955 = vmatprep.subr.mxu0 0.0
      %956 = vmatpush1.msra.mxu0 0.0
      %957 = vmatprep.subr.mxu0 0.0
      %958 = vmatpush1.msra.mxu0 0.0
      %959 = vmatprep.subr.mxu0 0.0
      %960 = vmatpush1.msra.mxu0 0.0
      %961 = vmatprep.subr.mxu0 0.0
      %962 = vmatpush1.msra.mxu0 0.0
      %963 = vmatprep.subr.mxu0 0.0
      %964 = vmatpush1.msra.mxu0 0.0
      %965 = vmatprep.subr.mxu0 0.0
      %966 = vmatpush1.msra.mxu0 0.0
      %967 = vmatprep.subr.mxu0 0.0
      %968 = vmatpush1.msra.mxu0 %v894
      %969 = vmatprep.subr.mxu0 0.0
      %970 = vmatpush1.msra.mxu0 %v893
      %971 = vmatprep.subr.mxu0 0.0
      %972 = vmatpush1.msra.mxu0 %v892
      %973 = vmatprep.subr.mxu0 0.0
      %974 = vmatpush1.msra.mxu0 %v891
      %975 = vmatprep.subr.mxu0 0.0
      %976 = vmatpush2.msra.mxu0 0.0
      %977 = vmatprep.subr.mxu0 0.0
      %978 = vmatpush2.msra.mxu0 0.0
      %979 = vmatprep.subr.mxu0 0.0
      %980 = vmatpush2.msra.mxu0 0.0
      %981 = vmatprep.subr.mxu0 0.0
      %982 = vmatpush2.msra.mxu0 0.0
      %983 = vmatprep.subr.mxu0 0.0
      %984 = vmatpush2.msra.mxu0 0.0
      %985 = vmatprep.subr.mxu0 0.0
      %986 = vmatpush2.msra.mxu0 0.0
      %987 = vmatprep.subr.mxu0 0.0
      %988 = vmatpush2.msra.mxu0 0.0
      %989 = vmatprep.subr.mxu0 0.0
      %990 = vmatpush2.msra.mxu0 0.0
      %991 = vmatprep.subr.mxu0 0.0
      %992 = vmatpush2.msra.mxu0 0.0
      %993 = vmatprep.subr.mxu0 0.0
      %994 = vmatpush2.msra.mxu0 0.0
      %995 = vmatprep.subr.mxu0 0.0
      %996 = vmatpush2.msra.mxu0 0.0
      %997 = vmatprep.subr.mxu0 0.0
      %998 = vmatpush2.msra.mxu0 0.0
      %999 = vmatprep.subr.mxu0 0.0
      %1000 = vmatpush2.msra.mxu0 0.0
      %1001 = vmatprep.subr.mxu0 0.0
      %1002 = vmatpush2.msra.mxu0 0.0
      %1003 = vmatprep.subr.mxu0 0.0
      %1004 = vmatpush2.msra.mxu0 0.0
      %1005 = vmatprep.subr.mxu0 0.0
      %1006 = vmatpush2.msra.mxu0 0.0
      %1007 = vmatprep.mubr.f32.mxu0 0.0
      %1008 = vmatmul.mubr.f32.gmra.mxu0 %v896
      %v1009 = vpop.f32.mrf.mxu0
      %v1010 = vadd.f32 0.0, %v1009
      %v1011 = vpop.f32.mrf.mxu0
      %1012 = vmatprep.mubr.f32.mxu0 0.0
      %1013 = vmatmul.mubr.f32.gmra.mxu0 %v899
      %v1014 = vpop.f32.mrf.mxu0
      %v1015 = vadd.f32 0.0, %v1014
      %v1016 = vpop.f32.mrf.mxu0
      %1017 = vmatprep.mubr.f32.mxu0 0.0
      %1018 = vmatmul.mubr.f32.gmra.mxu0 %v902
      %v1019 = vpop.f32.mrf.mxu0
      %v1020 = vadd.f32 0.0, %v1019
      %v1021 = vpop.f32.mrf.mxu0
      %1022 = vmatprep.mubr.f32.mxu0 0.0
      %1023 = vmatmul.mubr.f32.gmra.mxu0 %v905
      %v1024 = vpop.f32.mrf.mxu0
      %v1025 = vadd.f32 0.0, %v1024
      %v1026 = vpop.f32.mrf.mxu0
      %1027 = vmatprep.mubr.f32.mxu0 0.0
      %1028 = vmatmul.mubr.f32.gmra.mxu0 %v908
      %v1029 = vpop.f32.mrf.mxu0
      %v1030 = vadd.f32 0.0, %v1029
      %v1031 = vpop.f32.mrf.mxu0
      %1032 = vmatprep.mubr.f32.mxu0 0.0
      %1033 = vmatmul.mubr.f32.gmra.mxu0 %v911
      %v1034 = vpop.f32.mrf.mxu0
      %v1035 = vadd.f32 0.0, %v1034
      %v1036 = vpop.f32.mrf.mxu0
      %1037 = vmatprep.mubr.f32.mxu0 0.0
      %1038 = vmatmul.mubr.f32.gmra.mxu0 %v914
      %v1039 = vpop.f32.mrf.mxu0
      %v1040 = vadd.f32 0.0, %v1039
      %v1041 = vpop.f32.mrf.mxu0
      %1042 = vmatprep.mubr.f32.mxu0 0.0
      %1043 = vmatmul.mubr.f32.gmra.mxu0 %v917
      %v1044 = vpop.f32.mrf.mxu0
      %v1045 = vadd.f32 0.0, %v1044
      %v1046 = vpop.f32.mrf.mxu0
      %1047 = vmatprep.mubr.f32.mxu0 0.0
      %1048 = vmatmul.mubr.f32.gmra.mxu0 %v920
      %v1049 = vpop.f32.mrf.mxu0
      %v1050 = vadd.f32 0.0, %v1049
      %v1051 = vpop.f32.mrf.mxu0
      %1052 = vmatprep.mubr.f32.mxu0 0.0
      %1053 = vmatmul.mubr.f32.gmra.mxu0 %v923
      %v1054 = vpop.f32.mrf.mxu0
      %v1055 = vadd.f32 0.0, %v1054
      %v1056 = vpop.f32.mrf.mxu0
      %1057 = vmatprep.mubr.f32.mxu0 0.0
      %1058 = vmatmul.mubr.f32.gmra.mxu0 %v926
      %v1059 = vpop.f32.mrf.mxu0
      %v1060 = vadd.f32 0.0, %v1059
      %v1061 = vpop.f32.mrf.mxu0
      %1062 = vmatprep.mubr.f32.mxu0 0.0
      %1063 = vmatmul.mubr.f32.gmra.mxu0 %v929
      %v1064 = vpop.f32.mrf.mxu0
      %v1065 = vadd.f32 0.0, %v1064
      %v1066 = vpop.f32.mrf.mxu0
      %1067 = vmatprep.mubr.f32.mxu0 0.0
      %1068 = vmatmul.mubr.f32.gmra.mxu0 %v932
      %v1069 = vpop.f32.mrf.mxu0
      %v1070 = vadd.f32 0.0, %v1069
      %v1071 = vpop.f32.mrf.mxu0
      %1072 = vmatprep.mubr.f32.mxu0 0.0
      %1073 = vmatmul.mubr.f32.gmra.mxu0 %v935
      %v1074 = vpop.f32.mrf.mxu0
      %v1075 = vadd.f32 0.0, %v1074
      %v1076 = vpop.f32.mrf.mxu0
      %1077 = vmatprep.mubr.f32.mxu0 0.0
      %1078 = vmatmul.mubr.f32.gmra.mxu0 %v938
      %v1079 = vpop.f32.mrf.mxu0
      %v1080 = vadd.f32 0.0, %v1079
      %v1081 = vpop.f32.mrf.mxu0
      %1082 = vmatprep.mubr.f32.mxu0 0.0
      %1083 = vmatmul.mubr.f32.gmra.mxu0 %v941
      %v1084 = vpop.f32.mrf.mxu0
      %v1085 = vadd.f32 0.0, %v1084
      %v1086 = vpop.f32.mrf.mxu0
      %1087 = vdwg.mxu0
      %v1088 = vld [vmem:[#allocation2] sm:$0xff]
      %v1089 = vld [vmem:[#allocation2 + $0x8] sm:$0xff]
      %v1090 = vld [vmem:[#allocation2 + $0x10] sm:$0xff]
      %v1091 = vld [vmem:[#allocation2 + $0x18] sm:$0xff]
      %v1092 = vld [vmem:[#allocation2 + $0x20] sm:$0xff]
      %v1093 = vld [vmem:[#allocation2 + $0x28] sm:$0xff]
      %v1094 = vld [vmem:[#allocation2 + $0x30] sm:$0xff]
      %v1095 = vld [vmem:[#allocation2 + $0x38] sm:$0xff]
      %v1096 = vld [vmem:[#allocation2 + $0x40] sm:$0xff]
      %v1097 = vld [vmem:[#allocation2 + $0x48] sm:$0xff]
      %v1098 = vld [vmem:[#allocation2 + $0x50] sm:$0xff]
      %v1099 = vld [vmem:[#allocation2 + $0x58] sm:$0xff]
      %v1100 = vld [vmem:[#allocation2 + $0x60] sm:$0xff]
      %v1101 = vld [vmem:[#allocation2 + $0x68] sm:$0xff]
      %v1102 = vld [vmem:[#allocation2 + $0x70] sm:$0xff]
      %v1103 = vld [vmem:[#allocation2 + $0x78] sm:$0xff]
      %v1104 = vld [vmem:[#allocation3] sm:$0xff]
      %v1105 = vld [vmem:[#allocation3 + $0x8] sm:$0xff]
      %v1106 = vld [vmem:[#allocation3 + $0x10] sm:$0xff]
      %v1107 = vld [vmem:[#allocation3 + $0x18] sm:$0xff]
      %v1108 = vld [vmem:[#allocation3 + $0x20] sm:$0xff]
      %v1109 = vld [vmem:[#allocation3 + $0x28] sm:$0xff]
      %v1110 = vld [vmem:[#allocation3 + $0x30] sm:$0xff]
      %v1111 = vld [vmem:[#allocation3 + $0x38] sm:$0xff]
      %v1112 = vld [vmem:[#allocation3 + $0x40] sm:$0xff]
      %v1113 = vld [vmem:[#allocation3 + $0x48] sm:$0xff]
      %v1114 = vld [vmem:[#allocation3 + $0x50] sm:$0xff]
      %v1115 = vld [vmem:[#allocation3 + $0x58] sm:$0xff]
      %v1116 = vld [vmem:[#allocation3 + $0x60] sm:$0xff]
      %v1117 = vld [vmem:[#allocation3 + $0x68] sm:$0xff]
      %v1118 = vld [vmem:[#allocation3 + $0x70] sm:$0xff]
      %v1119 = vld [vmem:[#allocation3 + $0x78] sm:$0xff]
      %vm1120 = vcmask 64512
      %v1122 = vsel %vm1120, %v1010, 0
      %v1125 = vsel %vm1120, %v1015, 0
      %v1128 = vsel %vm1120, %v1020, 0
      %v1131 = vsel %vm1120, %v1025, 0
      %v1134 = vsel %vm1120, %v1030, 0
      %v1137 = vsel %vm1120, %v1035, 0
      %v1140 = vsel %vm1120, %v1040, 0
      %v1143 = vsel %vm1120, %v1045, 0
      %v1146 = vsel %vm1120, %v1050, 0
      %v1149 = vsel %vm1120, %v1055, 0
      %v1152 = vsel %vm1120, %v1060, 0
      %v1155 = vsel %vm1120, %v1065, 0
      %v1158 = vsel %vm1120, %v1070, 0
      %v1161 = vsel %vm1120, %v1075, 0
      %v1164 = vsel %vm1120, %v1080, 0
      %v1167 = vsel %vm1120, %v1085, 0
      %v1170 = vsel %vm1120, %v1088, 0
      %v1173 = vsel %vm1120, %v1089, 0
      %v1176 = vsel %vm1120, %v1090, 0
      %v1179 = vsel %vm1120, %v1091, 0
      %v1182 = vsel %vm1120, %v1092, 0
      %v1185 = vsel %vm1120, %v1093, 0
      %v1188 = vsel %vm1120, %v1094, 0
      %v1191 = vsel %vm1120, %v1095, 0
      %v1194 = vsel %vm1120, %v1096, 0
      %v1197 = vsel %vm1120, %v1097, 0
      %v1200 = vsel %vm1120, %v1098, 0
      %v1203 = vsel %vm1120, %v1099, 0
      %v1206 = vsel %vm1120, %v1100, 0
      %v1209 = vsel %vm1120, %v1101, 0
      %v1212 = vsel %vm1120, %v1102, 0
      %v1215 = vsel %vm1120, %v1103, 0
      %1217 = vmatprep.subr.mxu0 0.0
      %1218 = vmatpush1.xpose.msra.mxu0 %v1215
      %1219 = vmatprep.subr.mxu0 0.0
      %1220 = vmatpush1.xpose.msra.mxu0 %v1212
      %1221 = vmatprep.subr.mxu0 0.0
      %1222 = vmatpush1.xpose.msra.mxu0 %v1209
      %1223 = vmatprep.subr.mxu0 0.0
      %1224 = vmatpush1.xpose.msra.mxu0 %v1206
      %1225 = vmatprep.subr.mxu0 0.0
      %1226 = vmatpush1.xpose.msra.mxu0 %v1203
      %1227 = vmatprep.subr.mxu0 0.0
      %1228 = vmatpush1.xpose.msra.mxu0 %v1200
      %1229 = vmatprep.subr.mxu0 0.0
      %1230 = vmatpush1.xpose.msra.mxu0 %v1197
      %1231 = vmatprep.subr.mxu0 0.0
      %1232 = vmatpush1.xpose.msra.mxu0 %v1194
      %1233 = vmatprep.subr.mxu0 0.0
      %1234 = vmatpush1.xpose.msra.mxu0 %v1191
      %1235 = vmatprep.subr.mxu0 0.0
      %1236 = vmatpush1.xpose.msra.mxu0 %v1188
      %1237 = vmatprep.subr.mxu0 0.0
      %1238 = vmatpush1.xpose.msra.mxu0 %v1185
      %1239 = vmatprep.subr.mxu0 0.0
      %1240 = vmatpush1.xpose.msra.mxu0 %v1182
      %1241 = vmatprep.subr.mxu0 0.0
      %1242 = vmatpush1.xpose.msra.mxu0 %v1179
      %1243 = vmatprep.subr.mxu0 0.0
      %1244 = vmatpush1.xpose.msra.mxu0 %v1176
      %1245 = vmatprep.subr.mxu0 0.0
      %1246 = vmatpush1.xpose.msra.mxu0 %v1173
      %1247 = vmatprep.subr.mxu0 0.0
      %1248 = vmatpush1.xpose.msra.mxu0 %v1170
      %1249 = vmatprep.subr.mxu0 0.0
      %1250 = vmatpush2.xpose.msra.mxu0 0.0
      %1251 = vmatprep.subr.mxu0 0.0
      %1252 = vmatpush2.xpose.msra.mxu0 0.0
      %1253 = vmatprep.subr.mxu0 0.0
      %1254 = vmatpush2.xpose.msra.mxu0 0.0
      %1255 = vmatprep.subr.mxu0 0.0
      %1256 = vmatpush2.xpose.msra.mxu0 0.0
      %1257 = vmatprep.subr.mxu0 0.0
      %1258 = vmatpush2.xpose.msra.mxu0 0.0
      %1259 = vmatprep.subr.mxu0 0.0
      %1260 = vmatpush2.xpose.msra.mxu0 0.0
      %1261 = vmatprep.subr.mxu0 0.0
      %1262 = vmatpush2.xpose.msra.mxu0 0.0
      %1263 = vmatprep.subr.mxu0 0.0
      %1264 = vmatpush2.xpose.msra.mxu0 0.0
      %1265 = vmatprep.subr.mxu0 0.0
      %1266 = vmatpush2.xpose.msra.mxu0 0.0
      %1267 = vmatprep.subr.mxu0 0.0
      %1268 = vmatpush2.xpose.msra.mxu0 0.0
      %1269 = vmatprep.subr.mxu0 0.0
      %1270 = vmatpush2.xpose.msra.mxu0 0.0
      %1271 = vmatprep.subr.mxu0 0.0
      %1272 = vmatpush2.xpose.msra.mxu0 0.0
      %1273 = vmatprep.subr.mxu0 0.0
      %1274 = vmatpush2.xpose.msra.mxu0 0.0
      %1275 = vmatprep.subr.mxu0 0.0
      %1276 = vmatpush2.xpose.msra.mxu0 0.0
      %1277 = vmatprep.subr.mxu0 0.0
      %1278 = vmatpush2.xpose.msra.mxu0 0.0
      %1279 = vmatprep.subr.mxu0 0.0
      %1280 = vmatpush2.xpose.msra.mxu0 0.0
      %1281 = vmatprep.mubr.f32.mxu0 0.0
      %1282 = vmatmul.mubr.f32.gmra.mxu0 %v1122
      %v1283 = vpop.f32.mrf.mxu0
      %v1284 = vadd.f32 0.0, %v1283
      %v1285 = vpop.f32.mrf.mxu0
      %1286 = vmatprep.mubr.f32.mxu0 0.0
      %1287 = vmatmul.mubr.f32.gmra.mxu0 %v1125
      %v1288 = vpop.f32.mrf.mxu0
      %v1289 = vadd.f32 0.0, %v1288
      %v1290 = vpop.f32.mrf.mxu0
      %1291 = vmatprep.mubr.f32.mxu0 0.0
      %1292 = vmatmul.mubr.f32.gmra.mxu0 %v1128
      %v1293 = vpop.f32.mrf.mxu0
      %v1294 = vadd.f32 0.0, %v1293
      %v1295 = vpop.f32.mrf.mxu0
      %1296 = vmatprep.mubr.f32.mxu0 0.0
      %1297 = vmatmul.mubr.f32.gmra.mxu0 %v1131
      %v1298 = vpop.f32.mrf.mxu0
      %v1299 = vadd.f32 0.0, %v1298
      %v1300 = vpop.f32.mrf.mxu0
      %1301 = vmatprep.mubr.f32.mxu0 0.0
      %1302 = vmatmul.mubr.f32.gmra.mxu0 %v1134
      %v1303 = vpop.f32.mrf.mxu0
      %v1304 = vadd.f32 0.0, %v1303
      %v1305 = vpop.f32.mrf.mxu0
      %1306 = vmatprep.mubr.f32.mxu0 0.0
      %1307 = vmatmul.mubr.f32.gmra.mxu0 %v1137
      %v1308 = vpop.f32.mrf.mxu0
      %v1309 = vadd.f32 0.0, %v1308
      %v1310 = vpop.f32.mrf.mxu0
      %1311 = vmatprep.mubr.f32.mxu0 0.0
      %1312 = vmatmul.mubr.f32.gmra.mxu0 %v1140
      %v1313 = vpop.f32.mrf.mxu0
      %v1314 = vadd.f32 0.0, %v1313
      %v1315 = vpop.f32.mrf.mxu0
      %1316 = vmatprep.mubr.f32.mxu0 0.0
      %1317 = vmatmul.mubr.f32.gmra.mxu0 %v1143
      %v1318 = vpop.f32.mrf.mxu0
      %v1319 = vadd.f32 0.0, %v1318
      %v1320 = vpop.f32.mrf.mxu0
      %1321 = vmatprep.mubr.f32.mxu0 0.0
      %1322 = vmatmul.mubr.f32.gmra.mxu0 %v1146
      %v1323 = vpop.f32.mrf.mxu0
      %v1324 = vadd.f32 0.0, %v1323
      %v1325 = vpop.f32.mrf.mxu0
      %1326 = vmatprep.mubr.f32.mxu0 0.0
      %1327 = vmatmul.mubr.f32.gmra.mxu0 %v1149
      %v1328 = vpop.f32.mrf.mxu0
      %v1329 = vadd.f32 0.0, %v1328
      %v1330 = vpop.f32.mrf.mxu0
      %1331 = vmatprep.mubr.f32.mxu0 0.0
      %1332 = vmatmul.mubr.f32.gmra.mxu0 %v1152
      %v1333 = vpop.f32.mrf.mxu0
      %v1334 = vadd.f32 0.0, %v1333
      %v1335 = vpop.f32.mrf.mxu0
      %1336 = vmatprep.mubr.f32.mxu0 0.0
      %1337 = vmatmul.mubr.f32.gmra.mxu0 %v1155
      %v1338 = vpop.f32.mrf.mxu0
      %v1339 = vadd.f32 0.0, %v1338
      %v1340 = vpop.f32.mrf.mxu0
      %1341 = vmatprep.mubr.f32.mxu0 0.0
      %1342 = vmatmul.mubr.f32.gmra.mxu0 %v1158
      %v1343 = vpop.f32.mrf.mxu0
      %v1344 = vadd.f32 0.0, %v1343
      %v1345 = vpop.f32.mrf.mxu0
      %1346 = vmatprep.mubr.f32.mxu0 0.0
      %1347 = vmatmul.mubr.f32.gmra.mxu0 %v1161
      %v1348 = vpop.f32.mrf.mxu0
      %v1349 = vadd.f32 0.0, %v1348
      %v1350 = vpop.f32.mrf.mxu0
      %1351 = vmatprep.mubr.f32.mxu0 0.0
      %1352 = vmatmul.mubr.f32.gmra.mxu0 %v1164
      %v1353 = vpop.f32.mrf.mxu0
      %v1354 = vadd.f32 0.0, %v1353
      %v1355 = vpop.f32.mrf.mxu0
      %1356 = vmatprep.mubr.f32.mxu0 0.0
      %1357 = vmatmul.mubr.f32.gmra.mxu0 %v1167
      %v1358 = vpop.f32.mrf.mxu0
      %v1359 = vadd.f32 0.0, %v1358
      %v1360 = vpop.f32.mrf.mxu0
      %1361 = vdwg.mxu0
      %v1362 = vsel %vm874, %v1284, -1e+30
      %v1363 = vsel %vm874, %v1289, -1e+30
      %v1364 = vsel %vm874, %v1294, -1e+30
      %v1365 = vsel %vm874, %v1299, -1e+30
      %v1366 = vsel %vm874, %v1304, -1e+30
      %v1367 = vsel %vm874, %v1309, -1e+30
      %v1368 = vsel %vm874, %v1314, -1e+30
      %v1369 = vsel %vm874, %v1319, -1e+30
      %v1370 = vsel %vm874, %v1324, -1e+30
      %v1371 = vsel %vm874, %v1329, -1e+30
      %v1372 = vsel %vm874, %v1334, -1e+30
      %v1373 = vsel %vm874, %v1339, -1e+30
      %v1374 = vsel %vm874, %v1344, -1e+30
      %v1375 = vsel %vm874, %v1349, -1e+30
      %v1376 = vsel %vm874, %v1354, -1e+30
      %v1377 = vsel %vm874, %v1359, -1e+30
      %1378 = vmax.xlane.f32.xlu0 %v1362
      %v1379 = vpop.xlane.xlu0 %1378
      %1380 = vmax.xlane.f32.xlu0 %v1363
      %v1381 = vpop.xlane.xlu0 %1380
      %1382 = vmax.xlane.f32.xlu0 %v1364
      %v1383 = vpop.xlane.xlu0 %1382
      %1384 = vmax.xlane.f32.xlu0 %v1365
      %v1385 = vpop.xlane.xlu0 %1384
      %1386 = vmax.xlane.f32.xlu0 %v1366
      %v1387 = vpop.xlane.xlu0 %1386
      %1388 = vmax.xlane.f32.xlu0 %v1367
      %v1389 = vpop.xlane.xlu0 %1388
      %1390 = vmax.xlane.f32.xlu0 %v1368
      %v1391 = vpop.xlane.xlu0 %1390
      %1392 = vmax.xlane.f32.xlu0 %v1369
      %v1393 = vpop.xlane.xlu0 %1392
      %1394 = vmax.xlane.f32.xlu0 %v1370
      %v1395 = vpop.xlane.xlu0 %1394
      %1396 = vmax.xlane.f32.xlu0 %v1371
      %v1397 = vpop.xlane.xlu0 %1396
      %1398 = vmax.xlane.f32.xlu0 %v1372
      %v1399 = vpop.xlane.xlu0 %1398
      %1400 = vmax.xlane.f32.xlu0 %v1373
      %v1401 = vpop.xlane.xlu0 %1400
      %1402 = vmax.xlane.f32.xlu0 %v1374
      %v1403 = vpop.xlane.xlu0 %1402
      %1404 = vmax.xlane.f32.xlu0 %v1375
      %v1405 = vpop.xlane.xlu0 %1404
      %1406 = vmax.xlane.f32.xlu0 %v1376
      %v1407 = vpop.xlane.xlu0 %1406
      %1408 = vmax.xlane.f32.xlu0 %v1377
      %v1409 = vpop.xlane.xlu0 %1408
      %v1410 = vsub.f32 %v1362, %v1379
      %v1411 = vsub.f32 %v1363, %v1381
      %v1412 = vsub.f32 %v1364, %v1383
      %v1413 = vsub.f32 %v1365, %v1385
      %v1414 = vsub.f32 %v1366, %v1387
      %v1415 = vsub.f32 %v1367, %v1389
      %v1416 = vsub.f32 %v1368, %v1391
      %v1417 = vsub.f32 %v1369, %v1393
      %v1418 = vsub.f32 %v1370, %v1395
      %v1419 = vsub.f32 %v1371, %v1397
      %v1420 = vsub.f32 %v1372, %v1399
      %v1421 = vsub.f32 %v1373, %v1401
      %v1422 = vsub.f32 %v1374, %v1403
      %v1423 = vsub.f32 %v1375, %v1405
      %v1424 = vsub.f32 %v1376, %v1407
      %v1425 = vsub.f32 %v1377, %v1409
      %v1426 = vmul.f32 %v1410, 1.442695
      %v1427 = vpow.pop %v1426
      %v1428 = vmul.f32 %v1411, 1.442695
      %v1429 = vpow.pop %v1428
      %v1430 = vmul.f32 %v1412, 1.442695
      %v1431 = vpow.pop %v1430
      %v1432 = vmul.f32 %v1413, 1.442695
      %v1433 = vpow.pop %v1432
      %v1434 = vmul.f32 %v1414, 1.442695
      %v1435 = vpow.pop %v1434
      %v1436 = vmul.f32 %v1415, 1.442695
      %v1437 = vpow.pop %v1436
      %v1438 = vmul.f32 %v1416, 1.442695
      %v1439 = vpow.pop %v1438
      %v1440 = vmul.f32 %v1417, 1.442695
      %v1441 = vpow.pop %v1440
      %v1442 = vmul.f32 %v1418, 1.442695
      %v1443 = vpow.pop %v1442
      %v1444 = vmul.f32 %v1419, 1.442695
      %v1445 = vpow.pop %v1444
      %v1446 = vmul.f32 %v1420, 1.442695
      %v1447 = vpow.pop %v1446
      %v1448 = vmul.f32 %v1421, 1.442695
      %v1449 = vpow.pop %v1448
      %v1450 = vmul.f32 %v1422, 1.442695
      %v1451 = vpow.pop %v1450
      %v1452 = vmul.f32 %v1423, 1.442695
      %v1453 = vpow.pop %v1452
      %v1454 = vmul.f32 %v1424, 1.442695
      %v1455 = vpow.pop %v1454
      %v1456 = vmul.f32 %v1425, 1.442695
      %v1457 = vpow.pop %v1456
      %1458 = vadd.xlane.f32.xlu0 %v1427
      %v1459 = vpop.xlane.xlu0 %1458
      %1460 = vadd.xlane.f32.xlu0 %v1429
      %v1461 = vpop.xlane.xlu0 %1460
      %1462 = vadd.xlane.f32.xlu0 %v1431
      %v1463 = vpop.xlane.xlu0 %1462
      %1464 = vadd.xlane.f32.xlu0 %v1433
      %v1465 = vpop.xlane.xlu0 %1464
      %1466 = vadd.xlane.f32.xlu0 %v1435
      %v1467 = vpop.xlane.xlu0 %1466
      %1468 = vadd.xlane.f32.xlu0 %v1437
      %v1469 = vpop.xlane.xlu0 %1468
      %1470 = vadd.xlane.f32.xlu0 %v1439
      %v1471 = vpop.xlane.xlu0 %1470
      %1472 = vadd.xlane.f32.xlu0 %v1441
      %v1473 = vpop.xlane.xlu0 %1472
      %1474 = vadd.xlane.f32.xlu0 %v1443
      %v1475 = vpop.xlane.xlu0 %1474
      %1476 = vadd.xlane.f32.xlu0 %v1445
      %v1477 = vpop.xlane.xlu0 %1476
      %1478 = vadd.xlane.f32.xlu0 %v1447
      %v1479 = vpop.xlane.xlu0 %1478
      %1480 = vadd.xlane.f32.xlu0 %v1449
      %v1481 = vpop.xlane.xlu0 %1480
      %1482 = vadd.xlane.f32.xlu0 %v1451
      %v1483 = vpop.xlane.xlu0 %1482
      %1484 = vadd.xlane.f32.xlu0 %v1453
      %v1485 = vpop.xlane.xlu0 %1484
      %1486 = vadd.xlane.f32.xlu0 %v1455
      %v1487 = vpop.xlane.xlu0 %1486
      %1488 = vadd.xlane.f32.xlu0 %v1457
      %v1489 = vpop.xlane.xlu0 %1488
      %v1490 = vrcp.pop %v1459
      %v1491 = vrcp.pop %v1461
      %v1492 = vrcp.pop %v1463
      %v1493 = vrcp.pop %v1465
      %v1494 = vrcp.pop %v1467
      %v1495 = vrcp.pop %v1469
      %v1496 = vrcp.pop %v1471
      %v1497 = vrcp.pop %v1473
      %v1498 = vrcp.pop %v1475
      %v1499 = vrcp.pop %v1477
      %v1500 = vrcp.pop %v1479
      %v1501 = vrcp.pop %v1481
      %v1502 = vrcp.pop %v1483
      %v1503 = vrcp.pop %v1485
      %v1504 = vrcp.pop %v1487
      %v1505 = vrcp.pop %v1489
      %v1506 = vmul.f32 %v1427, %v1490
      %v1507 = vmul.f32 %v1429, %v1491
      %v1508 = vmul.f32 %v1431, %v1492
      %v1509 = vmul.f32 %v1433, %v1493
      %v1510 = vmul.f32 %v1435, %v1494
      %v1511 = vmul.f32 %v1437, %v1495
      %v1512 = vmul.f32 %v1439, %v1496
      %v1513 = vmul.f32 %v1441, %v1497
      %v1514 = vmul.f32 %v1443, %v1498
      %v1515 = vmul.f32 %v1445, %v1499
      %v1516 = vmul.f32 %v1447, %v1500
      %v1517 = vmul.f32 %v1449, %v1501
      %v1518 = vmul.f32 %v1451, %v1502
      %v1519 = vmul.f32 %v1453, %v1503
      %v1520 = vmul.f32 %v1455, %v1504
      %v1521 = vmul.f32 %v1457, %v1505
      %1522 = vmatprep.subr.mxu0 0.0
      %1523 = vmatpush1.msra.mxu0 %v1119
      %1524 = vmatprep.subr.mxu0 0.0
      %1525 = vmatpush1.msra.mxu0 %v1118
      %1526 = vmatprep.subr.mxu0 0.0
      %1527 = vmatpush1.msra.mxu0 %v1117
      %1528 = vmatprep.subr.mxu0 0.0
      %1529 = vmatpush1.msra.mxu0 %v1116
      %1530 = vmatprep.subr.mxu0 0.0
      %1531 = vmatpush1.msra.mxu0 %v1115
      %1532 = vmatprep.subr.mxu0 0.0
      %1533 = vmatpush1.msra.mxu0 %v1114
      %1534 = vmatprep.subr.mxu0 0.0
      %1535 = vmatpush1.msra.mxu0 %v1113
      %1536 = vmatprep.subr.mxu0 0.0
      %1537 = vmatpush1.msra.mxu0 %v1112
      %1538 = vmatprep.subr.mxu0 0.0
      %1539 = vmatpush1.msra.mxu0 %v1111
      %1540 = vmatprep.subr.mxu0 0.0
      %1541 = vmatpush1.msra.mxu0 %v1110
      %1542 = vmatprep.subr.mxu0 0.0
      %1543 = vmatpush1.msra.mxu0 %v1109
      %1544 = vmatprep.subr.mxu0 0.0
      %1545 = vmatpush1.msra.mxu0 %v1108
      %1546 = vmatprep.subr.mxu0 0.0
      %1547 = vmatpush1.msra.mxu0 %v1107
      %1548 = vmatprep.subr.mxu0 0.0
      %1549 = vmatpush1.msra.mxu0 %v1106
      %1550 = vmatprep.subr.mxu0 0.0
      %1551 = vmatpush1.msra.mxu0 %v1105
      %1552 = vmatprep.subr.mxu0 0.0
      %1553 = vmatpush1.msra.mxu0 %v1104
      %1554 = vmatprep.subr.mxu0 0.0
      %1555 = vmatpush2.msra.mxu0 0.0
      %1556 = vmatprep.subr.mxu0 0.0
      %1557 = vmatpush2.msra.mxu0 0.0
      %1558 = vmatprep.subr.mxu0 0.0
      %1559 = vmatpush2.msra.mxu0 0.0
      %1560 = vmatprep.subr.mxu0 0.0
      %1561 = vmatpush2.msra.mxu0 0.0
      %1562 = vmatprep.subr.mxu0 0.0
      %1563 = vmatpush2.msra.mxu0 0.0
      %1564 = vmatprep.subr.mxu0 0.0
      %1565 = vmatpush2.msra.mxu0 0.0
      %1566 = vmatprep.subr.mxu0 0.0
      %1567 = vmatpush2.msra.mxu0 0.0
      %1568 = vmatprep.subr.mxu0 0.0
      %1569 = vmatpush2.msra.mxu0 0.0
      %1570 = vmatprep.subr.mxu0 0.0
      %1571 = vmatpush2.msra.mxu0 0.0
      %1572 = vmatprep.subr.mxu0 0.0
      %1573 = vmatpush2.msra.mxu0 0.0
      %1574 = vmatprep.subr.mxu0 0.0
      %1575 = vmatpush2.msra.mxu0 0.0
      %1576 = vmatprep.subr.mxu0 0.0
      %1577 = vmatpush2.msra.mxu0 0.0
      %1578 = vmatprep.subr.mxu0 0.0
      %1579 = vmatpush2.msra.mxu0 0.0
      %1580 = vmatprep.subr.mxu0 0.0
      %1581 = vmatpush2.msra.mxu0 0.0
      %1582 = vmatprep.subr.mxu0 0.0
      %1583 = vmatpush2.msra.mxu0 0.0
      %1584 = vmatprep.subr.mxu0 0.0
      %1585 = vmatpush2.msra.mxu0 0.0
      %1586 = vmatprep.mubr.f32.mxu0 0.0
      %1587 = vmatmul.mubr.f32.gmra.mxu0 %v1506
      %v1588 = vpop.f32.mrf.mxu0
      %v1589 = vadd.f32 0.0, %v1588
      %v1590 = vpop.f32.mrf.mxu0
      %1591 = vmatprep.mubr.f32.mxu0 0.0
      %1592 = vmatmul.mubr.f32.gmra.mxu0 %v1507
      %v1593 = vpop.f32.mrf.mxu0
      %v1594 = vadd.f32 0.0, %v1593
      %v1595 = vpop.f32.mrf.mxu0
      %1596 = vmatprep.mubr.f32.mxu0 0.0
      %1597 = vmatmul.mubr.f32.gmra.mxu0 %v1508
      %v1598 = vpop.f32.mrf.mxu0
      %v1599 = vadd.f32 0.0, %v1598
      %v1600 = vpop.f32.mrf.mxu0
      %1601 = vmatprep.mubr.f32.mxu0 0.0
      %1602 = vmatmul.mubr.f32.gmra.mxu0 %v1509
      %v1603 = vpop.f32.mrf.mxu0
      %v1604 = vadd.f32 0.0, %v1603
      %v1605 = vpop.f32.mrf.mxu0
      %1606 = vmatprep.mubr.f32.mxu0 0.0
      %1607 = vmatmul.mubr.f32.gmra.mxu0 %v1510
      %v1608 = vpop.f32.mrf.mxu0
      %v1609 = vadd.f32 0.0, %v1608
      %v1610 = vpop.f32.mrf.mxu0
      %1611 = vmatprep.mubr.f32.mxu0 0.0
      %1612 = vmatmul.mubr.f32.gmra.mxu0 %v1511
      %v1613 = vpop.f32.mrf.mxu0
      %v1614 = vadd.f32 0.0, %v1613
      %v1615 = vpop.f32.mrf.mxu0
      %1616 = vmatprep.mubr.f32.mxu0 0.0
      %1617 = vmatmul.mubr.f32.gmra.mxu0 %v1512
      %v1618 = vpop.f32.mrf.mxu0
      %v1619 = vadd.f32 0.0, %v1618
      %v1620 = vpop.f32.mrf.mxu0
      %1621 = vmatprep.mubr.f32.mxu0 0.0
      %1622 = vmatmul.mubr.f32.gmra.mxu0 %v1513
      %v1623 = vpop.f32.mrf.mxu0
      %v1624 = vadd.f32 0.0, %v1623
      %v1625 = vpop.f32.mrf.mxu0
      %1626 = vmatprep.mubr.f32.mxu0 0.0
      %1627 = vmatmul.mubr.f32.gmra.mxu0 %v1514
      %v1628 = vpop.f32.mrf.mxu0
      %v1629 = vadd.f32 0.0, %v1628
      %v1630 = vpop.f32.mrf.mxu0
      %1631 = vmatprep.mubr.f32.mxu0 0.0
      %1632 = vmatmul.mubr.f32.gmra.mxu0 %v1515
      %v1633 = vpop.f32.mrf.mxu0
      %v1634 = vadd.f32 0.0, %v1633
      %v1635 = vpop.f32.mrf.mxu0
      %1636 = vmatprep.mubr.f32.mxu0 0.0
      %1637 = vmatmul.mubr.f32.gmra.mxu0 %v1516
      %v1638 = vpop.f32.mrf.mxu0
      %v1639 = vadd.f32 0.0, %v1638
      %v1640 = vpop.f32.mrf.mxu0
      %1641 = vmatprep.mubr.f32.mxu0 0.0
      %1642 = vmatmul.mubr.f32.gmra.mxu0 %v1517
      %v1643 = vpop.f32.mrf.mxu0
      %v1644 = vadd.f32 0.0, %v1643
      %v1645 = vpop.f32.mrf.mxu0
      %1646 = vmatprep.mubr.f32.mxu0 0.0
      %1647 = vmatmul.mubr.f32.gmra.mxu0 %v1518
      %v1648 = vpop.f32.mrf.mxu0
      %v1649 = vadd.f32 0.0, %v1648
      %v1650 = vpop.f32.mrf.mxu0
      %1651 = vmatprep.mubr.f32.mxu0 0.0
      %1652 = vmatmul.mubr.f32.gmra.mxu0 %v1519
      %v1653 = vpop.f32.mrf.mxu0
      %v1654 = vadd.f32 0.0, %v1653
      %v1655 = vpop.f32.mrf.mxu0
      %1656 = vmatprep.mubr.f32.mxu0 0.0
      %1657 = vmatmul.mubr.f32.gmra.mxu0 %v1520
      %v1658 = vpop.f32.mrf.mxu0
      %v1659 = vadd.f32 0.0, %v1658
      %v1660 = vpop.f32.mrf.mxu0
      %1661 = vmatprep.mubr.f32.mxu0 0.0
      %1662 = vmatmul.mubr.f32.gmra.mxu0 %v1521
      %v1663 = vpop.f32.mrf.mxu0
      %v1664 = vadd.f32 0.0, %v1663
      %v1665 = vpop.f32.mrf.mxu0
      %1666 = vdwg.mxu0
      %v1667 = vld [vmem:[#allocation4] sm:$0xff]
      %v1668 = vld [vmem:[#allocation4 + $0x8] sm:$0xff]
      %v1669 = vld [vmem:[#allocation4 + $0x10] sm:$0xff]
      %v1670 = vld [vmem:[#allocation4 + $0x18] sm:$0xff]
      %v1671 = vld [vmem:[#allocation4 + $0x20] sm:$0xff]
      %v1672 = vld [vmem:[#allocation4 + $0x28] sm:$0xff]
      %v1673 = vld [vmem:[#allocation4 + $0x30] sm:$0xff]
      %v1674 = vld [vmem:[#allocation4 + $0x38] sm:$0xff]
      %v1675 = vld [vmem:[#allocation4 + $0x40] sm:$0xff]
      %v1676 = vld [vmem:[#allocation4 + $0x48] sm:$0xff]
      %v1677 = vld [vmem:[#allocation4 + $0x50] sm:$0xff]
      %v1678 = vld [vmem:[#allocation4 + $0x58] sm:$0xff]
      %v1679 = vld [vmem:[#allocation4 + $0x60] sm:$0xff]
      %v1680 = vld [vmem:[#allocation4 + $0x68] sm:$0xff]
      %v1681 = vld [vmem:[#allocation4 + $0x70] sm:$0xff]
      %v1682 = vld [vmem:[#allocation4 + $0x78] sm:$0xff]
      %v1683 = vld [vmem:[%s6] sm:$0xff]
      %v1685 = vsel %vm1120, %v1589, 0
      %v1688 = vsel %vm1120, %v1594, 0
      %v1691 = vsel %vm1120, %v1599, 0
      %v1694 = vsel %vm1120, %v1604, 0
      %v1697 = vsel %vm1120, %v1609, 0
      %v1700 = vsel %vm1120, %v1614, 0
      %v1703 = vsel %vm1120, %v1619, 0
      %v1706 = vsel %vm1120, %v1624, 0
      %v1709 = vsel %vm1120, %v1629, 0
      %v1712 = vsel %vm1120, %v1634, 0
      %v1715 = vsel %vm1120, %v1639, 0
      %v1718 = vsel %vm1120, %v1644, 0
      %v1721 = vsel %vm1120, %v1649, 0
      %v1724 = vsel %vm1120, %v1654, 0
      %v1727 = vsel %vm1120, %v1659, 0
      %v1730 = vsel %vm1120, %v1664, 0
      %1732 = vmatprep.subr.mxu0 0.0
      %1733 = vmatpush1.msra.mxu0 0.0
      %1734 = vmatprep.subr.mxu0 0.0
      %1735 = vmatpush1.msra.mxu0 0.0
      %1736 = vmatprep.subr.mxu0 0.0
      %1737 = vmatpush1.msra.mxu0 0.0
      %1738 = vmatprep.subr.mxu0 0.0
      %1739 = vmatpush1.msra.mxu0 0.0
      %1740 = vmatprep.subr.mxu0 0.0
      %1741 = vmatpush1.msra.mxu0 0.0
      %1742 = vmatprep.subr.mxu0 0.0
      %1743 = vmatpush1.msra.mxu0 0.0
      %1744 = vmatprep.subr.mxu0 0.0
      %1745 = vmatpush1.msra.mxu0 0.0
      %1746 = vmatprep.subr.mxu0 0.0
      %1747 = vmatpush1.msra.mxu0 0.0
      %1748 = vmatprep.subr.mxu0 0.0
      %1749 = vmatpush1.msra.mxu0 0.0
      %1750 = vmatprep.subr.mxu0 0.0
      %1751 = vmatpush1.msra.mxu0 0.0
      %1752 = vmatprep.subr.mxu0 0.0
      %1753 = vmatpush1.msra.mxu0 0.0
      %1754 = vmatprep.subr.mxu0 0.0
      %1755 = vmatpush1.msra.mxu0 0.0
      %1756 = vmatprep.subr.mxu0 0.0
      %1757 = vmatpush1.msra.mxu0 0.0
      %1758 = vmatprep.subr.mxu0 0.0
      %1759 = vmatpush1.msra.mxu0 0.0
      %1760 = vmatprep.subr.mxu0 0.0
      %1761 = vmatpush1.msra.mxu0 0.0
      %1762 = vmatprep.subr.mxu0 0.0
      %1763 = vmatpush1.msra.mxu0 %v1683
      %1764 = vmatprep.subr.mxu0 0.0
      %1765 = vmatpush2.msra.mxu0 0.0
      %1766 = vmatprep.subr.mxu0 0.0
      %1767 = vmatpush2.msra.mxu0 0.0
      %1768 = vmatprep.subr.mxu0 0.0
      %1769 = vmatpush2.msra.mxu0 0.0
      %1770 = vmatprep.subr.mxu0 0.0
      %1771 = vmatpush2.msra.mxu0 0.0
      %1772 = vmatprep.subr.mxu0 0.0
      %1773 = vmatpush2.msra.mxu0 0.0
      %1774 = vmatprep.subr.mxu0 0.0
      %1775 = vmatpush2.msra.mxu0 0.0
      %1776 = vmatprep.subr.mxu0 0.0
      %1777 = vmatpush2.msra.mxu0 0.0
      %1778 = vmatprep.subr.mxu0 0.0
      %1779 = vmatpush2.msra.mxu0 0.0
      %1780 = vmatprep.subr.mxu0 0.0
      %1781 = vmatpush2.msra.mxu0 0.0
      %1782 = vmatprep.subr.mxu0 0.0
      %1783 = vmatpush2.msra.mxu0 0.0
      %1784 = vmatprep.subr.mxu0 0.0
      %1785 = vmatpush2.msra.mxu0 0.0
      %1786 = vmatprep.subr.mxu0 0.0
      %1787 = vmatpush2.msra.mxu0 0.0
      %1788 = vmatprep.subr.mxu0 0.0
      %1789 = vmatpush2.msra.mxu0 0.0
      %1790 = vmatprep.subr.mxu0 0.0
      %1791 = vmatpush2.msra.mxu0 0.0
      %1792 = vmatprep.subr.mxu0 0.0
      %1793 = vmatpush2.msra.mxu0 0.0
      %1794 = vmatprep.subr.mxu0 0.0
      %1795 = vmatpush2.msra.mxu0 0.0
      %1796 = vmatprep.mubr.f32.mxu0 0.0
      %1797 = vmatmul.mubr.f32.gmra.mxu0 %v1685
      %v1798 = vpop.f32.mrf.mxu0
      %v1799 = vadd.f32 0.0, %v1798
      %v1800 = vpop.f32.mrf.mxu0
      %1801 = vmatprep.mubr.f32.mxu0 0.0
      %1802 = vmatmul.mubr.f32.gmra.mxu0 %v1688
      %v1803 = vpop.f32.mrf.mxu0
      %v1804 = vadd.f32 0.0, %v1803
      %v1805 = vpop.f32.mrf.mxu0
      %1806 = vmatprep.mubr.f32.mxu0 0.0
      %1807 = vmatmul.mubr.f32.gmra.mxu0 %v1691
      %v1808 = vpop.f32.mrf.mxu0
      %v1809 = vadd.f32 0.0, %v1808
      %v1810 = vpop.f32.mrf.mxu0
      %1811 = vmatprep.mubr.f32.mxu0 0.0
      %1812 = vmatmul.mubr.f32.gmra.mxu0 %v1694
      %v1813 = vpop.f32.mrf.mxu0
      %v1814 = vadd.f32 0.0, %v1813
      %v1815 = vpop.f32.mrf.mxu0
      %1816 = vmatprep.mubr.f32.mxu0 0.0
      %1817 = vmatmul.mubr.f32.gmra.mxu0 %v1697
      %v1818 = vpop.f32.mrf.mxu0
      %v1819 = vadd.f32 0.0, %v1818
      %v1820 = vpop.f32.mrf.mxu0
      %1821 = vmatprep.mubr.f32.mxu0 0.0
      %1822 = vmatmul.mubr.f32.gmra.mxu0 %v1700
      %v1823 = vpop.f32.mrf.mxu0
      %v1824 = vadd.f32 0.0, %v1823
      %v1825 = vpop.f32.mrf.mxu0
      %1826 = vmatprep.mubr.f32.mxu0 0.0
      %1827 = vmatmul.mubr.f32.gmra.mxu0 %v1703
      %v1828 = vpop.f32.mrf.mxu0
      %v1829 = vadd.f32 0.0, %v1828
      %v1830 = vpop.f32.mrf.mxu0
      %1831 = vmatprep.mubr.f32.mxu0 0.0
      %1832 = vmatmul.mubr.f32.gmra.mxu0 %v1706
      %v1833 = vpop.f32.mrf.mxu0
      %v1834 = vadd.f32 0.0, %v1833
      %v1835 = vpop.f32.mrf.mxu0
      %1836 = vmatprep.mubr.f32.mxu0 0.0
      %1837 = vmatmul.mubr.f32.gmra.mxu0 %v1709
      %v1838 = vpop.f32.mrf.mxu0
      %v1839 = vadd.f32 0.0, %v1838
      %v1840 = vpop.f32.mrf.mxu0
      %1841 = vmatprep.mubr.f32.mxu0 0.0
      %1842 = vmatmul.mubr.f32.gmra.mxu0 %v1712
      %v1843 = vpop.f32.mrf.mxu0
      %v1844 = vadd.f32 0.0, %v1843
      %v1845 = vpop.f32.mrf.mxu0
      %1846 = vmatprep.mubr.f32.mxu0 0.0
      %1847 = vmatmul.mubr.f32.gmra.mxu0 %v1715
      %v1848 = vpop.f32.mrf.mxu0
      %v1849 = vadd.f32 0.0, %v1848
      %v1850 = vpop.f32.mrf.mxu0
      %1851 = vmatprep.mubr.f32.mxu0 0.0
      %1852 = vmatmul.mubr.f32.gmra.mxu0 %v1718
      %v1853 = vpop.f32.mrf.mxu0
      %v1854 = vadd.f32 0.0, %v1853
      %v1855 = vpop.f32.mrf.mxu0
      %1856 = vmatprep.mubr.f32.mxu0 0.0
      %1857 = vmatmul.mubr.f32.gmra.mxu0 %v1721
      %v1858 = vpop.f32.mrf.mxu0
      %v1859 = vadd.f32 0.0, %v1858
      %v1860 = vpop.f32.mrf.mxu0
      %1861 = vmatprep.mubr.f32.mxu0 0.0
      %1862 = vmatmul.mubr.f32.gmra.mxu0 %v1724
      %v1863 = vpop.f32.mrf.mxu0
      %v1864 = vadd.f32 0.0, %v1863
      %v1865 = vpop.f32.mrf.mxu0
      %1866 = vmatprep.mubr.f32.mxu0 0.0
      %1867 = vmatmul.mubr.f32.gmra.mxu0 %v1727
      %v1868 = vpop.f32.mrf.mxu0
      %v1869 = vadd.f32 0.0, %v1868
      %v1870 = vpop.f32.mrf.mxu0
      %1871 = vmatprep.mubr.f32.mxu0 0.0
      %1872 = vmatmul.mubr.f32.gmra.mxu0 %v1730
      %v1873 = vpop.f32.mrf.mxu0
      %v1874 = vadd.f32 0.0, %v1873
      %v1875 = vpop.f32.mrf.mxu0
      %1876 = vdwg.mxu0
      %v1877 = vadd.f32 %v1667, %v1799
      %v1878 = vadd.f32 %v1668, %v1804
      %v1879 = vadd.f32 %v1669, %v1809
      %v1880 = vadd.f32 %v1670, %v1814
      %v1881 = vadd.f32 %v1671, %v1819
      %v1882 = vadd.f32 %v1672, %v1824
      %v1883 = vadd.f32 %v1673, %v1829
      %v1884 = vadd.f32 %v1674, %v1834
      %v1885 = vadd.f32 %v1675, %v1839
      %v1886 = vadd.f32 %v1676, %v1844
      %v1887 = vadd.f32 %v1677, %v1849
      %v1888 = vadd.f32 %v1678, %v1854
      %v1889 = vadd.f32 %v1679, %v1859
      %v1890 = vadd.f32 %v1680, %v1864
      %v1891 = vadd.f32 %v1681, %v1869
      %v1892 = vadd.f32 %v1682, %v1874
      %1893 = vst.msk [vmem:[#allocation4] sm:$0xff] %vm855, %v1877
      %1894 = vst.msk [vmem:[#allocation4 + $0x8] sm:$0xff] %vm855, %v1878
      %1895 = vst.msk [vmem:[#allocation4 + $0x10] sm:$0xff] %vm855, %v1879
      %1896 = vst.msk [vmem:[#allocation4 + $0x18] sm:$0xff] %vm855, %v1880
      %1897 = vst.msk [vmem:[#allocation4 + $0x20] sm:$0xff] %vm855, %v1881
      %1898 = vst.msk [vmem:[#allocation4 + $0x28] sm:$0xff] %vm855, %v1882
      %1899 = vst.msk [vmem:[#allocation4 + $0x30] sm:$0xff] %vm855, %v1883
      %1900 = vst.msk [vmem:[#allocation4 + $0x38] sm:$0xff] %vm855, %v1884
      %1901 = vst.msk [vmem:[#allocation4 + $0x40] sm:$0xff] %vm855, %v1885
      %1902 = vst.msk [vmem:[#allocation4 + $0x48] sm:$0xff] %vm855, %v1886
      %1903 = vst.msk [vmem:[#allocation4 + $0x50] sm:$0xff] %vm855, %v1887
      %1904 = vst.msk [vmem:[#allocation4 + $0x58] sm:$0xff] %vm855, %v1888
      %1905 = vst.msk [vmem:[#allocation4 + $0x60] sm:$0xff] %vm855, %v1889
      %1906 = vst.msk [vmem:[#allocation4 + $0x68] sm:$0xff] %vm855, %v1890
      %1907 = vst.msk [vmem:[#allocation4 + $0x70] sm:$0xff] %vm855, %v1891
      %1908 = vst.msk [vmem:[#allocation4 + $0x78] sm:$0xff] %vm855, %v1892
      %v1909 = vld [vmem:[#allocation2] sm:$0xff]
      %v1910 = vld [vmem:[#allocation2 + $0x8] sm:$0xff]
      %v1911 = vld [vmem:[#allocation2 + $0x10] sm:$0xff]
      %v1912 = vld [vmem:[#allocation2 + $0x18] sm:$0xff]
      %v1913 = vld [vmem:[#allocation2 + $0x20] sm:$0xff]
      %v1914 = vld [vmem:[#allocation2 + $0x28] sm:$0xff]
      %v1915 = vld [vmem:[#allocation2 + $0x30] sm:$0xff]
      %v1916 = vld [vmem:[#allocation2 + $0x38] sm:$0xff]
      %v1917 = vld [vmem:[#allocation2 + $0x40] sm:$0xff]
      %v1918 = vld [vmem:[#allocation2 + $0x48] sm:$0xff]
      %v1919 = vld [vmem:[#allocation2 + $0x50] sm:$0xff]
      %v1920 = vld [vmem:[#allocation2 + $0x58] sm:$0xff]
      %v1921 = vld [vmem:[#allocation2 + $0x60] sm:$0xff]
      %v1922 = vld [vmem:[#allocation2 + $0x68] sm:$0xff]
      %v1923 = vld [vmem:[#allocation2 + $0x70] sm:$0xff]
      %v1924 = vld [vmem:[#allocation2 + $0x78] sm:$0xff]
      %v1925 = vld [vmem:[#allocation3] sm:$0xff]
      %v1926 = vld [vmem:[#allocation3 + $0x8] sm:$0xff]
      %v1927 = vld [vmem:[#allocation3 + $0x10] sm:$0xff]
      %v1928 = vld [vmem:[#allocation3 + $0x18] sm:$0xff]
      %v1929 = vld [vmem:[#allocation3 + $0x20] sm:$0xff]
      %v1930 = vld [vmem:[#allocation3 + $0x28] sm:$0xff]
      %v1931 = vld [vmem:[#allocation3 + $0x30] sm:$0xff]
      %v1932 = vld [vmem:[#allocation3 + $0x38] sm:$0xff]
      %v1933 = vld [vmem:[#allocation3 + $0x40] sm:$0xff]
      %v1934 = vld [vmem:[#allocation3 + $0x48] sm:$0xff]
      %v1935 = vld [vmem:[#allocation3 + $0x50] sm:$0xff]
      %v1936 = vld [vmem:[#allocation3 + $0x58] sm:$0xff]
      %v1937 = vld [vmem:[#allocation3 + $0x60] sm:$0xff]
      %v1938 = vld [vmem:[#allocation3 + $0x68] sm:$0xff]
      %v1939 = vld [vmem:[#allocation3 + $0x70] sm:$0xff]
      %v1940 = vld [vmem:[#allocation3 + $0x78] sm:$0xff]
      %1941 = vrot.lane.b32.xlu0 %v1010, 120
      %v1942 = vpop.permute.xlu0 %1941
      %1943 = vrot.lane.b32.xlu0 %v1015, 120
      %v1944 = vpop.permute.xlu0 %1943
      %1945 = vrot.lane.b32.xlu0 %v1020, 120
      %v1946 = vpop.permute.xlu0 %1945
      %1947 = vrot.lane.b32.xlu0 %v1025, 120
      %v1948 = vpop.permute.xlu0 %1947
      %1949 = vrot.lane.b32.xlu0 %v1030, 120
      %v1950 = vpop.permute.xlu0 %1949
      %1951 = vrot.lane.b32.xlu0 %v1035, 120
      %v1952 = vpop.permute.xlu0 %1951
      %1953 = vrot.lane.b32.xlu0 %v1040, 120
      %v1954 = vpop.permute.xlu0 %1953
      %1955 = vrot.lane.b32.xlu0 %v1045, 120
      %v1956 = vpop.permute.xlu0 %1955
      %1957 = vrot.lane.b32.xlu0 %v1050, 120
      %v1958 = vpop.permute.xlu0 %1957
      %1959 = vrot.lane.b32.xlu0 %v1055, 120
      %v1960 = vpop.permute.xlu0 %1959
      %1961 = vrot.lane.b32.xlu0 %v1060, 120
      %v1962 = vpop.permute.xlu0 %1961
      %1963 = vrot.lane.b32.xlu0 %v1065, 120
      %v1964 = vpop.permute.xlu0 %1963
      %1965 = vrot.lane.b32.xlu0 %v1070, 120
      %v1966 = vpop.permute.xlu0 %1965
      %1967 = vrot.lane.b32.xlu0 %v1075, 120
      %v1968 = vpop.permute.xlu0 %1967
      %1969 = vrot.lane.b32.xlu0 %v1080, 120
      %v1970 = vpop.permute.xlu0 %1969
      %1971 = vrot.lane.b32.xlu0 %v1085, 120
      %v1972 = vpop.permute.xlu0 %1971
      %1989 = vrot.lane.b32.xlu0 %v1909, 120
      %v1990 = vpop.permute.xlu0 %1989
      %1991 = vrot.lane.b32.xlu0 %v1910, 120
      %v1992 = vpop.permute.xlu0 %1991
      %1993 = vrot.lane.b32.xlu0 %v1911, 120
      %v1994 = vpop.permute.xlu0 %1993
      %1995 = vrot.lane.b32.xlu0 %v1912, 120
      %v1996 = vpop.permute.xlu0 %1995
      %1997 = vrot.lane.b32.xlu0 %v1913, 120
      %v1998 = vpop.permute.xlu0 %1997
      %1999 = vrot.lane.b32.xlu0 %v1914, 120
      %v2000 = vpop.permute.xlu0 %1999
      %2001 = vrot.lane.b32.xlu0 %v1915, 120
      %v2002 = vpop.permute.xlu0 %2001
      %2003 = vrot.lane.b32.xlu0 %v1916, 120
      %v2004 = vpop.permute.xlu0 %2003
      %2005 = vrot.lane.b32.xlu0 %v1917, 120
      %v2006 = vpop.permute.xlu0 %2005
      %2007 = vrot.lane.b32.xlu0 %v1918, 120
      %v2008 = vpop.permute.xlu0 %2007
      %2009 = vrot.lane.b32.xlu0 %v1919, 120
      %v2010 = vpop.permute.xlu0 %2009
      %2011 = vrot.lane.b32.xlu0 %v1920, 120
      %v2012 = vpop.permute.xlu0 %2011
      %2013 = vrot.lane.b32.xlu0 %v1921, 120
      %v2014 = vpop.permute.xlu0 %2013
      %2015 = vrot.lane.b32.xlu0 %v1922, 120
      %v2016 = vpop.permute.xlu0 %2015
      %2017 = vrot.lane.b32.xlu0 %v1923, 120
      %v2018 = vpop.permute.xlu0 %2017
      %2019 = vrot.lane.b32.xlu0 %v1924, 120
      %v2020 = vpop.permute.xlu0 %2019
      %v2021 = vsel %vm1120, %v1942, 0
      %v2023 = vsel %vm1120, %v1944, 0
      %v2025 = vsel %vm1120, %v1946, 0
      %v2027 = vsel %vm1120, %v1948, 0
      %v2029 = vsel %vm1120, %v1950, 0
      %v2031 = vsel %vm1120, %v1952, 0
      %v2033 = vsel %vm1120, %v1954, 0
      %v2035 = vsel %vm1120, %v1956, 0
      %v2037 = vsel %vm1120, %v1958, 0
      %v2039 = vsel %vm1120, %v1960, 0
      %v2041 = vsel %vm1120, %v1962, 0
      %v2043 = vsel %vm1120, %v1964, 0
      %v2045 = vsel %vm1120, %v1966, 0
      %v2047 = vsel %vm1120, %v1968, 0
      %v2049 = vsel %vm1120, %v1970, 0
      %v2051 = vsel %vm1120, %v1972, 0
      %v2053 = vsel %vm1120, %v1990, 0
      %v2055 = vsel %vm1120, %v1992, 0
      %v2057 = vsel %vm1120, %v1994, 0
      %v2059 = vsel %vm1120, %v1996, 0
      %v2061 = vsel %vm1120, %v1998, 0
      %v2063 = vsel %vm1120, %v2000, 0
      %v2065 = vsel %vm1120, %v2002, 0
      %v2067 = vsel %vm1120, %v2004, 0
      %v2069 = vsel %vm1120, %v2006, 0
      %v2071 = vsel %vm1120, %v2008, 0
      %v2073 = vsel %vm1120, %v2010, 0
      %v2075 = vsel %vm1120, %v2012, 0
      %v2077 = vsel %vm1120, %v2014, 0
      %v2079 = vsel %vm1120, %v2016, 0
      %v2081 = vsel %vm1120, %v2018, 0
      %v2083 = vsel %vm1120, %v2020, 0
      %2085 = vmatprep.subr.mxu0 0.0
      %2086 = vmatpush1.xpose.msra.mxu0 %v2083
      %2087 = vmatprep.subr.mxu0 0.0
      %2088 = vmatpush1.xpose.msra.mxu0 %v2081
      %2089 = vmatprep.subr.mxu0 0.0
      %2090 = vmatpush1.xpose.msra.mxu0 %v2079
      %2091 = vmatprep.subr.mxu0 0.0
      %2092 = vmatpush1.xpose.msra.mxu0 %v2077
      %2093 = vmatprep.subr.mxu0 0.0
      %2094 = vmatpush1.xpose.msra.mxu0 %v2075
      %2095 = vmatprep.subr.mxu0 0.0
      %2096 = vmatpush1.xpose.msra.mxu0 %v2073
      %2097 = vmatprep.subr.mxu0 0.0
      %2098 = vmatpush1.xpose.msra.mxu0 %v2071
      %2099 = vmatprep.subr.mxu0 0.0
      %2100 = vmatpush1.xpose.msra.mxu0 %v2069
      %2101 = vmatprep.subr.mxu0 0.0
      %2102 = vmatpush1.xpose.msra.mxu0 %v2067
      %2103 = vmatprep.subr.mxu0 0.0
      %2104 = vmatpush1.xpose.msra.mxu0 %v2065
      %2105 = vmatprep.subr.mxu0 0.0
      %2106 = vmatpush1.xpose.msra.mxu0 %v2063
      %2107 = vmatprep.subr.mxu0 0.0
      %2108 = vmatpush1.xpose.msra.mxu0 %v2061
      %2109 = vmatprep.subr.mxu0 0.0
      %2110 = vmatpush1.xpose.msra.mxu0 %v2059
      %2111 = vmatprep.subr.mxu0 0.0
      %2112 = vmatpush1.xpose.msra.mxu0 %v2057
      %2113 = vmatprep.subr.mxu0 0.0
      %2114 = vmatpush1.xpose.msra.mxu0 %v2055
      %2115 = vmatprep.subr.mxu0 0.0
      %2116 = vmatpush1.xpose.msra.mxu0 %v2053
      %2117 = vmatprep.subr.mxu0 0.0
      %2118 = vmatpush2.xpose.msra.mxu0 0.0
      %2119 = vmatprep.subr.mxu0 0.0
      %2120 = vmatpush2.xpose.msra.mxu0 0.0
      %2121 = vmatprep.subr.mxu0 0.0
      %2122 = vmatpush2.xpose.msra.mxu0 0.0
      %2123 = vmatprep.subr.mxu0 0.0
      %2124 = vmatpush2.xpose.msra.mxu0 0.0
      %2125 = vmatprep.subr.mxu0 0.0
      %2126 = vmatpush2.xpose.msra.mxu0 0.0
      %2127 = vmatprep.subr.mxu0 0.0
      %2128 = vmatpush2.xpose.msra.mxu0 0.0
      %2129 = vmatprep.subr.mxu0 0.0
      %2130 = vmatpush2.xpose.msra.mxu0 0.0
      %2131 = vmatprep.subr.mxu0 0.0
      %2132 = vmatpush2.xpose.msra.mxu0 0.0
      %2133 = vmatprep.subr.mxu0 0.0
      %2134 = vmatpush2.xpose.msra.mxu0 0.0
      %2135 = vmatprep.subr.mxu0 0.0
      %2136 = vmatpush2.xpose.msra.mxu0 0.0
      %2137 = vmatprep.subr.mxu0 0.0
      %2138 = vmatpush2.xpose.msra.mxu0 0.0
      %2139 = vmatprep.subr.mxu0 0.0
      %2140 = vmatpush2.xpose.msra.mxu0 0.0
      %2141 = vmatprep.subr.mxu0 0.0
      %2142 = vmatpush2.xpose.msra.mxu0 0.0
      %2143 = vmatprep.subr.mxu0 0.0
      %2144 = vmatpush2.xpose.msra.mxu0 0.0
      %2145 = vmatprep.subr.mxu0 0.0
      %2146 = vmatpush2.xpose.msra.mxu0 0.0
      %2147 = vmatprep.subr.mxu0 0.0
      %2148 = vmatpush2.xpose.msra.mxu0 0.0
      %2149 = vmatprep.mubr.f32.mxu0 0.0
      %2150 = vmatmul.mubr.f32.gmra.mxu0 %v2021
      %v2151 = vpop.f32.mrf.mxu0
      %v2152 = vadd.f32 0.0, %v2151
      %v2153 = vpop.f32.mrf.mxu0
      %2154 = vmatprep.mubr.f32.mxu0 0.0
      %2155 = vmatmul.mubr.f32.gmra.mxu0 %v2023
      %v2156 = vpop.f32.mrf.mxu0
      %v2157 = vadd.f32 0.0, %v2156
      %v2158 = vpop.f32.mrf.mxu0
      %2159 = vmatprep.mubr.f32.mxu0 0.0
      %2160 = vmatmul.mubr.f32.gmra.mxu0 %v2025
      %v2161 = vpop.f32.mrf.mxu0
      %v2162 = vadd.f32 0.0, %v2161
      %v2163 = vpop.f32.mrf.mxu0
      %2164 = vmatprep.mubr.f32.mxu0 0.0
      %2165 = vmatmul.mubr.f32.gmra.mxu0 %v2027
      %v2166 = vpop.f32.mrf.mxu0
      %v2167 = vadd.f32 0.0, %v2166
      %v2168 = vpop.f32.mrf.mxu0
      %2169 = vmatprep.mubr.f32.mxu0 0.0
      %2170 = vmatmul.mubr.f32.gmra.mxu0 %v2029
      %v2171 = vpop.f32.mrf.mxu0
      %v2172 = vadd.f32 0.0, %v2171
      %v2173 = vpop.f32.mrf.mxu0
      %2174 = vmatprep.mubr.f32.mxu0 0.0
      %2175 = vmatmul.mubr.f32.gmra.mxu0 %v2031
      %v2176 = vpop.f32.mrf.mxu0
      %v2177 = vadd.f32 0.0, %v2176
      %v2178 = vpop.f32.mrf.mxu0
      %2179 = vmatprep.mubr.f32.mxu0 0.0
      %2180 = vmatmul.mubr.f32.gmra.mxu0 %v2033
      %v2181 = vpop.f32.mrf.mxu0
      %v2182 = vadd.f32 0.0, %v2181
      %v2183 = vpop.f32.mrf.mxu0
      %2184 = vmatprep.mubr.f32.mxu0 0.0
      %2185 = vmatmul.mubr.f32.gmra.mxu0 %v2035
      %v2186 = vpop.f32.mrf.mxu0
      %v2187 = vadd.f32 0.0, %v2186
      %v2188 = vpop.f32.mrf.mxu0
      %2189 = vmatprep.mubr.f32.mxu0 0.0
      %2190 = vmatmul.mubr.f32.gmra.mxu0 %v2037
      %v2191 = vpop.f32.mrf.mxu0
      %v2192 = vadd.f32 0.0, %v2191
      %v2193 = vpop.f32.mrf.mxu0
      %2194 = vmatprep.mubr.f32.mxu0 0.0
      %2195 = vmatmul.mubr.f32.gmra.mxu0 %v2039
      %v2196 = vpop.f32.mrf.mxu0
      %v2197 = vadd.f32 0.0, %v2196
      %v2198 = vpop.f32.mrf.mxu0
      %2199 = vmatprep.mubr.f32.mxu0 0.0
      %2200 = vmatmul.mubr.f32.gmra.mxu0 %v2041
      %v2201 = vpop.f32.mrf.mxu0
      %v2202 = vadd.f32 0.0, %v2201
      %v2203 = vpop.f32.mrf.mxu0
      %2204 = vmatprep.mubr.f32.mxu0 0.0
      %2205 = vmatmul.mubr.f32.gmra.mxu0 %v2043
      %v2206 = vpop.f32.mrf.mxu0
      %v2207 = vadd.f32 0.0, %v2206
      %v2208 = vpop.f32.mrf.mxu0
      %2209 = vmatprep.mubr.f32.mxu0 0.0
      %2210 = vmatmul.mubr.f32.gmra.mxu0 %v2045
      %v2211 = vpop.f32.mrf.mxu0
      %v2212 = vadd.f32 0.0, %v2211
      %v2213 = vpop.f32.mrf.mxu0
      %2214 = vmatprep.mubr.f32.mxu0 0.0
      %2215 = vmatmul.mubr.f32.gmra.mxu0 %v2047
      %v2216 = vpop.f32.mrf.mxu0
      %v2217 = vadd.f32 0.0, %v2216
      %v2218 = vpop.f32.mrf.mxu0
      %2219 = vmatprep.mubr.f32.mxu0 0.0
      %2220 = vmatmul.mubr.f32.gmra.mxu0 %v2049
      %v2221 = vpop.f32.mrf.mxu0
      %v2222 = vadd.f32 0.0, %v2221
      %v2223 = vpop.f32.mrf.mxu0
      %2224 = vmatprep.mubr.f32.mxu0 0.0
      %2225 = vmatmul.mubr.f32.gmra.mxu0 %v2051
      %v2226 = vpop.f32.mrf.mxu0
      %v2227 = vadd.f32 0.0, %v2226
      %v2228 = vpop.f32.mrf.mxu0
      %2229 = vdwg.mxu0
      %v2230 = vsel %vm874, %v2152, -1e+30
      %v2231 = vsel %vm874, %v2157, -1e+30
      %v2232 = vsel %vm874, %v2162, -1e+30
      %v2233 = vsel %vm874, %v2167, -1e+30
      %v2234 = vsel %vm874, %v2172, -1e+30
      %v2235 = vsel %vm874, %v2177, -1e+30
      %v2236 = vsel %vm874, %v2182, -1e+30
      %v2237 = vsel %vm874, %v2187, -1e+30
      %v2238 = vsel %vm874, %v2192, -1e+30
      %v2239 = vsel %vm874, %v2197, -1e+30
      %v2240 = vsel %vm874, %v2202, -1e+30
      %v2241 = vsel %vm874, %v2207, -1e+30
      %v2242 = vsel %vm874, %v2212, -1e+30
      %v2243 = vsel %vm874, %v2217, -1e+30
      %v2244 = vsel %vm874, %v2222, -1e+30
      %v2245 = vsel %vm874, %v2227, -1e+30
      %2246 = vmax.xlane.f32.xlu0 %v2230
      %v2247 = vpop.xlane.xlu0 %2246
      %2248 = vmax.xlane.f32.xlu0 %v2231
      %v2249 = vpop.xlane.xlu0 %2248
      %2250 = vmax.xlane.f32.xlu0 %v2232
      %v2251 = vpop.xlane.xlu0 %2250
      %2252 = vmax.xlane.f32.xlu0 %v2233
      %v2253 = vpop.xlane.xlu0 %2252
      %2254 = vmax.xlane.f32.xlu0 %v2234
      %v2255 = vpop.xlane.xlu0 %2254
      %2256 = vmax.xlane.f32.xlu0 %v2235
      %v2257 = vpop.xlane.xlu0 %2256
      %2258 = vmax.xlane.f32.xlu0 %v2236
      %v2259 = vpop.xlane.xlu0 %2258
      %2260 = vmax.xlane.f32.xlu0 %v2237
      %v2261 = vpop.xlane.xlu0 %2260
      %2262 = vmax.xlane.f32.xlu0 %v2238
      %v2263 = vpop.xlane.xlu0 %2262
      %2264 = vmax.xlane.f32.xlu0 %v2239
      %v2265 = vpop.xlane.xlu0 %2264
      %2266 = vmax.xlane.f32.xlu0 %v2240
      %v2267 = vpop.xlane.xlu0 %2266
      %2268 = vmax.xlane.f32.xlu0 %v2241
      %v2269 = vpop.xlane.xlu0 %2268
      %2270 = vmax.xlane.f32.xlu0 %v2242
      %v2271 = vpop.xlane.xlu0 %2270
      %2272 = vmax.xlane.f32.xlu0 %v2243
      %v2273 = vpop.xlane.xlu0 %2272
      %2274 = vmax.xlane.f32.xlu0 %v2244
      %v2275 = vpop.xlane.xlu0 %2274
      %2276 = vmax.xlane.f32.xlu0 %v2245
      %v2277 = vpop.xlane.xlu0 %2276
      %v2278 = vsub.f32 %v2230, %v2247
      %v2279 = vsub.f32 %v2231, %v2249
      %v2280 = vsub.f32 %v2232, %v2251
      %v2281 = vsub.f32 %v2233, %v2253
      %v2282 = vsub.f32 %v2234, %v2255
      %v2283 = vsub.f32 %v2235, %v2257
      %v2284 = vsub.f32 %v2236, %v2259
      %v2285 = vsub.f32 %v2237, %v2261
      %v2286 = vsub.f32 %v2238, %v2263
      %v2287 = vsub.f32 %v2239, %v2265
      %v2288 = vsub.f32 %v2240, %v2267
      %v2289 = vsub.f32 %v2241, %v2269
      %v2290 = vsub.f32 %v2242, %v2271
      %v2291 = vsub.f32 %v2243, %v2273
      %v2292 = vsub.f32 %v2244, %v2275
      %v2293 = vsub.f32 %v2245, %v2277
      %v2294 = vmul.f32 %v2278, 1.442695
      %v2295 = vpow.pop %v2294
      %v2296 = vmul.f32 %v2279, 1.442695
      %v2297 = vpow.pop %v2296
      %v2298 = vmul.f32 %v2280, 1.442695
      %v2299 = vpow.pop %v2298
      %v2300 = vmul.f32 %v2281, 1.442695
      %v2301 = vpow.pop %v2300
      %v2302 = vmul.f32 %v2282, 1.442695
      %v2303 = vpow.pop %v2302
      %v2304 = vmul.f32 %v2283, 1.442695
      %v2305 = vpow.pop %v2304
      %v2306 = vmul.f32 %v2284, 1.442695
      %v2307 = vpow.pop %v2306
      %v2308 = vmul.f32 %v2285, 1.442695
      %v2309 = vpow.pop %v2308
      %v2310 = vmul.f32 %v2286, 1.442695
      %v2311 = vpow.pop %v2310
      %v2312 = vmul.f32 %v2287, 1.442695
      %v2313 = vpow.pop %v2312
      %v2314 = vmul.f32 %v2288, 1.442695
      %v2315 = vpow.pop %v2314
      %v2316 = vmul.f32 %v2289, 1.442695
      %v2317 = vpow.pop %v2316
      %v2318 = vmul.f32 %v2290, 1.442695
      %v2319 = vpow.pop %v2318
      %v2320 = vmul.f32 %v2291, 1.442695
      %v2321 = vpow.pop %v2320
      %v2322 = vmul.f32 %v2292, 1.442695
      %v2323 = vpow.pop %v2322
      %v2324 = vmul.f32 %v2293, 1.442695
      %v2325 = vpow.pop %v2324
      %2326 = vadd.xlane.f32.xlu0 %v2295
      %v2327 = vpop.xlane.xlu0 %2326
      %2328 = vadd.xlane.f32.xlu0 %v2297
      %v2329 = vpop.xlane.xlu0 %2328
      %2330 = vadd.xlane.f32.xlu0 %v2299
      %v2331 = vpop.xlane.xlu0 %2330
      %2332 = vadd.xlane.f32.xlu0 %v2301
      %v2333 = vpop.xlane.xlu0 %2332
      %2334 = vadd.xlane.f32.xlu0 %v2303
      %v2335 = vpop.xlane.xlu0 %2334
      %2336 = vadd.xlane.f32.xlu0 %v2305
      %v2337 = vpop.xlane.xlu0 %2336
      %2338 = vadd.xlane.f32.xlu0 %v2307
      %v2339 = vpop.xlane.xlu0 %2338
      %2340 = vadd.xlane.f32.xlu0 %v2309
      %v2341 = vpop.xlane.xlu0 %2340
      %2342 = vadd.xlane.f32.xlu0 %v2311
      %v2343 = vpop.xlane.xlu0 %2342
      %2344 = vadd.xlane.f32.xlu0 %v2313
      %v2345 = vpop.xlane.xlu0 %2344
      %2346 = vadd.xlane.f32.xlu0 %v2315
      %v2347 = vpop.xlane.xlu0 %2346
      %2348 = vadd.xlane.f32.xlu0 %v2317
      %v2349 = vpop.xlane.xlu0 %2348
      %2350 = vadd.xlane.f32.xlu0 %v2319
      %v2351 = vpop.xlane.xlu0 %2350
      %2352 = vadd.xlane.f32.xlu0 %v2321
      %v2353 = vpop.xlane.xlu0 %2352
      %2354 = vadd.xlane.f32.xlu0 %v2323
      %v2355 = vpop.xlane.xlu0 %2354
      %2356 = vadd.xlane.f32.xlu0 %v2325
      %v2357 = vpop.xlane.xlu0 %2356
      %v2358 = vrcp.pop %v2327
      %v2359 = vrcp.pop %v2329
      %v2360 = vrcp.pop %v2331
      %v2361 = vrcp.pop %v2333
      %v2362 = vrcp.pop %v2335
      %v2363 = vrcp.pop %v2337
      %v2364 = vrcp.pop %v2339
      %v2365 = vrcp.pop %v2341
      %v2366 = vrcp.pop %v2343
      %v2367 = vrcp.pop %v2345
      %v2368 = vrcp.pop %v2347
      %v2369 = vrcp.pop %v2349
      %v2370 = vrcp.pop %v2351
      %v2371 = vrcp.pop %v2353
      %v2372 = vrcp.pop %v2355
      %v2373 = vrcp.pop %v2357
      %v2374 = vmul.f32 %v2295, %v2358
      %v2375 = vmul.f32 %v2297, %v2359
      %v2376 = vmul.f32 %v2299, %v2360
      %v2377 = vmul.f32 %v2301, %v2361
      %v2378 = vmul.f32 %v2303, %v2362
      %v2379 = vmul.f32 %v2305, %v2363
      %v2380 = vmul.f32 %v2307, %v2364
      %v2381 = vmul.f32 %v2309, %v2365
      %v2382 = vmul.f32 %v2311, %v2366
      %v2383 = vmul.f32 %v2313, %v2367
      %v2384 = vmul.f32 %v2315, %v2368
      %v2385 = vmul.f32 %v2317, %v2369
      %v2386 = vmul.f32 %v2319, %v2370
      %v2387 = vmul.f32 %v2321, %v2371
      %v2388 = vmul.f32 %v2323, %v2372
      %v2389 = vmul.f32 %v2325, %v2373
      %2406 = vrot.lane.b32.xlu0 %v1925, 120
      %v2407 = vpop.permute.xlu0 %2406
      %2408 = vrot.lane.b32.xlu0 %v1926, 120
      %v2409 = vpop.permute.xlu0 %2408
      %2410 = vrot.lane.b32.xlu0 %v1927, 120
      %v2411 = vpop.permute.xlu0 %2410
      %2412 = vrot.lane.b32.xlu0 %v1928, 120
      %v2413 = vpop.permute.xlu0 %2412
      %2414 = vrot.lane.b32.xlu0 %v1929, 120
      %v2415 = vpop.permute.xlu0 %2414
      %2416 = vrot.lane.b32.xlu0 %v1930, 120
      %v2417 = vpop.permute.xlu0 %2416
      %2418 = vrot.lane.b32.xlu0 %v1931, 120
      %v2419 = vpop.permute.xlu0 %2418
      %2420 = vrot.lane.b32.xlu0 %v1932, 120
      %v2421 = vpop.permute.xlu0 %2420
      %2422 = vrot.lane.b32.xlu0 %v1933, 120
      %v2423 = vpop.permute.xlu0 %2422
      %2424 = vrot.lane.b32.xlu0 %v1934, 120
      %v2425 = vpop.permute.xlu0 %2424
      %2426 = vrot.lane.b32.xlu0 %v1935, 120
      %v2427 = vpop.permute.xlu0 %2426
      %2428 = vrot.lane.b32.xlu0 %v1936, 120
      %v2429 = vpop.permute.xlu0 %2428
      %2430 = vrot.lane.b32.xlu0 %v1937, 120
      %v2431 = vpop.permute.xlu0 %2430
      %2432 = vrot.lane.b32.xlu0 %v1938, 120
      %v2433 = vpop.permute.xlu0 %2432
      %2434 = vrot.lane.b32.xlu0 %v1939, 120
      %v2435 = vpop.permute.xlu0 %2434
      %2436 = vrot.lane.b32.xlu0 %v1940, 120
      %v2437 = vpop.permute.xlu0 %2436
      %2454 = vmatprep.subr.mxu0 0.0
      %2455 = vmatpush1.msra.mxu0 %v2437
      %2456 = vmatprep.subr.mxu0 0.0
      %2457 = vmatpush1.msra.mxu0 %v2435
      %2458 = vmatprep.subr.mxu0 0.0
      %2459 = vmatpush1.msra.mxu0 %v2433
      %2460 = vmatprep.subr.mxu0 0.0
      %2461 = vmatpush1.msra.mxu0 %v2431
      %2462 = vmatprep.subr.mxu0 0.0
      %2463 = vmatpush1.msra.mxu0 %v2429
      %2464 = vmatprep.subr.mxu0 0.0
      %2465 = vmatpush1.msra.mxu0 %v2427
      %2466 = vmatprep.subr.mxu0 0.0
      %2467 = vmatpush1.msra.mxu0 %v2425
      %2468 = vmatprep.subr.mxu0 0.0
      %2469 = vmatpush1.msra.mxu0 %v2423
      %2470 = vmatprep.subr.mxu0 0.0
      %2471 = vmatpush1.msra.mxu0 %v2421
      %2472 = vmatprep.subr.mxu0 0.0
      %2473 = vmatpush1.msra.mxu0 %v2419
      %2474 = vmatprep.subr.mxu0 0.0
      %2475 = vmatpush1.msra.mxu0 %v2417
      %2476 = vmatprep.subr.mxu0 0.0
      %2477 = vmatpush1.msra.mxu0 %v2415
      %2478 = vmatprep.subr.mxu0 0.0
      %2479 = vmatpush1.msra.mxu0 %v2413
      %2480 = vmatprep.subr.mxu0 0.0
      %2481 = vmatpush1.msra.mxu0 %v2411
      %2482 = vmatprep.subr.mxu0 0.0
      %2483 = vmatpush1.msra.mxu0 %v2409
      %2484 = vmatprep.subr.mxu0 0.0
      %2485 = vmatpush1.msra.mxu0 %v2407
      %2486 = vmatprep.subr.mxu0 0.0
      %2487 = vmatpush2.msra.mxu0 0.0
      %2488 = vmatprep.subr.mxu0 0.0
      %2489 = vmatpush2.msra.mxu0 0.0
      %2490 = vmatprep.subr.mxu0 0.0
      %2491 = vmatpush2.msra.mxu0 0.0
      %2492 = vmatprep.subr.mxu0 0.0
      %2493 = vmatpush2.msra.mxu0 0.0
      %2494 = vmatprep.subr.mxu0 0.0
      %2495 = vmatpush2.msra.mxu0 0.0
      %2496 = vmatprep.subr.mxu0 0.0
      %2497 = vmatpush2.msra.mxu0 0.0
      %2498 = vmatprep.subr.mxu0 0.0
      %2499 = vmatpush2.msra.mxu0 0.0
      %2500 = vmatprep.subr.mxu0 0.0
      %2501 = vmatpush2.msra.mxu0 0.0
      %2502 = vmatprep.subr.mxu0 0.0
      %2503 = vmatpush2.msra.mxu0 0.0
      %2504 = vmatprep.subr.mxu0 0.0
      %2505 = vmatpush2.msra.mxu0 0.0
      %2506 = vmatprep.subr.mxu0 0.0
      %2507 = vmatpush2.msra.mxu0 0.0
      %2508 = vmatprep.subr.mxu0 0.0
      %2509 = vmatpush2.msra.mxu0 0.0
      %2510 = vmatprep.subr.mxu0 0.0
      %2511 = vmatpush2.msra.mxu0 0.0
      %2512 = vmatprep.subr.mxu0 0.0
      %2513 = vmatpush2.msra.mxu0 0.0
      %2514 = vmatprep.subr.mxu0 0.0
      %2515 = vmatpush2.msra.mxu0 0.0
      %2516 = vmatprep.subr.mxu0 0.0
      %2517 = vmatpush2.msra.mxu0 0.0
      %2518 = vmatprep.mubr.f32.mxu0 0.0
      %2519 = vmatmul.mubr.f32.gmra.mxu0 %v2374
      %v2520 = vpop.f32.mrf.mxu0
      %v2521 = vadd.f32 0.0, %v2520
      %v2522 = vpop.f32.mrf.mxu0
      %2523 = vmatprep.mubr.f32.mxu0 0.0
      %2524 = vmatmul.mubr.f32.gmra.mxu0 %v2375
      %v2525 = vpop.f32.mrf.mxu0
      %v2526 = vadd.f32 0.0, %v2525
      %v2527 = vpop.f32.mrf.mxu0
      %2528 = vmatprep.mubr.f32.mxu0 0.0
      %2529 = vmatmul.mubr.f32.gmra.mxu0 %v2376
      %v2530 = vpop.f32.mrf.mxu0
      %v2531 = vadd.f32 0.0, %v2530
      %v2532 = vpop.f32.mrf.mxu0
      %2533 = vmatprep.mubr.f32.mxu0 0.0
      %2534 = vmatmul.mubr.f32.gmra.mxu0 %v2377
      %v2535 = vpop.f32.mrf.mxu0
      %v2536 = vadd.f32 0.0, %v2535
      %v2537 = vpop.f32.mrf.mxu0
      %2538 = vmatprep.mubr.f32.mxu0 0.0
      %2539 = vmatmul.mubr.f32.gmra.mxu0 %v2378
      %v2540 = vpop.f32.mrf.mxu0
      %v2541 = vadd.f32 0.0, %v2540
      %v2542 = vpop.f32.mrf.mxu0
      %2543 = vmatprep.mubr.f32.mxu0 0.0
      %2544 = vmatmul.mubr.f32.gmra.mxu0 %v2379
      %v2545 = vpop.f32.mrf.mxu0
      %v2546 = vadd.f32 0.0, %v2545
      %v2547 = vpop.f32.mrf.mxu0
      %2548 = vmatprep.mubr.f32.mxu0 0.0
      %2549 = vmatmul.mubr.f32.gmra.mxu0 %v2380
      %v2550 = vpop.f32.mrf.mxu0
      %v2551 = vadd.f32 0.0, %v2550
      %v2552 = vpop.f32.mrf.mxu0
      %2553 = vmatprep.mubr.f32.mxu0 0.0
      %2554 = vmatmul.mubr.f32.gmra.mxu0 %v2381
      %v2555 = vpop.f32.mrf.mxu0
      %v2556 = vadd.f32 0.0, %v2555
      %v2557 = vpop.f32.mrf.mxu0
      %2558 = vmatprep.mubr.f32.mxu0 0.0
      %2559 = vmatmul.mubr.f32.gmra.mxu0 %v2382
      %v2560 = vpop.f32.mrf.mxu0
      %v2561 = vadd.f32 0.0, %v2560
      %v2562 = vpop.f32.mrf.mxu0
      %2563 = vmatprep.mubr.f32.mxu0 0.0
      %2564 = vmatmul.mubr.f32.gmra.mxu0 %v2383
      %v2565 = vpop.f32.mrf.mxu0
      %v2566 = vadd.f32 0.0, %v2565
      %v2567 = vpop.f32.mrf.mxu0
      %2568 = vmatprep.mubr.f32.mxu0 0.0
      %2569 = vmatmul.mubr.f32.gmra.mxu0 %v2384
      %v2570 = vpop.f32.mrf.mxu0
      %v2571 = vadd.f32 0.0, %v2570
      %v2572 = vpop.f32.mrf.mxu0
      %2573 = vmatprep.mubr.f32.mxu0 0.0
      %2574 = vmatmul.mubr.f32.gmra.mxu0 %v2385
      %v2575 = vpop.f32.mrf.mxu0
      %v2576 = vadd.f32 0.0, %v2575
      %v2577 = vpop.f32.mrf.mxu0
      %2578 = vmatprep.mubr.f32.mxu0 0.0
      %2579 = vmatmul.mubr.f32.gmra.mxu0 %v2386
      %v2580 = vpop.f32.mrf.mxu0
      %v2581 = vadd.f32 0.0, %v2580
      %v2582 = vpop.f32.mrf.mxu0
      %2583 = vmatprep.mubr.f32.mxu0 0.0
      %2584 = vmatmul.mubr.f32.gmra.mxu0 %v2387
      %v2585 = vpop.f32.mrf.mxu0
      %v2586 = vadd.f32 0.0, %v2585
      %v2587 = vpop.f32.mrf.mxu0
      %2588 = vmatprep.mubr.f32.mxu0 0.0
      %2589 = vmatmul.mubr.f32.gmra.mxu0 %v2388
      %v2590 = vpop.f32.mrf.mxu0
      %v2591 = vadd.f32 0.0, %v2590
      %v2592 = vpop.f32.mrf.mxu0
      %2593 = vmatprep.mubr.f32.mxu0 0.0
      %2594 = vmatmul.mubr.f32.gmra.mxu0 %v2389
      %v2595 = vpop.f32.mrf.mxu0
      %v2596 = vadd.f32 0.0, %v2595
      %v2597 = vpop.f32.mrf.mxu0
      %2598 = vdwg.mxu0
      %v2599 = vld [vmem:[#allocation4] sm:$0xff]
      %v2600 = vld [vmem:[#allocation4 + $0x8] sm:$0xff]
      %v2601 = vld [vmem:[#allocation4 + $0x10] sm:$0xff]
      %v2602 = vld [vmem:[#allocation4 + $0x18] sm:$0xff]
      %v2603 = vld [vmem:[#allocation4 + $0x20] sm:$0xff]
      %v2604 = vld [vmem:[#allocation4 + $0x28] sm:$0xff]
      %v2605 = vld [vmem:[#allocation4 + $0x30] sm:$0xff]
      %v2606 = vld [vmem:[#allocation4 + $0x38] sm:$0xff]
      %v2607 = vld [vmem:[#allocation4 + $0x40] sm:$0xff]
      %v2608 = vld [vmem:[#allocation4 + $0x48] sm:$0xff]
      %v2609 = vld [vmem:[#allocation4 + $0x50] sm:$0xff]
      %v2610 = vld [vmem:[#allocation4 + $0x58] sm:$0xff]
      %v2611 = vld [vmem:[#allocation4 + $0x60] sm:$0xff]
      %v2612 = vld [vmem:[#allocation4 + $0x68] sm:$0xff]
      %v2613 = vld [vmem:[#allocation4 + $0x70] sm:$0xff]
      %v2614 = vld [vmem:[#allocation4 + $0x78] sm:$0xff]
      %v2615 = vld [vmem:[%s6 + $0x8] sm:$0xff]
      %v2617 = vsel %vm1120, %v2521, 0
      %v2620 = vsel %vm1120, %v2526, 0
      %v2623 = vsel %vm1120, %v2531, 0
      %v2626 = vsel %vm1120, %v2536, 0
      %v2629 = vsel %vm1120, %v2541, 0
      %v2632 = vsel %vm1120, %v2546, 0
      %v2635 = vsel %vm1120, %v2551, 0
      %v2638 = vsel %vm1120, %v2556, 0
      %v2641 = vsel %vm1120, %v2561, 0
      %v2644 = vsel %vm1120, %v2566, 0
      %v2647 = vsel %vm1120, %v2571, 0
      %v2650 = vsel %vm1120, %v2576, 0
      %v2653 = vsel %vm1120, %v2581, 0
      %v2656 = vsel %vm1120, %v2586, 0
      %v2659 = vsel %vm1120, %v2591, 0
      %v2662 = vsel %vm1120, %v2596, 0
      %2664 = vmatprep.subr.mxu0 0.0
      %2665 = vmatpush1.msra.mxu0 0.0
      %2666 = vmatprep.subr.mxu0 0.0
      %2667 = vmatpush1.msra.mxu0 0.0
      %2668 = vmatprep.subr.mxu0 0.0
      %2669 = vmatpush1.msra.mxu0 0.0
      %2670 = vmatprep.subr.mxu0 0.0
      %2671 = vmatpush1.msra.mxu0 0.0
      %2672 = vmatprep.subr.mxu0 0.0
      %2673 = vmatpush1.msra.mxu0 0.0
      %2674 = vmatprep.subr.mxu0 0.0
      %2675 = vmatpush1.msra.mxu0 0.0
      %2676 = vmatprep.subr.mxu0 0.0
      %2677 = vmatpush1.msra.mxu0 0.0
      %2678 = vmatprep.subr.mxu0 0.0
      %2679 = vmatpush1.msra.mxu0 0.0
      %2680 = vmatprep.subr.mxu0 0.0
      %2681 = vmatpush1.msra.mxu0 0.0
      %2682 = vmatprep.subr.mxu0 0.0
      %2683 = vmatpush1.msra.mxu0 0.0
      %2684 = vmatprep.subr.mxu0 0.0
      %2685 = vmatpush1.msra.mxu0 0.0
      %2686 = vmatprep.subr.mxu0 0.0
      %2687 = vmatpush1.msra.mxu0 0.0
      %2688 = vmatprep.subr.mxu0 0.0
      %2689 = vmatpush1.msra.mxu0 0.0
      %2690 = vmatprep.subr.mxu0 0.0
      %2691 = vmatpush1.msra.mxu0 0.0
      %2692 = vmatprep.subr.mxu0 0.0
      %2693 = vmatpush1.msra.mxu0 0.0
      %2694 = vmatprep.subr.mxu0 0.0
      %2695 = vmatpush1.msra.mxu0 %v2615
      %2696 = vmatprep.subr.mxu0 0.0
      %2697 = vmatpush2.msra.mxu0 0.0
      %2698 = vmatprep.subr.mxu0 0.0
      %2699 = vmatpush2.msra.mxu0 0.0
      %2700 = vmatprep.subr.mxu0 0.0
      %2701 = vmatpush2.msra.mxu0 0.0
      %2702 = vmatprep.subr.mxu0 0.0
      %2703 = vmatpush2.msra.mxu0 0.0
      %2704 = vmatprep.subr.mxu0 0.0
      %2705 = vmatpush2.msra.mxu0 0.0
      %2706 = vmatprep.subr.mxu0 0.0
      %2707 = vmatpush2.msra.mxu0 0.0
      %2708 = vmatprep.subr.mxu0 0.0
      %2709 = vmatpush2.msra.mxu0 0.0
      %2710 = vmatprep.subr.mxu0 0.0
      %2711 = vmatpush2.msra.mxu0 0.0
      %2712 = vmatprep.subr.mxu0 0.0
      %2713 = vmatpush2.msra.mxu0 0.0
      %2714 = vmatprep.subr.mxu0 0.0
      %2715 = vmatpush2.msra.mxu0 0.0
      %2716 = vmatprep.subr.mxu0 0.0
      %2717 = vmatpush2.msra.mxu0 0.0
      %2718 = vmatprep.subr.mxu0 0.0
      %2719 = vmatpush2.msra.mxu0 0.0
      %2720 = vmatprep.subr.mxu0 0.0
      %2721 = vmatpush2.msra.mxu0 0.0
      %2722 = vmatprep.subr.mxu0 0.0
      %2723 = vmatpush2.msra.mxu0 0.0
      %2724 = vmatprep.subr.mxu0 0.0
      %2725 = vmatpush2.msra.mxu0 0.0
      %2726 = vmatprep.subr.mxu0 0.0
      %2727 = vmatpush2.msra.mxu0 0.0
      %2728 = vmatprep.mubr.f32.mxu0 0.0
      %2729 = vmatmul.mubr.f32.gmra.mxu0 %v2617
      %v2730 = vpop.f32.mrf.mxu0
      %v2731 = vadd.f32 0.0, %v2730
      %v2732 = vpop.f32.mrf.mxu0
      %2733 = vmatprep.mubr.f32.mxu0 0.0
      %2734 = vmatmul.mubr.f32.gmra.mxu0 %v2620
      %v2735 = vpop.f32.mrf.mxu0
      %v2736 = vadd.f32 0.0, %v2735
      %v2737 = vpop.f32.mrf.mxu0
      %2738 = vmatprep.mubr.f32.mxu0 0.0
      %2739 = vmatmul.mubr.f32.gmra.mxu0 %v2623
      %v2740 = vpop.f32.mrf.mxu0
      %v2741 = vadd.f32 0.0, %v2740
      %v2742 = vpop.f32.mrf.mxu0
      %2743 = vmatprep.mubr.f32.mxu0 0.0
      %2744 = vmatmul.mubr.f32.gmra.mxu0 %v2626
      %v2745 = vpop.f32.mrf.mxu0
      %v2746 = vadd.f32 0.0, %v2745
      %v2747 = vpop.f32.mrf.mxu0
      %2748 = vmatprep.mubr.f32.mxu0 0.0
      %2749 = vmatmul.mubr.f32.gmra.mxu0 %v2629
      %v2750 = vpop.f32.mrf.mxu0
      %v2751 = vadd.f32 0.0, %v2750
      %v2752 = vpop.f32.mrf.mxu0
      %2753 = vmatprep.mubr.f32.mxu0 0.0
      %2754 = vmatmul.mubr.f32.gmra.mxu0 %v2632
      %v2755 = vpop.f32.mrf.mxu0
      %v2756 = vadd.f32 0.0, %v2755
      %v2757 = vpop.f32.mrf.mxu0
      %2758 = vmatprep.mubr.f32.mxu0 0.0
      %2759 = vmatmul.mubr.f32.gmra.mxu0 %v2635
      %v2760 = vpop.f32.mrf.mxu0
      %v2761 = vadd.f32 0.0, %v2760
      %v2762 = vpop.f32.mrf.mxu0
      %2763 = vmatprep.mubr.f32.mxu0 0.0
      %2764 = vmatmul.mubr.f32.gmra.mxu0 %v2638
      %v2765 = vpop.f32.mrf.mxu0
      %v2766 = vadd.f32 0.0, %v2765
      %v2767 = vpop.f32.mrf.mxu0
      %2768 = vmatprep.mubr.f32.mxu0 0.0
      %2769 = vmatmul.mubr.f32.gmra.mxu0 %v2641
      %v2770 = vpop.f32.mrf.mxu0
      %v2771 = vadd.f32 0.0, %v2770
      %v2772 = vpop.f32.mrf.mxu0
      %2773 = vmatprep.mubr.f32.mxu0 0.0
      %2774 = vmatmul.mubr.f32.gmra.mxu0 %v2644
      %v2775 = vpop.f32.mrf.mxu0
      %v2776 = vadd.f32 0.0, %v2775
      %v2777 = vpop.f32.mrf.mxu0
      %2778 = vmatprep.mubr.f32.mxu0 0.0
      %2779 = vmatmul.mubr.f32.gmra.mxu0 %v2647
      %v2780 = vpop.f32.mrf.mxu0
      %v2781 = vadd.f32 0.0, %v2780
      %v2782 = vpop.f32.mrf.mxu0
      %2783 = vmatprep.mubr.f32.mxu0 0.0
      %2784 = vmatmul.mubr.f32.gmra.mxu0 %v2650
      %v2785 = vpop.f32.mrf.mxu0
      %v2786 = vadd.f32 0.0, %v2785
      %v2787 = vpop.f32.mrf.mxu0
      %2788 = vmatprep.mubr.f32.mxu0 0.0
      %2789 = vmatmul.mubr.f32.gmra.mxu0 %v2653
      %v2790 = vpop.f32.mrf.mxu0
      %v2791 = vadd.f32 0.0, %v2790
      %v2792 = vpop.f32.mrf.mxu0
      %2793 = vmatprep.mubr.f32.mxu0 0.0
      %2794 = vmatmul.mubr.f32.gmra.mxu0 %v2656
      %v2795 = vpop.f32.mrf.mxu0
      %v2796 = vadd.f32 0.0, %v2795
      %v2797 = vpop.f32.mrf.mxu0
      %2798 = vmatprep.mubr.f32.mxu0 0.0
      %2799 = vmatmul.mubr.f32.gmra.mxu0 %v2659
      %v2800 = vpop.f32.mrf.mxu0
      %v2801 = vadd.f32 0.0, %v2800
      %v2802 = vpop.f32.mrf.mxu0
      %2803 = vmatprep.mubr.f32.mxu0 0.0
      %2804 = vmatmul.mubr.f32.gmra.mxu0 %v2662
      %v2805 = vpop.f32.mrf.mxu0
      %v2806 = vadd.f32 0.0, %v2805
      %v2807 = vpop.f32.mrf.mxu0
      %2808 = vdwg.mxu0
      %v2809 = vadd.f32 %v2599, %v2731
      %v2810 = vadd.f32 %v2600, %v2736
      %v2811 = vadd.f32 %v2601, %v2741
      %v2812 = vadd.f32 %v2602, %v2746
      %v2813 = vadd.f32 %v2603, %v2751
      %v2814 = vadd.f32 %v2604, %v2756
      %v2815 = vadd.f32 %v2605, %v2761
      %v2816 = vadd.f32 %v2606, %v2766
      %v2817 = vadd.f32 %v2607, %v2771
      %v2818 = vadd.f32 %v2608, %v2776
      %v2819 = vadd.f32 %v2609, %v2781
      %v2820 = vadd.f32 %v2610, %v2786
      %v2821 = vadd.f32 %v2611, %v2791
      %v2822 = vadd.f32 %v2612, %v2796
      %v2823 = vadd.f32 %v2613, %v2801
      %v2824 = vadd.f32 %v2614, %v2806
      %2825 = vst.msk [vmem:[#allocation4] sm:$0xff] %vm855, %v2809
      %2826 = vst.msk [vmem:[#allocation4 + $0x8] sm:$0xff] %vm855, %v2810
      %2827 = vst.msk [vmem:[#allocation4 + $0x10] sm:$0xff] %vm855, %v2811
      %2828 = vst.msk [vmem:[#allocation4 + $0x18] sm:$0xff] %vm855, %v2812
      %2829 = vst.msk [vmem:[#allocation4 + $0x20] sm:$0xff] %vm855, %v2813
      %2830 = vst.msk [vmem:[#allocation4 + $0x28] sm:$0xff] %vm855, %v2814
      %2831 = vst.msk [vmem:[#allocation4 + $0x30] sm:$0xff] %vm855, %v2815
      %2832 = vst.msk [vmem:[#allocation4 + $0x38] sm:$0xff] %vm855, %v2816
      %2833 = vst.msk [vmem:[#allocation4 + $0x40] sm:$0xff] %vm855, %v2817
      %2834 = vst.msk [vmem:[#allocation4 + $0x48] sm:$0xff] %vm855, %v2818
      %2835 = vst.msk [vmem:[#allocation4 + $0x50] sm:$0xff] %vm855, %v2819
      %2836 = vst.msk [vmem:[#allocation4 + $0x58] sm:$0xff] %vm855, %v2820
      %2837 = vst.msk [vmem:[#allocation4 + $0x60] sm:$0xff] %vm855, %v2821
      %2838 = vst.msk [vmem:[#allocation4 + $0x68] sm:$0xff] %vm855, %v2822
      %2839 = vst.msk [vmem:[#allocation4 + $0x70] sm:$0xff] %vm855, %v2823
      %2840 = vst.msk [vmem:[#allocation4 + $0x78] sm:$0xff] %vm855, %v2824
      %v2841 = vld [vmem:[#allocation2] sm:$0xff]
      %v2842 = vld [vmem:[#allocation2 + $0x8] sm:$0xff]
      %v2843 = vld [vmem:[#allocation2 + $0x10] sm:$0xff]
      %v2844 = vld [vmem:[#allocation2 + $0x18] sm:$0xff]
      %v2845 = vld [vmem:[#allocation2 + $0x20] sm:$0xff]
      %v2846 = vld [vmem:[#allocation2 + $0x28] sm:$0xff]
      %v2847 = vld [vmem:[#allocation2 + $0x30] sm:$0xff]
      %v2848 = vld [vmem:[#allocation2 + $0x38] sm:$0xff]
      %v2849 = vld [vmem:[#allocation2 + $0x40] sm:$0xff]
      %v2850 = vld [vmem:[#allocation2 + $0x48] sm:$0xff]
      %v2851 = vld [vmem:[#allocation2 + $0x50] sm:$0xff]
      %v2852 = vld [vmem:[#allocation2 + $0x58] sm:$0xff]
      %v2853 = vld [vmem:[#allocation2 + $0x60] sm:$0xff]
      %v2854 = vld [vmem:[#allocation2 + $0x68] sm:$0xff]
      %v2855 = vld [vmem:[#allocation2 + $0x70] sm:$0xff]
      %v2856 = vld [vmem:[#allocation2 + $0x78] sm:$0xff]
      %v2857 = vld [vmem:[#allocation3] sm:$0xff]
      %v2858 = vld [vmem:[#allocation3 + $0x8] sm:$0xff]
      %v2859 = vld [vmem:[#allocation3 + $0x10] sm:$0xff]
      %v2860 = vld [vmem:[#allocation3 + $0x18] sm:$0xff]
      %v2861 = vld [vmem:[#allocation3 + $0x20] sm:$0xff]
      %v2862 = vld [vmem:[#allocation3 + $0x28] sm:$0xff]
      %v2863 = vld [vmem:[#allocation3 + $0x30] sm:$0xff]
      %v2864 = vld [vmem:[#allocation3 + $0x38] sm:$0xff]
      %v2865 = vld [vmem:[#allocation3 + $0x40] sm:$0xff]
      %v2866 = vld [vmem:[#allocation3 + $0x48] sm:$0xff]
      %v2867 = vld [vmem:[#allocation3 + $0x50] sm:$0xff]
      %v2868 = vld [vmem:[#allocation3 + $0x58] sm:$0xff]
      %v2869 = vld [vmem:[#allocation3 + $0x60] sm:$0xff]
      %v2870 = vld [vmem:[#allocation3 + $0x68] sm:$0xff]
      %v2871 = vld [vmem:[#allocation3 + $0x70] sm:$0xff]
      %v2872 = vld [vmem:[#allocation3 + $0x78] sm:$0xff]
      %2873 = vrot.lane.b32.xlu0 %v1010, 112
      %v2874 = vpop.permute.xlu0 %2873
      %2875 = vrot.lane.b32.xlu0 %v1015, 112
      %v2876 = vpop.permute.xlu0 %2875
      %2877 = vrot.lane.b32.xlu0 %v1020, 112
      %v2878 = vpop.permute.xlu0 %2877
      %2879 = vrot.lane.b32.xlu0 %v1025, 112
      %v2880 = vpop.permute.xlu0 %2879
      %2881 = vrot.lane.b32.xlu0 %v1030, 112
      %v2882 = vpop.permute.xlu0 %2881
      %2883 = vrot.lane.b32.xlu0 %v1035, 112
      %v2884 = vpop.permute.xlu0 %2883
      %2885 = vrot.lane.b32.xlu0 %v1040, 112
      %v2886 = vpop.permute.xlu0 %2885
      %2887 = vrot.lane.b32.xlu0 %v1045, 112
      %v2888 = vpop.permute.xlu0 %2887
      %2889 = vrot.lane.b32.xlu0 %v1050, 112
      %v2890 = vpop.permute.xlu0 %2889
      %2891 = vrot.lane.b32.xlu0 %v1055, 112
      %v2892 = vpop.permute.xlu0 %2891
      %2893 = vrot.lane.b32.xlu0 %v1060, 112
      %v2894 = vpop.permute.xlu0 %2893
      %2895 = vrot.lane.b32.xlu0 %v1065, 112
      %v2896 = vpop.permute.xlu0 %2895
      %2897 = vrot.lane.b32.xlu0 %v1070, 112
      %v2898 = vpop.permute.xlu0 %2897
      %2899 = vrot.lane.b32.xlu0 %v1075, 112
      %v2900 = vpop.permute.xlu0 %2899
      %2901 = vrot.lane.b32.xlu0 %v1080, 112
      %v2902 = vpop.permute.xlu0 %2901
      %2903 = vrot.lane.b32.xlu0 %v1085, 112
      %v2904 = vpop.permute.xlu0 %2903
      %2921 = vrot.lane.b32.xlu0 %v2841, 112
      %v2922 = vpop.permute.xlu0 %2921
      %2923 = vrot.lane.b32.xlu0 %v2842, 112
      %v2924 = vpop.permute.xlu0 %2923
      %2925 = vrot.lane.b32.xlu0 %v2843, 112
      %v2926 = vpop.permute.xlu0 %2925
      %2927 = vrot.lane.b32.xlu0 %v2844, 112
      %v2928 = vpop.permute.xlu0 %2927
      %2929 = vrot.lane.b32.xlu0 %v2845, 112
      %v2930 = vpop.permute.xlu0 %2929
      %2931 = vrot.lane.b32.xlu0 %v2846, 112
      %v2932 = vpop.permute.xlu0 %2931
      %2933 = vrot.lane.b32.xlu0 %v2847, 112
      %v2934 = vpop.permute.xlu0 %2933
      %2935 = vrot.lane.b32.xlu0 %v2848, 112
      %v2936 = vpop.permute.xlu0 %2935
      %2937 = vrot.lane.b32.xlu0 %v2849, 112
      %v2938 = vpop.permute.xlu0 %2937
      %2939 = vrot.lane.b32.xlu0 %v2850, 112
      %v2940 = vpop.permute.xlu0 %2939
      %2941 = vrot.lane.b32.xlu0 %v2851, 112
      %v2942 = vpop.permute.xlu0 %2941
      %2943 = vrot.lane.b32.xlu0 %v2852, 112
      %v2944 = vpop.permute.xlu0 %2943
      %2945 = vrot.lane.b32.xlu0 %v2853, 112
      %v2946 = vpop.permute.xlu0 %2945
      %2947 = vrot.lane.b32.xlu0 %v2854, 112
      %v2948 = vpop.permute.xlu0 %2947
      %2949 = vrot.lane.b32.xlu0 %v2855, 112
      %v2950 = vpop.permute.xlu0 %2949
      %2951 = vrot.lane.b32.xlu0 %v2856, 112
      %v2952 = vpop.permute.xlu0 %2951
      %v2953 = vsel %vm1120, %v2874, 0
      %v2955 = vsel %vm1120, %v2876, 0
      %v2957 = vsel %vm1120, %v2878, 0
      %v2959 = vsel %vm1120, %v2880, 0
      %v2961 = vsel %vm1120, %v2882, 0
      %v2963 = vsel %vm1120, %v2884, 0
      %v2965 = vsel %vm1120, %v2886, 0
      %v2967 = vsel %vm1120, %v2888, 0
      %v2969 = vsel %vm1120, %v2890, 0
      %v2971 = vsel %vm1120, %v2892, 0
      %v2973 = vsel %vm1120, %v2894, 0
      %v2975 = vsel %vm1120, %v2896, 0
      %v2977 = vsel %vm1120, %v2898, 0
      %v2979 = vsel %vm1120, %v2900, 0
      %v2981 = vsel %vm1120, %v2902, 0
      %v2983 = vsel %vm1120, %v2904, 0
      %v2985 = vsel %vm1120, %v2922, 0
      %v2987 = vsel %vm1120, %v2924, 0
      %v2989 = vsel %vm1120, %v2926, 0
      %v2991 = vsel %vm1120, %v2928, 0
      %v2993 = vsel %vm1120, %v2930, 0
      %v2995 = vsel %vm1120, %v2932, 0
      %v2997 = vsel %vm1120, %v2934, 0
      %v2999 = vsel %vm1120, %v2936, 0
      %v3001 = vsel %vm1120, %v2938, 0
      %v3003 = vsel %vm1120, %v2940, 0
      %v3005 = vsel %vm1120, %v2942, 0
      %v3007 = vsel %vm1120, %v2944, 0
      %v3009 = vsel %vm1120, %v2946, 0
      %v3011 = vsel %vm1120, %v2948, 0
      %v3013 = vsel %vm1120, %v2950, 0
      %v3015 = vsel %vm1120, %v2952, 0
      %3017 = vmatprep.subr.mxu0 0.0
      %3018 = vmatpush1.xpose.msra.mxu0 %v3015
      %3019 = vmatprep.subr.mxu0 0.0
      %3020 = vmatpush1.xpose.msra.mxu0 %v3013
      %3021 = vmatprep.subr.mxu0 0.0
      %3022 = vmatpush1.xpose.msra.mxu0 %v3011
      %3023 = vmatprep.subr.mxu0 0.0
      %3024 = vmatpush1.xpose.msra.mxu0 %v3009
      %3025 = vmatprep.subr.mxu0 0.0
      %3026 = vmatpush1.xpose.msra.mxu0 %v3007
      %3027 = vmatprep.subr.mxu0 0.0
      %3028 = vmatpush1.xpose.msra.mxu0 %v3005
      %3029 = vmatprep.subr.mxu0 0.0
      %3030 = vmatpush1.xpose.msra.mxu0 %v3003
      %3031 = vmatprep.subr.mxu0 0.0
      %3032 = vmatpush1.xpose.msra.mxu0 %v3001
      %3033 = vmatprep.subr.mxu0 0.0
      %3034 = vmatpush1.xpose.msra.mxu0 %v2999
      %3035 = vmatprep.subr.mxu0 0.0
      %3036 = vmatpush1.xpose.msra.mxu0 %v2997
      %3037 = vmatprep.subr.mxu0 0.0
      %3038 = vmatpush1.xpose.msra.mxu0 %v2995
      %3039 = vmatprep.subr.mxu0 0.0
      %3040 = vmatpush1.xpose.msra.mxu0 %v2993
      %3041 = vmatprep.subr.mxu0 0.0
      %3042 = vmatpush1.xpose.msra.mxu0 %v2991
      %3043 = vmatprep.subr.mxu0 0.0
      %3044 = vmatpush1.xpose.msra.mxu0 %v2989
      %3045 = vmatprep.subr.mxu0 0.0
      %3046 = vmatpush1.xpose.msra.mxu0 %v2987
      %3047 = vmatprep.subr.mxu0 0.0
      %3048 = vmatpush1.xpose.msra.mxu0 %v2985
      %3049 = vmatprep.subr.mxu0 0.0
      %3050 = vmatpush2.xpose.msra.mxu0 0.0
      %3051 = vmatprep.subr.mxu0 0.0
      %3052 = vmatpush2.xpose.msra.mxu0 0.0
      %3053 = vmatprep.subr.mxu0 0.0
      %3054 = vmatpush2.xpose.msra.mxu0 0.0
      %3055 = vmatprep.subr.mxu0 0.0
      %3056 = vmatpush2.xpose.msra.mxu0 0.0
      %3057 = vmatprep.subr.mxu0 0.0
      %3058 = vmatpush2.xpose.msra.mxu0 0.0
      %3059 = vmatprep.subr.mxu0 0.0
      %3060 = vmatpush2.xpose.msra.mxu0 0.0
      %3061 = vmatprep.subr.mxu0 0.0
      %3062 = vmatpush2.xpose.msra.mxu0 0.0
      %3063 = vmatprep.subr.mxu0 0.0
      %3064 = vmatpush2.xpose.msra.mxu0 0.0
      %3065 = vmatprep.subr.mxu0 0.0
      %3066 = vmatpush2.xpose.msra.mxu0 0.0
      %3067 = vmatprep.subr.mxu0 0.0
      %3068 = vmatpush2.xpose.msra.mxu0 0.0
      %3069 = vmatprep.subr.mxu0 0.0
      %3070 = vmatpush2.xpose.msra.mxu0 0.0
      %3071 = vmatprep.subr.mxu0 0.0
      %3072 = vmatpush2.xpose.msra.mxu0 0.0
      %3073 = vmatprep.subr.mxu0 0.0
      %3074 = vmatpush2.xpose.msra.mxu0 0.0
      %3075 = vmatprep.subr.mxu0 0.0
      %3076 = vmatpush2.xpose.msra.mxu0 0.0
      %3077 = vmatprep.subr.mxu0 0.0
      %3078 = vmatpush2.xpose.msra.mxu0 0.0
      %3079 = vmatprep.subr.mxu0 0.0
      %3080 = vmatpush2.xpose.msra.mxu0 0.0
      %3081 = vmatprep.mubr.f32.mxu0 0.0
      %3082 = vmatmul.mubr.f32.gmra.mxu0 %v2953
      %v3083 = vpop.f32.mrf.mxu0
      %v3084 = vadd.f32 0.0, %v3083
      %v3085 = vpop.f32.mrf.mxu0
      %3086 = vmatprep.mubr.f32.mxu0 0.0
      %3087 = vmatmul.mubr.f32.gmra.mxu0 %v2955
      %v3088 = vpop.f32.mrf.mxu0
      %v3089 = vadd.f32 0.0, %v3088
      %v3090 = vpop.f32.mrf.mxu0
      %3091 = vmatprep.mubr.f32.mxu0 0.0
      %3092 = vmatmul.mubr.f32.gmra.mxu0 %v2957
      %v3093 = vpop.f32.mrf.mxu0
      %v3094 = vadd.f32 0.0, %v3093
      %v3095 = vpop.f32.mrf.mxu0
      %3096 = vmatprep.mubr.f32.mxu0 0.0
      %3097 = vmatmul.mubr.f32.gmra.mxu0 %v2959
      %v3098 = vpop.f32.mrf.mxu0
      %v3099 = vadd.f32 0.0, %v3098
      %v3100 = vpop.f32.mrf.mxu0
      %3101 = vmatprep.mubr.f32.mxu0 0.0
      %3102 = vmatmul.mubr.f32.gmra.mxu0 %v2961
      %v3103 = vpop.f32.mrf.mxu0
      %v3104 = vadd.f32 0.0, %v3103
      %v3105 = vpop.f32.mrf.mxu0
      %3106 = vmatprep.mubr.f32.mxu0 0.0
      %3107 = vmatmul.mubr.f32.gmra.mxu0 %v2963
      %v3108 = vpop.f32.mrf.mxu0
      %v3109 = vadd.f32 0.0, %v3108
      %v3110 = vpop.f32.mrf.mxu0
      %3111 = vmatprep.mubr.f32.mxu0 0.0
      %3112 = vmatmul.mubr.f32.gmra.mxu0 %v2965
      %v3113 = vpop.f32.mrf.mxu0
      %v3114 = vadd.f32 0.0, %v3113
      %v3115 = vpop.f32.mrf.mxu0
      %3116 = vmatprep.mubr.f32.mxu0 0.0
      %3117 = vmatmul.mubr.f32.gmra.mxu0 %v2967
      %v3118 = vpop.f32.mrf.mxu0
      %v3119 = vadd.f32 0.0, %v3118
      %v3120 = vpop.f32.mrf.mxu0
      %3121 = vmatprep.mubr.f32.mxu0 0.0
      %3122 = vmatmul.mubr.f32.gmra.mxu0 %v2969
      %v3123 = vpop.f32.mrf.mxu0
      %v3124 = vadd.f32 0.0, %v3123
      %v3125 = vpop.f32.mrf.mxu0
      %3126 = vmatprep.mubr.f32.mxu0 0.0
      %3127 = vmatmul.mubr.f32.gmra.mxu0 %v2971
      %v3128 = vpop.f32.mrf.mxu0
      %v3129 = vadd.f32 0.0, %v3128
      %v3130 = vpop.f32.mrf.mxu0
      %3131 = vmatprep.mubr.f32.mxu0 0.0
      %3132 = vmatmul.mubr.f32.gmra.mxu0 %v2973
      %v3133 = vpop.f32.mrf.mxu0
      %v3134 = vadd.f32 0.0, %v3133
      %v3135 = vpop.f32.mrf.mxu0
      %3136 = vmatprep.mubr.f32.mxu0 0.0
      %3137 = vmatmul.mubr.f32.gmra.mxu0 %v2975
      %v3138 = vpop.f32.mrf.mxu0
      %v3139 = vadd.f32 0.0, %v3138
      %v3140 = vpop.f32.mrf.mxu0
      %3141 = vmatprep.mubr.f32.mxu0 0.0
      %3142 = vmatmul.mubr.f32.gmra.mxu0 %v2977
      %v3143 = vpop.f32.mrf.mxu0
      %v3144 = vadd.f32 0.0, %v3143
      %v3145 = vpop.f32.mrf.mxu0
      %3146 = vmatprep.mubr.f32.mxu0 0.0
      %3147 = vmatmul.mubr.f32.gmra.mxu0 %v2979
      %v3148 = vpop.f32.mrf.mxu0
      %v3149 = vadd.f32 0.0, %v3148
      %v3150 = vpop.f32.mrf.mxu0
      %3151 = vmatprep.mubr.f32.mxu0 0.0
      %3152 = vmatmul.mubr.f32.gmra.mxu0 %v2981
      %v3153 = vpop.f32.mrf.mxu0
      %v3154 = vadd.f32 0.0, %v3153
      %v3155 = vpop.f32.mrf.mxu0
      %3156 = vmatprep.mubr.f32.mxu0 0.0
      %3157 = vmatmul.mubr.f32.gmra.mxu0 %v2983
      %v3158 = vpop.f32.mrf.mxu0
      %v3159 = vadd.f32 0.0, %v3158
      %v3160 = vpop.f32.mrf.mxu0
      %3161 = vdwg.mxu0
      %v3162 = vsel %vm874, %v3084, -1e+30
      %v3163 = vsel %vm874, %v3089, -1e+30
      %v3164 = vsel %vm874, %v3094, -1e+30
      %v3165 = vsel %vm874, %v3099, -1e+30
      %v3166 = vsel %vm874, %v3104, -1e+30
      %v3167 = vsel %vm874, %v3109, -1e+30
      %v3168 = vsel %vm874, %v3114, -1e+30
      %v3169 = vsel %vm874, %v3119, -1e+30
      %v3170 = vsel %vm874, %v3124, -1e+30
      %v3171 = vsel %vm874, %v3129, -1e+30
      %v3172 = vsel %vm874, %v3134, -1e+30
      %v3173 = vsel %vm874, %v3139, -1e+30
      %v3174 = vsel %vm874, %v3144, -1e+30
      %v3175 = vsel %vm874, %v3149, -1e+30
      %v3176 = vsel %vm874, %v3154, -1e+30
      %v3177 = vsel %vm874, %v3159, -1e+30
      %3178 = vmax.xlane.f32.xlu0 %v3162
      %v3179 = vpop.xlane.xlu0 %3178
      %3180 = vmax.xlane.f32.xlu0 %v3163
      %v3181 = vpop.xlane.xlu0 %3180
      %3182 = vmax.xlane.f32.xlu0 %v3164
      %v3183 = vpop.xlane.xlu0 %3182
      %3184 = vmax.xlane.f32.xlu0 %v3165
      %v3185 = vpop.xlane.xlu0 %3184
      %3186 = vmax.xlane.f32.xlu0 %v3166
      %v3187 = vpop.xlane.xlu0 %3186
      %3188 = vmax.xlane.f32.xlu0 %v3167
      %v3189 = vpop.xlane.xlu0 %3188
      %3190 = vmax.xlane.f32.xlu0 %v3168
      %v3191 = vpop.xlane.xlu0 %3190
      %3192 = vmax.xlane.f32.xlu0 %v3169
      %v3193 = vpop.xlane.xlu0 %3192
      %3194 = vmax.xlane.f32.xlu0 %v3170
      %v3195 = vpop.xlane.xlu0 %3194
      %3196 = vmax.xlane.f32.xlu0 %v3171
      %v3197 = vpop.xlane.xlu0 %3196
      %3198 = vmax.xlane.f32.xlu0 %v3172
      %v3199 = vpop.xlane.xlu0 %3198
      %3200 = vmax.xlane.f32.xlu0 %v3173
      %v3201 = vpop.xlane.xlu0 %3200
      %3202 = vmax.xlane.f32.xlu0 %v3174
      %v3203 = vpop.xlane.xlu0 %3202
      %3204 = vmax.xlane.f32.xlu0 %v3175
      %v3205 = vpop.xlane.xlu0 %3204
      %3206 = vmax.xlane.f32.xlu0 %v3176
      %v3207 = vpop.xlane.xlu0 %3206
      %3208 = vmax.xlane.f32.xlu0 %v3177
      %v3209 = vpop.xlane.xlu0 %3208
      %v3210 = vsub.f32 %v3162, %v3179
      %v3211 = vsub.f32 %v3163, %v3181
      %v3212 = vsub.f32 %v3164, %v3183
      %v3213 = vsub.f32 %v3165, %v3185
      %v3214 = vsub.f32 %v3166, %v3187
      %v3215 = vsub.f32 %v3167, %v3189
      %v3216 = vsub.f32 %v3168, %v3191
      %v3217 = vsub.f32 %v3169, %v3193
      %v3218 = vsub.f32 %v3170, %v3195
      %v3219 = vsub.f32 %v3171, %v3197
      %v3220 = vsub.f32 %v3172, %v3199
      %v3221 = vsub.f32 %v3173, %v3201
      %v3222 = vsub.f32 %v3174, %v3203
      %v3223 = vsub.f32 %v3175, %v3205
      %v3224 = vsub.f32 %v3176, %v3207
      %v3225 = vsub.f32 %v3177, %v3209
      %v3226 = vmul.f32 %v3210, 1.442695
      %v3227 = vpow.pop %v3226
      %v3228 = vmul.f32 %v3211, 1.442695
      %v3229 = vpow.pop %v3228
      %v3230 = vmul.f32 %v3212, 1.442695
      %v3231 = vpow.pop %v3230
      %v3232 = vmul.f32 %v3213, 1.442695
      %v3233 = vpow.pop %v3232
      %v3234 = vmul.f32 %v3214, 1.442695
      %v3235 = vpow.pop %v3234
      %v3236 = vmul.f32 %v3215, 1.442695
      %v3237 = vpow.pop %v3236
      %v3238 = vmul.f32 %v3216, 1.442695
      %v3239 = vpow.pop %v3238
      %v3240 = vmul.f32 %v3217, 1.442695
      %v3241 = vpow.pop %v3240
      %v3242 = vmul.f32 %v3218, 1.442695
      %v3243 = vpow.pop %v3242
      %v3244 = vmul.f32 %v3219, 1.442695
      %v3245 = vpow.pop %v3244
      %v3246 = vmul.f32 %v3220, 1.442695
      %v3247 = vpow.pop %v3246
      %v3248 = vmul.f32 %v3221, 1.442695
      %v3249 = vpow.pop %v3248
      %v3250 = vmul.f32 %v3222, 1.442695
      %v3251 = vpow.pop %v3250
      %v3252 = vmul.f32 %v3223, 1.442695
      %v3253 = vpow.pop %v3252
      %v3254 = vmul.f32 %v3224, 1.442695
      %v3255 = vpow.pop %v3254
      %v3256 = vmul.f32 %v3225, 1.442695
      %v3257 = vpow.pop %v3256
      %3258 = vadd.xlane.f32.xlu0 %v3227
      %v3259 = vpop.xlane.xlu0 %3258
      %3260 = vadd.xlane.f32.xlu0 %v3229
      %v3261 = vpop.xlane.xlu0 %3260
      %3262 = vadd.xlane.f32.xlu0 %v3231
      %v3263 = vpop.xlane.xlu0 %3262
      %3264 = vadd.xlane.f32.xlu0 %v3233
      %v3265 = vpop.xlane.xlu0 %3264
      %3266 = vadd.xlane.f32.xlu0 %v3235
      %v3267 = vpop.xlane.xlu0 %3266
      %3268 = vadd.xlane.f32.xlu0 %v3237
      %v3269 = vpop.xlane.xlu0 %3268
      %3270 = vadd.xlane.f32.xlu0 %v3239
      %v3271 = vpop.xlane.xlu0 %3270
      %3272 = vadd.xlane.f32.xlu0 %v3241
      %v3273 = vpop.xlane.xlu0 %3272
      %3274 = vadd.xlane.f32.xlu0 %v3243
      %v3275 = vpop.xlane.xlu0 %3274
      %3276 = vadd.xlane.f32.xlu0 %v3245
      %v3277 = vpop.xlane.xlu0 %3276
      %3278 = vadd.xlane.f32.xlu0 %v3247
      %v3279 = vpop.xlane.xlu0 %3278
      %3280 = vadd.xlane.f32.xlu0 %v3249
      %v3281 = vpop.xlane.xlu0 %3280
      %3282 = vadd.xlane.f32.xlu0 %v3251
      %v3283 = vpop.xlane.xlu0 %3282
      %3284 = vadd.xlane.f32.xlu0 %v3253
      %v3285 = vpop.xlane.xlu0 %3284
      %3286 = vadd.xlane.f32.xlu0 %v3255
      %v3287 = vpop.xlane.xlu0 %3286
      %3288 = vadd.xlane.f32.xlu0 %v3257
      %v3289 = vpop.xlane.xlu0 %3288
      %v3290 = vrcp.pop %v3259
      %v3291 = vrcp.pop %v3261
      %v3292 = vrcp.pop %v3263
      %v3293 = vrcp.pop %v3265
      %v3294 = vrcp.pop %v3267
      %v3295 = vrcp.pop %v3269
      %v3296 = vrcp.pop %v3271
      %v3297 = vrcp.pop %v3273
      %v3298 = vrcp.pop %v3275
      %v3299 = vrcp.pop %v3277
      %v3300 = vrcp.pop %v3279
      %v3301 = vrcp.pop %v3281
      %v3302 = vrcp.pop %v3283
      %v3303 = vrcp.pop %v3285
      %v3304 = vrcp.pop %v3287
      %v3305 = vrcp.pop %v3289
      %v3306 = vmul.f32 %v3227, %v3290
      %v3307 = vmul.f32 %v3229, %v3291
      %v3308 = vmul.f32 %v3231, %v3292
      %v3309 = vmul.f32 %v3233, %v3293
      %v3310 = vmul.f32 %v3235, %v3294
      %v3311 = vmul.f32 %v3237, %v3295
      %v3312 = vmul.f32 %v3239, %v3296
      %v3313 = vmul.f32 %v3241, %v3297
      %v3314 = vmul.f32 %v3243, %v3298
      %v3315 = vmul.f32 %v3245, %v3299
      %v3316 = vmul.f32 %v3247, %v3300
      %v3317 = vmul.f32 %v3249, %v3301
      %v3318 = vmul.f32 %v3251, %v3302
      %v3319 = vmul.f32 %v3253, %v3303
      %v3320 = vmul.f32 %v3255, %v3304
      %v3321 = vmul.f32 %v3257, %v3305
      %3338 = vrot.lane.b32.xlu0 %v2857, 112
      %v3339 = vpop.permute.xlu0 %3338
      %3340 = vrot.lane.b32.xlu0 %v2858, 112
      %v3341 = vpop.permute.xlu0 %3340
      %3342 = vrot.lane.b32.xlu0 %v2859, 112
      %v3343 = vpop.permute.xlu0 %3342
      %3344 = vrot.lane.b32.xlu0 %v2860, 112
      %v3345 = vpop.permute.xlu0 %3344
      %3346 = vrot.lane.b32.xlu0 %v2861, 112
      %v3347 = vpop.permute.xlu0 %3346
      %3348 = vrot.lane.b32.xlu0 %v2862, 112
      %v3349 = vpop.permute.xlu0 %3348
      %3350 = vrot.lane.b32.xlu0 %v2863, 112
      %v3351 = vpop.permute.xlu0 %3350
      %3352 = vrot.lane.b32.xlu0 %v2864, 112
      %v3353 = vpop.permute.xlu0 %3352
      %3354 = vrot.lane.b32.xlu0 %v2865, 112
      %v3355 = vpop.permute.xlu0 %3354
      %3356 = vrot.lane.b32.xlu0 %v2866, 112
      %v3357 = vpop.permute.xlu0 %3356
      %3358 = vrot.lane.b32.xlu0 %v2867, 112
      %v3359 = vpop.permute.xlu0 %3358
      %3360 = vrot.lane.b32.xlu0 %v2868, 112
      %v3361 = vpop.permute.xlu0 %3360
      %3362 = vrot.lane.b32.xlu0 %v2869, 112
      %v3363 = vpop.permute.xlu0 %3362
      %3364 = vrot.lane.b32.xlu0 %v2870, 112
      %v3365 = vpop.permute.xlu0 %3364
      %3366 = vrot.lane.b32.xlu0 %v2871, 112
      %v3367 = vpop.permute.xlu0 %3366
      %3368 = vrot.lane.b32.xlu0 %v2872, 112
      %v3369 = vpop.permute.xlu0 %3368
      %3386 = vmatprep.subr.mxu0 0.0
      %3387 = vmatpush1.msra.mxu0 %v3369
      %3388 = vmatprep.subr.mxu0 0.0
      %3389 = vmatpush1.msra.mxu0 %v3367
      %3390 = vmatprep.subr.mxu0 0.0
      %3391 = vmatpush1.msra.mxu0 %v3365
      %3392 = vmatprep.subr.mxu0 0.0
      %3393 = vmatpush1.msra.mxu0 %v3363
      %3394 = vmatprep.subr.mxu0 0.0
      %3395 = vmatpush1.msra.mxu0 %v3361
      %3396 = vmatprep.subr.mxu0 0.0
      %3397 = vmatpush1.msra.mxu0 %v3359
      %3398 = vmatprep.subr.mxu0 0.0
      %3399 = vmatpush1.msra.mxu0 %v3357
      %3400 = vmatprep.subr.mxu0 0.0
      %3401 = vmatpush1.msra.mxu0 %v3355
      %3402 = vmatprep.subr.mxu0 0.0
      %3403 = vmatpush1.msra.mxu0 %v3353
      %3404 = vmatprep.subr.mxu0 0.0
      %3405 = vmatpush1.msra.mxu0 %v3351
      %3406 = vmatprep.subr.mxu0 0.0
      %3407 = vmatpush1.msra.mxu0 %v3349
      %3408 = vmatprep.subr.mxu0 0.0
      %3409 = vmatpush1.msra.mxu0 %v3347
      %3410 = vmatprep.subr.mxu0 0.0
      %3411 = vmatpush1.msra.mxu0 %v3345
      %3412 = vmatprep.subr.mxu0 0.0
      %3413 = vmatpush1.msra.mxu0 %v3343
      %3414 = vmatprep.subr.mxu0 0.0
      %3415 = vmatpush1.msra.mxu0 %v3341
      %3416 = vmatprep.subr.mxu0 0.0
      %3417 = vmatpush1.msra.mxu0 %v3339
      %3418 = vmatprep.subr.mxu0 0.0
      %3419 = vmatpush2.msra.mxu0 0.0
      %3420 = vmatprep.subr.mxu0 0.0
      %3421 = vmatpush2.msra.mxu0 0.0
      %3422 = vmatprep.subr.mxu0 0.0
      %3423 = vmatpush2.msra.mxu0 0.0
      %3424 = vmatprep.subr.mxu0 0.0
      %3425 = vmatpush2.msra.mxu0 0.0
      %3426 = vmatprep.subr.mxu0 0.0
      %3427 = vmatpush2.msra.mxu0 0.0
      %3428 = vmatprep.subr.mxu0 0.0
      %3429 = vmatpush2.msra.mxu0 0.0
      %3430 = vmatprep.subr.mxu0 0.0
      %3431 = vmatpush2.msra.mxu0 0.0
      %3432 = vmatprep.subr.mxu0 0.0
      %3433 = vmatpush2.msra.mxu0 0.0
      %3434 = vmatprep.subr.mxu0 0.0
      %3435 = vmatpush2.msra.mxu0 0.0
      %3436 = vmatprep.subr.mxu0 0.0
      %3437 = vmatpush2.msra.mxu0 0.0
      %3438 = vmatprep.subr.mxu0 0.0
      %3439 = vmatpush2.msra.mxu0 0.0
      %3440 = vmatprep.subr.mxu0 0.0
      %3441 = vmatpush2.msra.mxu0 0.0
      %3442 = vmatprep.subr.mxu0 0.0
      %3443 = vmatpush2.msra.mxu0 0.0
      %3444 = vmatprep.subr.mxu0 0.0
      %3445 = vmatpush2.msra.mxu0 0.0
      %3446 = vmatprep.subr.mxu0 0.0
      %3447 = vmatpush2.msra.mxu0 0.0
      %3448 = vmatprep.subr.mxu0 0.0
      %3449 = vmatpush2.msra.mxu0 0.0
      %3450 = vmatprep.mubr.f32.mxu0 0.0
      %3451 = vmatmul.mubr.f32.gmra.mxu0 %v3306
      %v3452 = vpop.f32.mrf.mxu0
      %v3453 = vadd.f32 0.0, %v3452
      %v3454 = vpop.f32.mrf.mxu0
      %3455 = vmatprep.mubr.f32.mxu0 0.0
      %3456 = vmatmul.mubr.f32.gmra.mxu0 %v3307
      %v3457 = vpop.f32.mrf.mxu0
      %v3458 = vadd.f32 0.0, %v3457
      %v3459 = vpop.f32.mrf.mxu0
      %3460 = vmatprep.mubr.f32.mxu0 0.0
      %3461 = vmatmul.mubr.f32.gmra.mxu0 %v3308
      %v3462 = vpop.f32.mrf.mxu0
      %v3463 = vadd.f32 0.0, %v3462
      %v3464 = vpop.f32.mrf.mxu0
      %3465 = vmatprep.mubr.f32.mxu0 0.0
      %3466 = vmatmul.mubr.f32.gmra.mxu0 %v3309
      %v3467 = vpop.f32.mrf.mxu0
      %v3468 = vadd.f32 0.0, %v3467
      %v3469 = vpop.f32.mrf.mxu0
      %3470 = vmatprep.mubr.f32.mxu0 0.0
      %3471 = vmatmul.mubr.f32.gmra.mxu0 %v3310
      %v3472 = vpop.f32.mrf.mxu0
      %v3473 = vadd.f32 0.0, %v3472
      %v3474 = vpop.f32.mrf.mxu0
      %3475 = vmatprep.mubr.f32.mxu0 0.0
      %3476 = vmatmul.mubr.f32.gmra.mxu0 %v3311
      %v3477 = vpop.f32.mrf.mxu0
      %v3478 = vadd.f32 0.0, %v3477
      %v3479 = vpop.f32.mrf.mxu0
      %3480 = vmatprep.mubr.f32.mxu0 0.0
      %3481 = vmatmul.mubr.f32.gmra.mxu0 %v3312
      %v3482 = vpop.f32.mrf.mxu0
      %v3483 = vadd.f32 0.0, %v3482
      %v3484 = vpop.f32.mrf.mxu0
      %3485 = vmatprep.mubr.f32.mxu0 0.0
      %3486 = vmatmul.mubr.f32.gmra.mxu0 %v3313
      %v3487 = vpop.f32.mrf.mxu0
      %v3488 = vadd.f32 0.0, %v3487
      %v3489 = vpop.f32.mrf.mxu0
      %3490 = vmatprep.mubr.f32.mxu0 0.0
      %3491 = vmatmul.mubr.f32.gmra.mxu0 %v3314
      %v3492 = vpop.f32.mrf.mxu0
      %v3493 = vadd.f32 0.0, %v3492
      %v3494 = vpop.f32.mrf.mxu0
      %3495 = vmatprep.mubr.f32.mxu0 0.0
      %3496 = vmatmul.mubr.f32.gmra.mxu0 %v3315
      %v3497 = vpop.f32.mrf.mxu0
      %v3498 = vadd.f32 0.0, %v3497
      %v3499 = vpop.f32.mrf.mxu0
      %3500 = vmatprep.mubr.f32.mxu0 0.0
      %3501 = vmatmul.mubr.f32.gmra.mxu0 %v3316
      %v3502 = vpop.f32.mrf.mxu0
      %v3503 = vadd.f32 0.0, %v3502
      %v3504 = vpop.f32.mrf.mxu0
      %3505 = vmatprep.mubr.f32.mxu0 0.0
      %3506 = vmatmul.mubr.f32.gmra.mxu0 %v3317
      %v3507 = vpop.f32.mrf.mxu0
      %v3508 = vadd.f32 0.0, %v3507
      %v3509 = vpop.f32.mrf.mxu0
      %3510 = vmatprep.mubr.f32.mxu0 0.0
      %3511 = vmatmul.mubr.f32.gmra.mxu0 %v3318
      %v3512 = vpop.f32.mrf.mxu0
      %v3513 = vadd.f32 0.0, %v3512
      %v3514 = vpop.f32.mrf.mxu0
      %3515 = vmatprep.mubr.f32.mxu0 0.0
      %3516 = vmatmul.mubr.f32.gmra.mxu0 %v3319
      %v3517 = vpop.f32.mrf.mxu0
      %v3518 = vadd.f32 0.0, %v3517
      %v3519 = vpop.f32.mrf.mxu0
      %3520 = vmatprep.mubr.f32.mxu0 0.0
      %3521 = vmatmul.mubr.f32.gmra.mxu0 %v3320
      %v3522 = vpop.f32.mrf.mxu0
      %v3523 = vadd.f32 0.0, %v3522
      %v3524 = vpop.f32.mrf.mxu0
      %3525 = vmatprep.mubr.f32.mxu0 0.0
      %3526 = vmatmul.mubr.f32.gmra.mxu0 %v3321
      %v3527 = vpop.f32.mrf.mxu0
      %v3528 = vadd.f32 0.0, %v3527
      %v3529 = vpop.f32.mrf.mxu0
      %3530 = vdwg.mxu0
      %v3531 = vld [vmem:[#allocation4] sm:$0xff]
      %v3532 = vld [vmem:[#allocation4 + $0x8] sm:$0xff]
      %v3533 = vld [vmem:[#allocation4 + $0x10] sm:$0xff]
      %v3534 = vld [vmem:[#allocation4 + $0x18] sm:$0xff]
      %v3535 = vld [vmem:[#allocation4 + $0x20] sm:$0xff]
      %v3536 = vld [vmem:[#allocation4 + $0x28] sm:$0xff]
      %v3537 = vld [vmem:[#allocation4 + $0x30] sm:$0xff]
      %v3538 = vld [vmem:[#allocation4 + $0x38] sm:$0xff]
      %v3539 = vld [vmem:[#allocation4 + $0x40] sm:$0xff]
      %v3540 = vld [vmem:[#allocation4 + $0x48] sm:$0xff]
      %v3541 = vld [vmem:[#allocation4 + $0x50] sm:$0xff]
      %v3542 = vld [vmem:[#allocation4 + $0x58] sm:$0xff]
      %v3543 = vld [vmem:[#allocation4 + $0x60] sm:$0xff]
      %v3544 = vld [vmem:[#allocation4 + $0x68] sm:$0xff]
      %v3545 = vld [vmem:[#allocation4 + $0x70] sm:$0xff]
      %v3546 = vld [vmem:[#allocation4 + $0x78] sm:$0xff]
      %v3547 = vld [vmem:[%s6 + $0x10] sm:$0xff]
      %v3549 = vsel %vm1120, %v3453, 0
      %v3552 = vsel %vm1120, %v3458, 0
      %v3555 = vsel %vm1120, %v3463, 0
      %v3558 = vsel %vm1120, %v3468, 0
      %v3561 = vsel %vm1120, %v3473, 0
      %v3564 = vsel %vm1120, %v3478, 0
      %v3567 = vsel %vm1120, %v3483, 0
      %v3570 = vsel %vm1120, %v3488, 0
      %v3573 = vsel %vm1120, %v3493, 0
      %v3576 = vsel %vm1120, %v3498, 0
      %v3579 = vsel %vm1120, %v3503, 0
      %v3582 = vsel %vm1120, %v3508, 0
      %v3585 = vsel %vm1120, %v3513, 0
      %v3588 = vsel %vm1120, %v3518, 0
      %v3591 = vsel %vm1120, %v3523, 0
      %v3594 = vsel %vm1120, %v3528, 0
      %3596 = vmatprep.subr.mxu0 0.0
      %3597 = vmatpush1.msra.mxu0 0.0
      %3598 = vmatprep.subr.mxu0 0.0
      %3599 = vmatpush1.msra.mxu0 0.0
      %3600 = vmatprep.subr.mxu0 0.0
      %3601 = vmatpush1.msra.mxu0 0.0
      %3602 = vmatprep.subr.mxu0 0.0
      %3603 = vmatpush1.msra.mxu0 0.0
      %3604 = vmatprep.subr.mxu0 0.0
      %3605 = vmatpush1.msra.mxu0 0.0
      %3606 = vmatprep.subr.mxu0 0.0
      %3607 = vmatpush1.msra.mxu0 0.0
      %3608 = vmatprep.subr.mxu0 0.0
      %3609 = vmatpush1.msra.mxu0 0.0
      %3610 = vmatprep.subr.mxu0 0.0
      %3611 = vmatpush1.msra.mxu0 0.0
      %3612 = vmatprep.subr.mxu0 0.0
      %3613 = vmatpush1.msra.mxu0 0.0
      %3614 = vmatprep.subr.mxu0 0.0
      %3615 = vmatpush1.msra.mxu0 0.0
      %3616 = vmatprep.subr.mxu0 0.0
      %3617 = vmatpush1.msra.mxu0 0.0
      %3618 = vmatprep.subr.mxu0 0.0
      %3619 = vmatpush1.msra.mxu0 0.0
      %3620 = vmatprep.subr.mxu0 0.0
      %3621 = vmatpush1.msra.mxu0 0.0
      %3622 = vmatprep.subr.mxu0 0.0
      %3623 = vmatpush1.msra.mxu0 0.0
      %3624 = vmatprep.subr.mxu0 0.0
      %3625 = vmatpush1.msra.mxu0 0.0
      %3626 = vmatprep.subr.mxu0 0.0
      %3627 = vmatpush1.msra.mxu0 %v3547
      %3628 = vmatprep.subr.mxu0 0.0
      %3629 = vmatpush2.msra.mxu0 0.0
      %3630 = vmatprep.subr.mxu0 0.0
      %3631 = vmatpush2.msra.mxu0 0.0
      %3632 = vmatprep.subr.mxu0 0.0
      %3633 = vmatpush2.msra.mxu0 0.0
      %3634 = vmatprep.subr.mxu0 0.0
      %3635 = vmatpush2.msra.mxu0 0.0
      %3636 = vmatprep.subr.mxu0 0.0
      %3637 = vmatpush2.msra.mxu0 0.0
      %3638 = vmatprep.subr.mxu0 0.0
      %3639 = vmatpush2.msra.mxu0 0.0
      %3640 = vmatprep.subr.mxu0 0.0
      %3641 = vmatpush2.msra.mxu0 0.0
      %3642 = vmatprep.subr.mxu0 0.0
      %3643 = vmatpush2.msra.mxu0 0.0
      %3644 = vmatprep.subr.mxu0 0.0
      %3645 = vmatpush2.msra.mxu0 0.0
      %3646 = vmatprep.subr.mxu0 0.0
      %3647 = vmatpush2.msra.mxu0 0.0
      %3648 = vmatprep.subr.mxu0 0.0
      %3649 = vmatpush2.msra.mxu0 0.0
      %3650 = vmatprep.subr.mxu0 0.0
      %3651 = vmatpush2.msra.mxu0 0.0
      %3652 = vmatprep.subr.mxu0 0.0
      %3653 = vmatpush2.msra.mxu0 0.0
      %3654 = vmatprep.subr.mxu0 0.0
      %3655 = vmatpush2.msra.mxu0 0.0
      %3656 = vmatprep.subr.mxu0 0.0
      %3657 = vmatpush2.msra.mxu0 0.0
      %3658 = vmatprep.subr.mxu0 0.0
      %3659 = vmatpush2.msra.mxu0 0.0
      %3660 = vmatprep.mubr.f32.mxu0 0.0
      %3661 = vmatmul.mubr.f32.gmra.mxu0 %v3549
      %v3662 = vpop.f32.mrf.mxu0
      %v3663 = vadd.f32 0.0, %v3662
      %v3664 = vpop.f32.mrf.mxu0
      %3665 = vmatprep.mubr.f32.mxu0 0.0
      %3666 = vmatmul.mubr.f32.gmra.mxu0 %v3552
      %v3667 = vpop.f32.mrf.mxu0
      %v3668 = vadd.f32 0.0, %v3667
      %v3669 = vpop.f32.mrf.mxu0
      %3670 = vmatprep.mubr.f32.mxu0 0.0
      %3671 = vmatmul.mubr.f32.gmra.mxu0 %v3555
      %v3672 = vpop.f32.mrf.mxu0
      %v3673 = vadd.f32 0.0, %v3672
      %v3674 = vpop.f32.mrf.mxu0
      %3675 = vmatprep.mubr.f32.mxu0 0.0
      %3676 = vmatmul.mubr.f32.gmra.mxu0 %v3558
      %v3677 = vpop.f32.mrf.mxu0
      %v3678 = vadd.f32 0.0, %v3677
      %v3679 = vpop.f32.mrf.mxu0
      %3680 = vmatprep.mubr.f32.mxu0 0.0
      %3681 = vmatmul.mubr.f32.gmra.mxu0 %v3561
      %v3682 = vpop.f32.mrf.mxu0
      %v3683 = vadd.f32 0.0, %v3682
      %v3684 = vpop.f32.mrf.mxu0
      %3685 = vmatprep.mubr.f32.mxu0 0.0
      %3686 = vmatmul.mubr.f32.gmra.mxu0 %v3564
      %v3687 = vpop.f32.mrf.mxu0
      %v3688 = vadd.f32 0.0, %v3687
      %v3689 = vpop.f32.mrf.mxu0
      %3690 = vmatprep.mubr.f32.mxu0 0.0
      %3691 = vmatmul.mubr.f32.gmra.mxu0 %v3567
      %v3692 = vpop.f32.mrf.mxu0
      %v3693 = vadd.f32 0.0, %v3692
      %v3694 = vpop.f32.mrf.mxu0
      %3695 = vmatprep.mubr.f32.mxu0 0.0
      %3696 = vmatmul.mubr.f32.gmra.mxu0 %v3570
      %v3697 = vpop.f32.mrf.mxu0
      %v3698 = vadd.f32 0.0, %v3697
      %v3699 = vpop.f32.mrf.mxu0
      %3700 = vmatprep.mubr.f32.mxu0 0.0
      %3701 = vmatmul.mubr.f32.gmra.mxu0 %v3573
      %v3702 = vpop.f32.mrf.mxu0
      %v3703 = vadd.f32 0.0, %v3702
      %v3704 = vpop.f32.mrf.mxu0
      %3705 = vmatprep.mubr.f32.mxu0 0.0
      %3706 = vmatmul.mubr.f32.gmra.mxu0 %v3576
      %v3707 = vpop.f32.mrf.mxu0
      %v3708 = vadd.f32 0.0, %v3707
      %v3709 = vpop.f32.mrf.mxu0
      %3710 = vmatprep.mubr.f32.mxu0 0.0
      %3711 = vmatmul.mubr.f32.gmra.mxu0 %v3579
      %v3712 = vpop.f32.mrf.mxu0
      %v3713 = vadd.f32 0.0, %v3712
      %v3714 = vpop.f32.mrf.mxu0
      %3715 = vmatprep.mubr.f32.mxu0 0.0
      %3716 = vmatmul.mubr.f32.gmra.mxu0 %v3582
      %v3717 = vpop.f32.mrf.mxu0
      %v3718 = vadd.f32 0.0, %v3717
      %v3719 = vpop.f32.mrf.mxu0
      %3720 = vmatprep.mubr.f32.mxu0 0.0
      %3721 = vmatmul.mubr.f32.gmra.mxu0 %v3585
      %v3722 = vpop.f32.mrf.mxu0
      %v3723 = vadd.f32 0.0, %v3722
      %v3724 = vpop.f32.mrf.mxu0
      %3725 = vmatprep.mubr.f32.mxu0 0.0
      %3726 = vmatmul.mubr.f32.gmra.mxu0 %v3588
      %v3727 = vpop.f32.mrf.mxu0
      %v3728 = vadd.f32 0.0, %v3727
      %v3729 = vpop.f32.mrf.mxu0
      %3730 = vmatprep.mubr.f32.mxu0 0.0
      %3731 = vmatmul.mubr.f32.gmra.mxu0 %v3591
      %v3732 = vpop.f32.mrf.mxu0
      %v3733 = vadd.f32 0.0, %v3732
      %v3734 = vpop.f32.mrf.mxu0
      %3735 = vmatprep.mubr.f32.mxu0 0.0
      %3736 = vmatmul.mubr.f32.gmra.mxu0 %v3594
      %v3737 = vpop.f32.mrf.mxu0
      %v3738 = vadd.f32 0.0, %v3737
      %v3739 = vpop.f32.mrf.mxu0
      %3740 = vdwg.mxu0
      %v3741 = vadd.f32 %v3531, %v3663
      %v3742 = vadd.f32 %v3532, %v3668
      %v3743 = vadd.f32 %v3533, %v3673
      %v3744 = vadd.f32 %v3534, %v3678
      %v3745 = vadd.f32 %v3535, %v3683
      %v3746 = vadd.f32 %v3536, %v3688
      %v3747 = vadd.f32 %v3537, %v3693
      %v3748 = vadd.f32 %v3538, %v3698
      %v3749 = vadd.f32 %v3539, %v3703
      %v3750 = vadd.f32 %v3540, %v3708
      %v3751 = vadd.f32 %v3541, %v3713
      %v3752 = vadd.f32 %v3542, %v3718
      %v3753 = vadd.f32 %v3543, %v3723
      %v3754 = vadd.f32 %v3544, %v3728
      %v3755 = vadd.f32 %v3545, %v3733
      %v3756 = vadd.f32 %v3546, %v3738
      %3757 = vst.msk [vmem:[#allocation4] sm:$0xff] %vm855, %v3741
      %3758 = vst.msk [vmem:[#allocation4 + $0x8] sm:$0xff] %vm855, %v3742
      %3759 = vst.msk [vmem:[#allocation4 + $0x10] sm:$0xff] %vm855, %v3743
      %3760 = vst.msk [vmem:[#allocation4 + $0x18] sm:$0xff] %vm855, %v3744
      %3761 = vst.msk [vmem:[#allocation4 + $0x20] sm:$0xff] %vm855, %v3745
      %3762 = vst.msk [vmem:[#allocation4 + $0x28] sm:$0xff] %vm855, %v3746
      %3763 = vst.msk [vmem:[#allocation4 + $0x30] sm:$0xff] %vm855, %v3747
      %3764 = vst.msk [vmem:[#allocation4 + $0x38] sm:$0xff] %vm855, %v3748
      %3765 = vst.msk [vmem:[#allocation4 + $0x40] sm:$0xff] %vm855, %v3749
      %3766 = vst.msk [vmem:[#allocation4 + $0x48] sm:$0xff] %vm855, %v3750
      %3767 = vst.msk [vmem:[#allocation4 + $0x50] sm:$0xff] %vm855, %v3751
      %3768 = vst.msk [vmem:[#allocation4 + $0x58] sm:$0xff] %vm855, %v3752
      %3769 = vst.msk [vmem:[#allocation4 + $0x60] sm:$0xff] %vm855, %v3753
      %3770 = vst.msk [vmem:[#allocation4 + $0x68] sm:$0xff] %vm855, %v3754
      %3771 = vst.msk [vmem:[#allocation4 + $0x70] sm:$0xff] %vm855, %v3755
      %3772 = vst.msk [vmem:[#allocation4 + $0x78] sm:$0xff] %vm855, %v3756
      %v3773 = vld [vmem:[#allocation2] sm:$0xff]
      %v3774 = vld [vmem:[#allocation2 + $0x8] sm:$0xff]
      %v3775 = vld [vmem:[#allocation2 + $0x10] sm:$0xff]
      %v3776 = vld [vmem:[#allocation2 + $0x18] sm:$0xff]
      %v3777 = vld [vmem:[#allocation2 + $0x20] sm:$0xff]
      %v3778 = vld [vmem:[#allocation2 + $0x28] sm:$0xff]
      %v3779 = vld [vmem:[#allocation2 + $0x30] sm:$0xff]
      %v3780 = vld [vmem:[#allocation2 + $0x38] sm:$0xff]
      %v3781 = vld [vmem:[#allocation2 + $0x40] sm:$0xff]
      %v3782 = vld [vmem:[#allocation2 + $0x48] sm:$0xff]
      %v3783 = vld [vmem:[#allocation2 + $0x50] sm:$0xff]
      %v3784 = vld [vmem:[#allocation2 + $0x58] sm:$0xff]
      %v3785 = vld [vmem:[#allocation2 + $0x60] sm:$0xff]
      %v3786 = vld [vmem:[#allocation2 + $0x68] sm:$0xff]
      %v3787 = vld [vmem:[#allocation2 + $0x70] sm:$0xff]
      %v3788 = vld [vmem:[#allocation2 + $0x78] sm:$0xff]
      %v3789 = vld [vmem:[#allocation3] sm:$0xff]
      %v3790 = vld [vmem:[#allocation3 + $0x8] sm:$0xff]
      %v3791 = vld [vmem:[#allocation3 + $0x10] sm:$0xff]
      %v3792 = vld [vmem:[#allocation3 + $0x18] sm:$0xff]
      %v3793 = vld [vmem:[#allocation3 + $0x20] sm:$0xff]
      %v3794 = vld [vmem:[#allocation3 + $0x28] sm:$0xff]
      %v3795 = vld [vmem:[#allocation3 + $0x30] sm:$0xff]
      %v3796 = vld [vmem:[#allocation3 + $0x38] sm:$0xff]
      %v3797 = vld [vmem:[#allocation3 + $0x40] sm:$0xff]
      %v3798 = vld [vmem:[#allocation3 + $0x48] sm:$0xff]
      %v3799 = vld [vmem:[#allocation3 + $0x50] sm:$0xff]
      %v3800 = vld [vmem:[#allocation3 + $0x58] sm:$0xff]
      %v3801 = vld [vmem:[#allocation3 + $0x60] sm:$0xff]
      %v3802 = vld [vmem:[#allocation3 + $0x68] sm:$0xff]
      %v3803 = vld [vmem:[#allocation3 + $0x70] sm:$0xff]
      %v3804 = vld [vmem:[#allocation3 + $0x78] sm:$0xff]
      %3805 = vrot.lane.b32.xlu0 %v1010, 104
      %v3806 = vpop.permute.xlu0 %3805
      %3807 = vrot.lane.b32.xlu0 %v1015, 104
      %v3808 = vpop.permute.xlu0 %3807
      %3809 = vrot.lane.b32.xlu0 %v1020, 104
      %v3810 = vpop.permute.xlu0 %3809
      %3811 = vrot.lane.b32.xlu0 %v1025, 104
      %v3812 = vpop.permute.xlu0 %3811
      %3813 = vrot.lane.b32.xlu0 %v1030, 104
      %v3814 = vpop.permute.xlu0 %3813
      %3815 = vrot.lane.b32.xlu0 %v1035, 104
      %v3816 = vpop.permute.xlu0 %3815
      %3817 = vrot.lane.b32.xlu0 %v1040, 104
      %v3818 = vpop.permute.xlu0 %3817
      %3819 = vrot.lane.b32.xlu0 %v1045, 104
      %v3820 = vpop.permute.xlu0 %3819
      %3821 = vrot.lane.b32.xlu0 %v1050, 104
      %v3822 = vpop.permute.xlu0 %3821
      %3823 = vrot.lane.b32.xlu0 %v1055, 104
      %v3824 = vpop.permute.xlu0 %3823
      %3825 = vrot.lane.b32.xlu0 %v1060, 104
      %v3826 = vpop.permute.xlu0 %3825
      %3827 = vrot.lane.b32.xlu0 %v1065, 104
      %v3828 = vpop.permute.xlu0 %3827
      %3829 = vrot.lane.b32.xlu0 %v1070, 104
      %v3830 = vpop.permute.xlu0 %3829
      %3831 = vrot.lane.b32.xlu0 %v1075, 104
      %v3832 = vpop.permute.xlu0 %3831
      %3833 = vrot.lane.b32.xlu0 %v1080, 104
      %v3834 = vpop.permute.xlu0 %3833
      %3835 = vrot.lane.b32.xlu0 %v1085, 104
      %v3836 = vpop.permute.xlu0 %3835
      %3853 = vrot.lane.b32.xlu0 %v3773, 104
      %v3854 = vpop.permute.xlu0 %3853
      %3855 = vrot.lane.b32.xlu0 %v3774, 104
      %v3856 = vpop.permute.xlu0 %3855
      %3857 = vrot.lane.b32.xlu0 %v3775, 104
      %v3858 = vpop.permute.xlu0 %3857
      %3859 = vrot.lane.b32.xlu0 %v3776, 104
      %v3860 = vpop.permute.xlu0 %3859
      %3861 = vrot.lane.b32.xlu0 %v3777, 104
      %v3862 = vpop.permute.xlu0 %3861
      %3863 = vrot.lane.b32.xlu0 %v3778, 104
      %v3864 = vpop.permute.xlu0 %3863
      %3865 = vrot.lane.b32.xlu0 %v3779, 104
      %v3866 = vpop.permute.xlu0 %3865
      %3867 = vrot.lane.b32.xlu0 %v3780, 104
      %v3868 = vpop.permute.xlu0 %3867
      %3869 = vrot.lane.b32.xlu0 %v3781, 104
      %v3870 = vpop.permute.xlu0 %3869
      %3871 = vrot.lane.b32.xlu0 %v3782, 104
      %v3872 = vpop.permute.xlu0 %3871
      %3873 = vrot.lane.b32.xlu0 %v3783, 104
      %v3874 = vpop.permute.xlu0 %3873
      %3875 = vrot.lane.b32.xlu0 %v3784, 104
      %v3876 = vpop.permute.xlu0 %3875
      %3877 = vrot.lane.b32.xlu0 %v3785, 104
      %v3878 = vpop.permute.xlu0 %3877
      %3879 = vrot.lane.b32.xlu0 %v3786, 104
      %v3880 = vpop.permute.xlu0 %3879
      %3881 = vrot.lane.b32.xlu0 %v3787, 104
      %v3882 = vpop.permute.xlu0 %3881
      %3883 = vrot.lane.b32.xlu0 %v3788, 104
      %v3884 = vpop.permute.xlu0 %3883
      %v3885 = vsel %vm1120, %v3806, 0
      %v3887 = vsel %vm1120, %v3808, 0
      %v3889 = vsel %vm1120, %v3810, 0
      %v3891 = vsel %vm1120, %v3812, 0
      %v3893 = vsel %vm1120, %v3814, 0
      %v3895 = vsel %vm1120, %v3816, 0
      %v3897 = vsel %vm1120, %v3818, 0
      %v3899 = vsel %vm1120, %v3820, 0
      %v3901 = vsel %vm1120, %v3822, 0
      %v3903 = vsel %vm1120, %v3824, 0
      %v3905 = vsel %vm1120, %v3826, 0
      %v3907 = vsel %vm1120, %v3828, 0
      %v3909 = vsel %vm1120, %v3830, 0
      %v3911 = vsel %vm1120, %v3832, 0
      %v3913 = vsel %vm1120, %v3834, 0
      %v3915 = vsel %vm1120, %v3836, 0
      %v3917 = vsel %vm1120, %v3854, 0
      %v3919 = vsel %vm1120, %v3856, 0
      %v3921 = vsel %vm1120, %v3858, 0
      %v3923 = vsel %vm1120, %v3860, 0
      %v3925 = vsel %vm1120, %v3862, 0
      %v3927 = vsel %vm1120, %v3864, 0
      %v3929 = vsel %vm1120, %v3866, 0
      %v3931 = vsel %vm1120, %v3868, 0
      %v3933 = vsel %vm1120, %v3870, 0
      %v3935 = vsel %vm1120, %v3872, 0
      %v3937 = vsel %vm1120, %v3874, 0
      %v3939 = vsel %vm1120, %v3876, 0
      %v3941 = vsel %vm1120, %v3878, 0
      %v3943 = vsel %vm1120, %v3880, 0
      %v3945 = vsel %vm1120, %v3882, 0
      %v3947 = vsel %vm1120, %v3884, 0
      %3949 = vmatprep.subr.mxu0 0.0
      %3950 = vmatpush1.xpose.msra.mxu0 %v3947
      %3951 = vmatprep.subr.mxu0 0.0
      %3952 = vmatpush1.xpose.msra.mxu0 %v3945
      %3953 = vmatprep.subr.mxu0 0.0
      %3954 = vmatpush1.xpose.msra.mxu0 %v3943
      %3955 = vmatprep.subr.mxu0 0.0
      %3956 = vmatpush1.xpose.msra.mxu0 %v3941
      %3957 = vmatprep.subr.mxu0 0.0
      %3958 = vmatpush1.xpose.msra.mxu0 %v3939
      %3959 = vmatprep.subr.mxu0 0.0
      %3960 = vmatpush1.xpose.msra.mxu0 %v3937
      %3961 = vmatprep.subr.mxu0 0.0
      %3962 = vmatpush1.xpose.msra.mxu0 %v3935
      %3963 = vmatprep.subr.mxu0 0.0
      %3964 = vmatpush1.xpose.msra.mxu0 %v3933
      %3965 = vmatprep.subr.mxu0 0.0
      %3966 = vmatpush1.xpose.msra.mxu0 %v3931
      %3967 = vmatprep.subr.mxu0 0.0
      %3968 = vmatpush1.xpose.msra.mxu0 %v3929
      %3969 = vmatprep.subr.mxu0 0.0
      %3970 = vmatpush1.xpose.msra.mxu0 %v3927
      %3971 = vmatprep.subr.mxu0 0.0
      %3972 = vmatpush1.xpose.msra.mxu0 %v3925
      %3973 = vmatprep.subr.mxu0 0.0
      %3974 = vmatpush1.xpose.msra.mxu0 %v3923
      %3975 = vmatprep.subr.mxu0 0.0
      %3976 = vmatpush1.xpose.msra.mxu0 %v3921
      %3977 = vmatprep.subr.mxu0 0.0
      %3978 = vmatpush1.xpose.msra.mxu0 %v3919
      %3979 = vmatprep.subr.mxu0 0.0
      %3980 = vmatpush1.xpose.msra.mxu0 %v3917
      %3981 = vmatprep.subr.mxu0 0.0
      %3982 = vmatpush2.xpose.msra.mxu0 0.0
      %3983 = vmatprep.subr.mxu0 0.0
      %3984 = vmatpush2.xpose.msra.mxu0 0.0
      %3985 = vmatprep.subr.mxu0 0.0
      %3986 = vmatpush2.xpose.msra.mxu0 0.0
      %3987 = vmatprep.subr.mxu0 0.0
      %3988 = vmatpush2.xpose.msra.mxu0 0.0
      %3989 = vmatprep.subr.mxu0 0.0
      %3990 = vmatpush2.xpose.msra.mxu0 0.0
      %3991 = vmatprep.subr.mxu0 0.0
      %3992 = vmatpush2.xpose.msra.mxu0 0.0
      %3993 = vmatprep.subr.mxu0 0.0
      %3994 = vmatpush2.xpose.msra.mxu0 0.0
      %3995 = vmatprep.subr.mxu0 0.0
      %3996 = vmatpush2.xpose.msra.mxu0 0.0
      %3997 = vmatprep.subr.mxu0 0.0
      %3998 = vmatpush2.xpose.msra.mxu0 0.0
      %3999 = vmatprep.subr.mxu0 0.0
      %4000 = vmatpush2.xpose.msra.mxu0 0.0
      %4001 = vmatprep.subr.mxu0 0.0
      %4002 = vmatpush2.xpose.msra.mxu0 0.0
      %4003 = vmatprep.subr.mxu0 0.0
      %4004 = vmatpush2.xpose.msra.mxu0 0.0
      %4005 = vmatprep.subr.mxu0 0.0
      %4006 = vmatpush2.xpose.msra.mxu0 0.0
      %4007 = vmatprep.subr.mxu0 0.0
      %4008 = vmatpush2.xpose.msra.mxu0 0.0
      %4009 = vmatprep.subr.mxu0 0.0
      %4010 = vmatpush2.xpose.msra.mxu0 0.0
      %4011 = vmatprep.subr.mxu0 0.0
      %4012 = vmatpush2.xpose.msra.mxu0 0.0
      %4013 = vmatprep.mubr.f32.mxu0 0.0
      %4014 = vmatmul.mubr.f32.gmra.mxu0 %v3885
      %v4015 = vpop.f32.mrf.mxu0
      %v4016 = vadd.f32 0.0, %v4015
      %v4017 = vpop.f32.mrf.mxu0
      %4018 = vmatprep.mubr.f32.mxu0 0.0
      %4019 = vmatmul.mubr.f32.gmra.mxu0 %v3887
      %v4020 = vpop.f32.mrf.mxu0
      %v4021 = vadd.f32 0.0, %v4020
      %v4022 = vpop.f32.mrf.mxu0
      %4023 = vmatprep.mubr.f32.mxu0 0.0
      %4024 = vmatmul.mubr.f32.gmra.mxu0 %v3889
      %v4025 = vpop.f32.mrf.mxu0
      %v4026 = vadd.f32 0.0, %v4025
      %v4027 = vpop.f32.mrf.mxu0
      %4028 = vmatprep.mubr.f32.mxu0 0.0
      %4029 = vmatmul.mubr.f32.gmra.mxu0 %v3891
      %v4030 = vpop.f32.mrf.mxu0
      %v4031 = vadd.f32 0.0, %v4030
      %v4032 = vpop.f32.mrf.mxu0
      %4033 = vmatprep.mubr.f32.mxu0 0.0
      %4034 = vmatmul.mubr.f32.gmra.mxu0 %v3893
      %v4035 = vpop.f32.mrf.mxu0
      %v4036 = vadd.f32 0.0, %v4035
      %v4037 = vpop.f32.mrf.mxu0
      %4038 = vmatprep.mubr.f32.mxu0 0.0
      %4039 = vmatmul.mubr.f32.gmra.mxu0 %v3895
      %v4040 = vpop.f32.mrf.mxu0
      %v4041 = vadd.f32 0.0, %v4040
      %v4042 = vpop.f32.mrf.mxu0
      %4043 = vmatprep.mubr.f32.mxu0 0.0
      %4044 = vmatmul.mubr.f32.gmra.mxu0 %v3897
      %v4045 = vpop.f32.mrf.mxu0
      %v4046 = vadd.f32 0.0, %v4045
      %v4047 = vpop.f32.mrf.mxu0
      %4048 = vmatprep.mubr.f32.mxu0 0.0
      %4049 = vmatmul.mubr.f32.gmra.mxu0 %v3899
      %v4050 = vpop.f32.mrf.mxu0
      %v4051 = vadd.f32 0.0, %v4050
      %v4052 = vpop.f32.mrf.mxu0
      %4053 = vmatprep.mubr.f32.mxu0 0.0
      %4054 = vmatmul.mubr.f32.gmra.mxu0 %v3901
      %v4055 = vpop.f32.mrf.mxu0
      %v4056 = vadd.f32 0.0, %v4055
      %v4057 = vpop.f32.mrf.mxu0
      %4058 = vmatprep.mubr.f32.mxu0 0.0
      %4059 = vmatmul.mubr.f32.gmra.mxu0 %v3903
      %v4060 = vpop.f32.mrf.mxu0
      %v4061 = vadd.f32 0.0, %v4060
      %v4062 = vpop.f32.mrf.mxu0
      %4063 = vmatprep.mubr.f32.mxu0 0.0
      %4064 = vmatmul.mubr.f32.gmra.mxu0 %v3905
      %v4065 = vpop.f32.mrf.mxu0
      %v4066 = vadd.f32 0.0, %v4065
      %v4067 = vpop.f32.mrf.mxu0
      %4068 = vmatprep.mubr.f32.mxu0 0.0
      %4069 = vmatmul.mubr.f32.gmra.mxu0 %v3907
      %v4070 = vpop.f32.mrf.mxu0
      %v4071 = vadd.f32 0.0, %v4070
      %v4072 = vpop.f32.mrf.mxu0
      %4073 = vmatprep.mubr.f32.mxu0 0.0
      %4074 = vmatmul.mubr.f32.gmra.mxu0 %v3909
      %v4075 = vpop.f32.mrf.mxu0
      %v4076 = vadd.f32 0.0, %v4075
      %v4077 = vpop.f32.mrf.mxu0
      %4078 = vmatprep.mubr.f32.mxu0 0.0
      %4079 = vmatmul.mubr.f32.gmra.mxu0 %v3911
      %v4080 = vpop.f32.mrf.mxu0
      %v4081 = vadd.f32 0.0, %v4080
      %v4082 = vpop.f32.mrf.mxu0
      %4083 = vmatprep.mubr.f32.mxu0 0.0
      %4084 = vmatmul.mubr.f32.gmra.mxu0 %v3913
      %v4085 = vpop.f32.mrf.mxu0
      %v4086 = vadd.f32 0.0, %v4085
      %v4087 = vpop.f32.mrf.mxu0
      %4088 = vmatprep.mubr.f32.mxu0 0.0
      %4089 = vmatmul.mubr.f32.gmra.mxu0 %v3915
      %v4090 = vpop.f32.mrf.mxu0
      %v4091 = vadd.f32 0.0, %v4090
      %v4092 = vpop.f32.mrf.mxu0
      %4093 = vdwg.mxu0
      %v4094 = vsel %vm874, %v4016, -1e+30
      %v4095 = vsel %vm874, %v4021, -1e+30
      %v4096 = vsel %vm874, %v4026, -1e+30
      %v4097 = vsel %vm874, %v4031, -1e+30
      %v4098 = vsel %vm874, %v4036, -1e+30
      %v4099 = vsel %vm874, %v4041, -1e+30
      %v4100 = vsel %vm874, %v4046, -1e+30
      %v4101 = vsel %vm874, %v4051, -1e+30
      %v4102 = vsel %vm874, %v4056, -1e+30
      %v4103 = vsel %vm874, %v4061, -1e+30
      %v4104 = vsel %vm874, %v4066, -1e+30
      %v4105 = vsel %vm874, %v4071, -1e+30
      %v4106 = vsel %vm874, %v4076, -1e+30
      %v4107 = vsel %vm874, %v4081, -1e+30
      %v4108 = vsel %vm874, %v4086, -1e+30
      %v4109 = vsel %vm874, %v4091, -1e+30
      %4110 = vmax.xlane.f32.xlu0 %v4094
      %v4111 = vpop.xlane.xlu0 %4110
      %4112 = vmax.xlane.f32.xlu0 %v4095
      %v4113 = vpop.xlane.xlu0 %4112
      %4114 = vmax.xlane.f32.xlu0 %v4096
      %v4115 = vpop.xlane.xlu0 %4114
      %4116 = vmax.xlane.f32.xlu0 %v4097
      %v4117 = vpop.xlane.xlu0 %4116
      %4118 = vmax.xlane.f32.xlu0 %v4098
      %v4119 = vpop.xlane.xlu0 %4118
      %4120 = vmax.xlane.f32.xlu0 %v4099
      %v4121 = vpop.xlane.xlu0 %4120
      %4122 = vmax.xlane.f32.xlu0 %v4100
      %v4123 = vpop.xlane.xlu0 %4122
      %4124 = vmax.xlane.f32.xlu0 %v4101
      %v4125 = vpop.xlane.xlu0 %4124
      %4126 = vmax.xlane.f32.xlu0 %v4102
      %v4127 = vpop.xlane.xlu0 %4126
      %4128 = vmax.xlane.f32.xlu0 %v4103
      %v4129 = vpop.xlane.xlu0 %4128
      %4130 = vmax.xlane.f32.xlu0 %v4104
      %v4131 = vpop.xlane.xlu0 %4130
      %4132 = vmax.xlane.f32.xlu0 %v4105
      %v4133 = vpop.xlane.xlu0 %4132
      %4134 = vmax.xlane.f32.xlu0 %v4106
      %v4135 = vpop.xlane.xlu0 %4134
      %4136 = vmax.xlane.f32.xlu0 %v4107
      %v4137 = vpop.xlane.xlu0 %4136
      %4138 = vmax.xlane.f32.xlu0 %v4108
      %v4139 = vpop.xlane.xlu0 %4138
      %4140 = vmax.xlane.f32.xlu0 %v4109
      %v4141 = vpop.xlane.xlu0 %4140
      %v4142 = vsub.f32 %v4094, %v4111
      %v4143 = vsub.f32 %v4095, %v4113
      %v4144 = vsub.f32 %v4096, %v4115
      %v4145 = vsub.f32 %v4097, %v4117
      %v4146 = vsub.f32 %v4098, %v4119
      %v4147 = vsub.f32 %v4099, %v4121
      %v4148 = vsub.f32 %v4100, %v4123
      %v4149 = vsub.f32 %v4101, %v4125
      %v4150 = vsub.f32 %v4102, %v4127
      %v4151 = vsub.f32 %v4103, %v4129
      %v4152 = vsub.f32 %v4104, %v4131
      %v4153 = vsub.f32 %v4105, %v4133
      %v4154 = vsub.f32 %v4106, %v4135
      %v4155 = vsub.f32 %v4107, %v4137
      %v4156 = vsub.f32 %v4108, %v4139
      %v4157 = vsub.f32 %v4109, %v4141
      %v4158 = vmul.f32 %v4142, 1.442695
      %v4159 = vpow.pop %v4158
      %v4160 = vmul.f32 %v4143, 1.442695
      %v4161 = vpow.pop %v4160
      %v4162 = vmul.f32 %v4144, 1.442695
      %v4163 = vpow.pop %v4162
      %v4164 = vmul.f32 %v4145, 1.442695
      %v4165 = vpow.pop %v4164
      %v4166 = vmul.f32 %v4146, 1.442695
      %v4167 = vpow.pop %v4166
      %v4168 = vmul.f32 %v4147, 1.442695
      %v4169 = vpow.pop %v4168
      %v4170 = vmul.f32 %v4148, 1.442695
      %v4171 = vpow.pop %v4170
      %v4172 = vmul.f32 %v4149, 1.442695
      %v4173 = vpow.pop %v4172
      %v4174 = vmul.f32 %v4150, 1.442695
      %v4175 = vpow.pop %v4174
      %v4176 = vmul.f32 %v4151, 1.442695
      %v4177 = vpow.pop %v4176
      %v4178 = vmul.f32 %v4152, 1.442695
      %v4179 = vpow.pop %v4178
      %v4180 = vmul.f32 %v4153, 1.442695
      %v4181 = vpow.pop %v4180
      %v4182 = vmul.f32 %v4154, 1.442695
      %v4183 = vpow.pop %v4182
      %v4184 = vmul.f32 %v4155, 1.442695
      %v4185 = vpow.pop %v4184
      %v4186 = vmul.f32 %v4156, 1.442695
      %v4187 = vpow.pop %v4186
      %v4188 = vmul.f32 %v4157, 1.442695
      %v4189 = vpow.pop %v4188
      %4190 = vadd.xlane.f32.xlu0 %v4159
      %v4191 = vpop.xlane.xlu0 %4190
      %4192 = vadd.xlane.f32.xlu0 %v4161
      %v4193 = vpop.xlane.xlu0 %4192
      %4194 = vadd.xlane.f32.xlu0 %v4163
      %v4195 = vpop.xlane.xlu0 %4194
      %4196 = vadd.xlane.f32.xlu0 %v4165
      %v4197 = vpop.xlane.xlu0 %4196
      %4198 = vadd.xlane.f32.xlu0 %v4167
      %v4199 = vpop.xlane.xlu0 %4198
      %4200 = vadd.xlane.f32.xlu0 %v4169
      %v4201 = vpop.xlane.xlu0 %4200
      %4202 = vadd.xlane.f32.xlu0 %v4171
      %v4203 = vpop.xlane.xlu0 %4202
      %4204 = vadd.xlane.f32.xlu0 %v4173
      %v4205 = vpop.xlane.xlu0 %4204
      %4206 = vadd.xlane.f32.xlu0 %v4175
      %v4207 = vpop.xlane.xlu0 %4206
      %4208 = vadd.xlane.f32.xlu0 %v4177
      %v4209 = vpop.xlane.xlu0 %4208
      %4210 = vadd.xlane.f32.xlu0 %v4179
      %v4211 = vpop.xlane.xlu0 %4210
      %4212 = vadd.xlane.f32.xlu0 %v4181
      %v4213 = vpop.xlane.xlu0 %4212
      %4214 = vadd.xlane.f32.xlu0 %v4183
      %v4215 = vpop.xlane.xlu0 %4214
      %4216 = vadd.xlane.f32.xlu0 %v4185
      %v4217 = vpop.xlane.xlu0 %4216
      %4218 = vadd.xlane.f32.xlu0 %v4187
      %v4219 = vpop.xlane.xlu0 %4218
      %4220 = vadd.xlane.f32.xlu0 %v4189
      %v4221 = vpop.xlane.xlu0 %4220
      %v4222 = vrcp.pop %v4191
      %v4223 = vrcp.pop %v4193
      %v4224 = vrcp.pop %v4195
      %v4225 = vrcp.pop %v4197
      %v4226 = vrcp.pop %v4199
      %v4227 = vrcp.pop %v4201
      %v4228 = vrcp.pop %v4203
      %v4229 = vrcp.pop %v4205
      %v4230 = vrcp.pop %v4207
      %v4231 = vrcp.pop %v4209
      %v4232 = vrcp.pop %v4211
      %v4233 = vrcp.pop %v4213
      %v4234 = vrcp.pop %v4215
      %v4235 = vrcp.pop %v4217
      %v4236 = vrcp.pop %v4219
      %v4237 = vrcp.pop %v4221
      %v4238 = vmul.f32 %v4159, %v4222
      %v4239 = vmul.f32 %v4161, %v4223
      %v4240 = vmul.f32 %v4163, %v4224
      %v4241 = vmul.f32 %v4165, %v4225
      %v4242 = vmul.f32 %v4167, %v4226
      %v4243 = vmul.f32 %v4169, %v4227
      %v4244 = vmul.f32 %v4171, %v4228
      %v4245 = vmul.f32 %v4173, %v4229
      %v4246 = vmul.f32 %v4175, %v4230
      %v4247 = vmul.f32 %v4177, %v4231
      %v4248 = vmul.f32 %v4179, %v4232
      %v4249 = vmul.f32 %v4181, %v4233
      %v4250 = vmul.f32 %v4183, %v4234
      %v4251 = vmul.f32 %v4185, %v4235
      %v4252 = vmul.f32 %v4187, %v4236
      %v4253 = vmul.f32 %v4189, %v4237
      %4270 = vrot.lane.b32.xlu0 %v3789, 104
      %v4271 = vpop.permute.xlu0 %4270
      %4272 = vrot.lane.b32.xlu0 %v3790, 104
      %v4273 = vpop.permute.xlu0 %4272
      %4274 = vrot.lane.b32.xlu0 %v3791, 104
      %v4275 = vpop.permute.xlu0 %4274
      %4276 = vrot.lane.b32.xlu0 %v3792, 104
      %v4277 = vpop.permute.xlu0 %4276
      %4278 = vrot.lane.b32.xlu0 %v3793, 104
      %v4279 = vpop.permute.xlu0 %4278
      %4280 = vrot.lane.b32.xlu0 %v3794, 104
      %v4281 = vpop.permute.xlu0 %4280
      %4282 = vrot.lane.b32.xlu0 %v3795, 104
      %v4283 = vpop.permute.xlu0 %4282
      %4284 = vrot.lane.b32.xlu0 %v3796, 104
      %v4285 = vpop.permute.xlu0 %4284
      %4286 = vrot.lane.b32.xlu0 %v3797, 104
      %v4287 = vpop.permute.xlu0 %4286
      %4288 = vrot.lane.b32.xlu0 %v3798, 104
      %v4289 = vpop.permute.xlu0 %4288
      %4290 = vrot.lane.b32.xlu0 %v3799, 104
      %v4291 = vpop.permute.xlu0 %4290
      %4292 = vrot.lane.b32.xlu0 %v3800, 104
      %v4293 = vpop.permute.xlu0 %4292
      %4294 = vrot.lane.b32.xlu0 %v3801, 104
      %v4295 = vpop.permute.xlu0 %4294
      %4296 = vrot.lane.b32.xlu0 %v3802, 104
      %v4297 = vpop.permute.xlu0 %4296
      %4298 = vrot.lane.b32.xlu0 %v3803, 104
      %v4299 = vpop.permute.xlu0 %4298
      %4300 = vrot.lane.b32.xlu0 %v3804, 104
      %v4301 = vpop.permute.xlu0 %4300
      %4318 = vmatprep.subr.mxu0 0.0
      %4319 = vmatpush1.msra.mxu0 %v4301
      %4320 = vmatprep.subr.mxu0 0.0
      %4321 = vmatpush1.msra.mxu0 %v4299
      %4322 = vmatprep.subr.mxu0 0.0
      %4323 = vmatpush1.msra.mxu0 %v4297
      %4324 = vmatprep.subr.mxu0 0.0
      %4325 = vmatpush1.msra.mxu0 %v4295
      %4326 = vmatprep.subr.mxu0 0.0
      %4327 = vmatpush1.msra.mxu0 %v4293
      %4328 = vmatprep.subr.mxu0 0.0
      %4329 = vmatpush1.msra.mxu0 %v4291
      %4330 = vmatprep.subr.mxu0 0.0
      %4331 = vmatpush1.msra.mxu0 %v4289
      %4332 = vmatprep.subr.mxu0 0.0
      %4333 = vmatpush1.msra.mxu0 %v4287
      %4334 = vmatprep.subr.mxu0 0.0
      %4335 = vmatpush1.msra.mxu0 %v4285
      %4336 = vmatprep.subr.mxu0 0.0
      %4337 = vmatpush1.msra.mxu0 %v4283
      %4338 = vmatprep.subr.mxu0 0.0
      %4339 = vmatpush1.msra.mxu0 %v4281
      %4340 = vmatprep.subr.mxu0 0.0
      %4341 = vmatpush1.msra.mxu0 %v4279
      %4342 = vmatprep.subr.mxu0 0.0
      %4343 = vmatpush1.msra.mxu0 %v4277
      %4344 = vmatprep.subr.mxu0 0.0
      %4345 = vmatpush1.msra.mxu0 %v4275
      %4346 = vmatprep.subr.mxu0 0.0
      %4347 = vmatpush1.msra.mxu0 %v4273
      %4348 = vmatprep.subr.mxu0 0.0
      %4349 = vmatpush1.msra.mxu0 %v4271
      %4350 = vmatprep.subr.mxu0 0.0
      %4351 = vmatpush2.msra.mxu0 0.0
      %4352 = vmatprep.subr.mxu0 0.0
      %4353 = vmatpush2.msra.mxu0 0.0
      %4354 = vmatprep.subr.mxu0 0.0
      %4355 = vmatpush2.msra.mxu0 0.0
      %4356 = vmatprep.subr.mxu0 0.0
      %4357 = vmatpush2.msra.mxu0 0.0
      %4358 = vmatprep.subr.mxu0 0.0
      %4359 = vmatpush2.msra.mxu0 0.0
      %4360 = vmatprep.subr.mxu0 0.0
      %4361 = vmatpush2.msra.mxu0 0.0
      %4362 = vmatprep.subr.mxu0 0.0
      %4363 = vmatpush2.msra.mxu0 0.0
      %4364 = vmatprep.subr.mxu0 0.0
      %4365 = vmatpush2.msra.mxu0 0.0
      %4366 = vmatprep.subr.mxu0 0.0
      %4367 = vmatpush2.msra.mxu0 0.0
      %4368 = vmatprep.subr.mxu0 0.0
      %4369 = vmatpush2.msra.mxu0 0.0
      %4370 = vmatprep.subr.mxu0 0.0
      %4371 = vmatpush2.msra.mxu0 0.0
      %4372 = vmatprep.subr.mxu0 0.0
      %4373 = vmatpush2.msra.mxu0 0.0
      %4374 = vmatprep.subr.mxu0 0.0
      %4375 = vmatpush2.msra.mxu0 0.0
      %4376 = vmatprep.subr.mxu0 0.0
      %4377 = vmatpush2.msra.mxu0 0.0
      %4378 = vmatprep.subr.mxu0 0.0
      %4379 = vmatpush2.msra.mxu0 0.0
      %4380 = vmatprep.subr.mxu0 0.0
      %4381 = vmatpush2.msra.mxu0 0.0
      %4382 = vmatprep.mubr.f32.mxu0 0.0
      %4383 = vmatmul.mubr.f32.gmra.mxu0 %v4238
      %v4384 = vpop.f32.mrf.mxu0
      %v4385 = vadd.f32 0.0, %v4384
      %v4386 = vpop.f32.mrf.mxu0
      %4387 = vmatprep.mubr.f32.mxu0 0.0
      %4388 = vmatmul.mubr.f32.gmra.mxu0 %v4239
      %v4389 = vpop.f32.mrf.mxu0
      %v4390 = vadd.f32 0.0, %v4389
      %v4391 = vpop.f32.mrf.mxu0
      %4392 = vmatprep.mubr.f32.mxu0 0.0
      %4393 = vmatmul.mubr.f32.gmra.mxu0 %v4240
      %v4394 = vpop.f32.mrf.mxu0
      %v4395 = vadd.f32 0.0, %v4394
      %v4396 = vpop.f32.mrf.mxu0
      %4397 = vmatprep.mubr.f32.mxu0 0.0
      %4398 = vmatmul.mubr.f32.gmra.mxu0 %v4241
      %v4399 = vpop.f32.mrf.mxu0
      %v4400 = vadd.f32 0.0, %v4399
      %v4401 = vpop.f32.mrf.mxu0
      %4402 = vmatprep.mubr.f32.mxu0 0.0
      %4403 = vmatmul.mubr.f32.gmra.mxu0 %v4242
      %v4404 = vpop.f32.mrf.mxu0
      %v4405 = vadd.f32 0.0, %v4404
      %v4406 = vpop.f32.mrf.mxu0
      %4407 = vmatprep.mubr.f32.mxu0 0.0
      %4408 = vmatmul.mubr.f32.gmra.mxu0 %v4243
      %v4409 = vpop.f32.mrf.mxu0
      %v4410 = vadd.f32 0.0, %v4409
      %v4411 = vpop.f32.mrf.mxu0
      %4412 = vmatprep.mubr.f32.mxu0 0.0
      %4413 = vmatmul.mubr.f32.gmra.mxu0 %v4244
      %v4414 = vpop.f32.mrf.mxu0
      %v4415 = vadd.f32 0.0, %v4414
      %v4416 = vpop.f32.mrf.mxu0
      %4417 = vmatprep.mubr.f32.mxu0 0.0
      %4418 = vmatmul.mubr.f32.gmra.mxu0 %v4245
      %v4419 = vpop.f32.mrf.mxu0
      %v4420 = vadd.f32 0.0, %v4419
      %v4421 = vpop.f32.mrf.mxu0
      %4422 = vmatprep.mubr.f32.mxu0 0.0
      %4423 = vmatmul.mubr.f32.gmra.mxu0 %v4246
      %v4424 = vpop.f32.mrf.mxu0
      %v4425 = vadd.f32 0.0, %v4424
      %v4426 = vpop.f32.mrf.mxu0
      %4427 = vmatprep.mubr.f32.mxu0 0.0
      %4428 = vmatmul.mubr.f32.gmra.mxu0 %v4247
      %v4429 = vpop.f32.mrf.mxu0
      %v4430 = vadd.f32 0.0, %v4429
      %v4431 = vpop.f32.mrf.mxu0
      %4432 = vmatprep.mubr.f32.mxu0 0.0
      %4433 = vmatmul.mubr.f32.gmra.mxu0 %v4248
      %v4434 = vpop.f32.mrf.mxu0
      %v4435 = vadd.f32 0.0, %v4434
      %v4436 = vpop.f32.mrf.mxu0
      %4437 = vmatprep.mubr.f32.mxu0 0.0
      %4438 = vmatmul.mubr.f32.gmra.mxu0 %v4249
      %v4439 = vpop.f32.mrf.mxu0
      %v4440 = vadd.f32 0.0, %v4439
      %v4441 = vpop.f32.mrf.mxu0
      %4442 = vmatprep.mubr.f32.mxu0 0.0
      %4443 = vmatmul.mubr.f32.gmra.mxu0 %v4250
      %v4444 = vpop.f32.mrf.mxu0
      %v4445 = vadd.f32 0.0, %v4444
      %v4446 = vpop.f32.mrf.mxu0
      %4447 = vmatprep.mubr.f32.mxu0 0.0
      %4448 = vmatmul.mubr.f32.gmra.mxu0 %v4251
      %v4449 = vpop.f32.mrf.mxu0
      %v4450 = vadd.f32 0.0, %v4449
      %v4451 = vpop.f32.mrf.mxu0
      %4452 = vmatprep.mubr.f32.mxu0 0.0
      %4453 = vmatmul.mubr.f32.gmra.mxu0 %v4252
      %v4454 = vpop.f32.mrf.mxu0
      %v4455 = vadd.f32 0.0, %v4454
      %v4456 = vpop.f32.mrf.mxu0
      %4457 = vmatprep.mubr.f32.mxu0 0.0
      %4458 = vmatmul.mubr.f32.gmra.mxu0 %v4253
      %v4459 = vpop.f32.mrf.mxu0
      %v4460 = vadd.f32 0.0, %v4459
      %v4461 = vpop.f32.mrf.mxu0
      %4462 = vdwg.mxu0
      %v4463 = vld [vmem:[#allocation4] sm:$0xff]
      %v4464 = vld [vmem:[#allocation4 + $0x8] sm:$0xff]
      %v4465 = vld [vmem:[#allocation4 + $0x10] sm:$0xff]
      %v4466 = vld [vmem:[#allocation4 + $0x18] sm:$0xff]
      %v4467 = vld [vmem:[#allocation4 + $0x20] sm:$0xff]
      %v4468 = vld [vmem:[#allocation4 + $0x28] sm:$0xff]
      %v4469 = vld [vmem:[#allocation4 + $0x30] sm:$0xff]
      %v4470 = vld [vmem:[#allocation4 + $0x38] sm:$0xff]
      %v4471 = vld [vmem:[#allocation4 + $0x40] sm:$0xff]
      %v4472 = vld [vmem:[#allocation4 + $0x48] sm:$0xff]
      %v4473 = vld [vmem:[#allocation4 + $0x50] sm:$0xff]
      %v4474 = vld [vmem:[#allocation4 + $0x58] sm:$0xff]
      %v4475 = vld [vmem:[#allocation4 + $0x60] sm:$0xff]
      %v4476 = vld [vmem:[#allocation4 + $0x68] sm:$0xff]
      %v4477 = vld [vmem:[#allocation4 + $0x70] sm:$0xff]
      %v4478 = vld [vmem:[#allocation4 + $0x78] sm:$0xff]
      %v4479 = vld [vmem:[%s6 + $0x18] sm:$0xff]
      %v4481 = vsel %vm1120, %v4385, 0
      %v4484 = vsel %vm1120, %v4390, 0
      %v4487 = vsel %vm1120, %v4395, 0
      %v4490 = vsel %vm1120, %v4400, 0
      %v4493 = vsel %vm1120, %v4405, 0
      %v4496 = vsel %vm1120, %v4410, 0
      %v4499 = vsel %vm1120, %v4415, 0
      %v4502 = vsel %vm1120, %v4420, 0
      %v4505 = vsel %vm1120, %v4425, 0
      %v4508 = vsel %vm1120, %v4430, 0
      %v4511 = vsel %vm1120, %v4435, 0
      %v4514 = vsel %vm1120, %v4440, 0
      %v4517 = vsel %vm1120, %v4445, 0
      %v4520 = vsel %vm1120, %v4450, 0
      %v4523 = vsel %vm1120, %v4455, 0
      %v4526 = vsel %vm1120, %v4460, 0
      %4528 = vmatprep.subr.mxu0 0.0
      %4529 = vmatpush1.msra.mxu0 0.0
      %4530 = vmatprep.subr.mxu0 0.0
      %4531 = vmatpush1.msra.mxu0 0.0
      %4532 = vmatprep.subr.mxu0 0.0
      %4533 = vmatpush1.msra.mxu0 0.0
      %4534 = vmatprep.subr.mxu0 0.0
      %4535 = vmatpush1.msra.mxu0 0.0
      %4536 = vmatprep.subr.mxu0 0.0
      %4537 = vmatpush1.msra.mxu0 0.0
      %4538 = vmatprep.subr.mxu0 0.0
      %4539 = vmatpush1.msra.mxu0 0.0
      %4540 = vmatprep.subr.mxu0 0.0
      %4541 = vmatpush1.msra.mxu0 0.0
      %4542 = vmatprep.subr.mxu0 0.0
      %4543 = vmatpush1.msra.mxu0 0.0
      %4544 = vmatprep.subr.mxu0 0.0
      %4545 = vmatpush1.msra.mxu0 0.0
      %4546 = vmatprep.subr.mxu0 0.0
      %4547 = vmatpush1.msra.mxu0 0.0
      %4548 = vmatprep.subr.mxu0 0.0
      %4549 = vmatpush1.msra.mxu0 0.0
      %4550 = vmatprep.subr.mxu0 0.0
      %4551 = vmatpush1.msra.mxu0 0.0
      %4552 = vmatprep.subr.mxu0 0.0
      %4553 = vmatpush1.msra.mxu0 0.0
      %4554 = vmatprep.subr.mxu0 0.0
      %4555 = vmatpush1.msra.mxu0 0.0
      %4556 = vmatprep.subr.mxu0 0.0
      %4557 = vmatpush1.msra.mxu0 0.0
      %4558 = vmatprep.subr.mxu0 0.0
      %4559 = vmatpush1.msra.mxu0 %v4479
      %4560 = vmatprep.subr.mxu0 0.0
      %4561 = vmatpush2.msra.mxu0 0.0
      %4562 = vmatprep.subr.mxu0 0.0
      %4563 = vmatpush2.msra.mxu0 0.0
      %4564 = vmatprep.subr.mxu0 0.0
      %4565 = vmatpush2.msra.mxu0 0.0
      %4566 = vmatprep.subr.mxu0 0.0
      %4567 = vmatpush2.msra.mxu0 0.0
      %4568 = vmatprep.subr.mxu0 0.0
      %4569 = vmatpush2.msra.mxu0 0.0
      %4570 = vmatprep.subr.mxu0 0.0
      %4571 = vmatpush2.msra.mxu0 0.0
      %4572 = vmatprep.subr.mxu0 0.0
      %4573 = vmatpush2.msra.mxu0 0.0
      %4574 = vmatprep.subr.mxu0 0.0
      %4575 = vmatpush2.msra.mxu0 0.0
      %4576 = vmatprep.subr.mxu0 0.0
      %4577 = vmatpush2.msra.mxu0 0.0
      %4578 = vmatprep.subr.mxu0 0.0
      %4579 = vmatpush2.msra.mxu0 0.0
      %4580 = vmatprep.subr.mxu0 0.0
      %4581 = vmatpush2.msra.mxu0 0.0
      %4582 = vmatprep.subr.mxu0 0.0
      %4583 = vmatpush2.msra.mxu0 0.0
      %4584 = vmatprep.subr.mxu0 0.0
      %4585 = vmatpush2.msra.mxu0 0.0
      %4586 = vmatprep.subr.mxu0 0.0
      %4587 = vmatpush2.msra.mxu0 0.0
      %4588 = vmatprep.subr.mxu0 0.0
      %4589 = vmatpush2.msra.mxu0 0.0
      %4590 = vmatprep.subr.mxu0 0.0
      %4591 = vmatpush2.msra.mxu0 0.0
      %4592 = vmatprep.mubr.f32.mxu0 0.0
      %4593 = vmatmul.mubr.f32.gmra.mxu0 %v4481
      %v4594 = vpop.f32.mrf.mxu0
      %v4595 = vadd.f32 0.0, %v4594
      %v4596 = vpop.f32.mrf.mxu0
      %4597 = vmatprep.mubr.f32.mxu0 0.0
      %4598 = vmatmul.mubr.f32.gmra.mxu0 %v4484
      %v4599 = vpop.f32.mrf.mxu0
      %v4600 = vadd.f32 0.0, %v4599
      %v4601 = vpop.f32.mrf.mxu0
      %4602 = vmatprep.mubr.f32.mxu0 0.0
      %4603 = vmatmul.mubr.f32.gmra.mxu0 %v4487
      %v4604 = vpop.f32.mrf.mxu0
      %v4605 = vadd.f32 0.0, %v4604
      %v4606 = vpop.f32.mrf.mxu0
      %4607 = vmatprep.mubr.f32.mxu0 0.0
      %4608 = vmatmul.mubr.f32.gmra.mxu0 %v4490
      %v4609 = vpop.f32.mrf.mxu0
      %v4610 = vadd.f32 0.0, %v4609
      %v4611 = vpop.f32.mrf.mxu0
      %4612 = vmatprep.mubr.f32.mxu0 0.0
      %4613 = vmatmul.mubr.f32.gmra.mxu0 %v4493
      %v4614 = vpop.f32.mrf.mxu0
      %v4615 = vadd.f32 0.0, %v4614
      %v4616 = vpop.f32.mrf.mxu0
      %4617 = vmatprep.mubr.f32.mxu0 0.0
      %4618 = vmatmul.mubr.f32.gmra.mxu0 %v4496
      %v4619 = vpop.f32.mrf.mxu0
      %v4620 = vadd.f32 0.0, %v4619
      %v4621 = vpop.f32.mrf.mxu0
      %4622 = vmatprep.mubr.f32.mxu0 0.0
      %4623 = vmatmul.mubr.f32.gmra.mxu0 %v4499
      %v4624 = vpop.f32.mrf.mxu0
      %v4625 = vadd.f32 0.0, %v4624
      %v4626 = vpop.f32.mrf.mxu0
      %4627 = vmatprep.mubr.f32.mxu0 0.0
      %4628 = vmatmul.mubr.f32.gmra.mxu0 %v4502
      %v4629 = vpop.f32.mrf.mxu0
      %v4630 = vadd.f32 0.0, %v4629
      %v4631 = vpop.f32.mrf.mxu0
      %4632 = vmatprep.mubr.f32.mxu0 0.0
      %4633 = vmatmul.mubr.f32.gmra.mxu0 %v4505
      %v4634 = vpop.f32.mrf.mxu0
      %v4635 = vadd.f32 0.0, %v4634
      %v4636 = vpop.f32.mrf.mxu0
      %4637 = vmatprep.mubr.f32.mxu0 0.0
      %4638 = vmatmul.mubr.f32.gmra.mxu0 %v4508
      %v4639 = vpop.f32.mrf.mxu0
      %v4640 = vadd.f32 0.0, %v4639
      %v4641 = vpop.f32.mrf.mxu0
      %4642 = vmatprep.mubr.f32.mxu0 0.0
      %4643 = vmatmul.mubr.f32.gmra.mxu0 %v4511
      %v4644 = vpop.f32.mrf.mxu0
      %v4645 = vadd.f32 0.0, %v4644
      %v4646 = vpop.f32.mrf.mxu0
      %4647 = vmatprep.mubr.f32.mxu0 0.0
      %4648 = vmatmul.mubr.f32.gmra.mxu0 %v4514
      %v4649 = vpop.f32.mrf.mxu0
      %v4650 = vadd.f32 0.0, %v4649
      %v4651 = vpop.f32.mrf.mxu0
      %4652 = vmatprep.mubr.f32.mxu0 0.0
      %4653 = vmatmul.mubr.f32.gmra.mxu0 %v4517
      %v4654 = vpop.f32.mrf.mxu0
      %v4655 = vadd.f32 0.0, %v4654
      %v4656 = vpop.f32.mrf.mxu0
      %4657 = vmatprep.mubr.f32.mxu0 0.0
      %4658 = vmatmul.mubr.f32.gmra.mxu0 %v4520
      %v4659 = vpop.f32.mrf.mxu0
      %v4660 = vadd.f32 0.0, %v4659
      %v4661 = vpop.f32.mrf.mxu0
      %4662 = vmatprep.mubr.f32.mxu0 0.0
      %4663 = vmatmul.mubr.f32.gmra.mxu0 %v4523
      %v4664 = vpop.f32.mrf.mxu0
      %v4665 = vadd.f32 0.0, %v4664
      %v4666 = vpop.f32.mrf.mxu0
      %4667 = vmatprep.mubr.f32.mxu0 0.0
      %4668 = vmatmul.mubr.f32.gmra.mxu0 %v4526
      %v4669 = vpop.f32.mrf.mxu0
      %v4670 = vadd.f32 0.0, %v4669
      %v4671 = vpop.f32.mrf.mxu0
      %4672 = vdwg.mxu0
      %v4673 = vadd.f32 %v4463, %v4595
      %v4674 = vadd.f32 %v4464, %v4600
      %v4675 = vadd.f32 %v4465, %v4605
      %v4676 = vadd.f32 %v4466, %v4610
      %v4677 = vadd.f32 %v4467, %v4615
      %v4678 = vadd.f32 %v4468, %v4620
      %v4679 = vadd.f32 %v4469, %v4625
      %v4680 = vadd.f32 %v4470, %v4630
      %v4681 = vadd.f32 %v4471, %v4635
      %v4682 = vadd.f32 %v4472, %v4640
      %v4683 = vadd.f32 %v4473, %v4645
      %v4684 = vadd.f32 %v4474, %v4650
      %v4685 = vadd.f32 %v4475, %v4655
      %v4686 = vadd.f32 %v4476, %v4660
      %v4687 = vadd.f32 %v4477, %v4665
      %v4688 = vadd.f32 %v4478, %v4670
      %4689 = vst.msk [vmem:[#allocation4] sm:$0xff] %vm855, %v4673
      %4690 = vst.msk [vmem:[#allocation4 + $0x8] sm:$0xff] %vm855, %v4674
      %4691 = vst.msk [vmem:[#allocation4 + $0x10] sm:$0xff] %vm855, %v4675
      %4692 = vst.msk [vmem:[#allocation4 + $0x18] sm:$0xff] %vm855, %v4676
      %4693 = vst.msk [vmem:[#allocation4 + $0x20] sm:$0xff] %vm855, %v4677
      %4694 = vst.msk [vmem:[#allocation4 + $0x28] sm:$0xff] %vm855, %v4678
      %4695 = vst.msk [vmem:[#allocation4 + $0x30] sm:$0xff] %vm855, %v4679
      %4696 = vst.msk [vmem:[#allocation4 + $0x38] sm:$0xff] %vm855, %v4680
      %4697 = vst.msk [vmem:[#allocation4 + $0x40] sm:$0xff] %vm855, %v4681
      %4698 = vst.msk [vmem:[#allocation4 + $0x48] sm:$0xff] %vm855, %v4682
      %4699 = vst.msk [vmem:[#allocation4 + $0x50] sm:$0xff] %vm855, %v4683
      %4700 = vst.msk [vmem:[#allocation4 + $0x58] sm:$0xff] %vm855, %v4684
      %4701 = vst.msk [vmem:[#allocation4 + $0x60] sm:$0xff] %vm855, %v4685
      %4702 = vst.msk [vmem:[#allocation4 + $0x68] sm:$0xff] %vm855, %v4686
      %4703 = vst.msk [vmem:[#allocation4 + $0x70] sm:$0xff] %vm855, %v4687
      %4704 = vst.msk [vmem:[#allocation4 + $0x78] sm:$0xff] %vm855, %v4688
      %v4705 = vld [vmem:[#allocation4] sm:$0xff]
      %v4706 = vld [vmem:[#allocation4 + $0x8] sm:$0xff]
      %v4707 = vld [vmem:[#allocation4 + $0x10] sm:$0xff]
      %v4708 = vld [vmem:[#allocation4 + $0x18] sm:$0xff]
      %v4709 = vld [vmem:[#allocation4 + $0x20] sm:$0xff]
      %v4710 = vld [vmem:[#allocation4 + $0x28] sm:$0xff]
      %v4711 = vld [vmem:[#allocation4 + $0x30] sm:$0xff]
      %v4712 = vld [vmem:[#allocation4 + $0x38] sm:$0xff]
      %v4713 = vld [vmem:[#allocation4 + $0x40] sm:$0xff]
      %v4714 = vld [vmem:[#allocation4 + $0x48] sm:$0xff]
      %v4715 = vld [vmem:[#allocation4 + $0x50] sm:$0xff]
      %v4716 = vld [vmem:[#allocation4 + $0x58] sm:$0xff]
      %v4717 = vld [vmem:[#allocation4 + $0x60] sm:$0xff]
      %v4718 = vld [vmem:[#allocation4 + $0x68] sm:$0xff]
      %v4719 = vld [vmem:[#allocation4 + $0x70] sm:$0xff]
      %v4720 = vld [vmem:[#allocation4 + $0x78] sm:$0xff]
      %4721 = vst.msk [vmem:[%s383] sm:$0xff] %vm855, %v4705
      %4722 = vst.msk [vmem:[%s383 + $0x8] sm:$0xff] %vm855, %v4706
      %4723 = vst.msk [vmem:[%s383 + $0x10] sm:$0xff] %vm855, %v4707
      %4724 = vst.msk [vmem:[%s383 + $0x18] sm:$0xff] %vm855, %v4708
      %4725 = vst.msk [vmem:[%s383 + $0x20] sm:$0xff] %vm855, %v4709
      %4726 = vst.msk [vmem:[%s383 + $0x28] sm:$0xff] %vm855, %v4710
      %4727 = vst.msk [vmem:[%s383 + $0x30] sm:$0xff] %vm855, %v4711
      %4728 = vst.msk [vmem:[%s383 + $0x38] sm:$0xff] %vm855, %v4712
      %4729 = vst.msk [vmem:[%s383 + $0x40] sm:$0xff] %vm855, %v4713
      %4730 = vst.msk [vmem:[%s383 + $0x48] sm:$0xff] %vm855, %v4714
      %4731 = vst.msk [vmem:[%s383 + $0x50] sm:$0xff] %vm855, %v4715
      %4732 = vst.msk [vmem:[%s383 + $0x58] sm:$0xff] %vm855, %v4716
      %4733 = vst.msk [vmem:[%s383 + $0x60] sm:$0xff] %vm855, %v4717
      %4734 = vst.msk [vmem:[%s383 + $0x68] sm:$0xff] %vm855, %v4718
      %4735 = vst.msk [vmem:[%s383 + $0x70] sm:$0xff] %vm855, %v4719
      %4736 = vst.msk [vmem:[%s383 + $0x78] sm:$0xff] %vm855, %v4720
      %s4737 = smul.u32 16, %s24
      %p4738 = scmp.lt.s32.totalorder %s23, 1
      %s4739 = scalar_select %p4738, %s23, 1
      %p4740 = scmp.lt.s32.totalorder %s4737, 15
      %s4741 = scalar_select %p4740, %s4737, 15
      %s4742 = smul.addr %s4739, 16
      %s4743 = sadd.s32 %s4741, %s4742
      %s4744 = smul.addr %s4743, 8
      %s4745 = scalar_lea.vmem %s8, %s4744
      // Predicated region
      $region57: #{tpu_custom_call.1} parent=51 // pred_check
        %p4746 = pneg %p236
      $region58: #{tpu_custom_call.1} parent=51 // pred_check_branch
        %4748 = sbr.rel (%p4746) target = $region60
      $region59: #{tpu_custom_call.1} parent=51 // pred_region
        %s4749 = smul.u32 16, %s24
      $region60: #{tpu_custom_call.1} parent=51 // pred_fallthru
        _
    $region52: #{tpu_custom_call.1} parent=5 // pred_fallthru
      _
    %p4750 = scmp.le.s32.totalorder 2, %s14
    // Predicated region
    $region61: #{tpu_custom_call.1} parent=5 // pred_check
      %p4751 = pneg %p4750
    $region62: #{tpu_custom_call.1} parent=5 // pred_check_branch
      %4753 = sbr.rel (%p4751) target = $region64
    $region63: #{tpu_custom_call.1} parent=5 // pred_region
      %s4754 = ssub.s32 %s14, 2
      // Predicated region
      $region65: #{tpu_custom_call.1} parent=63 // pred_check
        %p4755 = pneg %p242
      $region66: #{tpu_custom_call.1} parent=63 // pred_check_branch
        %4757 = sbr.rel (%p4755) target = $region68
      $region67: #{tpu_custom_call.1} parent=63 // pred_region
        %s4758 = smul.u32 16, %s26
        %p4759 = scmp.lt.s32.totalorder %s25, 1
        %s4760 = scalar_select %p4759, %s25, 1
        %p4761 = scmp.lt.s32.totalorder %s4758, 15
        %s4762 = scalar_select %p4761, %s4758, 15
        %s4763 = smul.addr %s4760, 16
        %s4764 = sadd.s32 %s4762, %s4763
        %s4765 = smul.addr %s4764, 8
        %s4766 = scalar_lea.vmem %s8, %s4765
      $region68: #{tpu_custom_call.1} parent=63 // pred_fallthru
        _
    $region64: #{tpu_custom_call.1} parent=5 // pred_fallthru
      _
  $region6: #{tpu_custom_call.1} parent=0 // loop_footer
    %s18 = sadd.s32 1, %s14
  $region7: #{tpu_custom_call.1} parent=0 // loop_footer_branch
    %13 = sbr.rel target = $region3
  $region8: #{tpu_custom_call.1} parent=0 // loop_exit
    _

// kernel: tpu_custom_call.1
$region0: #{tpu_custom_call.1}
  #allocation0 [shape = 'u32[]', space=smem, size = 0x4, offset = 0x4, fixed_abs, tag = 'smem constant byte address 0x4 - core index']
  #allocation1 [shape = 'u32[144,128]{1,0:T(1,128)}', space=vmem, size = 0x12000, scoped, tag = 'internal scratch']
  #allocation2 [shape = 'f32[128,32]{1,0:T(8,128)}', space=vmem, size = 0x10000, scoped, tag = 'scratch operand']
  #allocation3 [shape = 'f32[128,32]{1,0:T(8,128)}', space=vmem, size = 0x10000, scoped, tag = 'scratch operand']
  #allocation4 [shape = 'f32[128,32]{1,0:T(8,128)}', space=vmem, size = 0x10000, scoped, tag = 'scratch operand']
  %s0 = inlined_call_operand.vmem [shape: f32[2,128,32], index: 0, kind: input, shape index: {}]
  %s1 = inlined_call_operand.vmem [shape: f32[2,128,32], index: 1, kind: input, shape index: {}]
  %s2 = inlined_call_operand.vmem [shape: f32[2,128,32], index: 2, kind: input, shape index: {}]
  %s3 = inlined_call_operand.vmem [shape: f32[32,32], index: 3, kind: input, shape index: {}]
  %s4 = inlined_call_operand.vmem [shape: f32[32,32], index: 4, kind: input, shape index: {}]
  %s5 = inlined_call_operand.vmem [shape: f32[32,32], index: 5, kind: input, shape index: {}]
  %s6 = inlined_call_operand.vmem [shape: f32[32,32], index: 6, kind: input, shape index: {}]
  %s7 = inlined_call_operand.vmem [shape: f32[1,32], index: 7, kind: input, shape index: {}]
  %s8 = inlined_call_operand.vmem [shape: f32[2,128,32], index: 8, kind: output, shape index: {}]
  %s9 = sld [smem:[#allocation0]]
  $region69: #{tpu_custom_call.1} parent=0
    _
  %s11 = ssub.s32 1, %s9
  %s12 = scalar_select 0, %s11, %s9
  loop: start=0, step=1, limit=4
  $region2: #{tpu_custom_call.1} parent=0 // loop_pre_header
    _
  $region3: #{tpu_custom_call.1} parent=0 // loop_header
    %s14 = sphi 0, %s18
    %p15 = scmp.ge.s32.totalorder %s14, 4
    %s21 = sphi 0, %s33
    %s22 = sphi 0, %s29
    %s23 = sphi 0, %s21
    %s24 = sphi 0, %s22
    %s25 = sphi 0, %s23
    %s26 = sphi 0, %s24
    %s38 = sphi 0, %s40
    %s41 = sphi 0, %s38
    %s42 = sphi 0, %s41
    %s58 = sphi 0, %s42
    %s64 = sphi 0, %s66
    %s67 = sphi 0, %s64
    %s68 = sphi 0, %s67
    %s84 = sphi 0, %s68
    %s90 = sphi 0, %s92
    %s93 = sphi 0, %s90
    %s94 = sphi 0, %s93
    %s110 = sphi 0, %s94
    %s114 = sphi 0, %s114
    %s116 = sphi 0, %s114
    %s117 = sphi 0, %s116
    %s131 = sphi 0, %s117
    %s135 = sphi 0, %s135
    %s137 = sphi 0, %s135
    %s138 = sphi 0, %s137
    %s152 = sphi 0, %s138
    %s156 = sphi 0, %s156
    %s158 = sphi 0, %s156
    %s159 = sphi 0, %s158
    %s173 = sphi 0, %s159
    %s177 = sphi 0, %s177
    %s179 = sphi 0, %s177
    %s180 = sphi 0, %s179
    %s194 = sphi 0, %s180
    %s198 = sphi 0, %s198
    %s200 = sphi 0, %s198
    %s201 = sphi 0, %s200
    %s215 = sphi 0, %s201
    %s223 = sphi 0, %s225
    %s226 = sphi 0, %s223
    %s227 = sphi 0, %s226
    %s243 = sphi 0, %s227
  $region4: #{tpu_custom_call.1} parent=0 // loop_header_branch
    %17 = sbr.rel (%p15) target = $region8
  $region5: #{tpu_custom_call.1} parent=0 // loop_body
    %s19 = ssub.s32 %s14, 1
    %s20 = ssub.s32 %s14, 2
    %s27 = sadd.s32 1, %s22
    %p28 = scmp.ge.s32.totalorder %s27, 1
    %s29 = scalar_select %p28, 0, %s27
    %s30 = sadd.s32 1, %s21
    %s31 = scalar_select %p28, %s30, %s21
    %p32 = scmp.ge.s32.totalorder %s31, 2
    %s33 = scalar_select %p32, 0, %s31
    %s34 = ssub.s32 %s21, %s33
    %s35 = ssub.s32 %s22, %s29
    %s36 = sor.u32 %s34, %s35
    %p37 = scmp.eq.s32.totalorder %s36, 0
    %s39 = sadd.s32 %s38, 1
    %s40 = scalar_select %p37, %s38, %s39
    %p43 = pneg %p37
    %p44 = scmp.eq.s32.totalorder %s14, 1
    %p45 = por %p43, %p44
    %p46 = scmp.ne.s32.totalorder %s38, %s41
    %p47 = scmp.eq.s32.totalorder %s14, 0
    %p48 = por %p46, %p47
    %p49 = scmp.ne.s32.totalorder %s38, %s41
    %p50 = scmp.eq.s32.totalorder %s19, 1
    %p51 = por %p49, %p50
    %p52 = scmp.ne.s32.totalorder %s41, %s42
    %p53 = scmp.eq.s32.totalorder %s19, 0
    %p54 = por %p52, %p53
    %p55 = scmp.ne.s32.totalorder %s41, %s42
    %p56 = scmp.eq.s32.totalorder %s20, 1
    %p57 = por %p55, %p56
    %p59 = scmp.ne.s32.totalorder %s42, %s58
    %p60 = scmp.eq.s32.totalorder %s20, 0
    %p61 = por %p59, %p60
    %s62 = ssub.s32 %s21, %s33
    %p63 = scmp.eq.s32.totalorder %s62, 0
    %s65 = sadd.s32 %s64, 1
    %s66 = scalar_select %p63, %s64, %s65
    %p69 = pneg %p63
    %p70 = scmp.eq.s32.totalorder %s14, 1
    %p71 = por %p69, %p70
    %p72 = scmp.ne.s32.totalorder %s64, %s67
    %p73 = scmp.eq.s32.totalorder %s14, 0
    %p74 = por %p72, %p73
    %p75 = scmp.ne.s32.totalorder %s64, %s67
    %p76 = scmp.eq.s32.totalorder %s19, 1
    %p77 = por %p75, %p76
    %p78 = scmp.ne.s32.totalorder %s67, %s68
    %p79 = scmp.eq.s32.totalorder %s19, 0
    %p80 = por %p78, %p79
    %p81 = scmp.ne.s32.totalorder %s67, %s68
    %p82 = scmp.eq.s32.totalorder %s20, 1
    %p83 = por %p81, %p82
    %p85 = scmp.ne.s32.totalorder %s68, %s84
    %p86 = scmp.eq.s32.totalorder %s20, 0
    %p87 = por %p85, %p86
    %s88 = ssub.s32 %s21, %s33
    %p89 = scmp.eq.s32.totalorder %s88, 0
    %s91 = sadd.s32 %s90, 1
    %s92 = scalar_select %p89, %s90, %s91
    %p95 = pneg %p89
    %p96 = scmp.eq.s32.totalorder %s14, 1
    %p97 = por %p95, %p96
    %p98 = scmp.ne.s32.totalorder %s90, %s93
    %p99 = scmp.eq.s32.totalorder %s14, 0
    %p100 = por %p98, %p99
    %p101 = scmp.ne.s32.totalorder %s90, %s93
    %p102 = scmp.eq.s32.totalorder %s19, 1
    %p103 = por %p101, %p102
    %p104 = scmp.ne.s32.totalorder %s93, %s94
    %p105 = scmp.eq.s32.totalorder %s19, 0
    %p106 = por %p104, %p105
    %p107 = scmp.ne.s32.totalorder %s93, %s94
    %p108 = scmp.eq.s32.totalorder %s20, 1
    %p109 = por %p107, %p108
    %p111 = scmp.ne.s32.totalorder %s94, %s110
    %p112 = scmp.eq.s32.totalorder %s20, 0
    %p113 = por %p111, %p112
    %s115 = sadd.s32 %s114, 1
    %p118 = scmp.eq.s32.totalorder %s14, 1
    %p119 = scmp.ne.s32.totalorder %s114, %s116
    %p120 = scmp.eq.s32.totalorder %s14, 0
    %p121 = por %p119, %p120
    %p122 = scmp.ne.s32.totalorder %s114, %s116
    %p123 = scmp.eq.s32.totalorder %s19, 1
    %p124 = por %p122, %p123
    %p125 = scmp.ne.s32.totalorder %s116, %s117
    %p126 = scmp.eq.s32.totalorder %s19, 0
    %p127 = por %p125, %p126
    %p128 = scmp.ne.s32.totalorder %s116, %s117
    %p129 = scmp.eq.s32.totalorder %s20, 1
    %p130 = por %p128, %p129
    %p132 = scmp.ne.s32.totalorder %s117, %s131
    %p133 = scmp.eq.s32.totalorder %s20, 0
    %p134 = por %p132, %p133
    %s136 = sadd.s32 %s135, 1
    %p139 = scmp.eq.s32.totalorder %s14, 1
    %p140 = scmp.ne.s32.totalorder %s135, %s137
    %p141 = scmp.eq.s32.totalorder %s14, 0
    %p142 = por %p140, %p141
    %p143 = scmp.ne.s32.totalorder %s135, %s137
    %p144 = scmp.eq.s32.totalorder %s19, 1
    %p145 = por %p143, %p144
    %p146 = scmp.ne.s32.totalorder %s137, %s138
    %p147 = scmp.eq.s32.totalorder %s19, 0
    %p148 = por %p146, %p147
    %p149 = scmp.ne.s32.totalorder %s137, %s138
    %p150 = scmp.eq.s32.totalorder %s20, 1
    %p151 = por %p149, %p150
    %p153 = scmp.ne.s32.totalorder %s138, %s152
    %p154 = scmp.eq.s32.totalorder %s20, 0
    %p155 = por %p153, %p154
    %s157 = sadd.s32 %s156, 1
    %p160 = scmp.eq.s32.totalorder %s14, 1
    %p161 = scmp.ne.s32.totalorder %s156, %s158
    %p162 = scmp.eq.s32.totalorder %s14, 0
    %p163 = por %p161, %p162
    %p164 = scmp.ne.s32.totalorder %s156, %s158
    %p165 = scmp.eq.s32.totalorder %s19, 1
    %p166 = por %p164, %p165
    %p167 = scmp.ne.s32.totalorder %s158, %s159
    %p168 = scmp.eq.s32.totalorder %s19, 0
    %p169 = por %p167, %p168
    %p170 = scmp.ne.s32.totalorder %s158, %s159
    %p171 = scmp.eq.s32.totalorder %s20, 1
    %p172 = por %p170, %p171
    %p174 = scmp.ne.s32.totalorder %s159, %s173
    %p175 = scmp.eq.s32.totalorder %s20, 0
    %p176 = por %p174, %p175
    %s178 = sadd.s32 %s177, 1
    %p181 = scmp.eq.s32.totalorder %s14, 1
    %p182 = scmp.ne.s32.totalorder %s177, %s179
    %p183 = scmp.eq.s32.totalorder %s14, 0
    %p184 = por %p182, %p183
    %p185 = scmp.ne.s32.totalorder %s177, %s179
    %p186 = scmp.eq.s32.totalorder %s19, 1
    %p187 = por %p185, %p186
    %p188 = scmp.ne.s32.totalorder %s179, %s180
    %p189 = scmp.eq.s32.totalorder %s19, 0
    %p190 = por %p188, %p189
    %p191 = scmp.ne.s32.totalorder %s179, %s180
    %p192 = scmp.eq.s32.totalorder %s20, 1
    %p193 = por %p191, %p192
    %p195 = scmp.ne.s32.totalorder %s180, %s194
    %p196 = scmp.eq.s32.totalorder %s20, 0
    %p197 = por %p195, %p196
    %s199 = sadd.s32 %s198, 1
    %p202 = scmp.eq.s32.totalorder %s14, 1
    %p203 = scmp.ne.s32.totalorder %s198, %s200
    %p204 = scmp.eq.s32.totalorder %s14, 0
    %p205 = por %p203, %p204
    %p206 = scmp.ne.s32.totalorder %s198, %s200
    %p207 = scmp.eq.s32.totalorder %s19, 1
    %p208 = por %p206, %p207
    %p209 = scmp.ne.s32.totalorder %s200, %s201
    %p210 = scmp.eq.s32.totalorder %s19, 0
    %p211 = por %p209, %p210
    %p212 = scmp.ne.s32.totalorder %s200, %s201
    %p213 = scmp.eq.s32.totalorder %s20, 1
    %p214 = por %p212, %p213
    %p216 = scmp.ne.s32.totalorder %s201, %s215
    %p217 = scmp.eq.s32.totalorder %s20, 0
    %p218 = por %p216, %p217
    %s219 = ssub.s32 %s21, %s33
    %s220 = ssub.s32 %s22, %s29
    %s221 = sor.u32 %s219, %s220
    %p222 = scmp.eq.s32.totalorder %s221, 0
    %s224 = sadd.s32 %s223, 1
    %s225 = scalar_select %p222, %s223, %s224
    %p228 = pneg %p222
    %p229 = scmp.eq.s32.totalorder %s14, 1
    %p230 = por %p228, %p229
    %p231 = scmp.ne.s32.totalorder %s223, %s226
    %p232 = scmp.eq.s32.totalorder %s14, 0
    %p233 = por %p231, %p232
    %p234 = scmp.ne.s32.totalorder %s223, %s226
    %p235 = scmp.eq.s32.totalorder %s19, 1
    %p236 = por %p234, %p235
    %p237 = scmp.ne.s32.totalorder %s226, %s227
    %p238 = scmp.eq.s32.totalorder %s19, 0
    %p239 = por %p237, %p238
    %p240 = scmp.ne.s32.totalorder %s226, %s227
    %p241 = scmp.eq.s32.totalorder %s20, 1
    %p242 = por %p240, %p241
    %p244 = scmp.ne.s32.totalorder %s227, %s243
    %p245 = scmp.eq.s32.totalorder %s20, 0
    %p246 = por %p244, %p245
    %p247 = scmp.le.s32.totalorder 1, %s14
    %p248 = scmp.lt.s32.totalorder %s14, 3
    %p249 = pnand %p247, %p248
    %p250 = pneg %p249
    // Predicated region
    $region9: #{tpu_custom_call.1} parent=5 // pred_check
      _
    $region10: #{tpu_custom_call.1} parent=5 // pred_check_branch
      %252 = sbr.rel (%p249) target = $region12
    $region11: #{tpu_custom_call.1} parent=5 // pred_region
      %s253 = ssub.s32 %s14, 1
      // Predicated region
      $region13: #{tpu_custom_call.1} parent=11 // pred_check
        %p254 = pneg %p127
      $region14: #{tpu_custom_call.1} parent=11 // pred_check_branch
        %256 = sbr.rel (%p254) target = $region16
      $region15: #{tpu_custom_call.1} parent=11 // pred_region
        _
      $region16: #{tpu_custom_call.1} parent=11 // pred_fallthru
        _
      // Predicated region
      $region17: #{tpu_custom_call.1} parent=11 // pred_check
        %p257 = pneg %p148
      $region18: #{tpu_custom_call.1} parent=11 // pred_check_branch
        %259 = sbr.rel (%p257) target = $region20
      $region19: #{tpu_custom_call.1} parent=11 // pred_region
        _
      $region20: #{tpu_custom_call.1} parent=11 // pred_fallthru
        _
      // Predicated region
      $region21: #{tpu_custom_call.1} parent=11 // pred_check
        %p260 = pneg %p169
      $region22: #{tpu_custom_call.1} parent=11 // pred_check_branch
        %262 = sbr.rel (%p260) target = $region24
      $region23: #{tpu_custom_call.1} parent=11 // pred_region
        _
      $region24: #{tpu_custom_call.1} parent=11 // pred_fallthru
        _
      // Predicated region
      $region25: #{tpu_custom_call.1} parent=11 // pred_check
        %p263 = pneg %p190
      $region26: #{tpu_custom_call.1} parent=11 // pred_check_branch
        %265 = sbr.rel (%p263) target = $region28
      $region27: #{tpu_custom_call.1} parent=11 // pred_region
        _
      $region28: #{tpu_custom_call.1} parent=11 // pred_fallthru
        _
      // Predicated region
      $region29: #{tpu_custom_call.1} parent=11 // pred_check
        %p266 = pneg %p211
      $region30: #{tpu_custom_call.1} parent=11 // pred_check_branch
        %268 = sbr.rel (%p266) target = $region32
      $region31: #{tpu_custom_call.1} parent=11 // pred_region
        _
      $region32: #{tpu_custom_call.1} parent=11 // pred_fallthru
        _
    $region12: #{tpu_custom_call.1} parent=5 // pred_fallthru
      _
    %p269 = scmp.lt.s32.totalorder %s14, 2
    // Predicated region
    $region33: #{tpu_custom_call.1} parent=5 // pred_check
      %p270 = pneg %p269
    $region34: #{tpu_custom_call.1} parent=5 // pred_check_branch
      %272 = sbr.rel (%p270) target = $region36
    $region35: #{tpu_custom_call.1} parent=5 // pred_region
      // Predicated region
      $region37: #{tpu_custom_call.1} parent=35 // pred_check
        %p273 = pneg %p48
      $region38: #{tpu_custom_call.1} parent=35 // pred_check_branch
        %275 = sbr.rel (%p273) target = $region40
      $region39: #{tpu_custom_call.1} parent=35 // pred_region
        %s276 = smul.u32 16, %s22
        %p277 = scmp.lt.s32.totalorder %s21, 1
        %s278 = scalar_select %p277, %s21, 1
        %p279 = scmp.lt.s32.totalorder %s276, 15
        %s280 = scalar_select %p279, %s276, 15
        %s281 = smul.addr %s278, 16
        %s282 = sadd.s32 %s280, %s281
        %s283 = smul.addr %s282, 8
        %s284 = scalar_lea.vmem %s0, %s283
        %s285 = smul.u32 16, %s22
      $region40: #{tpu_custom_call.1} parent=35 // pred_fallthru
        _
      // Predicated region
      $region41: #{tpu_custom_call.1} parent=35 // pred_check
        %p286 = pneg %p74
      $region42: #{tpu_custom_call.1} parent=35 // pred_check_branch
        %288 = sbr.rel (%p286) target = $region44
      $region43: #{tpu_custom_call.1} parent=35 // pred_region
        %p289 = scmp.lt.s32.totalorder %s21, 1
        %s290 = scalar_select %p289, %s21, 1
        %s291 = smul.addr %s290, 16
        %s292 = smul.addr %s291, 8
        %s293 = scalar_lea.vmem %s1, %s292
      $region44: #{tpu_custom_call.1} parent=35 // pred_fallthru
        _
      // Predicated region
      $region45: #{tpu_custom_call.1} parent=35 // pred_check
        %p294 = pneg %p100
      $region46: #{tpu_custom_call.1} parent=35 // pred_check_branch
        %296 = sbr.rel (%p294) target = $region48
      $region47: #{tpu_custom_call.1} parent=35 // pred_region
        %p297 = scmp.lt.s32.totalorder %s21, 1
        %s298 = scalar_select %p297, %s21, 1
        %s299 = smul.addr %s298, 16
        %s300 = smul.addr %s299, 8
        %s301 = scalar_lea.vmem %s2, %s300
      $region48: #{tpu_custom_call.1} parent=35 // pred_fallthru
        _
    $region36: #{tpu_custom_call.1} parent=5 // pred_fallthru
      _
    %p302 = scmp.le.s32.totalorder 1, %s14
    %p303 = scmp.lt.s32.totalorder %s14, 3
    %p304 = pnand %p302, %p303
    %p305 = pneg %p304
    // Predicated region
    $region49: #{tpu_custom_call.1} parent=5 // pred_check
      _
    $region50: #{tpu_custom_call.1} parent=5 // pred_check_branch
      %307 = sbr.rel (%p304) target = $region52
    $region51: #{tpu_custom_call.1} parent=5 // pred_region
      %s308 = ssub.s32 %s14, 1
      %s309 = smul.u32 16, %s24
      %p310 = scmp.lt.s32.totalorder %s23, 1
      %s311 = scalar_select %p310, %s23, 1
      %p312 = scmp.lt.s32.totalorder %s309, 15
      %s313 = scalar_select %p312, %s309, 15
      %s314 = smul.addr %s311, 16
      %s315 = sadd.s32 %s313, %s314
      %s316 = smul.addr %s315, 8
      %s317 = scalar_lea.vmem %s0, %s316
      %p318 = pneg %p54
      %p319 = pneg %p51
      %p320 = scmp.lt.s32.totalorder %s23, 1
      %s321 = scalar_select %p320, %s23, 1
      %s322 = smul.addr %s321, 16
      %s323 = smul.addr %s322, 8
      %s324 = scalar_lea.vmem %s1, %s323
      %p325 = pneg %p80
      %p326 = pneg %p77
      %p327 = scmp.lt.s32.totalorder %s23, 1
      %s328 = scalar_select %p327, %s23, 1
      %s329 = smul.addr %s328, 16
      %s330 = smul.addr %s329, 8
      %s331 = scalar_lea.vmem %s2, %s330
      %p332 = pneg %p106
      %p333 = pneg %p103
      %p334 = pneg %p127
      %p335 = pneg %p124
      %p336 = pneg %p148
      %p337 = pneg %p145
      %p338 = pneg %p169
      %p339 = pneg %p166
      %p340 = pneg %p190
      %p341 = pneg %p187
      %p342 = pneg %p211
      %p343 = pneg %p208
      %p344 = pneg %p239
      %p345 = pneg %p236
      %s346 = smul.u32 16, %s24
      %p347 = scmp.lt.s32.totalorder %s23, 1
      %s348 = scalar_select %p347, %s23, 1
      %p349 = scmp.lt.s32.totalorder %s346, 15
      %s350 = scalar_select %p349, %s346, 15
      %s351 = smul.addr %s348, 16
      %s352 = sadd.s32 %s350, %s351
      %s353 = smul.addr %s352, 8
      %s354 = scalar_lea.vmem %s8, %s353
      %s355 = smul.u32 16, %s24
      %p356 = scmp.lt.s32.totalorder %s23, 1
      %s357 = scalar_select %p356, %s23, 1
      %p358 = scmp.lt.s32.totalorder %s355, 15
      %s359 = scalar_select %p358, %s355, 15
      %s360 = smul.addr %s357, 16
      %s361 = sadd.s32 %s359, %s360
      %s362 = smul.addr %s361, 8
      %s363 = scalar_lea.vmem %s0, %s362
      %s364 = smul.u32 16, %s24
      %p365 = scmp.lt.s32.totalorder %s23, 1
      %s366 = scalar_select %p365, %s23, 1
      %s367 = smul.addr %s366, 16
      %s368 = smul.addr %s367, 8
      %s369 = scalar_lea.vmem %s1, %s368
      %p370 = scmp.lt.s32.totalorder %s23, 1
      %s371 = scalar_select %p370, %s23, 1
      %s372 = smul.addr %s371, 16
      %s373 = smul.addr %s372, 8
      %s374 = scalar_lea.vmem %s2, %s373
      %s375 = smul.u32 16, %s24
      %p376 = scmp.lt.s32.totalorder %s23, 1
      %s377 = scalar_select %p376, %s23, 1
      %p378 = scmp.lt.s32.totalorder %s375, 15
      %s379 = scalar_select %p378, %s375, 15
      %s380 = smul.addr %s377, 16
      %s381 = sadd.s32 %s379, %s380
      %s382 = smul.addr %s381, 8
      %s383 = scalar_lea.vmem %s8, %s382
      %s384 = smul.u32 16, %s24
      %p385 = scmp.eq.s32.totalorder %s24, 0
      // Predicated region
      $region53: #{tpu_custom_call.1} parent=51 // pred_check
        %p386 = pneg %p385
      $region54: #{tpu_custom_call.1} parent=51 // pred_check_branch
        %388 = sbr.rel (%p386) target = $region56
      $region55: #{tpu_custom_call.1} parent=51 // pred_region
        %v389 = vld [vmem:[%s369] sm:$0xff]
        %v390 = vld [vmem:[%s369 + $0x8] sm:$0xff]
        %v391 = vld [vmem:[%s369 + $0x10] sm:$0xff]
        %v392 = vld [vmem:[%s369 + $0x18] sm:$0xff]
        %v393 = vld [vmem:[%s369 + $0x20] sm:$0xff]
        %v394 = vld [vmem:[%s369 + $0x28] sm:$0xff]
        %v395 = vld [vmem:[%s369 + $0x30] sm:$0xff]
        %v396 = vld [vmem:[%s369 + $0x38] sm:$0xff]
        %v397 = vld [vmem:[%s369 + $0x40] sm:$0xff]
        %v398 = vld [vmem:[%s369 + $0x48] sm:$0xff]
        %v399 = vld [vmem:[%s369 + $0x50] sm:$0xff]
        %v400 = vld [vmem:[%s369 + $0x58] sm:$0xff]
        %v401 = vld [vmem:[%s369 + $0x60] sm:$0xff]
        %v402 = vld [vmem:[%s369 + $0x68] sm:$0xff]
        %v403 = vld [vmem:[%s369 + $0x70] sm:$0xff]
        %v404 = vld [vmem:[%s369 + $0x78] sm:$0xff]
        %v405 = vld [vmem:[%s374] sm:$0xff]
        %v406 = vld [vmem:[%s374 + $0x8] sm:$0xff]
        %v407 = vld [vmem:[%s374 + $0x10] sm:$0xff]
        %v408 = vld [vmem:[%s374 + $0x18] sm:$0xff]
        %v409 = vld [vmem:[%s374 + $0x20] sm:$0xff]
        %v410 = vld [vmem:[%s374 + $0x28] sm:$0xff]
        %v411 = vld [vmem:[%s374 + $0x30] sm:$0xff]
        %v412 = vld [vmem:[%s374 + $0x38] sm:$0xff]
        %v413 = vld [vmem:[%s374 + $0x40] sm:$0xff]
        %v414 = vld [vmem:[%s374 + $0x48] sm:$0xff]
        %v415 = vld [vmem:[%s374 + $0x50] sm:$0xff]
        %v416 = vld [vmem:[%s374 + $0x58] sm:$0xff]
        %v417 = vld [vmem:[%s374 + $0x60] sm:$0xff]
        %v418 = vld [vmem:[%s374 + $0x68] sm:$0xff]
        %v419 = vld [vmem:[%s374 + $0x70] sm:$0xff]
        %v420 = vld [vmem:[%s374 + $0x78] sm:$0xff]
        %v421 = vld [vmem:[%s4] sm:$0xff]
        %v422 = vld [vmem:[%s4 + $0x8] sm:$0xff]
        %v423 = vld [vmem:[%s4 + $0x10] sm:$0xff]
        %v424 = vld [vmem:[%s4 + $0x18] sm:$0xff]
        %vm425 = vcmask 261120
        %v427 = vsel %vm425, %v389, 0
        %v430 = vsel %vm425, %v390, 0
        %v433 = vsel %vm425, %v391, 0
        %v436 = vsel %vm425, %v392, 0
        %v439 = vsel %vm425, %v393, 0
        %v442 = vsel %vm425, %v394, 0
        %v445 = vsel %vm425, %v395, 0
        %v448 = vsel %vm425, %v396, 0
        %v451 = vsel %vm425, %v397, 0
        %v454 = vsel %vm425, %v398, 0
        %v457 = vsel %vm425, %v399, 0
        %v460 = vsel %vm425, %v400, 0
        %v463 = vsel %vm425, %v401, 0
        %v466 = vsel %vm425, %v402, 0
        %v469 = vsel %vm425, %v403, 0
        %v472 = vsel %vm425, %v404, 0
        %474 = vmatprep.subr.mxu0 0.0
        %475 = vmatpush1.msra.mxu0 0.0
        %476 = vmatprep.subr.mxu0 0.0
        %477 = vmatpush1.msra.mxu0 0.0
        %478 = vmatprep.subr.mxu0 0.0
        %479 = vmatpush1.msra.mxu0 0.0
        %480 = vmatprep.subr.mxu0 0.0
        %481 = vmatpush1.msra.mxu0 0.0
        %482 = vmatprep.subr.mxu0 0.0
        %483 = vmatpush1.msra.mxu0 0.0
        %484 = vmatprep.subr.mxu0 0.0
        %485 = vmatpush1.msra.mxu0 0.0
        %486 = vmatprep.subr.mxu0 0.0
        %487 = vmatpush1.msra.mxu0 0.0
        %488 = vmatprep.subr.mxu0 0.0
        %489 = vmatpush1.msra.mxu0 0.0
        %490 = vmatprep.subr.mxu0 0.0
        %491 = vmatpush1.msra.mxu0 0.0
        %492 = vmatprep.subr.mxu0 0.0
        %493 = vmatpush1.msra.mxu0 0.0
        %494 = vmatprep.subr.mxu0 0.0
        %495 = vmatpush1.msra.mxu0 0.0
        %496 = vmatprep.subr.mxu0 0.0
        %497 = vmatpush1.msra.mxu0 0.0
        %498 = vmatprep.subr.mxu0 0.0
        %499 = vmatpush1.msra.mxu0 %v424
        %500 = vmatprep.subr.mxu0 0.0
        %501 = vmatpush1.msra.mxu0 %v423
        %502 = vmatprep.subr.mxu0 0.0
        %503 = vmatpush1.msra.mxu0 %v422
        %504 = vmatprep.subr.mxu0 0.0
        %505 = vmatpush1.msra.mxu0 %v421
        %506 = vmatprep.subr.mxu0 0.0
        %507 = vmatpush2.msra.mxu0 0.0
        %508 = vmatprep.subr.mxu0 0.0
        %509 = vmatpush2.msra.mxu0 0.0
        %510 = vmatprep.subr.mxu0 0.0
        %511 = vmatpush2.msra.mxu0 0.0
        %512 = vmatprep.subr.mxu0 0.0
        %513 = vmatpush2.msra.mxu0 0.0
        %514 = vmatprep.subr.mxu0 0.0
        %515 = vmatpush2.msra.mxu0 0.0
        %516 = vmatprep.subr.mxu0 0.0
        %517 = vmatpush2.msra.mxu0 0.0
        %518 = vmatprep.subr.mxu0 0.0
        %519 = vmatpush2.msra.mxu0 0.0
        %520 = vmatprep.subr.mxu0 0.0
        %521 = vmatpush2.msra.mxu0 0.0
        %522 = vmatprep.subr.mxu0 0.0
        %523 = vmatpush2.msra.mxu0 0.0
        %524 = vmatprep.subr.mxu0 0.0
        %525 = vmatpush2.msra.mxu0 0.0
        %526 = vmatprep.subr.mxu0 0.0
        %527 = vmatpush2.msra.mxu0 0.0
        %528 = vmatprep.subr.mxu0 0.0
        %529 = vmatpush2.msra.mxu0 0.0
        %530 = vmatprep.subr.mxu0 0.0
        %531 = vmatpush2.msra.mxu0 0.0
        %532 = vmatprep.subr.mxu0 0.0
        %533 = vmatpush2.msra.mxu0 0.0
        %534 = vmatprep.subr.mxu0 0.0
        %535 = vmatpush2.msra.mxu0 0.0
        %536 = vmatprep.subr.mxu0 0.0
        %537 = vmatpush2.msra.mxu0 0.0
        %538 = vmatprep.mubr.f32.mxu0 0.0
        %539 = vmatmul.mubr.f32.gmra.mxu0 %v427
        %v540 = vpop.f32.mrf.mxu0
        %v541 = vadd.f32 0.0, %v540
        %v542 = vpop.f32.mrf.mxu0
        %543 = vmatprep.mubr.f32.mxu0 0.0
        %544 = vmatmul.mubr.f32.gmra.mxu0 %v430
        %v545 = vpop.f32.mrf.mxu0
        %v546 = vadd.f32 0.0, %v545
        %v547 = vpop.f32.mrf.mxu0
        %548 = vmatprep.mubr.f32.mxu0 0.0
        %549 = vmatmul.mubr.f32.gmra.mxu0 %v433
        %v550 = vpop.f32.mrf.mxu0
        %v551 = vadd.f32 0.0, %v550
        %v552 = vpop.f32.mrf.mxu0
        %553 = vmatprep.mubr.f32.mxu0 0.0
        %554 = vmatmul.mubr.f32.gmra.mxu0 %v436
        %v555 = vpop.f32.mrf.mxu0
        %v556 = vadd.f32 0.0, %v555
        %v557 = vpop.f32.mrf.mxu0
        %558 = vmatprep.mubr.f32.mxu0 0.0
        %559 = vmatmul.mubr.f32.gmra.mxu0 %v439
        %v560 = vpop.f32.mrf.mxu0
        %v561 = vadd.f32 0.0, %v560
        %v562 = vpop.f32.mrf.mxu0
        %563 = vmatprep.mubr.f32.mxu0 0.0
        %564 = vmatmul.mubr.f32.gmra.mxu0 %v442
        %v565 = vpop.f32.mrf.mxu0
        %v566 = vadd.f32 0.0, %v565
        %v567 = vpop.f32.mrf.mxu0
        %568 = vmatprep.mubr.f32.mxu0 0.0
        %569 = vmatmul.mubr.f32.gmra.mxu0 %v445
        %v570 = vpop.f32.mrf.mxu0
        %v571 = vadd.f32 0.0, %v570
        %v572 = vpop.f32.mrf.mxu0
        %573 = vmatprep.mubr.f32.mxu0 0.0
        %574 = vmatmul.mubr.f32.gmra.mxu0 %v448
        %v575 = vpop.f32.mrf.mxu0
        %v576 = vadd.f32 0.0, %v575
        %v577 = vpop.f32.mrf.mxu0
        %578 = vmatprep.mubr.f32.mxu0 0.0
        %579 = vmatmul.mubr.f32.gmra.mxu0 %v451
        %v580 = vpop.f32.mrf.mxu0
        %v581 = vadd.f32 0.0, %v580
        %v582 = vpop.f32.mrf.mxu0
        %583 = vmatprep.mubr.f32.mxu0 0.0
        %584 = vmatmul.mubr.f32.gmra.mxu0 %v454
        %v585 = vpop.f32.mrf.mxu0
        %v586 = vadd.f32 0.0, %v585
        %v587 = vpop.f32.mrf.mxu0
        %588 = vmatprep.mubr.f32.mxu0 0.0
        %589 = vmatmul.mubr.f32.gmra.mxu0 %v457
        %v590 = vpop.f32.mrf.mxu0
        %v591 = vadd.f32 0.0, %v590
        %v592 = vpop.f32.mrf.mxu0
        %593 = vmatprep.mubr.f32.mxu0 0.0
        %594 = vmatmul.mubr.f32.gmra.mxu0 %v460
        %v595 = vpop.f32.mrf.mxu0
        %v596 = vadd.f32 0.0, %v595
        %v597 = vpop.f32.mrf.mxu0
        %598 = vmatprep.mubr.f32.mxu0 0.0
        %599 = vmatmul.mubr.f32.gmra.mxu0 %v463
        %v600 = vpop.f32.mrf.mxu0
        %v601 = vadd.f32 0.0, %v600
        %v602 = vpop.f32.mrf.mxu0
        %603 = vmatprep.mubr.f32.mxu0 0.0
        %604 = vmatmul.mubr.f32.gmra.mxu0 %v466
        %v605 = vpop.f32.mrf.mxu0
        %v606 = vadd.f32 0.0, %v605
        %v607 = vpop.f32.mrf.mxu0
        %608 = vmatprep.mubr.f32.mxu0 0.0
        %609 = vmatmul.mubr.f32.gmra.mxu0 %v469
        %v610 = vpop.f32.mrf.mxu0
        %v611 = vadd.f32 0.0, %v610
        %v612 = vpop.f32.mrf.mxu0
        %613 = vmatprep.mubr.f32.mxu0 0.0
        %614 = vmatmul.mubr.f32.gmra.mxu0 %v472
        %v615 = vpop.f32.mrf.mxu0
        %v616 = vadd.f32 0.0, %v615
        %v617 = vpop.f32.mrf.mxu0
        %618 = vdwg.mxu0
        %619 = vst.msk [vmem:[#allocation2] sm:$0xff] %vm425, %v541
        %620 = vst.msk [vmem:[#allocation2 + $0x8] sm:$0xff] %vm425, %v546
        %621 = vst.msk [vmem:[#allocation2 + $0x10] sm:$0xff] %vm425, %v551
        %622 = vst.msk [vmem:[#allocation2 + $0x18] sm:$0xff] %vm425, %v556
        %623 = vst.msk [vmem:[#allocation2 + $0x20] sm:$0xff] %vm425, %v561
        %624 = vst.msk [vmem:[#allocation2 + $0x28] sm:$0xff] %vm425, %v566
        %625 = vst.msk [vmem:[#allocation2 + $0x30] sm:$0xff] %vm425, %v571
        %626 = vst.msk [vmem:[#allocation2 + $0x38] sm:$0xff] %vm425, %v576
        %627 = vst.msk [vmem:[#allocation2 + $0x40] sm:$0xff] %vm425, %v581
        %628 = vst.msk [vmem:[#allocation2 + $0x48] sm:$0xff] %vm425, %v586
        %629 = vst.msk [vmem:[#allocation2 + $0x50] sm:$0xff] %vm425, %v591
        %630 = vst.msk [vmem:[#allocation2 + $0x58] sm:$0xff] %vm425, %v596
        %631 = vst.msk [vmem:[#allocation2 + $0x60] sm:$0xff] %vm425, %v601
        %632 = vst.msk [vmem:[#allocation2 + $0x68] sm:$0xff] %vm425, %v606
        %633 = vst.msk [vmem:[#allocation2 + $0x70] sm:$0xff] %vm425, %v611
        %634 = vst.msk [vmem:[#allocation2 + $0x78] sm:$0xff] %vm425, %v616
        %v635 = vld [vmem:[%s5] sm:$0xff]
        %v636 = vld [vmem:[%s5 + $0x8] sm:$0xff]
        %v637 = vld [vmem:[%s5 + $0x10] sm:$0xff]
        %v638 = vld [vmem:[%s5 + $0x18] sm:$0xff]
        %v640 = vsel %vm425, %v405, 0
        %v643 = vsel %vm425, %v406, 0
        %v646 = vsel %vm425, %v407, 0
        %v649 = vsel %vm425, %v408, 0
        %v652 = vsel %vm425, %v409, 0
        %v655 = vsel %vm425, %v410, 0
        %v658 = vsel %vm425, %v411, 0
        %v661 = vsel %vm425, %v412, 0
        %v664 = vsel %vm425, %v413, 0
        %v667 = vsel %vm425, %v414, 0
        %v670 = vsel %vm425, %v415, 0
        %v673 = vsel %vm425, %v416, 0
        %v676 = vsel %vm425, %v417, 0
        %v679 = vsel %vm425, %v418, 0
        %v682 = vsel %vm425, %v419, 0
        %v685 = vsel %vm425, %v420, 0
        %687 = vmatprep.subr.mxu0 0.0
        %688 = vmatpush1.msra.mxu0 0.0
        %689 = vmatprep.subr.mxu0 0.0
        %690 = vmatpush1.msra.mxu0 0.0
        %691 = vmatprep.subr.mxu0 0.0
        %692 = vmatpush1.msra.mxu0 0.0
        %693 = vmatprep.subr.mxu0 0.0
        %694 = vmatpush1.msra.mxu0 0.0
        %695 = vmatprep.subr.mxu0 0.0
        %696 = vmatpush1.msra.mxu0 0.0
        %697 = vmatprep.subr.mxu0 0.0
        %698 = vmatpush1.msra.mxu0 0.0
        %699 = vmatprep.subr.mxu0 0.0
        %700 = vmatpush1.msra.mxu0 0.0
        %701 = vmatprep.subr.mxu0 0.0
        %702 = vmatpush1.msra.mxu0 0.0
        %703 = vmatprep.subr.mxu0 0.0
        %704 = vmatpush1.msra.mxu0 0.0
        %705 = vmatprep.subr.mxu0 0.0
        %706 = vmatpush1.msra.mxu0 0.0
        %707 = vmatprep.subr.mxu0 0.0
        %708 = vmatpush1.msra.mxu0 0.0
        %709 = vmatprep.subr.mxu0 0.0
        %710 = vmatpush1.msra.mxu0 0.0
        %711 = vmatprep.subr.mxu0 0.0
        %712 = vmatpush1.msra.mxu0 %v638
        %713 = vmatprep.subr.mxu0 0.0
        %714 = vmatpush1.msra.mxu0 %v637
        %715 = vmatprep.subr.mxu0 0.0
        %716 = vmatpush1.msra.mxu0 %v636
        %717 = vmatprep.subr.mxu0 0.0
        %718 = vmatpush1.msra.mxu0 %v635
        %719 = vmatprep.subr.mxu0 0.0
        %720 = vmatpush2.msra.mxu0 0.0
        %721 = vmatprep.subr.mxu0 0.0
        %722 = vmatpush2.msra.mxu0 0.0
        %723 = vmatprep.subr.mxu0 0.0
        %724 = vmatpush2.msra.mxu0 0.0
        %725 = vmatprep.subr.mxu0 0.0
        %726 = vmatpush2.msra.mxu0 0.0
        %727 = vmatprep.subr.mxu0 0.0
        %728 = vmatpush2.msra.mxu0 0.0
        %729 = vmatprep.subr.mxu0 0.0
        %730 = vmatpush2.msra.mxu0 0.0
        %731 = vmatprep.subr.mxu0 0.0
        %732 = vmatpush2.msra.mxu0 0.0
        %733 = vmatprep.subr.mxu0 0.0
        %734 = vmatpush2.msra.mxu0 0.0
        %735 = vmatprep.subr.mxu0 0.0
        %736 = vmatpush2.msra.mxu0 0.0
        %737 = vmatprep.subr.mxu0 0.0
        %738 = vmatpush2.msra.mxu0 0.0
        %739 = vmatprep.subr.mxu0 0.0
        %740 = vmatpush2.msra.mxu0 0.0
        %741 = vmatprep.subr.mxu0 0.0
        %742 = vmatpush2.msra.mxu0 0.0
        %743 = vmatprep.subr.mxu0 0.0
        %744 = vmatpush2.msra.mxu0 0.0
        %745 = vmatprep.subr.mxu0 0.0
        %746 = vmatpush2.msra.mxu0 0.0
        %747 = vmatprep.subr.mxu0 0.0
        %748 = vmatpush2.msra.mxu0 0.0
        %749 = vmatprep.subr.mxu0 0.0
        %750 = vmatpush2.msra.mxu0 0.0
        %751 = vmatprep.mubr.f32.mxu0 0.0
        %752 = vmatmul.mubr.f32.gmra.mxu0 %v640
        %v753 = vpop.f32.mrf.mxu0
        %v754 = vadd.f32 0.0, %v753
        %v755 = vpop.f32.mrf.mxu0
        %756 = vmatprep.mubr.f32.mxu0 0.0
        %757 = vmatmul.mubr.f32.gmra.mxu0 %v643
        %v758 = vpop.f32.mrf.mxu0
        %v759 = vadd.f32 0.0, %v758
        %v760 = vpop.f32.mrf.mxu0
        %761 = vmatprep.mubr.f32.mxu0 0.0
        %762 = vmatmul.mubr.f32.gmra.mxu0 %v646
        %v763 = vpop.f32.mrf.mxu0
        %v764 = vadd.f32 0.0, %v763
        %v765 = vpop.f32.mrf.mxu0
        %766 = vmatprep.mubr.f32.mxu0 0.0
        %767 = vmatmul.mubr.f32.gmra.mxu0 %v649
        %v768 = vpop.f32.mrf.mxu0
        %v769 = vadd.f32 0.0, %v768
        %v770 = vpop.f32.mrf.mxu0
        %771 = vmatprep.mubr.f32.mxu0 0.0
        %772 = vmatmul.mubr.f32.gmra.mxu0 %v652
        %v773 = vpop.f32.mrf.mxu0
        %v774 = vadd.f32 0.0, %v773
        %v775 = vpop.f32.mrf.mxu0
        %776 = vmatprep.mubr.f32.mxu0 0.0
        %777 = vmatmul.mubr.f32.gmra.mxu0 %v655
        %v778 = vpop.f32.mrf.mxu0
        %v779 = vadd.f32 0.0, %v778
        %v780 = vpop.f32.mrf.mxu0
        %781 = vmatprep.mubr.f32.mxu0 0.0
        %782 = vmatmul.mubr.f32.gmra.mxu0 %v658
        %v783 = vpop.f32.mrf.mxu0
        %v784 = vadd.f32 0.0, %v783
        %v785 = vpop.f32.mrf.mxu0
        %786 = vmatprep.mubr.f32.mxu0 0.0
        %787 = vmatmul.mubr.f32.gmra.mxu0 %v661
        %v788 = vpop.f32.mrf.mxu0
        %v789 = vadd.f32 0.0, %v788
        %v790 = vpop.f32.mrf.mxu0
        %791 = vmatprep.mubr.f32.mxu0 0.0
        %792 = vmatmul.mubr.f32.gmra.mxu0 %v664
        %v793 = vpop.f32.mrf.mxu0
        %v794 = vadd.f32 0.0, %v793
        %v795 = vpop.f32.mrf.mxu0
        %796 = vmatprep.mubr.f32.mxu0 0.0
        %797 = vmatmul.mubr.f32.gmra.mxu0 %v667
        %v798 = vpop.f32.mrf.mxu0
        %v799 = vadd.f32 0.0, %v798
        %v800 = vpop.f32.mrf.mxu0
        %801 = vmatprep.mubr.f32.mxu0 0.0
        %802 = vmatmul.mubr.f32.gmra.mxu0 %v670
        %v803 = vpop.f32.mrf.mxu0
        %v804 = vadd.f32 0.0, %v803
        %v805 = vpop.f32.mrf.mxu0
        %806 = vmatprep.mubr.f32.mxu0 0.0
        %807 = vmatmul.mubr.f32.gmra.mxu0 %v673
        %v808 = vpop.f32.mrf.mxu0
        %v809 = vadd.f32 0.0, %v808
        %v810 = vpop.f32.mrf.mxu0
        %811 = vmatprep.mubr.f32.mxu0 0.0
        %812 = vmatmul.mubr.f32.gmra.mxu0 %v676
        %v813 = vpop.f32.mrf.mxu0
        %v814 = vadd.f32 0.0, %v813
        %v815 = vpop.f32.mrf.mxu0
        %816 = vmatprep.mubr.f32.mxu0 0.0
        %817 = vmatmul.mubr.f32.gmra.mxu0 %v679
        %v818 = vpop.f32.mrf.mxu0
        %v819 = vadd.f32 0.0, %v818
        %v820 = vpop.f32.mrf.mxu0
        %821 = vmatprep.mubr.f32.mxu0 0.0
        %822 = vmatmul.mubr.f32.gmra.mxu0 %v682
        %v823 = vpop.f32.mrf.mxu0
        %v824 = vadd.f32 0.0, %v823
        %v825 = vpop.f32.mrf.mxu0
        %826 = vmatprep.mubr.f32.mxu0 0.0
        %827 = vmatmul.mubr.f32.gmra.mxu0 %v685
        %v828 = vpop.f32.mrf.mxu0
        %v829 = vadd.f32 0.0, %v828
        %v830 = vpop.f32.mrf.mxu0
        %831 = vdwg.mxu0
        %832 = vst.msk [vmem:[#allocation3] sm:$0xff] %vm425, %v754
        %833 = vst.msk [vmem:[#allocation3 + $0x8] sm:$0xff] %vm425, %v759
        %834 = vst.msk [vmem:[#allocation3 + $0x10] sm:$0xff] %vm425, %v764
        %835 = vst.msk [vmem:[#allocation3 + $0x18] sm:$0xff] %vm425, %v769
        %836 = vst.msk [vmem:[#allocation3 + $0x20] sm:$0xff] %vm425, %v774
        %837 = vst.msk [vmem:[#allocation3 + $0x28] sm:$0xff] %vm425, %v779
        %838 = vst.msk [vmem:[#allocation3 + $0x30] sm:$0xff] %vm425, %v784
        %839 = vst.msk [vmem:[#allocation3 + $0x38] sm:$0xff] %vm425, %v789
        %840 = vst.msk [vmem:[#allocation3 + $0x40] sm:$0xff] %vm425, %v794
        %841 = vst.msk [vmem:[#allocation3 + $0x48] sm:$0xff] %vm425, %v799
        %842 = vst.msk [vmem:[#allocation3 + $0x50] sm:$0xff] %vm425, %v804
        %843 = vst.msk [vmem:[#allocation3 + $0x58] sm:$0xff] %vm425, %v809
        %844 = vst.msk [vmem:[#allocation3 + $0x60] sm:$0xff] %vm425, %v814
        %845 = vst.msk [vmem:[#allocation3 + $0x68] sm:$0xff] %vm425, %v819
        %846 = vst.msk [vmem:[#allocation3 + $0x70] sm:$0xff] %vm425, %v824
        %847 = vst.msk [vmem:[#allocation3 + $0x78] sm:$0xff] %vm425, %v829
      $region56: #{tpu_custom_call.1} parent=51 // pred_fallthru
        _
      %v848 = vld [vmem:[%s7] sm:$0x1]
      %v850 = vlaneseq
      %v851 = vshrl.u32 %v850, 7
      %v852 = vsub.s32 0, %v851
      %v853 = vrot.slane %v848, %v852
      %vm855 = vcmask 261120
      %856 = vst.msk [vmem:[#allocation4] sm:$0xff] %vm855, %v853
      %857 = vst.msk [vmem:[#allocation4 + $0x8] sm:$0xff] %vm855, %v853
      %858 = vst.msk [vmem:[#allocation4 + $0x10] sm:$0xff] %vm855, %v853
      %859 = vst.msk [vmem:[#allocation4 + $0x18] sm:$0xff] %vm855, %v853
      %860 = vst.msk [vmem:[#allocation4 + $0x20] sm:$0xff] %vm855, %v853
      %861 = vst.msk [vmem:[#allocation4 + $0x28] sm:$0xff] %vm855, %v853
      %862 = vst.msk [vmem:[#allocation4 + $0x30] sm:$0xff] %vm855, %v853
      %863 = vst.msk [vmem:[#allocation4 + $0x38] sm:$0xff] %vm855, %v853
      %864 = vst.msk [vmem:[#allocation4 + $0x40] sm:$0xff] %vm855, %v853
      %865 = vst.msk [vmem:[#allocation4 + $0x48] sm:$0xff] %vm855, %v853
      %866 = vst.msk [vmem:[#allocation4 + $0x50] sm:$0xff] %vm855, %v853
      %867 = vst.msk [vmem:[#allocation4 + $0x58] sm:$0xff] %vm855, %v853
      %868 = vst.msk [vmem:[#allocation4 + $0x60] sm:$0xff] %vm855, %v853
      %869 = vst.msk [vmem:[#allocation4 + $0x68] sm:$0xff] %vm855, %v853
      %870 = vst.msk [vmem:[#allocation4 + $0x70] sm:$0xff] %vm855, %v853
      %871 = vst.msk [vmem:[#allocation4 + $0x78] sm:$0xff] %vm855, %v853
      %v872 = vlaneseq
      %v873 = vand.u32 %v872, 127
      %vm874 = vcmp.lt.s32.totalorder %v873, 8
      %v875 = vld [vmem:[%s363] sm:$0xff]
      %v876 = vld [vmem:[%s363 + $0x8] sm:$0xff]
      %v877 = vld [vmem:[%s363 + $0x10] sm:$0xff]
      %v878 = vld [vmem:[%s363 + $0x18] sm:$0xff]
      %v879 = vld [vmem:[%s363 + $0x20] sm:$0xff]
      %v880 = vld [vmem:[%s363 + $0x28] sm:$0xff]
      %v881 = vld [vmem:[%s363 + $0x30] sm:$0xff]
      %v882 = vld [vmem:[%s363 + $0x38] sm:$0xff]
      %v883 = vld [vmem:[%s363 + $0x40] sm:$0xff]
      %v884 = vld [vmem:[%s363 + $0x48] sm:$0xff]
      %v885 = vld [vmem:[%s363 + $0x50] sm:$0xff]
      %v886 = vld [vmem:[%s363 + $0x58] sm:$0xff]
      %v887 = vld [vmem:[%s363 + $0x60] sm:$0xff]
      %v888 = vld [vmem:[%s363 + $0x68] sm:$0xff]
      %v889 = vld [vmem:[%s363 + $0x70] sm:$0xff]
      %v890 = vld [vmem:[%s363 + $0x78] sm:$0xff]
      %v891 = vld [vmem:[%s3] sm:$0xff]
      %v892 = vld [vmem:[%s3 + $0x8] sm:$0xff]
      %v893 = vld [vmem:[%s3 + $0x10] sm:$0xff]
      %v894 = vld [vmem:[%s3 + $0x18] sm:$0xff]
      %v896 = vsel %vm855, %v875, 0
      %v899 = vsel %vm855, %v876, 0
      %v902 = vsel %vm855, %v877, 0
      %v905 = vsel %vm855, %v878, 0
      %v908 = vsel %vm855, %v879, 0
      %v911 = vsel %vm855, %v880, 0
      %v914 = vsel %vm855, %v881, 0
      %v917 = vsel %vm855, %v882, 0
      %v920 = vsel %vm855, %v883, 0
      %v923 = vsel %vm855, %v884, 0
      %v926 = vsel %vm855, %v885, 0
      %v929 = vsel %vm855, %v886, 0
      %v932 = vsel %vm855, %v887, 0
      %v935 = vsel %vm855, %v888, 0
      %v938 = vsel %vm855, %v889, 0
      %v941 = vsel %vm855, %v890, 0
      %943 = vmatprep.subr.mxu0 0.0
      %944 = vmatpush1.msra.mxu0 0.0
      %945 = vmatprep.subr.mxu0 0.0
      %946 = vmatpush1.msra.mxu0 0.0
      %947 = vmatprep.subr.mxu0 0.0
      %948 = vmatpush1.msra.mxu0 0.0
      %949 = vmatprep.subr.mxu0 0.0
      %950 = vmatpush1.msra.mxu0 0.0
      %951 = vmatprep.subr.mxu0 0.0
      %952 = vmatpush1.msra.mxu0 0.0
      %953 = vmatprep.subr.mxu0 0.0
      %954 = vmatpush1.msra.mxu0 0.0
      %955 = vmatprep.subr.mxu0 0.0
      %956 = vmatpush1.msra.mxu0 0.0
      %957 = vmatprep.subr.mxu0 0.0
      %958 = vmatpush1.msra.mxu0 0.0
      %959 = vmatprep.subr.mxu0 0.0
      %960 = vmatpush1.msra.mxu0 0.0
      %961 = vmatprep.subr.mxu0 0.0
      %962 = vmatpush1.msra.mxu0 0.0
      %963 = vmatprep.subr.mxu0 0.0
      %964 = vmatpush1.msra.mxu0 0.0
      %965 = vmatprep.subr.mxu0 0.0
      %966 = vmatpush1.msra.mxu0 0.0
      %967 = vmatprep.subr.mxu0 0.0
      %968 = vmatpush1.msra.mxu0 %v894
      %969 = vmatprep.subr.mxu0 0.0
      %970 = vmatpush1.msra.mxu0 %v893
      %971 = vmatprep.subr.mxu0 0.0
      %972 = vmatpush1.msra.mxu0 %v892
      %973 = vmatprep.subr.mxu0 0.0
      %974 = vmatpush1.msra.mxu0 %v891
      %975 = vmatprep.subr.mxu0 0.0
      %976 = vmatpush2.msra.mxu0 0.0
      %977 = vmatprep.subr.mxu0 0.0
      %978 = vmatpush2.msra.mxu0 0.0
      %979 = vmatprep.subr.mxu0 0.0
      %980 = vmatpush2.msra.mxu0 0.0
      %981 = vmatprep.subr.mxu0 0.0
      %982 = vmatpush2.msra.mxu0 0.0
      %983 = vmatprep.subr.mxu0 0.0
      %984 = vmatpush2.msra.mxu0 0.0
      %985 = vmatprep.subr.mxu0 0.0
      %986 = vmatpush2.msra.mxu0 0.0
      %987 = vmatprep.subr.mxu0 0.0
      %988 = vmatpush2.msra.mxu0 0.0
      %989 = vmatprep.subr.mxu0 0.0
      %990 = vmatpush2.msra.mxu0 0.0
      %991 = vmatprep.subr.mxu0 0.0
      %992 = vmatpush2.msra.mxu0 0.0
      %993 = vmatprep.subr.mxu0 0.0
      %994 = vmatpush2.msra.mxu0 0.0
      %995 = vmatprep.subr.mxu0 0.0
      %996 = vmatpush2.msra.mxu0 0.0
      %997 = vmatprep.subr.mxu0 0.0
      %998 = vmatpush2.msra.mxu0 0.0
      %999 = vmatprep.subr.mxu0 0.0
      %1000 = vmatpush2.msra.mxu0 0.0
      %1001 = vmatprep.subr.mxu0 0.0
      %1002 = vmatpush2.msra.mxu0 0.0
      %1003 = vmatprep.subr.mxu0 0.0
      %1004 = vmatpush2.msra.mxu0 0.0
      %1005 = vmatprep.subr.mxu0 0.0
      %1006 = vmatpush2.msra.mxu0 0.0
      %1007 = vmatprep.mubr.f32.mxu0 0.0
      %1008 = vmatmul.mubr.f32.gmra.mxu0 %v896
      %v1009 = vpop.f32.mrf.mxu0
      %v1010 = vadd.f32 0.0, %v1009
      %v1011 = vpop.f32.mrf.mxu0
      %1012 = vmatprep.mubr.f32.mxu0 0.0
      %1013 = vmatmul.mubr.f32.gmra.mxu0 %v899
      %v1014 = vpop.f32.mrf.mxu0
      %v1015 = vadd.f32 0.0, %v1014
      %v1016 = vpop.f32.mrf.mxu0
      %1017 = vmatprep.mubr.f32.mxu0 0.0
      %1018 = vmatmul.mubr.f32.gmra.mxu0 %v902
      %v1019 = vpop.f32.mrf.mxu0
      %v1020 = vadd.f32 0.0, %v1019
      %v1021 = vpop.f32.mrf.mxu0
      %1022 = vmatprep.mubr.f32.mxu0 0.0
      %1023 = vmatmul.mubr.f32.gmra.mxu0 %v905
      %v1024 = vpop.f32.mrf.mxu0
      %v1025 = vadd.f32 0.0, %v1024
      %v1026 = vpop.f32.mrf.mxu0
      %1027 = vmatprep.mubr.f32.mxu0 0.0
      %1028 = vmatmul.mubr.f32.gmra.mxu0 %v908
      %v1029 = vpop.f32.mrf.mxu0
      %v1030 = vadd.f32 0.0, %v1029
      %v1031 = vpop.f32.mrf.mxu0
      %1032 = vmatprep.mubr.f32.mxu0 0.0
      %1033 = vmatmul.mubr.f32.gmra.mxu0 %v911
      %v1034 = vpop.f32.mrf.mxu0
      %v1035 = vadd.f32 0.0, %v1034
      %v1036 = vpop.f32.mrf.mxu0
      %1037 = vmatprep.mubr.f32.mxu0 0.0
      %1038 = vmatmul.mubr.f32.gmra.mxu0 %v914
      %v1039 = vpop.f32.mrf.mxu0
      %v1040 = vadd.f32 0.0, %v1039
      %v1041 = vpop.f32.mrf.mxu0
      %1042 = vmatprep.mubr.f32.mxu0 0.0
      %1043 = vmatmul.mubr.f32.gmra.mxu0 %v917
      %v1044 = vpop.f32.mrf.mxu0
      %v1045 = vadd.f32 0.0, %v1044
      %v1046 = vpop.f32.mrf.mxu0
      %1047 = vmatprep.mubr.f32.mxu0 0.0
      %1048 = vmatmul.mubr.f32.gmra.mxu0 %v920
      %v1049 = vpop.f32.mrf.mxu0
      %v1050 = vadd.f32 0.0, %v1049
      %v1051 = vpop.f32.mrf.mxu0
      %1052 = vmatprep.mubr.f32.mxu0 0.0
      %1053 = vmatmul.mubr.f32.gmra.mxu0 %v923
      %v1054 = vpop.f32.mrf.mxu0
      %v1055 = vadd.f32 0.0, %v1054
      %v1056 = vpop.f32.mrf.mxu0
      %1057 = vmatprep.mubr.f32.mxu0 0.0
      %1058 = vmatmul.mubr.f32.gmra.mxu0 %v926
      %v1059 = vpop.f32.mrf.mxu0
      %v1060 = vadd.f32 0.0, %v1059
      %v1061 = vpop.f32.mrf.mxu0
      %1062 = vmatprep.mubr.f32.mxu0 0.0
      %1063 = vmatmul.mubr.f32.gmra.mxu0 %v929
      %v1064 = vpop.f32.mrf.mxu0
      %v1065 = vadd.f32 0.0, %v1064
      %v1066 = vpop.f32.mrf.mxu0
      %1067 = vmatprep.mubr.f32.mxu0 0.0
      %1068 = vmatmul.mubr.f32.gmra.mxu0 %v932
      %v1069 = vpop.f32.mrf.mxu0
      %v1070 = vadd.f32 0.0, %v1069
      %v1071 = vpop.f32.mrf.mxu0
      %1072 = vmatprep.mubr.f32.mxu0 0.0
      %1073 = vmatmul.mubr.f32.gmra.mxu0 %v935
      %v1074 = vpop.f32.mrf.mxu0
      %v1075 = vadd.f32 0.0, %v1074
      %v1076 = vpop.f32.mrf.mxu0
      %1077 = vmatprep.mubr.f32.mxu0 0.0
      %1078 = vmatmul.mubr.f32.gmra.mxu0 %v938
      %v1079 = vpop.f32.mrf.mxu0
      %v1080 = vadd.f32 0.0, %v1079
      %v1081 = vpop.f32.mrf.mxu0
      %1082 = vmatprep.mubr.f32.mxu0 0.0
      %1083 = vmatmul.mubr.f32.gmra.mxu0 %v941
      %v1084 = vpop.f32.mrf.mxu0
      %v1085 = vadd.f32 0.0, %v1084
      %v1086 = vpop.f32.mrf.mxu0
      %1087 = vdwg.mxu0
      %v1088 = vld [vmem:[#allocation2] sm:$0xff]
      %v1089 = vld [vmem:[#allocation2 + $0x8] sm:$0xff]
      %v1090 = vld [vmem:[#allocation2 + $0x10] sm:$0xff]
      %v1091 = vld [vmem:[#allocation2 + $0x18] sm:$0xff]
      %v1092 = vld [vmem:[#allocation2 + $0x20] sm:$0xff]
      %v1093 = vld [vmem:[#allocation2 + $0x28] sm:$0xff]
      %v1094 = vld [vmem:[#allocation2 + $0x30] sm:$0xff]
      %v1095 = vld [vmem:[#allocation2 + $0x38] sm:$0xff]
      %v1096 = vld [vmem:[#allocation2 + $0x40] sm:$0xff]
      %v1097 = vld [vmem:[#allocation2 + $0x48] sm:$0xff]
      %v1098 = vld [vmem:[#allocation2 + $0x50] sm:$0xff]
      %v1099 = vld [vmem:[#allocation2 + $0x58] sm:$0xff]
      %v1100 = vld [vmem:[#allocation2 + $0x60] sm:$0xff]
      %v1101 = vld [vmem:[#allocation2 + $0x68] sm:$0xff]
      %v1102 = vld [vmem:[#allocation2 + $0x70] sm:$0xff]
      %v1103 = vld [vmem:[#allocation2 + $0x78] sm:$0xff]
      %v1104 = vld [vmem:[#allocation3] sm:$0xff]
      %v1105 = vld [vmem:[#allocation3 + $0x8] sm:$0xff]
      %v1106 = vld [vmem:[#allocation3 + $0x10] sm:$0xff]
      %v1107 = vld [vmem:[#allocation3 + $0x18] sm:$0xff]
      %v1108 = vld [vmem:[#allocation3 + $0x20] sm:$0xff]
      %v1109 = vld [vmem:[#allocation3 + $0x28] sm:$0xff]
      %v1110 = vld [vmem:[#allocation3 + $0x30] sm:$0xff]
      %v1111 = vld [vmem:[#allocation3 + $0x38] sm:$0xff]
      %v1112 = vld [vmem:[#allocation3 + $0x40] sm:$0xff]
      %v1113 = vld [vmem:[#allocation3 + $0x48] sm:$0xff]
      %v1114 = vld [vmem:[#allocation3 + $0x50] sm:$0xff]
      %v1115 = vld [vmem:[#allocation3 + $0x58] sm:$0xff]
      %v1116 = vld [vmem:[#allocation3 + $0x60] sm:$0xff]
      %v1117 = vld [vmem:[#allocation3 + $0x68] sm:$0xff]
      %v1118 = vld [vmem:[#allocation3 + $0x70] sm:$0xff]
      %v1119 = vld [vmem:[#allocation3 + $0x78] sm:$0xff]
      %vm1120 = vcmask 64512
      %v1122 = vsel %vm1120, %v1010, 0
      %v1125 = vsel %vm1120, %v1015, 0
      %v1128 = vsel %vm1120, %v1020, 0
      %v1131 = vsel %vm1120, %v1025, 0
      %v1134 = vsel %vm1120, %v1030, 0
      %v1137 = vsel %vm1120, %v1035, 0
      %v1140 = vsel %vm1120, %v1040, 0
      %v1143 = vsel %vm1120, %v1045, 0
      %v1146 = vsel %vm1120, %v1050, 0
      %v1149 = vsel %vm1120, %v1055, 0
      %v1152 = vsel %vm1120, %v1060, 0
      %v1155 = vsel %vm1120, %v1065, 0
      %v1158 = vsel %vm1120, %v1070, 0
      %v1161 = vsel %vm1120, %v1075, 0
      %v1164 = vsel %vm1120, %v1080, 0
      %v1167 = vsel %vm1120, %v1085, 0
      %v1170 = vsel %vm1120, %v1088, 0
      %v1173 = vsel %vm1120, %v1089, 0
      %v1176 = vsel %vm1120, %v1090, 0
      %v1179 = vsel %vm1120, %v1091, 0
      %v1182 = vsel %vm1120, %v1092, 0
      %v1185 = vsel %vm1120, %v1093, 0
      %v1188 = vsel %vm1120, %v1094, 0
      %v1191 = vsel %vm1120, %v1095, 0
      %v1194 = vsel %vm1120, %v1096, 0
      %v1197 = vsel %vm1120, %v1097, 0
      %v1200 = vsel %vm1120, %v1098, 0
      %v1203 = vsel %vm1120, %v1099, 0
      %v1206 = vsel %vm1120, %v1100, 0
      %v1209 = vsel %vm1120, %v1101, 0
      %v1212 = vsel %vm1120, %v1102, 0
      %v1215 = vsel %vm1120, %v1103, 0
      %1217 = vmatprep.subr.mxu0 0.0
      %1218 = vmatpush1.xpose.msra.mxu0 %v1215
      %1219 = vmatprep.subr.mxu0 0.0
      %1220 = vmatpush1.xpose.msra.mxu0 %v1212
      %1221 = vmatprep.subr.mxu0 0.0
      %1222 = vmatpush1.xpose.msra.mxu0 %v1209
      %1223 = vmatprep.subr.mxu0 0.0
      %1224 = vmatpush1.xpose.msra.mxu0 %v1206
      %1225 = vmatprep.subr.mxu0 0.0
      %1226 = vmatpush1.xpose.msra.mxu0 %v1203
      %1227 = vmatprep.subr.mxu0 0.0
      %1228 = vmatpush1.xpose.msra.mxu0 %v1200
      %1229 = vmatprep.subr.mxu0 0.0
      %1230 = vmatpush1.xpose.msra.mxu0 %v1197
      %1231 = vmatprep.subr.mxu0 0.0
      %1232 = vmatpush1.xpose.msra.mxu0 %v1194
      %1233 = vmatprep.subr.mxu0 0.0
      %1234 = vmatpush1.xpose.msra.mxu0 %v1191
      %1235 = vmatprep.subr.mxu0 0.0
      %1236 = vmatpush1.xpose.msra.mxu0 %v1188
      %1237 = vmatprep.subr.mxu0 0.0
      %1238 = vmatpush1.xpose.msra.mxu0 %v1185
      %1239 = vmatprep.subr.mxu0 0.0
      %1240 = vmatpush1.xpose.msra.mxu0 %v1182
      %1241 = vmatprep.subr.mxu0 0.0
      %1242 = vmatpush1.xpose.msra.mxu0 %v1179
      %1243 = vmatprep.subr.mxu0 0.0
      %1244 = vmatpush1.xpose.msra.mxu0 %v1176
      %1245 = vmatprep.subr.mxu0 0.0
      %1246 = vmatpush1.xpose.msra.mxu0 %v1173
      %1247 = vmatprep.subr.mxu0 0.0
      %1248 = vmatpush1.xpose.msra.mxu0 %v1170
      %1249 = vmatprep.subr.mxu0 0.0
      %1250 = vmatpush2.xpose.msra.mxu0 0.0
      %1251 = vmatprep.subr.mxu0 0.0
      %1252 = vmatpush2.xpose.msra.mxu0 0.0
      %1253 = vmatprep.subr.mxu0 0.0
      %1254 = vmatpush2.xpose.msra.mxu0 0.0
      %1255 = vmatprep.subr.mxu0 0.0
      %1256 = vmatpush2.xpose.msra.mxu0 0.0
      %1257 = vmatprep.subr.mxu0 0.0
      %1258 = vmatpush2.xpose.msra.mxu0 0.0
      %1259 = vmatprep.subr.mxu0 0.0
      %1260 = vmatpush2.xpose.msra.mxu0 0.0
      %1261 = vmatprep.subr.mxu0 0.0
      %1262 = vmatpush2.xpose.msra.mxu0 0.0
      %1263 = vmatprep.subr.mxu0 0.0
      %1264 = vmatpush2.xpose.msra.mxu0 0.0
      %1265 = vmatprep.subr.mxu0 0.0
      %1266 = vmatpush2.xpose.msra.mxu0 0.0
      %1267 = vmatprep.subr.mxu0 0.0
      %1268 = vmatpush2.xpose.msra.mxu0 0.0
      %1269 = vmatprep.subr.mxu0 0.0
      %1270 = vmatpush2.xpose.msra.mxu0 0.0
      %1271 = vmatprep.subr.mxu0 0.0
      %1272 = vmatpush2.xpose.msra.mxu0 0.0
      %1273 = vmatprep.subr.mxu0 0.0
      %1274 = vmatpush2.xpose.msra.mxu0 0.0
      %1275 = vmatprep.subr.mxu0 0.0
      %1276 = vmatpush2.xpose.msra.mxu0 0.0
      %1277 = vmatprep.subr.mxu0 0.0
      %1278 = vmatpush2.xpose.msra.mxu0 0.0
      %1279 = vmatprep.subr.mxu0 0.0
      %1280 = vmatpush2.xpose.msra.mxu0 0.0
      %1281 = vmatprep.mubr.f32.mxu0 0.0
      %1282 = vmatmul.mubr.f32.gmra.mxu0 %v1122
      %v1283 = vpop.f32.mrf.mxu0
      %v1284 = vadd.f32 0.0, %v1283
      %v1285 = vpop.f32.mrf.mxu0
      %1286 = vmatprep.mubr.f32.mxu0 0.0
      %1287 = vmatmul.mubr.f32.gmra.mxu0 %v1125
      %v1288 = vpop.f32.mrf.mxu0
      %v1289 = vadd.f32 0.0, %v1288
      %v1290 = vpop.f32.mrf.mxu0
      %1291 = vmatprep.mubr.f32.mxu0 0.0
      %1292 = vmatmul.mubr.f32.gmra.mxu0 %v1128
      %v1293 = vpop.f32.mrf.mxu0
      %v1294 = vadd.f32 0.0, %v1293
      %v1295 = vpop.f32.mrf.mxu0
      %1296 = vmatprep.mubr.f32.mxu0 0.0
      %1297 = vmatmul.mubr.f32.gmra.mxu0 %v1131
      %v1298 = vpop.f32.mrf.mxu0
      %v1299 = vadd.f32 0.0, %v1298
      %v1300 = vpop.f32.mrf.mxu0
      %1301 = vmatprep.mubr.f32.mxu0 0.0
      %1302 = vmatmul.mubr.f32.gmra.mxu0 %v1134
      %v1303 = vpop.f32.mrf.mxu0
      %v1304 = vadd.f32 0.0, %v1303
      %v1305 = vpop.f32.mrf.mxu0
      %1306 = vmatprep.mubr.f32.mxu0 0.0
      %1307 = vmatmul.mubr.f32.gmra.mxu0 %v1137
      %v1308 = vpop.f32.mrf.mxu0
      %v1309 = vadd.f32 0.0, %v1308
      %v1310 = vpop.f32.mrf.mxu0
      %1311 = vmatprep.mubr.f32.mxu0 0.0
      %1312 = vmatmul.mubr.f32.gmra.mxu0 %v1140
      %v1313 = vpop.f32.mrf.mxu0
      %v1314 = vadd.f32 0.0, %v1313
      %v1315 = vpop.f32.mrf.mxu0
      %1316 = vmatprep.mubr.f32.mxu0 0.0
      %1317 = vmatmul.mubr.f32.gmra.mxu0 %v1143
      %v1318 = vpop.f32.mrf.mxu0
      %v1319 = vadd.f32 0.0, %v1318
      %v1320 = vpop.f32.mrf.mxu0
      %1321 = vmatprep.mubr.f32.mxu0 0.0
      %1322 = vmatmul.mubr.f32.gmra.mxu0 %v1146
      %v1323 = vpop.f32.mrf.mxu0
      %v1324 = vadd.f32 0.0, %v1323
      %v1325 = vpop.f32.mrf.mxu0
      %1326 = vmatprep.mubr.f32.mxu0 0.0
      %1327 = vmatmul.mubr.f32.gmra.mxu0 %v1149
      %v1328 = vpop.f32.mrf.mxu0
      %v1329 = vadd.f32 0.0, %v1328
      %v1330 = vpop.f32.mrf.mxu0
      %1331 = vmatprep.mubr.f32.mxu0 0.0
      %1332 = vmatmul.mubr.f32.gmra.mxu0 %v1152
      %v1333 = vpop.f32.mrf.mxu0
      %v1334 = vadd.f32 0.0, %v1333
      %v1335 = vpop.f32.mrf.mxu0
      %1336 = vmatprep.mubr.f32.mxu0 0.0
      %1337 = vmatmul.mubr.f32.gmra.mxu0 %v1155
      %v1338 = vpop.f32.mrf.mxu0
      %v1339 = vadd.f32 0.0, %v1338
      %v1340 = vpop.f32.mrf.mxu0
      %1341 = vmatprep.mubr.f32.mxu0 0.0
      %1342 = vmatmul.mubr.f32.gmra.mxu0 %v1158
      %v1343 = vpop.f32.mrf.mxu0
      %v1344 = vadd.f32 0.0, %v1343
      %v1345 = vpop.f32.mrf.mxu0
      %1346 = vmatprep.mubr.f32.mxu0 0.0
      %1347 = vmatmul.mubr.f32.gmra.mxu0 %v1161
      %v1348 = vpop.f32.mrf.mxu0
      %v1349 = vadd.f32 0.0, %v1348
      %v1350 = vpop.f32.mrf.mxu0
      %1351 = vmatprep.mubr.f32.mxu0 0.0
      %1352 = vmatmul.mubr.f32.gmra.mxu0 %v1164
      %v1353 = vpop.f32.mrf.mxu0
      %v1354 = vadd.f32 0.0, %v1353
      %v1355 = vpop.f32.mrf.mxu0
      %1356 = vmatprep.mubr.f32.mxu0 0.0
      %1357 = vmatmul.mubr.f32.gmra.mxu0 %v1167
      %v1358 = vpop.f32.mrf.mxu0
      %v1359 = vadd.f32 0.0, %v1358
      %v1360 = vpop.f32.mrf.mxu0
      %1361 = vdwg.mxu0
      %v1362 = vsel %vm874, %v1284, -1e+30
      %v1363 = vsel %vm874, %v1289, -1e+30
      %v1364 = vsel %vm874, %v1294, -1e+30
      %v1365 = vsel %vm874, %v1299, -1e+30
      %v1366 = vsel %vm874, %v1304, -1e+30
      %v1367 = vsel %vm874, %v1309, -1e+30
      %v1368 = vsel %vm874, %v1314, -1e+30
      %v1369 = vsel %vm874, %v1319, -1e+30
      %v1370 = vsel %vm874, %v1324, -1e+30
      %v1371 = vsel %vm874, %v1329, -1e+30
      %v1372 = vsel %vm874, %v1334, -1e+30
      %v1373 = vsel %vm874, %v1339, -1e+30
      %v1374 = vsel %vm874, %v1344, -1e+30
      %v1375 = vsel %vm874, %v1349, -1e+30
      %v1376 = vsel %vm874, %v1354, -1e+30
      %v1377 = vsel %vm874, %v1359, -1e+30
      %1378 = vmax.xlane.f32.xlu0 %v1362
      %v1379 = vpop.xlane.xlu0 %1378
      %1380 = vmax.xlane.f32.xlu0 %v1363
      %v1381 = vpop.xlane.xlu0 %1380
      %1382 = vmax.xlane.f32.xlu0 %v1364
      %v1383 = vpop.xlane.xlu0 %1382
      %1384 = vmax.xlane.f32.xlu0 %v1365
      %v1385 = vpop.xlane.xlu0 %1384
      %1386 = vmax.xlane.f32.xlu0 %v1366
      %v1387 = vpop.xlane.xlu0 %1386
      %1388 = vmax.xlane.f32.xlu0 %v1367
      %v1389 = vpop.xlane.xlu0 %1388
      %1390 = vmax.xlane.f32.xlu0 %v1368
      %v1391 = vpop.xlane.xlu0 %1390
      %1392 = vmax.xlane.f32.xlu0 %v1369
      %v1393 = vpop.xlane.xlu0 %1392
      %1394 = vmax.xlane.f32.xlu0 %v1370
      %v1395 = vpop.xlane.xlu0 %1394
      %1396 = vmax.xlane.f32.xlu0 %v1371
      %v1397 = vpop.xlane.xlu0 %1396
      %1398 = vmax.xlane.f32.xlu0 %v1372
      %v1399 = vpop.xlane.xlu0 %1398
      %1400 = vmax.xlane.f32.xlu0 %v1373
      %v1401 = vpop.xlane.xlu0 %1400
      %1402 = vmax.xlane.f32.xlu0 %v1374
      %v1403 = vpop.xlane.xlu0 %1402
      %1404 = vmax.xlane.f32.xlu0 %v1375
      %v1405 = vpop.xlane.xlu0 %1404
      %1406 = vmax.xlane.f32.xlu0 %v1376
      %v1407 = vpop.xlane.xlu0 %1406
      %1408 = vmax.xlane.f32.xlu0 %v1377
      %v1409 = vpop.xlane.xlu0 %1408
      %v1410 = vsub.f32 %v1362, %v1379
      %v1411 = vsub.f32 %v1363, %v1381
      %v1412 = vsub.f32 %v1364, %v1383
      %v1413 = vsub.f32 %v1365, %v1385
      %v1414 = vsub.f32 %v1366, %v1387
      %v1415 = vsub.f32 %v1367, %v1389
      %v1416 = vsub.f32 %v1368, %v1391
      %v1417 = vsub.f32 %v1369, %v1393
      %v1418 = vsub.f32 %v1370, %v1395
      %v1419 = vsub.f32 %v1371, %v1397
      %v1420 = vsub.f32 %v1372, %v1399
      %v1421 = vsub.f32 %v1373, %v1401
      %v1422 = vsub.f32 %v1374, %v1403
      %v1423 = vsub.f32 %v1375, %v1405
      %v1424 = vsub.f32 %v1376, %v1407
      %v1425 = vsub.f32 %v1377, %v1409
      %v1426 = vmul.f32 %v1410, 1.442695
      %v1427 = vpow.pop %v1426
      %v1428 = vmul.f32 %v1411, 1.442695
      %v1429 = vpow.pop %v1428
      %v1430 = vmul.f32 %v1412, 1.442695
      %v1431 = vpow.pop %v1430
      %v1432 = vmul.f32 %v1413, 1.442695
      %v1433 = vpow.pop %v1432
      %v1434 = vmul.f32 %v1414, 1.442695
      %v1435 = vpow.pop %v1434
      %v1436 = vmul.f32 %v1415, 1.442695
      %v1437 = vpow.pop %v1436
      %v1438 = vmul.f32 %v1416, 1.442695
      %v1439 = vpow.pop %v1438
      %v1440 = vmul.f32 %v1417, 1.442695
      %v1441 = vpow.pop %v1440
      %v1442 = vmul.f32 %v1418, 1.442695
      %v1443 = vpow.pop %v1442
      %v1444 = vmul.f32 %v1419, 1.442695
      %v1445 = vpow.pop %v1444
      %v1446 = vmul.f32 %v1420, 1.442695
      %v1447 = vpow.pop %v1446
      %v1448 = vmul.f32 %v1421, 1.442695
      %v1449 = vpow.pop %v1448
      %v1450 = vmul.f32 %v1422, 1.442695
      %v1451 = vpow.pop %v1450
      %v1452 = vmul.f32 %v1423, 1.442695
      %v1453 = vpow.pop %v1452
      %v1454 = vmul.f32 %v1424, 1.442695
      %v1455 = vpow.pop %v1454
      %v1456 = vmul.f32 %v1425, 1.442695
      %v1457 = vpow.pop %v1456
      %1458 = vadd.xlane.f32.xlu0 %v1427
      %v1459 = vpop.xlane.xlu0 %1458
      %1460 = vadd.xlane.f32.xlu0 %v1429
      %v1461 = vpop.xlane.xlu0 %1460
      %1462 = vadd.xlane.f32.xlu0 %v1431
      %v1463 = vpop.xlane.xlu0 %1462
      %1464 = vadd.xlane.f32.xlu0 %v1433
      %v1465 = vpop.xlane.xlu0 %1464
      %1466 = vadd.xlane.f32.xlu0 %v1435
      %v1467 = vpop.xlane.xlu0 %1466
      %1468 = vadd.xlane.f32.xlu0 %v1437
      %v1469 = vpop.xlane.xlu0 %1468
      %1470 = vadd.xlane.f32.xlu0 %v1439
      %v1471 = vpop.xlane.xlu0 %1470
      %1472 = vadd.xlane.f32.xlu0 %v1441
      %v1473 = vpop.xlane.xlu0 %1472
      %1474 = vadd.xlane.f32.xlu0 %v1443
      %v1475 = vpop.xlane.xlu0 %1474
      %1476 = vadd.xlane.f32.xlu0 %v1445
      %v1477 = vpop.xlane.xlu0 %1476
      %1478 = vadd.xlane.f32.xlu0 %v1447
      %v1479 = vpop.xlane.xlu0 %1478
      %1480 = vadd.xlane.f32.xlu0 %v1449
      %v1481 = vpop.xlane.xlu0 %1480
      %1482 = vadd.xlane.f32.xlu0 %v1451
      %v1483 = vpop.xlane.xlu0 %1482
      %1484 = vadd.xlane.f32.xlu0 %v1453
      %v1485 = vpop.xlane.xlu0 %1484
      %1486 = vadd.xlane.f32.xlu0 %v1455
      %v1487 = vpop.xlane.xlu0 %1486
      %1488 = vadd.xlane.f32.xlu0 %v1457
      %v1489 = vpop.xlane.xlu0 %1488
      %v1490 = vrcp.pop %v1459
      %v1491 = vrcp.pop %v1461
      %v1492 = vrcp.pop %v1463
      %v1493 = vrcp.pop %v1465
      %v1494 = vrcp.pop %v1467
      %v1495 = vrcp.pop %v1469
      %v1496 = vrcp.pop %v1471
      %v1497 = vrcp.pop %v1473
      %v1498 = vrcp.pop %v1475
      %v1499 = vrcp.pop %v1477
      %v1500 = vrcp.pop %v1479
      %v1501 = vrcp.pop %v1481
      %v1502 = vrcp.pop %v1483
      %v1503 = vrcp.pop %v1485
      %v1504 = vrcp.pop %v1487
      %v1505 = vrcp.pop %v1489
      %v1506 = vmul.f32 %v1427, %v1490
      %v1507 = vmul.f32 %v1429, %v1491
      %v1508 = vmul.f32 %v1431, %v1492
      %v1509 = vmul.f32 %v1433, %v1493
      %v1510 = vmul.f32 %v1435, %v1494
      %v1511 = vmul.f32 %v1437, %v1495
      %v1512 = vmul.f32 %v1439, %v1496
      %v1513 = vmul.f32 %v1441, %v1497
      %v1514 = vmul.f32 %v1443, %v1498
      %v1515 = vmul.f32 %v1445, %v1499
      %v1516 = vmul.f32 %v1447, %v1500
      %v1517 = vmul.f32 %v1449, %v1501
      %v1518 = vmul.f32 %v1451, %v1502
      %v1519 = vmul.f32 %v1453, %v1503
      %v1520 = vmul.f32 %v1455, %v1504
      %v1521 = vmul.f32 %v1457, %v1505
      %1522 = vmatprep.subr.mxu0 0.0
      %1523 = vmatpush1.msra.mxu0 %v1119
      %1524 = vmatprep.subr.mxu0 0.0
      %1525 = vmatpush1.msra.mxu0 %v1118
      %1526 = vmatprep.subr.mxu0 0.0
      %1527 = vmatpush1.msra.mxu0 %v1117
      %1528 = vmatprep.subr.mxu0 0.0
      %1529 = vmatpush1.msra.mxu0 %v1116
      %1530 = vmatprep.subr.mxu0 0.0
      %1531 = vmatpush1.msra.mxu0 %v1115
      %1532 = vmatprep.subr.mxu0 0.0
      %1533 = vmatpush1.msra.mxu0 %v1114
      %1534 = vmatprep.subr.mxu0 0.0
      %1535 = vmatpush1.msra.mxu0 %v1113
      %1536 = vmatprep.subr.mxu0 0.0
      %1537 = vmatpush1.msra.mxu0 %v1112
      %1538 = vmatprep.subr.mxu0 0.0
      %1539 = vmatpush1.msra.mxu0 %v1111
      %1540 = vmatprep.subr.mxu0 0.0
      %1541 = vmatpush1.msra.mxu0 %v1110
      %1542 = vmatprep.subr.mxu0 0.0
      %1543 = vmatpush1.msra.mxu0 %v1109
      %1544 = vmatprep.subr.mxu0 0.0
      %1545 = vmatpush1.msra.mxu0 %v1108
      %1546 = vmatprep.subr.mxu0 0.0
      %1547 = vmatpush1.msra.mxu0 %v1107
      %1548 = vmatprep.subr.mxu0 0.0
      %1549 = vmatpush1.msra.mxu0 %v1106
      %1550 = vmatprep.subr.mxu0 0.0
      %1551 = vmatpush1.msra.mxu0 %v1105
      %1552 = vmatprep.subr.mxu0 0.0
      %1553 = vmatpush1.msra.mxu0 %v1104
      %1554 = vmatprep.subr.mxu0 0.0
      %1555 = vmatpush2.msra.mxu0 0.0
      %1556 = vmatprep.subr.mxu0 0.0
      %1557 = vmatpush2.msra.mxu0 0.0
      %1558 = vmatprep.subr.mxu0 0.0
      %1559 = vmatpush2.msra.mxu0 0.0
      %1560 = vmatprep.subr.mxu0 0.0
      %1561 = vmatpush2.msra.mxu0 0.0
      %1562 = vmatprep.subr.mxu0 0.0
      %1563 = vmatpush2.msra.mxu0 0.0
      %1564 = vmatprep.subr.mxu0 0.0
      %1565 = vmatpush2.msra.mxu0 0.0
      %1566 = vmatprep.subr.mxu0 0.0
      %1567 = vmatpush2.msra.mxu0 0.0
      %1568 = vmatprep.subr.mxu0 0.0
      %1569 = vmatpush2.msra.mxu0 0.0
      %1570 = vmatprep.subr.mxu0 0.0
      %1571 = vmatpush2.msra.mxu0 0.0
      %1572 = vmatprep.subr.mxu0 0.0
      %1573 = vmatpush2.msra.mxu0 0.0
      %1574 = vmatprep.subr.mxu0 0.0
      %1575 = vmatpush2.msra.mxu0 0.0
      %1576 = vmatprep.subr.mxu0 0.0
      %1577 = vmatpush2.msra.mxu0 0.0
      %1578 = vmatprep.subr.mxu0 0.0
      %1579 = vmatpush2.msra.mxu0 0.0
      %1580 = vmatprep.subr.mxu0 0.0
      %1581 = vmatpush2.msra.mxu0 0.0
      %1582 = vmatprep.subr.mxu0 0.0
      %1583 = vmatpush2.msra.mxu0 0.0
      %1584 = vmatprep.subr.mxu0 0.0
      %1585 = vmatpush2.msra.mxu0 0.0
      %1586 = vmatprep.mubr.f32.mxu0 0.0
      %1587 = vmatmul.mubr.f32.gmra.mxu0 %v1506
      %v1588 = vpop.f32.mrf.mxu0
      %v1589 = vadd.f32 0.0, %v1588
      %v1590 = vpop.f32.mrf.mxu0
      %1591 = vmatprep.mubr.f32.mxu0 0.0
      %1592 = vmatmul.mubr.f32.gmra.mxu0 %v1507
      %v1593 = vpop.f32.mrf.mxu0
      %v1594 = vadd.f32 0.0, %v1593
      %v1595 = vpop.f32.mrf.mxu0
      %1596 = vmatprep.mubr.f32.mxu0 0.0
      %1597 = vmatmul.mubr.f32.gmra.mxu0 %v1508
      %v1598 = vpop.f32.mrf.mxu0
      %v1599 = vadd.f32 0.0, %v1598
      %v1600 = vpop.f32.mrf.mxu0
      %1601 = vmatprep.mubr.f32.mxu0 0.0
      %1602 = vmatmul.mubr.f32.gmra.mxu0 %v1509
      %v1603 = vpop.f32.mrf.mxu0
      %v1604 = vadd.f32 0.0, %v1603
      %v1605 = vpop.f32.mrf.mxu0
      %1606 = vmatprep.mubr.f32.mxu0 0.0
      %1607 = vmatmul.mubr.f32.gmra.mxu0 %v1510
      %v1608 = vpop.f32.mrf.mxu0
      %v1609 = vadd.f32 0.0, %v1608
      %v1610 = vpop.f32.mrf.mxu0
      %1611 = vmatprep.mubr.f32.mxu0 0.0
      %1612 = vmatmul.mubr.f32.gmra.mxu0 %v1511
      %v1613 = vpop.f32.mrf.mxu0
      %v1614 = vadd.f32 0.0, %v1613
      %v1615 = vpop.f32.mrf.mxu0
      %1616 = vmatprep.mubr.f32.mxu0 0.0
      %1617 = vmatmul.mubr.f32.gmra.mxu0 %v1512
      %v1618 = vpop.f32.mrf.mxu0
      %v1619 = vadd.f32 0.0, %v1618
      %v1620 = vpop.f32.mrf.mxu0
      %1621 = vmatprep.mubr.f32.mxu0 0.0
      %1622 = vmatmul.mubr.f32.gmra.mxu0 %v1513
      %v1623 = vpop.f32.mrf.mxu0
      %v1624 = vadd.f32 0.0, %v1623
      %v1625 = vpop.f32.mrf.mxu0
      %1626 = vmatprep.mubr.f32.mxu0 0.0
      %1627 = vmatmul.mubr.f32.gmra.mxu0 %v1514
      %v1628 = vpop.f32.mrf.mxu0
      %v1629 = vadd.f32 0.0, %v1628
      %v1630 = vpop.f32.mrf.mxu0
      %1631 = vmatprep.mubr.f32.mxu0 0.0
      %1632 = vmatmul.mubr.f32.gmra.mxu0 %v1515
      %v1633 = vpop.f32.mrf.mxu0
      %v1634 = vadd.f32 0.0, %v1633
      %v1635 = vpop.f32.mrf.mxu0
      %1636 = vmatprep.mubr.f32.mxu0 0.0
      %1637 = vmatmul.mubr.f32.gmra.mxu0 %v1516
      %v1638 = vpop.f32.mrf.mxu0
      %v1639 = vadd.f32 0.0, %v1638
      %v1640 = vpop.f32.mrf.mxu0
      %1641 = vmatprep.mubr.f32.mxu0 0.0
      %1642 = vmatmul.mubr.f32.gmra.mxu0 %v1517
      %v1643 = vpop.f32.mrf.mxu0
      %v1644 = vadd.f32 0.0, %v1643
      %v1645 = vpop.f32.mrf.mxu0
      %1646 = vmatprep.mubr.f32.mxu0 0.0
      %1647 = vmatmul.mubr.f32.gmra.mxu0 %v1518
      %v1648 = vpop.f32.mrf.mxu0
      %v1649 = vadd.f32 0.0, %v1648
      %v1650 = vpop.f32.mrf.mxu0
      %1651 = vmatprep.mubr.f32.mxu0 0.0
      %1652 = vmatmul.mubr.f32.gmra.mxu0 %v1519
      %v1653 = vpop.f32.mrf.mxu0
      %v1654 = vadd.f32 0.0, %v1653
      %v1655 = vpop.f32.mrf.mxu0
      %1656 = vmatprep.mubr.f32.mxu0 0.0
      %1657 = vmatmul.mubr.f32.gmra.mxu0 %v1520
      %v1658 = vpop.f32.mrf.mxu0
      %v1659 = vadd.f32 0.0, %v1658
      %v1660 = vpop.f32.mrf.mxu0
      %1661 = vmatprep.mubr.f32.mxu0 0.0
      %1662 = vmatmul.mubr.f32.gmra.mxu0 %v1521
      %v1663 = vpop.f32.mrf.mxu0
      %v1664 = vadd.f32 0.0, %v1663
      %v1665 = vpop.f32.mrf.mxu0
      %1666 = vdwg.mxu0
      %v1667 = vld [vmem:[#allocation4] sm:$0xff]
      %v1668 = vld [vmem:[#allocation4 + $0x8] sm:$0xff]
      %v1669 = vld [vmem:[#allocation4 + $0x10] sm:$0xff]
      %v1670 = vld [vmem:[#allocation4 + $0x18] sm:$0xff]
      %v1671 = vld [vmem:[#allocation4 + $0x20] sm:$0xff]
      %v1672 = vld [vmem:[#allocation4 + $0x28] sm:$0xff]
      %v1673 = vld [vmem:[#allocation4 + $0x30] sm:$0xff]
      %v1674 = vld [vmem:[#allocation4 + $0x38] sm:$0xff]
      %v1675 = vld [vmem:[#allocation4 + $0x40] sm:$0xff]
      %v1676 = vld [vmem:[#allocation4 + $0x48] sm:$0xff]
      %v1677 = vld [vmem:[#allocation4 + $0x50] sm:$0xff]
      %v1678 = vld [vmem:[#allocation4 + $0x58] sm:$0xff]
      %v1679 = vld [vmem:[#allocation4 + $0x60] sm:$0xff]
      %v1680 = vld [vmem:[#allocation4 + $0x68] sm:$0xff]
      %v1681 = vld [vmem:[#allocation4 + $0x70] sm:$0xff]
      %v1682 = vld [vmem:[#allocation4 + $0x78] sm:$0xff]
      %v1683 = vld [vmem:[%s6] sm:$0xff]
      %v1685 = vsel %vm1120, %v1589, 0
      %v1688 = vsel %vm1120, %v1594, 0
      %v1691 = vsel %vm1120, %v1599, 0
      %v1694 = vsel %vm1120, %v1604, 0
      %v1697 = vsel %vm1120, %v1609, 0
      %v1700 = vsel %vm1120, %v1614, 0
      %v1703 = vsel %vm1120, %v1619, 0
      %v1706 = vsel %vm1120, %v1624, 0
      %v1709 = vsel %vm1120, %v1629, 0
      %v1712 = vsel %vm1120, %v1634, 0
      %v1715 = vsel %vm1120, %v1639, 0
      %v1718 = vsel %vm1120, %v1644, 0
      %v1721 = vsel %vm1120, %v1649, 0
      %v1724 = vsel %vm1120, %v1654, 0
      %v1727 = vsel %vm1120, %v1659, 0
      %v1730 = vsel %vm1120, %v1664, 0
      %1732 = vmatprep.subr.mxu0 0.0
      %1733 = vmatpush1.msra.mxu0 0.0
      %1734 = vmatprep.subr.mxu0 0.0
      %1735 = vmatpush1.msra.mxu0 0.0
      %1736 = vmatprep.subr.mxu0 0.0
      %1737 = vmatpush1.msra.mxu0 0.0
      %1738 = vmatprep.subr.mxu0 0.0
      %1739 = vmatpush1.msra.mxu0 0.0
      %1740 = vmatprep.subr.mxu0 0.0
      %1741 = vmatpush1.msra.mxu0 0.0
      %1742 = vmatprep.subr.mxu0 0.0
      %1743 = vmatpush1.msra.mxu0 0.0
      %1744 = vmatprep.subr.mxu0 0.0
      %1745 = vmatpush1.msra.mxu0 0.0
      %1746 = vmatprep.subr.mxu0 0.0
      %1747 = vmatpush1.msra.mxu0 0.0
      %1748 = vmatprep.subr.mxu0 0.0
      %1749 = vmatpush1.msra.mxu0 0.0
      %1750 = vmatprep.subr.mxu0 0.0
      %1751 = vmatpush1.msra.mxu0 0.0
      %1752 = vmatprep.subr.mxu0 0.0
      %1753 = vmatpush1.msra.mxu0 0.0
      %1754 = vmatprep.subr.mxu0 0.0
      %1755 = vmatpush1.msra.mxu0 0.0
      %1756 = vmatprep.subr.mxu0 0.0
      %1757 = vmatpush1.msra.mxu0 0.0
      %1758 = vmatprep.subr.mxu0 0.0
      %1759 = vmatpush1.msra.mxu0 0.0
      %1760 = vmatprep.subr.mxu0 0.0
      %1761 = vmatpush1.msra.mxu0 0.0
      %1762 = vmatprep.subr.mxu0 0.0
      %1763 = vmatpush1.msra.mxu0 %v1683
      %1764 = vmatprep.subr.mxu0 0.0
      %1765 = vmatpush2.msra.mxu0 0.0
      %1766 = vmatprep.subr.mxu0 0.0
      %1767 = vmatpush2.msra.mxu0 0.0
      %1768 = vmatprep.subr.mxu0 0.0
      %1769 = vmatpush2.msra.mxu0 0.0
      %1770 = vmatprep.subr.mxu0 0.0
      %1771 = vmatpush2.msra.mxu0 0.0
      %1772 = vmatprep.subr.mxu0 0.0
      %1773 = vmatpush2.msra.mxu0 0.0
      %1774 = vmatprep.subr.mxu0 0.0
      %1775 = vmatpush2.msra.mxu0 0.0
      %1776 = vmatprep.subr.mxu0 0.0
      %1777 = vmatpush2.msra.mxu0 0.0
      %1778 = vmatprep.subr.mxu0 0.0
      %1779 = vmatpush2.msra.mxu0 0.0
      %1780 = vmatprep.subr.mxu0 0.0
      %1781 = vmatpush2.msra.mxu0 0.0
      %1782 = vmatprep.subr.mxu0 0.0
      %1783 = vmatpush2.msra.mxu0 0.0
      %1784 = vmatprep.subr.mxu0 0.0
      %1785 = vmatpush2.msra.mxu0 0.0
      %1786 = vmatprep.subr.mxu0 0.0
      %1787 = vmatpush2.msra.mxu0 0.0
      %1788 = vmatprep.subr.mxu0 0.0
      %1789 = vmatpush2.msra.mxu0 0.0
      %1790 = vmatprep.subr.mxu0 0.0
      %1791 = vmatpush2.msra.mxu0 0.0
      %1792 = vmatprep.subr.mxu0 0.0
      %1793 = vmatpush2.msra.mxu0 0.0
      %1794 = vmatprep.subr.mxu0 0.0
      %1795 = vmatpush2.msra.mxu0 0.0
      %1796 = vmatprep.mubr.f32.mxu0 0.0
      %1797 = vmatmul.mubr.f32.gmra.mxu0 %v1685
      %v1798 = vpop.f32.mrf.mxu0
      %v1799 = vadd.f32 0.0, %v1798
      %v1800 = vpop.f32.mrf.mxu0
      %1801 = vmatprep.mubr.f32.mxu0 0.0
      %1802 = vmatmul.mubr.f32.gmra.mxu0 %v1688
      %v1803 = vpop.f32.mrf.mxu0
      %v1804 = vadd.f32 0.0, %v1803
      %v1805 = vpop.f32.mrf.mxu0
      %1806 = vmatprep.mubr.f32.mxu0 0.0
      %1807 = vmatmul.mubr.f32.gmra.mxu0 %v1691
      %v1808 = vpop.f32.mrf.mxu0
      %v1809 = vadd.f32 0.0, %v1808
      %v1810 = vpop.f32.mrf.mxu0
      %1811 = vmatprep.mubr.f32.mxu0 0.0
      %1812 = vmatmul.mubr.f32.gmra.mxu0 %v1694
      %v1813 = vpop.f32.mrf.mxu0
      %v1814 = vadd.f32 0.0, %v1813
      %v1815 = vpop.f32.mrf.mxu0
      %1816 = vmatprep.mubr.f32.mxu0 0.0
      %1817 = vmatmul.mubr.f32.gmra.mxu0 %v1697
      %v1818 = vpop.f32.mrf.mxu0
      %v1819 = vadd.f32 0.0, %v1818
      %v1820 = vpop.f32.mrf.mxu0
      %1821 = vmatprep.mubr.f32.mxu0 0.0
      %1822 = vmatmul.mubr.f32.gmra.mxu0 %v1700
      %v1823 = vpop.f32.mrf.mxu0
      %v1824 = vadd.f32 0.0, %v1823
      %v1825 = vpop.f32.mrf.mxu0
      %1826 = vmatprep.mubr.f32.mxu0 0.0
      %1827 = vmatmul.mubr.f32.gmra.mxu0 %v1703
      %v1828 = vpop.f32.mrf.mxu0
      %v1829 = vadd.f32 0.0, %v1828
      %v1830 = vpop.f32.mrf.mxu0
      %1831 = vmatprep.mubr.f32.mxu0 0.0
      %1832 = vmatmul.mubr.f32.gmra.mxu0 %v1706
      %v1833 = vpop.f32.mrf.mxu0
      %v1834 = vadd.f32 0.0, %v1833
      %v1835 = vpop.f32.mrf.mxu0
      %1836 = vmatprep.mubr.f32.mxu0 0.0
      %1837 = vmatmul.mubr.f32.gmra.mxu0 %v1709
      %v1838 = vpop.f32.mrf.mxu0
      %v1839 = vadd.f32 0.0, %v1838
      %v1840 = vpop.f32.mrf.mxu0
      %1841 = vmatprep.mubr.f32.mxu0 0.0
      %1842 = vmatmul.mubr.f32.gmra.mxu0 %v1712
      %v1843 = vpop.f32.mrf.mxu0
      %v1844 = vadd.f32 0.0, %v1843
      %v1845 = vpop.f32.mrf.mxu0
      %1846 = vmatprep.mubr.f32.mxu0 0.0
      %1847 = vmatmul.mubr.f32.gmra.mxu0 %v1715
      %v1848 = vpop.f32.mrf.mxu0
      %v1849 = vadd.f32 0.0, %v1848
      %v1850 = vpop.f32.mrf.mxu0
      %1851 = vmatprep.mubr.f32.mxu0 0.0
      %1852 = vmatmul.mubr.f32.gmra.mxu0 %v1718
      %v1853 = vpop.f32.mrf.mxu0
      %v1854 = vadd.f32 0.0, %v1853
      %v1855 = vpop.f32.mrf.mxu0
      %1856 = vmatprep.mubr.f32.mxu0 0.0
      %1857 = vmatmul.mubr.f32.gmra.mxu0 %v1721
      %v1858 = vpop.f32.mrf.mxu0
      %v1859 = vadd.f32 0.0, %v1858
      %v1860 = vpop.f32.mrf.mxu0
      %1861 = vmatprep.mubr.f32.mxu0 0.0
      %1862 = vmatmul.mubr.f32.gmra.mxu0 %v1724
      %v1863 = vpop.f32.mrf.mxu0
      %v1864 = vadd.f32 0.0, %v1863
      %v1865 = vpop.f32.mrf.mxu0
      %1866 = vmatprep.mubr.f32.mxu0 0.0
      %1867 = vmatmul.mubr.f32.gmra.mxu0 %v1727
      %v1868 = vpop.f32.mrf.mxu0
      %v1869 = vadd.f32 0.0, %v1868
      %v1870 = vpop.f32.mrf.mxu0
      %1871 = vmatprep.mubr.f32.mxu0 0.0
      %1872 = vmatmul.mubr.f32.gmra.mxu0 %v1730
      %v1873 = vpop.f32.mrf.mxu0
      %v1874 = vadd.f32 0.0, %v1873
      %v1875 = vpop.f32.mrf.mxu0
      %1876 = vdwg.mxu0
      %v1877 = vadd.f32 %v1667, %v1799
      %v1878 = vadd.f32 %v1668, %v1804
      %v1879 = vadd.f32 %v1669, %v1809
      %v1880 = vadd.f32 %v1670, %v1814
      %v1881 = vadd.f32 %v1671, %v1819
      %v1882 = vadd.f32 %v1672, %v1824
      %v1883 = vadd.f32 %v1673, %v1829
      %v1884 = vadd.f32 %v1674, %v1834
      %v1885 = vadd.f32 %v1675, %v1839
      %v1886 = vadd.f32 %v1676, %v1844
      %v1887 = vadd.f32 %v1677, %v1849
      %v1888 = vadd.f32 %v1678, %v1854
      %v1889 = vadd.f32 %v1679, %v1859
      %v1890 = vadd.f32 %v1680, %v1864
      %v1891 = vadd.f32 %v1681, %v1869
      %v1892 = vadd.f32 %v1682, %v1874
      %1893 = vst.msk [vmem:[#allocation4] sm:$0xff] %vm855, %v1877
      %1894 = vst.msk [vmem:[#allocation4 + $0x8] sm:$0xff] %vm855, %v1878
      %1895 = vst.msk [vmem:[#allocation4 + $0x10] sm:$0xff] %vm855, %v1879
      %1896 = vst.msk [vmem:[#allocation4 + $0x18] sm:$0xff] %vm855, %v1880
      %1897 = vst.msk [vmem:[#allocation4 + $0x20] sm:$0xff] %vm855, %v1881
      %1898 = vst.msk [vmem:[#allocation4 + $0x28] sm:$0xff] %vm855, %v1882
      %1899 = vst.msk [vmem:[#allocation4 + $0x30] sm:$0xff] %vm855, %v1883
      %1900 = vst.msk [vmem:[#allocation4 + $0x38] sm:$0xff] %vm855, %v1884
      %1901 = vst.msk [vmem:[#allocation4 + $0x40] sm:$0xff] %vm855, %v1885
      %1902 = vst.msk [vmem:[#allocation4 + $0x48] sm:$0xff] %vm855, %v1886
      %1903 = vst.msk [vmem:[#allocation4 + $0x50] sm:$0xff] %vm855, %v1887
      %1904 = vst.msk [vmem:[#allocation4 + $0x58] sm:$0xff] %vm855, %v1888
      %1905 = vst.msk [vmem:[#allocation4 + $0x60] sm:$0xff] %vm855, %v1889
      %1906 = vst.msk [vmem:[#allocation4 + $0x68] sm:$0xff] %vm855, %v1890
      %1907 = vst.msk [vmem:[#allocation4 + $0x70] sm:$0xff] %vm855, %v1891
      %1908 = vst.msk [vmem:[#allocation4 + $0x78] sm:$0xff] %vm855, %v1892
      %v1909 = vld [vmem:[#allocation2] sm:$0xff]
      %v1910 = vld [vmem:[#allocation2 + $0x8] sm:$0xff]
      %v1911 = vld [vmem:[#allocation2 + $0x10] sm:$0xff]
      %v1912 = vld [vmem:[#allocation2 + $0x18] sm:$0xff]
      %v1913 = vld [vmem:[#allocation2 + $0x20] sm:$0xff]
      %v1914 = vld [vmem:[#allocation2 + $0x28] sm:$0xff]
      %v1915 = vld [vmem:[#allocation2 + $0x30] sm:$0xff]
      %v1916 = vld [vmem:[#allocation2 + $0x38] sm:$0xff]
      %v1917 = vld [vmem:[#allocation2 + $0x40] sm:$0xff]
      %v1918 = vld [vmem:[#allocation2 + $0x48] sm:$0xff]
      %v1919 = vld [vmem:[#allocation2 + $0x50] sm:$0xff]
      %v1920 = vld [vmem:[#allocation2 + $0x58] sm:$0xff]
      %v1921 = vld [vmem:[#allocation2 + $0x60] sm:$0xff]
      %v1922 = vld [vmem:[#allocation2 + $0x68] sm:$0xff]
      %v1923 = vld [vmem:[#allocation2 + $0x70] sm:$0xff]
      %v1924 = vld [vmem:[#allocation2 + $0x78] sm:$0xff]
      %v1925 = vld [vmem:[#allocation3] sm:$0xff]
      %v1926 = vld [vmem:[#allocation3 + $0x8] sm:$0xff]
      %v1927 = vld [vmem:[#allocation3 + $0x10] sm:$0xff]
      %v1928 = vld [vmem:[#allocation3 + $0x18] sm:$0xff]
      %v1929 = vld [vmem:[#allocation3 + $0x20] sm:$0xff]
      %v1930 = vld [vmem:[#allocation3 + $0x28] sm:$0xff]
      %v1931 = vld [vmem:[#allocation3 + $0x30] sm:$0xff]
      %v1932 = vld [vmem:[#allocation3 + $0x38] sm:$0xff]
      %v1933 = vld [vmem:[#allocation3 + $0x40] sm:$0xff]
      %v1934 = vld [vmem:[#allocation3 + $0x48] sm:$0xff]
      %v1935 = vld [vmem:[#allocation3 + $0x50] sm:$0xff]
      %v1936 = vld [vmem:[#allocation3 + $0x58] sm:$0xff]
      %v1937 = vld [vmem:[#allocation3 + $0x60] sm:$0xff]
      %v1938 = vld [vmem:[#allocation3 + $0x68] sm:$0xff]
      %v1939 = vld [vmem:[#allocation3 + $0x70] sm:$0xff]
      %v1940 = vld [vmem:[#allocation3 + $0x78] sm:$0xff]
      %1941 = vrot.lane.b32.xlu0 %v1010, 120
      %v1942 = vpop.permute.xlu0 %1941
      %1943 = vrot.lane.b32.xlu0 %v1015, 120
      %v1944 = vpop.permute.xlu0 %1943
      %1945 = vrot.lane.b32.xlu0 %v1020, 120
      %v1946 = vpop.permute.xlu0 %1945
      %1947 = vrot.lane.b32.xlu0 %v1025, 120
      %v1948 = vpop.permute.xlu0 %1947
      %1949 = vrot.lane.b32.xlu0 %v1030, 120
      %v1950 = vpop.permute.xlu0 %1949
      %1951 = vrot.lane.b32.xlu0 %v1035, 120
      %v1952 = vpop.permute.xlu0 %1951
      %1953 = vrot.lane.b32.xlu0 %v1040, 120
      %v1954 = vpop.permute.xlu0 %1953
      %1955 = vrot.lane.b32.xlu0 %v1045, 120
      %v1956 = vpop.permute.xlu0 %1955
      %1957 = vrot.lane.b32.xlu0 %v1050, 120
      %v1958 = vpop.permute.xlu0 %1957
      %1959 = vrot.lane.b32.xlu0 %v1055, 120
      %v1960 = vpop.permute.xlu0 %1959
      %1961 = vrot.lane.b32.xlu0 %v1060, 120
      %v1962 = vpop.permute.xlu0 %1961
      %1963 = vrot.lane.b32.xlu0 %v1065, 120
      %v1964 = vpop.permute.xlu0 %1963
      %1965 = vrot.lane.b32.xlu0 %v1070, 120
      %v1966 = vpop.permute.xlu0 %1965
      %1967 = vrot.lane.b32.xlu0 %v1075, 120
      %v1968 = vpop.permute.xlu0 %1967
      %1969 = vrot.lane.b32.xlu0 %v1080, 120
      %v1970 = vpop.permute.xlu0 %1969
      %1971 = vrot.lane.b32.xlu0 %v1085, 120
      %v1972 = vpop.permute.xlu0 %1971
      %1989 = vrot.lane.b32.xlu0 %v1909, 120
      %v1990 = vpop.permute.xlu0 %1989
      %1991 = vrot.lane.b32.xlu0 %v1910, 120
      %v1992 = vpop.permute.xlu0 %1991
      %1993 = vrot.lane.b32.xlu0 %v1911, 120
      %v1994 = vpop.permute.xlu0 %1993
      %1995 = vrot.lane.b32.xlu0 %v1912, 120
      %v1996 = vpop.permute.xlu0 %1995
      %1997 = vrot.lane.b32.xlu0 %v1913, 120
      %v1998 = vpop.permute.xlu0 %1997
      %1999 = vrot.lane.b32.xlu0 %v1914, 120
      %v2000 = vpop.permute.xlu0 %1999
      %2001 = vrot.lane.b32.xlu0 %v1915, 120
      %v2002 = vpop.permute.xlu0 %2001
      %2003 = vrot.lane.b32.xlu0 %v1916, 120
      %v2004 = vpop.permute.xlu0 %2003
      %2005 = vrot.lane.b32.xlu0 %v1917, 120
      %v2006 = vpop.permute.xlu0 %2005
      %2007 = vrot.lane.b32.xlu0 %v1918, 120
      %v2008 = vpop.permute.xlu0 %2007
      %2009 = vrot.lane.b32.xlu0 %v1919, 120
      %v2010 = vpop.permute.xlu0 %2009
      %2011 = vrot.lane.b32.xlu0 %v1920, 120
      %v2012 = vpop.permute.xlu0 %2011
      %2013 = vrot.lane.b32.xlu0 %v1921, 120
      %v2014 = vpop.permute.xlu0 %2013
      %2015 = vrot.lane.b32.xlu0 %v1922, 120
      %v2016 = vpop.permute.xlu0 %2015
      %2017 = vrot.lane.b32.xlu0 %v1923, 120
      %v2018 = vpop.permute.xlu0 %2017
      %2019 = vrot.lane.b32.xlu0 %v1924, 120
      %v2020 = vpop.permute.xlu0 %2019
      %v2021 = vsel %vm1120, %v1942, 0
      %v2023 = vsel %vm1120, %v1944, 0
      %v2025 = vsel %vm1120, %v1946, 0
      %v2027 = vsel %vm1120, %v1948, 0
      %v2029 = vsel %vm1120, %v1950, 0
      %v2031 = vsel %vm1120, %v1952, 0
      %v2033 = vsel %vm1120, %v1954, 0
      %v2035 = vsel %vm1120, %v1956, 0
      %v2037 = vsel %vm1120, %v1958, 0
      %v2039 = vsel %vm1120, %v1960, 0
      %v2041 = vsel %vm1120, %v1962, 0
      %v2043 = vsel %vm1120, %v1964, 0
      %v2045 = vsel %vm1120, %v1966, 0
      %v2047 = vsel %vm1120, %v1968, 0
      %v2049 = vsel %vm1120, %v1970, 0
      %v2051 = vsel %vm1120, %v1972, 0
      %v2053 = vsel %vm1120, %v1990, 0
      %v2055 = vsel %vm1120, %v1992, 0
      %v2057 = vsel %vm1120, %v1994, 0
      %v2059 = vsel %vm1120, %v1996, 0
      %v2061 = vsel %vm1120, %v1998, 0
      %v2063 = vsel %vm1120, %v2000, 0
      %v2065 = vsel %vm1120, %v2002, 0
      %v2067 = vsel %vm1120, %v2004, 0
      %v2069 = vsel %vm1120, %v2006, 0
      %v2071 = vsel %vm1120, %v2008, 0
      %v2073 = vsel %vm1120, %v2010, 0
      %v2075 = vsel %vm1120, %v2012, 0
      %v2077 = vsel %vm1120, %v2014, 0
      %v2079 = vsel %vm1120, %v2016, 0
      %v2081 = vsel %vm1120, %v2018, 0
      %v2083 = vsel %vm1120, %v2020, 0
      %2085 = vmatprep.subr.mxu0 0.0
      %2086 = vmatpush1.xpose.msra.mxu0 %v2083
      %2087 = vmatprep.subr.mxu0 0.0
      %2088 = vmatpush1.xpose.msra.mxu0 %v2081
      %2089 = vmatprep.subr.mxu0 0.0
      %2090 = vmatpush1.xpose.msra.mxu0 %v2079
      %2091 = vmatprep.subr.mxu0 0.0
      %2092 = vmatpush1.xpose.msra.mxu0 %v2077
      %2093 = vmatprep.subr.mxu0 0.0
      %2094 = vmatpush1.xpose.msra.mxu0 %v2075
      %2095 = vmatprep.subr.mxu0 0.0
      %2096 = vmatpush1.xpose.msra.mxu0 %v2073
      %2097 = vmatprep.subr.mxu0 0.0
      %2098 = vmatpush1.xpose.msra.mxu0 %v2071
      %2099 = vmatprep.subr.mxu0 0.0
      %2100 = vmatpush1.xpose.msra.mxu0 %v2069
      %2101 = vmatprep.subr.mxu0 0.0
      %2102 = vmatpush1.xpose.msra.mxu0 %v2067
      %2103 = vmatprep.subr.mxu0 0.0
      %2104 = vmatpush1.xpose.msra.mxu0 %v2065
      %2105 = vmatprep.subr.mxu0 0.0
      %2106 = vmatpush1.xpose.msra.mxu0 %v2063
      %2107 = vmatprep.subr.mxu0 0.0
      %2108 = vmatpush1.xpose.msra.mxu0 %v2061
      %2109 = vmatprep.subr.mxu0 0.0
      %2110 = vmatpush1.xpose.msra.mxu0 %v2059
      %2111 = vmatprep.subr.mxu0 0.0
      %2112 = vmatpush1.xpose.msra.mxu0 %v2057
      %2113 = vmatprep.subr.mxu0 0.0
      %2114 = vmatpush1.xpose.msra.mxu0 %v2055
      %2115 = vmatprep.subr.mxu0 0.0
      %2116 = vmatpush1.xpose.msra.mxu0 %v2053
      %2117 = vmatprep.subr.mxu0 0.0
      %2118 = vmatpush2.xpose.msra.mxu0 0.0
      %2119 = vmatprep.subr.mxu0 0.0
      %2120 = vmatpush2.xpose.msra.mxu0 0.0
      %2121 = vmatprep.subr.mxu0 0.0
      %2122 = vmatpush2.xpose.msra.mxu0 0.0
      %2123 = vmatprep.subr.mxu0 0.0
      %2124 = vmatpush2.xpose.msra.mxu0 0.0
      %2125 = vmatprep.subr.mxu0 0.0
      %2126 = vmatpush2.xpose.msra.mxu0 0.0
      %2127 = vmatprep.subr.mxu0 0.0
      %2128 = vmatpush2.xpose.msra.mxu0 0.0
      %2129 = vmatprep.subr.mxu0 0.0
      %2130 = vmatpush2.xpose.msra.mxu0 0.0
      %2131 = vmatprep.subr.mxu0 0.0
      %2132 = vmatpush2.xpose.msra.mxu0 0.0
      %2133 = vmatprep.subr.mxu0 0.0
      %2134 = vmatpush2.xpose.msra.mxu0 0.0
      %2135 = vmatprep.subr.mxu0 0.0
      %2136 = vmatpush2.xpose.msra.mxu0 0.0
      %2137 = vmatprep.subr.mxu0 0.0
      %2138 = vmatpush2.xpose.msra.mxu0 0.0
      %2139 = vmatprep.subr.mxu0 0.0
      %2140 = vmatpush2.xpose.msra.mxu0 0.0
      %2141 = vmatprep.subr.mxu0 0.0
      %2142 = vmatpush2.xpose.msra.mxu0 0.0
      %2143 = vmatprep.subr.mxu0 0.0
      %2144 = vmatpush2.xpose.msra.mxu0 0.0
      %2145 = vmatprep.subr.mxu0 0.0
      %2146 = vmatpush2.xpose.msra.mxu0 0.0
      %2147 = vmatprep.subr.mxu0 0.0
      %2148 = vmatpush2.xpose.msra.mxu0 0.0
      %2149 = vmatprep.mubr.f32.mxu0 0.0
      %2150 = vmatmul.mubr.f32.gmra.mxu0 %v2021
      %v2151 = vpop.f32.mrf.mxu0
      %v2152 = vadd.f32 0.0, %v2151
      %v2153 = vpop.f32.mrf.mxu0
      %2154 = vmatprep.mubr.f32.mxu0 0.0
      %2155 = vmatmul.mubr.f32.gmra.mxu0 %v2023
      %v2156 = vpop.f32.mrf.mxu0
      %v2157 = vadd.f32 0.0, %v2156
      %v2158 = vpop.f32.mrf.mxu0
      %2159 = vmatprep.mubr.f32.mxu0 0.0
      %2160 = vmatmul.mubr.f32.gmra.mxu0 %v2025
      %v2161 = vpop.f32.mrf.mxu0
      %v2162 = vadd.f32 0.0, %v2161
      %v2163 = vpop.f32.mrf.mxu0
      %2164 = vmatprep.mubr.f32.mxu0 0.0
      %2165 = vmatmul.mubr.f32.gmra.mxu0 %v2027
      %v2166 = vpop.f32.mrf.mxu0
      %v2167 = vadd.f32 0.0, %v2166
      %v2168 = vpop.f32.mrf.mxu0
      %2169 = vmatprep.mubr.f32.mxu0 0.0
      %2170 = vmatmul.mubr.f32.gmra.mxu0 %v2029
      %v2171 = vpop.f32.mrf.mxu0
      %v2172 = vadd.f32 0.0, %v2171
      %v2173 = vpop.f32.mrf.mxu0
      %2174 = vmatprep.mubr.f32.mxu0 0.0
      %2175 = vmatmul.mubr.f32.gmra.mxu0 %v2031
      %v2176 = vpop.f32.mrf.mxu0
      %v2177 = vadd.f32 0.0, %v2176
      %v2178 = vpop.f32.mrf.mxu0
      %2179 = vmatprep.mubr.f32.mxu0 0.0
      %2180 = vmatmul.mubr.f32.gmra.mxu0 %v2033
      %v2181 = vpop.f32.mrf.mxu0
      %v2182 = vadd.f32 0.0, %v2181
      %v2183 = vpop.f32.mrf.mxu0
      %2184 = vmatprep.mubr.f32.mxu0 0.0
      %2185 = vmatmul.mubr.f32.gmra.mxu0 %v2035
      %v2186 = vpop.f32.mrf.mxu0
      %v2187 = vadd.f32 0.0, %v2186
      %v2188 = vpop.f32.mrf.mxu0
      %2189 = vmatprep.mubr.f32.mxu0 0.0
      %2190 = vmatmul.mubr.f32.gmra.mxu0 %v2037
      %v2191 = vpop.f32.mrf.mxu0
      %v2192 = vadd.f32 0.0, %v2191
      %v2193 = vpop.f32.mrf.mxu0
      %2194 = vmatprep.mubr.f32.mxu0 0.0
      %2195 = vmatmul.mubr.f32.gmra.mxu0 %v2039
      %v2196 = vpop.f32.mrf.mxu0
      %v2197 = vadd.f32 0.0, %v2196
      %v2198 = vpop.f32.mrf.mxu0
      %2199 = vmatprep.mubr.f32.mxu0 0.0
      %2200 = vmatmul.mubr.f32.gmra.mxu0 %v2041
      %v2201 = vpop.f32.mrf.mxu0
      %v2202 = vadd.f32 0.0, %v2201
      %v2203 = vpop.f32.mrf.mxu0
      %2204 = vmatprep.mubr.f32.mxu0 0.0
      %2205 = vmatmul.mubr.f32.gmra.mxu0 %v2043
      %v2206 = vpop.f32.mrf.mxu0
      %v2207 = vadd.f32 0.0, %v2206
      %v2208 = vpop.f32.mrf.mxu0
      %2209 = vmatprep.mubr.f32.mxu0 0.0
      %2210 = vmatmul.mubr.f32.gmra.mxu0 %v2045
      %v2211 = vpop.f32.mrf.mxu0
      %v2212 = vadd.f32 0.0, %v2211
      %v2213 = vpop.f32.mrf.mxu0
      %2214 = vmatprep.mubr.f32.mxu0 0.0
      %2215 = vmatmul.mubr.f32.gmra.mxu0 %v2047
      %v2216 = vpop.f32.mrf.mxu0
      %v2217 = vadd.f32 0.0, %v2216
      %v2218 = vpop.f32.mrf.mxu0
      %2219 = vmatprep.mubr.f32.mxu0 0.0
      %2220 = vmatmul.mubr.f32.gmra.mxu0 %v2049
      %v2221 = vpop.f32.mrf.mxu0
      %v2222 = vadd.f32 0.0, %v2221
      %v2223 = vpop.f32.mrf.mxu0
      %2224 = vmatprep.mubr.f32.mxu0 0.0
      %2225 = vmatmul.mubr.f32.gmra.mxu0 %v2051
      %v2226 = vpop.f32.mrf.mxu0
      %v2227 = vadd.f32 0.0, %v2226
      %v2228 = vpop.f32.mrf.mxu0
      %2229 = vdwg.mxu0
      %v2230 = vsel %vm874, %v2152, -1e+30
      %v2231 = vsel %vm874, %v2157, -1e+30
      %v2232 = vsel %vm874, %v2162, -1e+30
      %v2233 = vsel %vm874, %v2167, -1e+30
      %v2234 = vsel %vm874, %v2172, -1e+30
      %v2235 = vsel %vm874, %v2177, -1e+30
      %v2236 = vsel %vm874, %v2182, -1e+30
      %v2237 = vsel %vm874, %v2187, -1e+30
      %v2238 = vsel %vm874, %v2192, -1e+30
      %v2239 = vsel %vm874, %v2197, -1e+30
      %v2240 = vsel %vm874, %v2202, -1e+30
      %v2241 = vsel %vm874, %v2207, -1e+30
      %v2242 = vsel %vm874, %v2212, -1e+30
      %v2243 = vsel %vm874, %v2217, -1e+30
      %v2244 = vsel %vm874, %v2222, -1e+30
      %v2245 = vsel %vm874, %v2227, -1e+30
      %2246 = vmax.xlane.f32.xlu0 %v2230
      %v2247 = vpop.xlane.xlu0 %2246
      %2248 = vmax.xlane.f32.xlu0 %v2231
      %v2249 = vpop.xlane.xlu0 %2248
      %2250 = vmax.xlane.f32.xlu0 %v2232
      %v2251 = vpop.xlane.xlu0 %2250
      %2252 = vmax.xlane.f32.xlu0 %v2233
      %v2253 = vpop.xlane.xlu0 %2252
      %2254 = vmax.xlane.f32.xlu0 %v2234
      %v2255 = vpop.xlane.xlu0 %2254
      %2256 = vmax.xlane.f32.xlu0 %v2235
      %v2257 = vpop.xlane.xlu0 %2256
      %2258 = vmax.xlane.f32.xlu0 %v2236
      %v2259 = vpop.xlane.xlu0 %2258
      %2260 = vmax.xlane.f32.xlu0 %v2237
      %v2261 = vpop.xlane.xlu0 %2260
      %2262 = vmax.xlane.f32.xlu0 %v2238
      %v2263 = vpop.xlane.xlu0 %2262
      %2264 = vmax.xlane.f32.xlu0 %v2239
      %v2265 = vpop.xlane.xlu0 %2264
      %2266 = vmax.xlane.f32.xlu0 %v2240
      %v2267 = vpop.xlane.xlu0 %2266
      %2268 = vmax.xlane.f32.xlu0 %v2241
      %v2269 = vpop.xlane.xlu0 %2268
      %2270 = vmax.xlane.f32.xlu0 %v2242
      %v2271 = vpop.xlane.xlu0 %2270
      %2272 = vmax.xlane.f32.xlu0 %v2243
      %v2273 = vpop.xlane.xlu0 %2272
      %2274 = vmax.xlane.f32.xlu0 %v2244
      %v2275 = vpop.xlane.xlu0 %2274
      %2276 = vmax.xlane.f32.xlu0 %v2245
      %v2277 = vpop.xlane.xlu0 %2276
      %v2278 = vsub.f32 %v2230, %v2247
      %v2279 = vsub.f32 %v2231, %v2249
      %v2280 = vsub.f32 %v2232, %v2251
      %v2281 = vsub.f32 %v2233, %v2253
      %v2282 = vsub.f32 %v2234, %v2255
      %v2283 = vsub.f32 %v2235, %v2257
      %v2284 = vsub.f32 %v2236, %v2259
      %v2285 = vsub.f32 %v2237, %v2261
      %v2286 = vsub.f32 %v2238, %v2263
      %v2287 = vsub.f32 %v2239, %v2265
      %v2288 = vsub.f32 %v2240, %v2267
      %v2289 = vsub.f32 %v2241, %v2269
      %v2290 = vsub.f32 %v2242, %v2271
      %v2291 = vsub.f32 %v2243, %v2273
      %v2292 = vsub.f32 %v2244, %v2275
      %v2293 = vsub.f32 %v2245, %v2277
      %v2294 = vmul.f32 %v2278, 1.442695
      %v2295 = vpow.pop %v2294
      %v2296 = vmul.f32 %v2279, 1.442695
      %v2297 = vpow.pop %v2296
      %v2298 = vmul.f32 %v2280, 1.442695
      %v2299 = vpow.pop %v2298
      %v2300 = vmul.f32 %v2281, 1.442695
      %v2301 = vpow.pop %v2300
      %v2302 = vmul.f32 %v2282, 1.442695
      %v2303 = vpow.pop %v2302
      %v2304 = vmul.f32 %v2283, 1.442695
      %v2305 = vpow.pop %v2304
      %v2306 = vmul.f32 %v2284, 1.442695
      %v2307 = vpow.pop %v2306
      %v2308 = vmul.f32 %v2285, 1.442695
      %v2309 = vpow.pop %v2308
      %v2310 = vmul.f32 %v2286, 1.442695
      %v2311 = vpow.pop %v2310
      %v2312 = vmul.f32 %v2287, 1.442695
      %v2313 = vpow.pop %v2312
      %v2314 = vmul.f32 %v2288, 1.442695
      %v2315 = vpow.pop %v2314
      %v2316 = vmul.f32 %v2289, 1.442695
      %v2317 = vpow.pop %v2316
      %v2318 = vmul.f32 %v2290, 1.442695
      %v2319 = vpow.pop %v2318
      %v2320 = vmul.f32 %v2291, 1.442695
      %v2321 = vpow.pop %v2320
      %v2322 = vmul.f32 %v2292, 1.442695
      %v2323 = vpow.pop %v2322
      %v2324 = vmul.f32 %v2293, 1.442695
      %v2325 = vpow.pop %v2324
      %2326 = vadd.xlane.f32.xlu0 %v2295
      %v2327 = vpop.xlane.xlu0 %2326
      %2328 = vadd.xlane.f32.xlu0 %v2297
      %v2329 = vpop.xlane.xlu0 %2328
      %2330 = vadd.xlane.f32.xlu0 %v2299
      %v2331 = vpop.xlane.xlu0 %2330
      %2332 = vadd.xlane.f32.xlu0 %v2301
      %v2333 = vpop.xlane.xlu0 %2332
      %2334 = vadd.xlane.f32.xlu0 %v2303
      %v2335 = vpop.xlane.xlu0 %2334
      %2336 = vadd.xlane.f32.xlu0 %v2305
      %v2337 = vpop.xlane.xlu0 %2336
      %2338 = vadd.xlane.f32.xlu0 %v2307
      %v2339 = vpop.xlane.xlu0 %2338
      %2340 = vadd.xlane.f32.xlu0 %v2309
      %v2341 = vpop.xlane.xlu0 %2340
      %2342 = vadd.xlane.f32.xlu0 %v2311
      %v2343 = vpop.xlane.xlu0 %2342
      %2344 = vadd.xlane.f32.xlu0 %v2313
      %v2345 = vpop.xlane.xlu0 %2344
      %2346 = vadd.xlane.f32.xlu0 %v2315
      %v2347 = vpop.xlane.xlu0 %2346
      %2348 = vadd.xlane.f32.xlu0 %v2317
      %v2349 = vpop.xlane.xlu0 %2348
      %2350 = vadd.xlane.f32.xlu0 %v2319
      %v2351 = vpop.xlane.xlu0 %2350
      %2352 = vadd.xlane.f32.xlu0 %v2321
      %v2353 = vpop.xlane.xlu0 %2352
      %2354 = vadd.xlane.f32.xlu0 %v2323
      %v2355 = vpop.xlane.xlu0 %2354
      %2356 = vadd.xlane.f32.xlu0 %v2325
      %v2357 = vpop.xlane.xlu0 %2356
      %v2358 = vrcp.pop %v2327
      %v2359 = vrcp.pop %v2329
      %v2360 = vrcp.pop %v2331
      %v2361 = vrcp.pop %v2333
      %v2362 = vrcp.pop %v2335
      %v2363 = vrcp.pop %v2337
      %v2364 = vrcp.pop %v2339
      %v2365 = vrcp.pop %v2341
      %v2366 = vrcp.pop %v2343
      %v2367 = vrcp.pop %v2345
      %v2368 = vrcp.pop %v2347
      %v2369 = vrcp.pop %v2349
      %v2370 = vrcp.pop %v2351
      %v2371 = vrcp.pop %v2353
      %v2372 = vrcp.pop %v2355
      %v2373 = vrcp.pop %v2357
      %v2374 = vmul.f32 %v2295, %v2358
      %v2375 = vmul.f32 %v2297, %v2359
      %v2376 = vmul.f32 %v2299, %v2360
      %v2377 = vmul.f32 %v2301, %v2361
      %v2378 = vmul.f32 %v2303, %v2362
      %v2379 = vmul.f32 %v2305, %v2363
      %v2380 = vmul.f32 %v2307, %v2364
      %v2381 = vmul.f32 %v2309, %v2365
      %v2382 = vmul.f32 %v2311, %v2366
      %v2383 = vmul.f32 %v2313, %v2367
      %v2384 = vmul.f32 %v2315, %v2368
      %v2385 = vmul.f32 %v2317, %v2369
      %v2386 = vmul.f32 %v2319, %v2370
      %v2387 = vmul.f32 %v2321, %v2371
      %v2388 = vmul.f32 %v2323, %v2372
      %v2389 = vmul.f32 %v2325, %v2373
      %2406 = vrot.lane.b32.xlu0 %v1925, 120
      %v2407 = vpop.permute.xlu0 %2406
      %2408 = vrot.lane.b32.xlu0 %v1926, 120
      %v2409 = vpop.permute.xlu0 %2408
      %2410 = vrot.lane.b32.xlu0 %v1927, 120
      %v2411 = vpop.permute.xlu0 %2410
      %2412 = vrot.lane.b32.xlu0 %v1928, 120
      %v2413 = vpop.permute.xlu0 %2412
      %2414 = vrot.lane.b32.xlu0 %v1929, 120
      %v2415 = vpop.permute.xlu0 %2414
      %2416 = vrot.lane.b32.xlu0 %v1930, 120
      %v2417 = vpop.permute.xlu0 %2416
      %2418 = vrot.lane.b32.xlu0 %v1931, 120
      %v2419 = vpop.permute.xlu0 %2418
      %2420 = vrot.lane.b32.xlu0 %v1932, 120
      %v2421 = vpop.permute.xlu0 %2420
      %2422 = vrot.lane.b32.xlu0 %v1933, 120
      %v2423 = vpop.permute.xlu0 %2422
      %2424 = vrot.lane.b32.xlu0 %v1934, 120
      %v2425 = vpop.permute.xlu0 %2424
      %2426 = vrot.lane.b32.xlu0 %v1935, 120
      %v2427 = vpop.permute.xlu0 %2426
      %2428 = vrot.lane.b32.xlu0 %v1936, 120
      %v2429 = vpop.permute.xlu0 %2428
      %2430 = vrot.lane.b32.xlu0 %v1937, 120
      %v2431 = vpop.permute.xlu0 %2430
      %2432 = vrot.lane.b32.xlu0 %v1938, 120
      %v2433 = vpop.permute.xlu0 %2432
      %2434 = vrot.lane.b32.xlu0 %v1939, 120
      %v2435 = vpop.permute.xlu0 %2434
      %2436 = vrot.lane.b32.xlu0 %v1940, 120
      %v2437 = vpop.permute.xlu0 %2436
      %2454 = vmatprep.subr.mxu0 0.0
      %2455 = vmatpush1.msra.mxu0 %v2437
      %2456 = vmatprep.subr.mxu0 0.0
      %2457 = vmatpush1.msra.mxu0 %v2435
      %2458 = vmatprep.subr.mxu0 0.0
      %2459 = vmatpush1.msra.mxu0 %v2433
      %2460 = vmatprep.subr.mxu0 0.0
      %2461 = vmatpush1.msra.mxu0 %v2431
      %2462 = vmatprep.subr.mxu0 0.0
      %2463 = vmatpush1.msra.mxu0 %v2429
      %2464 = vmatprep.subr.mxu0 0.0
      %2465 = vmatpush1.msra.mxu0 %v2427
      %2466 = vmatprep.subr.mxu0 0.0
      %2467 = vmatpush1.msra.mxu0 %v2425
      %2468 = vmatprep.subr.mxu0 0.0
      %2469 = vmatpush1.msra.mxu0 %v2423
      %2470 = vmatprep.subr.mxu0 0.0
      %2471 = vmatpush1.msra.mxu0 %v2421
      %2472 = vmatprep.subr.mxu0 0.0
      %2473 = vmatpush1.msra.mxu0 %v2419
      %2474 = vmatprep.subr.mxu0 0.0
      %2475 = vmatpush1.msra.mxu0 %v2417
      %2476 = vmatprep.subr.mxu0 0.0
      %2477 = vmatpush1.msra.mxu0 %v2415
      %2478 = vmatprep.subr.mxu0 0.0
      %2479 = vmatpush1.msra.mxu0 %v2413
      %2480 = vmatprep.subr.mxu0 0.0
      %2481 = vmatpush1.msra.mxu0 %v2411
      %2482 = vmatprep.subr.mxu0 0.0
      %2483 = vmatpush1.msra.mxu0 %v2409
      %2484 = vmatprep.subr.mxu0 0.0
      %2485 = vmatpush1.msra.mxu0 %v2407
      %2486 = vmatprep.subr.mxu0 0.0
      %2487 = vmatpush2.msra.mxu0 0.0
      %2488 = vmatprep.subr.mxu0 0.0
      %2489 = vmatpush2.msra.mxu0 0.0
      %2490 = vmatprep.subr.mxu0 0.0
      %2491 = vmatpush2.msra.mxu0 0.0
      %2492 = vmatprep.subr.mxu0 0.0
      %2493 = vmatpush2.msra.mxu0 0.0
      %2494 = vmatprep.subr.mxu0 0.0
      %2495 = vmatpush2.msra.mxu0 0.0
      %2496 = vmatprep.subr.mxu0 0.0
      %2497 = vmatpush2.msra.mxu0 0.0
      %2498 = vmatprep.subr.mxu0 0.0
      %2499 = vmatpush2.msra.mxu0 0.0
      %2500 = vmatprep.subr.mxu0 0.0
      %2501 = vmatpush2.msra.mxu0 0.0
      %2502 = vmatprep.subr.mxu0 0.0
      %2503 = vmatpush2.msra.mxu0 0.0
      %2504 = vmatprep.subr.mxu0 0.0
      %2505 = vmatpush2.msra.mxu0 0.0
      %2506 = vmatprep.subr.mxu0 0.0
      %2507 = vmatpush2.msra.mxu0 0.0
      %2508 = vmatprep.subr.mxu0 0.0
      %2509 = vmatpush2.msra.mxu0 0.0
      %2510 = vmatprep.subr.mxu0 0.0
      %2511 = vmatpush2.msra.mxu0 0.0
      %2512 = vmatprep.subr.mxu0 0.0
      %2513 = vmatpush2.msra.mxu0 0.0
      %2514 = vmatprep.subr.mxu0 0.0
      %2515 = vmatpush2.msra.mxu0 0.0
      %2516 = vmatprep.subr.mxu0 0.0
      %2517 = vmatpush2.msra.mxu0 0.0
      %2518 = vmatprep.mubr.f32.mxu0 0.0
      %2519 = vmatmul.mubr.f32.gmra.mxu0 %v2374
      %v2520 = vpop.f32.mrf.mxu0
      %v2521 = vadd.f32 0.0, %v2520
      %v2522 = vpop.f32.mrf.mxu0
      %2523 = vmatprep.mubr.f32.mxu0 0.0
      %2524 = vmatmul.mubr.f32.gmra.mxu0 %v2375
      %v2525 = vpop.f32.mrf.mxu0
      %v2526 = vadd.f32 0.0, %v2525
      %v2527 = vpop.f32.mrf.mxu0
      %2528 = vmatprep.mubr.f32.mxu0 0.0
      %2529 = vmatmul.mubr.f32.gmra.mxu0 %v2376
      %v2530 = vpop.f32.mrf.mxu0
      %v2531 = vadd.f32 0.0, %v2530
      %v2532 = vpop.f32.mrf.mxu0
      %2533 = vmatprep.mubr.f32.mxu0 0.0
      %2534 = vmatmul.mubr.f32.gmra.mxu0 %v2377
      %v2535 = vpop.f32.mrf.mxu0
      %v2536 = vadd.f32 0.0, %v2535
      %v2537 = vpop.f32.mrf.mxu0
      %2538 = vmatprep.mubr.f32.mxu0 0.0
      %2539 = vmatmul.mubr.f32.gmra.mxu0 %v2378
      %v2540 = vpop.f32.mrf.mxu0
      %v2541 = vadd.f32 0.0, %v2540
      %v2542 = vpop.f32.mrf.mxu0
      %2543 = vmatprep.mubr.f32.mxu0 0.0
      %2544 = vmatmul.mubr.f32.gmra.mxu0 %v2379
      %v2545 = vpop.f32.mrf.mxu0
      %v2546 = vadd.f32 0.0, %v2545
      %v2547 = vpop.f32.mrf.mxu0
      %2548 = vmatprep.mubr.f32.mxu0 0.0
      %2549 = vmatmul.mubr.f32.gmra.mxu0 %v2380
      %v2550 = vpop.f32.mrf.mxu0
      %v2551 = vadd.f32 0.0, %v2550
      %v2552 = vpop.f32.mrf.mxu0
      %2553 = vmatprep.mubr.f32.mxu0 0.0
      %2554 = vmatmul.mubr.f32.gmra.mxu0 %v2381
      %v2555 = vpop.f32.mrf.mxu0
      %v2556 = vadd.f32 0.0, %v2555
      %v2557 = vpop.f32.mrf.mxu0
      %2558 = vmatprep.mubr.f32.mxu0 0.0
      %2559 = vmatmul.mubr.f32.gmra.mxu0 %v2382
      %v2560 = vpop.f32.mrf.mxu0
      %v2561 = vadd.f32 0.0, %v2560
      %v2562 = vpop.f32.mrf.mxu0
      %2563 = vmatprep.mubr.f32.mxu0 0.0
      %2564 = vmatmul.mubr.f32.gmra.mxu0 %v2383
      %v2565 = vpop.f32.mrf.mxu0
      %v2566 = vadd.f32 0.0, %v2565
      %v2567 = vpop.f32.mrf.mxu0
      %2568 = vmatprep.mubr.f32.mxu0 0.0
      %2569 = vmatmul.mubr.f32.gmra.mxu0 %v2384
      %v2570 = vpop.f32.mrf.mxu0
      %v2571 = vadd.f32 0.0, %v2570
      %v2572 = vpop.f32.mrf.mxu0
      %2573 = vmatprep.mubr.f32.mxu0 0.0
      %2574 = vmatmul.mubr.f32.gmra.mxu0 %v2385
      %v2575 = vpop.f32.mrf.mxu0
      %v2576 = vadd.f32 0.0, %v2575
      %v2577 = vpop.f32.mrf.mxu0
      %2578 = vmatprep.mubr.f32.mxu0 0.0
      %2579 = vmatmul.mubr.f32.gmra.mxu0 %v2386
      %v2580 = vpop.f32.mrf.mxu0
      %v2581 = vadd.f32 0.0, %v2580
      %v2582 = vpop.f32.mrf.mxu0
      %2583 = vmatprep.mubr.f32.mxu0 0.0
      %2584 = vmatmul.mubr.f32.gmra.mxu0 %v2387
      %v2585 = vpop.f32.mrf.mxu0
      %v2586 = vadd.f32 0.0, %v2585
      %v2587 = vpop.f32.mrf.mxu0
      %2588 = vmatprep.mubr.f32.mxu0 0.0
      %2589 = vmatmul.mubr.f32.gmra.mxu0 %v2388
      %v2590 = vpop.f32.mrf.mxu0
      %v2591 = vadd.f32 0.0, %v2590
      %v2592 = vpop.f32.mrf.mxu0
      %2593 = vmatprep.mubr.f32.mxu0 0.0
      %2594 = vmatmul.mubr.f32.gmra.mxu0 %v2389
      %v2595 = vpop.f32.mrf.mxu0
      %v2596 = vadd.f32 0.0, %v2595
      %v2597 = vpop.f32.mrf.mxu0
      %2598 = vdwg.mxu0
      %v2599 = vld [vmem:[#allocation4] sm:$0xff]
      %v2600 = vld [vmem:[#allocation4 + $0x8] sm:$0xff]
      %v2601 = vld [vmem:[#allocation4 + $0x10] sm:$0xff]
      %v2602 = vld [vmem:[#allocation4 + $0x18] sm:$0xff]
      %v2603 = vld [vmem:[#allocation4 + $0x20] sm:$0xff]
      %v2604 = vld [vmem:[#allocation4 + $0x28] sm:$0xff]
      %v2605 = vld [vmem:[#allocation4 + $0x30] sm:$0xff]
      %v2606 = vld [vmem:[#allocation4 + $0x38] sm:$0xff]
      %v2607 = vld [vmem:[#allocation4 + $0x40] sm:$0xff]
      %v2608 = vld [vmem:[#allocation4 + $0x48] sm:$0xff]
      %v2609 = vld [vmem:[#allocation4 + $0x50] sm:$0xff]
      %v2610 = vld [vmem:[#allocation4 + $0x58] sm:$0xff]
      %v2611 = vld [vmem:[#allocation4 + $0x60] sm:$0xff]
      %v2612 = vld [vmem:[#allocation4 + $0x68] sm:$0xff]
      %v2613 = vld [vmem:[#allocation4 + $0x70] sm:$0xff]
      %v2614 = vld [vmem:[#allocation4 + $0x78] sm:$0xff]
      %v2615 = vld [vmem:[%s6 + $0x8] sm:$0xff]
      %v2617 = vsel %vm1120, %v2521, 0
      %v2620 = vsel %vm1120, %v2526, 0
      %v2623 = vsel %vm1120, %v2531, 0
      %v2626 = vsel %vm1120, %v2536, 0
      %v2629 = vsel %vm1120, %v2541, 0
      %v2632 = vsel %vm1120, %v2546, 0
      %v2635 = vsel %vm1120, %v2551, 0
      %v2638 = vsel %vm1120, %v2556, 0
      %v2641 = vsel %vm1120, %v2561, 0
      %v2644 = vsel %vm1120, %v2566, 0
      %v2647 = vsel %vm1120, %v2571, 0
      %v2650 = vsel %vm1120, %v2576, 0
      %v2653 = vsel %vm1120, %v2581, 0
      %v2656 = vsel %vm1120, %v2586, 0
      %v2659 = vsel %vm1120, %v2591, 0
      %v2662 = vsel %vm1120, %v2596, 0
      %2664 = vmatprep.subr.mxu0 0.0
      %2665 = vmatpush1.msra.mxu0 0.0
      %2666 = vmatprep.subr.mxu0 0.0
      %2667 = vmatpush1.msra.mxu0 0.0
      %2668 = vmatprep.subr.mxu0 0.0
      %2669 = vmatpush1.msra.mxu0 0.0
      %2670 = vmatprep.subr.mxu0 0.0
      %2671 = vmatpush1.msra.mxu0 0.0
      %2672 = vmatprep.subr.mxu0 0.0
      %2673 = vmatpush1.msra.mxu0 0.0
      %2674 = vmatprep.subr.mxu0 0.0
      %2675 = vmatpush1.msra.mxu0 0.0
      %2676 = vmatprep.subr.mxu0 0.0
      %2677 = vmatpush1.msra.mxu0 0.0
      %2678 = vmatprep.subr.mxu0 0.0
      %2679 = vmatpush1.msra.mxu0 0.0
      %2680 = vmatprep.subr.mxu0 0.0
      %2681 = vmatpush1.msra.mxu0 0.0
      %2682 = vmatprep.subr.mxu0 0.0
      %2683 = vmatpush1.msra.mxu0 0.0
      %2684 = vmatprep.subr.mxu0 0.0
      %2685 = vmatpush1.msra.mxu0 0.0
      %2686 = vmatprep.subr.mxu0 0.0
      %2687 = vmatpush1.msra.mxu0 0.0
      %2688 = vmatprep.subr.mxu0 0.0
      %2689 = vmatpush1.msra.mxu0 0.0
      %2690 = vmatprep.subr.mxu0 0.0
      %2691 = vmatpush1.msra.mxu0 0.0
      %2692 = vmatprep.subr.mxu0 0.0
      %2693 = vmatpush1.msra.mxu0 0.0
      %2694 = vmatprep.subr.mxu0 0.0
      %2695 = vmatpush1.msra.mxu0 %v2615
      %2696 = vmatprep.subr.mxu0 0.0
      %2697 = vmatpush2.msra.mxu0 0.0
      %2698 = vmatprep.subr.mxu0 0.0
      %2699 = vmatpush2.msra.mxu0 0.0
      %2700 = vmatprep.subr.mxu0 0.0
      %2701 = vmatpush2.msra.mxu0 0.0
      %2702 = vmatprep.subr.mxu0 0.0
      %2703 = vmatpush2.msra.mxu0 0.0
      %2704 = vmatprep.subr.mxu0 0.0
      %2705 = vmatpush2.msra.mxu0 0.0
      %2706 = vmatprep.subr.mxu0 0.0
      %2707 = vmatpush2.msra.mxu0 0.0
      %2708 = vmatprep.subr.mxu0 0.0
      %2709 = vmatpush2.msra.mxu0 0.0
      %2710 = vmatprep.subr.mxu0 0.0
      %2711 = vmatpush2.msra.mxu0 0.0
      %2712 = vmatprep.subr.mxu0 0.0
      %2713 = vmatpush2.msra.mxu0 0.0
      %2714 = vmatprep.subr.mxu0 0.0
      %2715 = vmatpush2.msra.mxu0 0.0
      %2716 = vmatprep.subr.mxu0 0.0
      %2717 = vmatpush2.msra.mxu0 0.0
      %2718 = vmatprep.subr.mxu0 0.0
      %2719 = vmatpush2.msra.mxu0 0.0
      %2720 = vmatprep.subr.mxu0 0.0
      %2721 = vmatpush2.msra.mxu0 0.0
      %2722 = vmatprep.subr.mxu0 0.0
      %2723 = vmatpush2.msra.mxu0 0.0
      %2724 = vmatprep.subr.mxu0 0.0
      %2725 = vmatpush2.msra.mxu0 0.0
      %2726 = vmatprep.subr.mxu0 0.0
      %2727 = vmatpush2.msra.mxu0 0.0
      %2728 = vmatprep.mubr.f32.mxu0 0.0
      %2729 = vmatmul.mubr.f32.gmra.mxu0 %v2617
      %v2730 = vpop.f32.mrf.mxu0
      %v2731 = vadd.f32 0.0, %v2730
      %v2732 = vpop.f32.mrf.mxu0
      %2733 = vmatprep.mubr.f32.mxu0 0.0
      %2734 = vmatmul.mubr.f32.gmra.mxu0 %v2620
      %v2735 = vpop.f32.mrf.mxu0
      %v2736 = vadd.f32 0.0, %v2735
      %v2737 = vpop.f32.mrf.mxu0
      %2738 = vmatprep.mubr.f32.mxu0 0.0
      %2739 = vmatmul.mubr.f32.gmra.mxu0 %v2623
      %v2740 = vpop.f32.mrf.mxu0
      %v2741 = vadd.f32 0.0, %v2740
      %v2742 = vpop.f32.mrf.mxu0
      %2743 = vmatprep.mubr.f32.mxu0 0.0
      %2744 = vmatmul.mubr.f32.gmra.mxu0 %v2626
      %v2745 = vpop.f32.mrf.mxu0
      %v2746 = vadd.f32 0.0, %v2745
      %v2747 = vpop.f32.mrf.mxu0
      %2748 = vmatprep.mubr.f32.mxu0 0.0
      %2749 = vmatmul.mubr.f32.gmra.mxu0 %v2629
      %v2750 = vpop.f32.mrf.mxu0
      %v2751 = vadd.f32 0.0, %v2750
      %v2752 = vpop.f32.mrf.mxu0
      %2753 = vmatprep.mubr.f32.mxu0 0.0
      %2754 = vmatmul.mubr.f32.gmra.mxu0 %v2632
      %v2755 = vpop.f32.mrf.mxu0
      %v2756 = vadd.f32 0.0, %v2755
      %v2757 = vpop.f32.mrf.mxu0
      %2758 = vmatprep.mubr.f32.mxu0 0.0
      %2759 = vmatmul.mubr.f32.gmra.mxu0 %v2635
      %v2760 = vpop.f32.mrf.mxu0
      %v2761 = vadd.f32 0.0, %v2760
      %v2762 = vpop.f32.mrf.mxu0
      %2763 = vmatprep.mubr.f32.mxu0 0.0
      %2764 = vmatmul.mubr.f32.gmra.mxu0 %v2638
      %v2765 = vpop.f32.mrf.mxu0
      %v2766 = vadd.f32 0.0, %v2765
      %v2767 = vpop.f32.mrf.mxu0
      %2768 = vmatprep.mubr.f32.mxu0 0.0
      %2769 = vmatmul.mubr.f32.gmra.mxu0 %v2641
      %v2770 = vpop.f32.mrf.mxu0
      %v2771 = vadd.f32 0.0, %v2770
      %v2772 = vpop.f32.mrf.mxu0
      %2773 = vmatprep.mubr.f32.mxu0 0.0
      %2774 = vmatmul.mubr.f32.gmra.mxu0 %v2644
      %v2775 = vpop.f32.mrf.mxu0
      %v2776 = vadd.f32 0.0, %v2775
      %v2777 = vpop.f32.mrf.mxu0
      %2778 = vmatprep.mubr.f32.mxu0 0.0
      %2779 = vmatmul.mubr.f32.gmra.mxu0 %v2647
      %v2780 = vpop.f32.mrf.mxu0
      %v2781 = vadd.f32 0.0, %v2780
      %v2782 = vpop.f32.mrf.mxu0
      %2783 = vmatprep.mubr.f32.mxu0 0.0
      %2784 = vmatmul.mubr.f32.gmra.mxu0 %v2650
      %v2785 = vpop.f32.mrf.mxu0
      %v2786 = vadd.f32 0.0, %v2785
      %v2787 = vpop.f32.mrf.mxu0
      %2788 = vmatprep.mubr.f32.mxu0 0.0
      %2789 = vmatmul.mubr.f32.gmra.mxu0 %v2653
      %v2790 = vpop.f32.mrf.mxu0
      %v2791 = vadd.f32 0.0, %v2790
      %v2792 = vpop.f32.mrf.mxu0
      %2793 = vmatprep.mubr.f32.mxu0 0.0
      %2794 = vmatmul.mubr.f32.gmra.mxu0 %v2656
      %v2795 = vpop.f32.mrf.mxu0
      %v2796 = vadd.f32 0.0, %v2795
      %v2797 = vpop.f32.mrf.mxu0
      %2798 = vmatprep.mubr.f32.mxu0 0.0
      %2799 = vmatmul.mubr.f32.gmra.mxu0 %v2659
      %v2800 = vpop.f32.mrf.mxu0
      %v2801 = vadd.f32 0.0, %v2800
      %v2802 = vpop.f32.mrf.mxu0
      %2803 = vmatprep.mubr.f32.mxu0 0.0
      %2804 = vmatmul.mubr.f32.gmra.mxu0 %v2662
      %v2805 = vpop.f32.mrf.mxu0
      %v2806 = vadd.f32 0.0, %v2805
      %v2807 = vpop.f32.mrf.mxu0
      %2808 = vdwg.mxu0
      %v2809 = vadd.f32 %v2599, %v2731
      %v2810 = vadd.f32 %v2600, %v2736
      %v2811 = vadd.f32 %v2601, %v2741
      %v2812 = vadd.f32 %v2602, %v2746
      %v2813 = vadd.f32 %v2603, %v2751
      %v2814 = vadd.f32 %v2604, %v2756
      %v2815 = vadd.f32 %v2605, %v2761
      %v2816 = vadd.f32 %v2606, %v2766
      %v2817 = vadd.f32 %v2607, %v2771
      %v2818 = vadd.f32 %v2608, %v2776
      %v2819 = vadd.f32 %v2609, %v2781
      %v2820 = vadd.f32 %v2610, %v2786
      %v2821 = vadd.f32 %v2611, %v2791
      %v2822 = vadd.f32 %v2612, %v2796
      %v2823 = vadd.f32 %v2613, %v2801
      %v2824 = vadd.f32 %v2614, %v2806
      %2825 = vst.msk [vmem:[#allocation4] sm:$0xff] %vm855, %v2809
      %2826 = vst.msk [vmem:[#allocation4 + $0x8] sm:$0xff] %vm855, %v2810
      %2827 = vst.msk [vmem:[#allocation4 + $0x10] sm:$0xff] %vm855, %v2811
      %2828 = vst.msk [vmem:[#allocation4 + $0x18] sm:$0xff] %vm855, %v2812
      %2829 = vst.msk [vmem:[#allocation4 + $0x20] sm:$0xff] %vm855, %v2813
      %2830 = vst.msk [vmem:[#allocation4 + $0x28] sm:$0xff] %vm855, %v2814
      %2831 = vst.msk [vmem:[#allocation4 + $0x30] sm:$0xff] %vm855, %v2815
      %2832 = vst.msk [vmem:[#allocation4 + $0x38] sm:$0xff] %vm855, %v2816
      %2833 = vst.msk [vmem:[#allocation4 + $0x40] sm:$0xff] %vm855, %v2817
      %2834 = vst.msk [vmem:[#allocation4 + $0x48] sm:$0xff] %vm855, %v2818
      %2835 = vst.msk [vmem:[#allocation4 + $0x50] sm:$0xff] %vm855, %v2819
      %2836 = vst.msk [vmem:[#allocation4 + $0x58] sm:$0xff] %vm855, %v2820
      %2837 = vst.msk [vmem:[#allocation4 + $0x60] sm:$0xff] %vm855, %v2821
      %2838 = vst.msk [vmem:[#allocation4 + $0x68] sm:$0xff] %vm855, %v2822
      %2839 = vst.msk [vmem:[#allocation4 + $0x70] sm:$0xff] %vm855, %v2823
      %2840 = vst.msk [vmem:[#allocation4 + $0x78] sm:$0xff] %vm855, %v2824
      %v2841 = vld [vmem:[#allocation2] sm:$0xff]
      %v2842 = vld [vmem:[#allocation2 + $0x8] sm:$0xff]
      %v2843 = vld [vmem:[#allocation2 + $0x10] sm:$0xff]
      %v2844 = vld [vmem:[#allocation2 + $0x18] sm:$0xff]
      %v2845 = vld [vmem:[#allocation2 + $0x20] sm:$0xff]
      %v2846 = vld [vmem:[#allocation2 + $0x28] sm:$0xff]
      %v2847 = vld [vmem:[#allocation2 + $0x30] sm:$0xff]
      %v2848 = vld [vmem:[#allocation2 + $0x38] sm:$0xff]
      %v2849 = vld [vmem:[#allocation2 + $0x40] sm:$0xff]
      %v2850 = vld [vmem:[#allocation2 + $0x48] sm:$0xff]
      %v2851 = vld [vmem:[#allocation2 + $0x50] sm:$0xff]
      %v2852 = vld [vmem:[#allocation2 + $0x58] sm:$0xff]
      %v2853 = vld [vmem:[#allocation2 + $0x60] sm:$0xff]
      %v2854 = vld [vmem:[#allocation2 + $0x68] sm:$0xff]
      %v2855 = vld [vmem:[#allocation2 + $0x70] sm:$0xff]
      %v2856 = vld [vmem:[#allocation2 + $0x78] sm:$0xff]
      %v2857 = vld [vmem:[#allocation3] sm:$0xff]
      %v2858 = vld [vmem:[#allocation3 + $0x8] sm:$0xff]
      %v2859 = vld [vmem:[#allocation3 + $0x10] sm:$0xff]
      %v2860 = vld [vmem:[#allocation3 + $0x18] sm:$0xff]
      %v2861 = vld [vmem:[#allocation3 + $0x20] sm:$0xff]
      %v2862 = vld [vmem:[#allocation3 + $0x28] sm:$0xff]
      %v2863 = vld [vmem:[#allocation3 + $0x30] sm:$0xff]
      %v2864 = vld [vmem:[#allocation3 + $0x38] sm:$0xff]
      %v2865 = vld [vmem:[#allocation3 + $0x40] sm:$0xff]
      %v2866 = vld [vmem:[#allocation3 + $0x48] sm:$0xff]
      %v2867 = vld [vmem:[#allocation3 + $0x50] sm:$0xff]
      %v2868 = vld [vmem:[#allocation3 + $0x58] sm:$0xff]
      %v2869 = vld [vmem:[#allocation3 + $0x60] sm:$0xff]
      %v2870 = vld [vmem:[#allocation3 + $0x68] sm:$0xff]
      %v2871 = vld [vmem:[#allocation3 + $0x70] sm:$0xff]
      %v2872 = vld [vmem:[#allocation3 + $0x78] sm:$0xff]
      %2873 = vrot.lane.b32.xlu0 %v1010, 112
      %v2874 = vpop.permute.xlu0 %2873
      %2875 = vrot.lane.b32.xlu0 %v1015, 112
      %v2876 = vpop.permute.xlu0 %2875
      %2877 = vrot.lane.b32.xlu0 %v1020, 112
      %v2878 = vpop.permute.xlu0 %2877
      %2879 = vrot.lane.b32.xlu0 %v1025, 112
      %v2880 = vpop.permute.xlu0 %2879
      %2881 = vrot.lane.b32.xlu0 %v1030, 112
      %v2882 = vpop.permute.xlu0 %2881
      %2883 = vrot.lane.b32.xlu0 %v1035, 112
      %v2884 = vpop.permute.xlu0 %2883
      %2885 = vrot.lane.b32.xlu0 %v1040, 112
      %v2886 = vpop.permute.xlu0 %2885
      %2887 = vrot.lane.b32.xlu0 %v1045, 112
      %v2888 = vpop.permute.xlu0 %2887
      %2889 = vrot.lane.b32.xlu0 %v1050, 112
      %v2890 = vpop.permute.xlu0 %2889
      %2891 = vrot.lane.b32.xlu0 %v1055, 112
      %v2892 = vpop.permute.xlu0 %2891
      %2893 = vrot.lane.b32.xlu0 %v1060, 112
      %v2894 = vpop.permute.xlu0 %2893
      %2895 = vrot.lane.b32.xlu0 %v1065, 112
      %v2896 = vpop.permute.xlu0 %2895
      %2897 = vrot.lane.b32.xlu0 %v1070, 112
      %v2898 = vpop.permute.xlu0 %2897
      %2899 = vrot.lane.b32.xlu0 %v1075, 112
      %v2900 = vpop.permute.xlu0 %2899
      %2901 = vrot.lane.b32.xlu0 %v1080, 112
      %v2902 = vpop.permute.xlu0 %2901
      %2903 = vrot.lane.b32.xlu0 %v1085, 112
      %v2904 = vpop.permute.xlu0 %2903
      %2921 = vrot.lane.b32.xlu0 %v2841, 112
      %v2922 = vpop.permute.xlu0 %2921
      %2923 = vrot.lane.b32.xlu0 %v2842, 112
      %v2924 = vpop.permute.xlu0 %2923
      %2925 = vrot.lane.b32.xlu0 %v2843, 112
      %v2926 = vpop.permute.xlu0 %2925
      %2927 = vrot.lane.b32.xlu0 %v2844, 112
      %v2928 = vpop.permute.xlu0 %2927
      %2929 = vrot.lane.b32.xlu0 %v2845, 112
      %v2930 = vpop.permute.xlu0 %2929
      %2931 = vrot.lane.b32.xlu0 %v2846, 112
      %v2932 = vpop.permute.xlu0 %2931
      %2933 = vrot.lane.b32.xlu0 %v2847, 112
      %v2934 = vpop.permute.xlu0 %2933
      %2935 = vrot.lane.b32.xlu0 %v2848, 112
      %v2936 = vpop.permute.xlu0 %2935
      %2937 = vrot.lane.b32.xlu0 %v2849, 112
      %v2938 = vpop.permute.xlu0 %2937
      %2939 = vrot.lane.b32.xlu0 %v2850, 112
      %v2940 = vpop.permute.xlu0 %2939
      %2941 = vrot.lane.b32.xlu0 %v2851, 112
      %v2942 = vpop.permute.xlu0 %2941
      %2943 = vrot.lane.b32.xlu0 %v2852, 112
      %v2944 = vpop.permute.xlu0 %2943
      %2945 = vrot.lane.b32.xlu0 %v2853, 112
      %v2946 = vpop.permute.xlu0 %2945
      %2947 = vrot.lane.b32.xlu0 %v2854, 112
      %v2948 = vpop.permute.xlu0 %2947
      %2949 = vrot.lane.b32.xlu0 %v2855, 112
      %v2950 = vpop.permute.xlu0 %2949
      %2951 = vrot.lane.b32.xlu0 %v2856, 112
      %v2952 = vpop.permute.xlu0 %2951
      %v2953 = vsel %vm1120, %v2874, 0
      %v2955 = vsel %vm1120, %v2876, 0
      %v2957 = vsel %vm1120, %v2878, 0
      %v2959 = vsel %vm1120, %v2880, 0
      %v2961 = vsel %vm1120, %v2882, 0
      %v2963 = vsel %vm1120, %v2884, 0
      %v2965 = vsel %vm1120, %v2886, 0
      %v2967 = vsel %vm1120, %v2888, 0
      %v2969 = vsel %vm1120, %v2890, 0
      %v2971 = vsel %vm1120, %v2892, 0
      %v2973 = vsel %vm1120, %v2894, 0
      %v2975 = vsel %vm1120, %v2896, 0
      %v2977 = vsel %vm1120, %v2898, 0
      %v2979 = vsel %vm1120, %v2900, 0
      %v2981 = vsel %vm1120, %v2902, 0
      %v2983 = vsel %vm1120, %v2904, 0
      %v2985 = vsel %vm1120, %v2922, 0
      %v2987 = vsel %vm1120, %v2924, 0
      %v2989 = vsel %vm1120, %v2926, 0
      %v2991 = vsel %vm1120, %v2928, 0
      %v2993 = vsel %vm1120, %v2930, 0
      %v2995 = vsel %vm1120, %v2932, 0
      %v2997 = vsel %vm1120, %v2934, 0
      %v2999 = vsel %vm1120, %v2936, 0
      %v3001 = vsel %vm1120, %v2938, 0
      %v3003 = vsel %vm1120, %v2940, 0
      %v3005 = vsel %vm1120, %v2942, 0
      %v3007 = vsel %vm1120, %v2944, 0
      %v3009 = vsel %vm1120, %v2946, 0
      %v3011 = vsel %vm1120, %v2948, 0
      %v3013 = vsel %vm1120, %v2950, 0
      %v3015 = vsel %vm1120, %v2952, 0
      %3017 = vmatprep.subr.mxu0 0.0
      %3018 = vmatpush1.xpose.msra.mxu0 %v3015
      %3019 = vmatprep.subr.mxu0 0.0
      %3020 = vmatpush1.xpose.msra.mxu0 %v3013
      %3021 = vmatprep.subr.mxu0 0.0
      %3022 = vmatpush1.xpose.msra.mxu0 %v3011
      %3023 = vmatprep.subr.mxu0 0.0
      %3024 = vmatpush1.xpose.msra.mxu0 %v3009
      %3025 = vmatprep.subr.mxu0 0.0
      %3026 = vmatpush1.xpose.msra.mxu0 %v3007
      %3027 = vmatprep.subr.mxu0 0.0
      %3028 = vmatpush1.xpose.msra.mxu0 %v3005
      %3029 = vmatprep.subr.mxu0 0.0
      %3030 = vmatpush1.xpose.msra.mxu0 %v3003
      %3031 = vmatprep.subr.mxu0 0.0
      %3032 = vmatpush1.xpose.msra.mxu0 %v3001
      %3033 = vmatprep.subr.mxu0 0.0
      %3034 = vmatpush1.xpose.msra.mxu0 %v2999
      %3035 = vmatprep.subr.mxu0 0.0
      %3036 = vmatpush1.xpose.msra.mxu0 %v2997
      %3037 = vmatprep.subr.mxu0 0.0
      %3038 = vmatpush1.xpose.msra.mxu0 %v2995
      %3039 = vmatprep.subr.mxu0 0.0
      %3040 = vmatpush1.xpose.msra.mxu0 %v2993
      %3041 = vmatprep.subr.mxu0 0.0
      %3042 = vmatpush1.xpose.msra.mxu0 %v2991
      %3043 = vmatprep.subr.mxu0 0.0
      %3044 = vmatpush1.xpose.msra.mxu0 %v2989
      %3045 = vmatprep.subr.mxu0 0.0
      %3046 = vmatpush1.xpose.msra.mxu0 %v2987
      %3047 = vmatprep.subr.mxu0 0.0
      %3048 = vmatpush1.xpose.msra.mxu0 %v2985
      %3049 = vmatprep.subr.mxu0 0.0
      %3050 = vmatpush2.xpose.msra.mxu0 0.0
      %3051 = vmatprep.subr.mxu0 0.0
      %3052 = vmatpush2.xpose.msra.mxu0 0.0
      %3053 = vmatprep.subr.mxu0 0.0
      %3054 = vmatpush2.xpose.msra.mxu0 0.0
      %3055 = vmatprep.subr.mxu0 0.0
      %3056 = vmatpush2.xpose.msra.mxu0 0.0
      %3057 = vmatprep.subr.mxu0 0.0
      %3058 = vmatpush2.xpose.msra.mxu0 0.0
      %3059 = vmatprep.subr.mxu0 0.0
      %3060 = vmatpush2.xpose.msra.mxu0 0.0
      %3061 = vmatprep.subr.mxu0 0.0
      %3062 = vmatpush2.xpose.msra.mxu0 0.0
      %3063 = vmatprep.subr.mxu0 0.0
      %3064 = vmatpush2.xpose.msra.mxu0 0.0
      %3065 = vmatprep.subr.mxu0 0.0
      %3066 = vmatpush2.xpose.msra.mxu0 0.0
      %3067 = vmatprep.subr.mxu0 0.0
      %3068 = vmatpush2.xpose.msra.mxu0 0.0
      %3069 = vmatprep.subr.mxu0 0.0
      %3070 = vmatpush2.xpose.msra.mxu0 0.0
      %3071 = vmatprep.subr.mxu0 0.0
      %3072 = vmatpush2.xpose.msra.mxu0 0.0
      %3073 = vmatprep.subr.mxu0 0.0
      %3074 = vmatpush2.xpose.msra.mxu0 0.0
      %3075 = vmatprep.subr.mxu0 0.0
      %3076 = vmatpush2.xpose.msra.mxu0 0.0
      %3077 = vmatprep.subr.mxu0 0.0
      %3078 = vmatpush2.xpose.msra.mxu0 0.0
      %3079 = vmatprep.subr.mxu0 0.0
      %3080 = vmatpush2.xpose.msra.mxu0 0.0
      %3081 = vmatprep.mubr.f32.mxu0 0.0
      %3082 = vmatmul.mubr.f32.gmra.mxu0 %v2953
      %v3083 = vpop.f32.mrf.mxu0
      %v3084 = vadd.f32 0.0, %v3083
      %v3085 = vpop.f32.mrf.mxu0
      %3086 = vmatprep.mubr.f32.mxu0 0.0
      %3087 = vmatmul.mubr.f32.gmra.mxu0 %v2955
      %v3088 = vpop.f32.mrf.mxu0
      %v3089 = vadd.f32 0.0, %v3088
      %v3090 = vpop.f32.mrf.mxu0
      %3091 = vmatprep.mubr.f32.mxu0 0.0
      %3092 = vmatmul.mubr.f32.gmra.mxu0 %v2957
      %v3093 = vpop.f32.mrf.mxu0
      %v3094 = vadd.f32 0.0, %v3093
      %v3095 = vpop.f32.mrf.mxu0
      %3096 = vmatprep.mubr.f32.mxu0 0.0
      %3097 = vmatmul.mubr.f32.gmra.mxu0 %v2959
      %v3098 = vpop.f32.mrf.mxu0
      %v3099 = vadd.f32 0.0, %v3098
      %v3100 = vpop.f32.mrf.mxu0
      %3101 = vmatprep.mubr.f32.mxu0 0.0
      %3102 = vmatmul.mubr.f32.gmra.mxu0 %v2961
      %v3103 = vpop.f32.mrf.mxu0
      %v3104 = vadd.f32 0.0, %v3103
      %v3105 = vpop.f32.mrf.mxu0
      %3106 = vmatprep.mubr.f32.mxu0 0.0
      %3107 = vmatmul.mubr.f32.gmra.mxu0 %v2963
      %v3108 = vpop.f32.mrf.mxu0
      %v3109 = vadd.f32 0.0, %v3108
      %v3110 = vpop.f32.mrf.mxu0
      %3111 = vmatprep.mubr.f32.mxu0 0.0
      %3112 = vmatmul.mubr.f32.gmra.mxu0 %v2965
      %v3113 = vpop.f32.mrf.mxu0
      %v3114 = vadd.f32 0.0, %v3113
      %v3115 = vpop.f32.mrf.mxu0
      %3116 = vmatprep.mubr.f32.mxu0 0.0
      %3117 = vmatmul.mubr.f32.gmra.mxu0 %v2967
      %v3118 = vpop.f32.mrf.mxu0
      %v3119 = vadd.f32 0.0, %v3118
      %v3120 = vpop.f32.mrf.mxu0
      %3121 = vmatprep.mubr.f32.mxu0 0.0
      %3122 = vmatmul.mubr.f32.gmra.mxu0 %v2969
      %v3123 = vpop.f32.mrf.mxu0
      %v3124 = vadd.f32 0.0, %v3123
      %v3125 = vpop.f32.mrf.mxu0
      %3126 = vmatprep.mubr.f32.mxu0 0.0
      %3127 = vmatmul.mubr.f32.gmra.mxu0 %v2971
      %v3128 = vpop.f32.mrf.mxu0
      %v3129 = vadd.f32 0.0, %v3128
      %v3130 = vpop.f32.mrf.mxu0
      %3131 = vmatprep.mubr.f32.mxu0 0.0
      %3132 = vmatmul.mubr.f32.gmra.mxu0 %v2973
      %v3133 = vpop.f32.mrf.mxu0
      %v3134 = vadd.f32 0.0, %v3133
      %v3135 = vpop.f32.mrf.mxu0
      %3136 = vmatprep.mubr.f32.mxu0 0.0
      %3137 = vmatmul.mubr.f32.gmra.mxu0 %v2975
      %v3138 = vpop.f32.mrf.mxu0
      %v3139 = vadd.f32 0.0, %v3138
      %v3140 = vpop.f32.mrf.mxu0
      %3141 = vmatprep.mubr.f32.mxu0 0.0
      %3142 = vmatmul.mubr.f32.gmra.mxu0 %v2977
      %v3143 = vpop.f32.mrf.mxu0
      %v3144 = vadd.f32 0.0, %v3143
      %v3145 = vpop.f32.mrf.mxu0
      %3146 = vmatprep.mubr.f32.mxu0 0.0
      %3147 = vmatmul.mubr.f32.gmra.mxu0 %v2979
      %v3148 = vpop.f32.mrf.mxu0
      %v3149 = vadd.f32 0.0, %v3148
      %v3150 = vpop.f32.mrf.mxu0
      %3151 = vmatprep.mubr.f32.mxu0 0.0
      %3152 = vmatmul.mubr.f32.gmra.mxu0 %v2981
      %v3153 = vpop.f32.mrf.mxu0
      %v3154 = vadd.f32 0.0, %v3153
      %v3155 = vpop.f32.mrf.mxu0
      %3156 = vmatprep.mubr.f32.mxu0 0.0
      %3157 = vmatmul.mubr.f32.gmra.mxu0 %v2983
      %v3158 = vpop.f32.mrf.mxu0
      %v3159 = vadd.f32 0.0, %v3158
      %v3160 = vpop.f32.mrf.mxu0
      %3161 = vdwg.mxu0
      %v3162 = vsel %vm874, %v3084, -1e+30
      %v3163 = vsel %vm874, %v3089, -1e+30
      %v3164 = vsel %vm874, %v3094, -1e+30
      %v3165 = vsel %vm874, %v3099, -1e+30
      %v3166 = vsel %vm874, %v3104, -1e+30
      %v3167 = vsel %vm874, %v3109, -1e+30
      %v3168 = vsel %vm874, %v3114, -1e+30
      %v3169 = vsel %vm874, %v3119, -1e+30
      %v3170 = vsel %vm874, %v3124, -1e+30
      %v3171 = vsel %vm874, %v3129, -1e+30
      %v3172 = vsel %vm874, %v3134, -1e+30
      %v3173 = vsel %vm874, %v3139, -1e+30
      %v3174 = vsel %vm874, %v3144, -1e+30
      %v3175 = vsel %vm874, %v3149, -1e+30
      %v3176 = vsel %vm874, %v3154, -1e+30
      %v3177 = vsel %vm874, %v3159, -1e+30
      %3178 = vmax.xlane.f32.xlu0 %v3162
      %v3179 = vpop.xlane.xlu0 %3178
      %3180 = vmax.xlane.f32.xlu0 %v3163
      %v3181 = vpop.xlane.xlu0 %3180
      %3182 = vmax.xlane.f32.xlu0 %v3164
      %v3183 = vpop.xlane.xlu0 %3182
      %3184 = vmax.xlane.f32.xlu0 %v3165
      %v3185 = vpop.xlane.xlu0 %3184
      %3186 = vmax.xlane.f32.xlu0 %v3166
      %v3187 = vpop.xlane.xlu0 %3186
      %3188 = vmax.xlane.f32.xlu0 %v3167
      %v3189 = vpop.xlane.xlu0 %3188
      %3190 = vmax.xlane.f32.xlu0 %v3168
      %v3191 = vpop.xlane.xlu0 %3190
      %3192 = vmax.xlane.f32.xlu0 %v3169
      %v3193 = vpop.xlane.xlu0 %3192
      %3194 = vmax.xlane.f32.xlu0 %v3170
      %v3195 = vpop.xlane.xlu0 %3194
      %3196 = vmax.xlane.f32.xlu0 %v3171
      %v3197 = vpop.xlane.xlu0 %3196
      %3198 = vmax.xlane.f32.xlu0 %v3172
      %v3199 = vpop.xlane.xlu0 %3198
      %3200 = vmax.xlane.f32.xlu0 %v3173
      %v3201 = vpop.xlane.xlu0 %3200
      %3202 = vmax.xlane.f32.xlu0 %v3174
      %v3203 = vpop.xlane.xlu0 %3202
      %3204 = vmax.xlane.f32.xlu0 %v3175
      %v3205 = vpop.xlane.xlu0 %3204
      %3206 = vmax.xlane.f32.xlu0 %v3176
      %v3207 = vpop.xlane.xlu0 %3206
      %3208 = vmax.xlane.f32.xlu0 %v3177
      %v3209 = vpop.xlane.xlu0 %3208
      %v3210 = vsub.f32 %v3162, %v3179
      %v3211 = vsub.f32 %v3163, %v3181
      %v3212 = vsub.f32 %v3164, %v3183
      %v3213 = vsub.f32 %v3165, %v3185
      %v3214 = vsub.f32 %v3166, %v3187
      %v3215 = vsub.f32 %v3167, %v3189
      %v3216 = vsub.f32 %v3168, %v3191
      %v3217 = vsub.f32 %v3169, %v3193
      %v3218 = vsub.f32 %v3170, %v3195
      %v3219 = vsub.f32 %v3171, %v3197
      %v3220 = vsub.f32 %v3172, %v3199
      %v3221 = vsub.f32 %v3173, %v3201
      %v3222 = vsub.f32 %v3174, %v3203
      %v3223 = vsub.f32 %v3175, %v3205
      %v3224 = vsub.f32 %v3176, %v3207
      %v3225 = vsub.f32 %v3177, %v3209
      %v3226 = vmul.f32 %v3210, 1.442695
      %v3227 = vpow.pop %v3226
      %v3228 = vmul.f32 %v3211, 1.442695
      %v3229 = vpow.pop %v3228
      %v3230 = vmul.f32 %v3212, 1.442695
      %v3231 = vpow.pop %v3230
      %v3232 = vmul.f32 %v3213, 1.442695
      %v3233 = vpow.pop %v3232
      %v3234 = vmul.f32 %v3214, 1.442695
      %v3235 = vpow.pop %v3234
      %v3236 = vmul.f32 %v3215, 1.442695
      %v3237 = vpow.pop %v3236
      %v3238 = vmul.f32 %v3216, 1.442695
      %v3239 = vpow.pop %v3238
      %v3240 = vmul.f32 %v3217, 1.442695
      %v3241 = vpow.pop %v3240
      %v3242 = vmul.f32 %v3218, 1.442695
      %v3243 = vpow.pop %v3242
      %v3244 = vmul.f32 %v3219, 1.442695
      %v3245 = vpow.pop %v3244
      %v3246 = vmul.f32 %v3220, 1.442695
      %v3247 = vpow.pop %v3246
      %v3248 = vmul.f32 %v3221, 1.442695
      %v3249 = vpow.pop %v3248
      %v3250 = vmul.f32 %v3222, 1.442695
      %v3251 = vpow.pop %v3250
      %v3252 = vmul.f32 %v3223, 1.442695
      %v3253 = vpow.pop %v3252
      %v3254 = vmul.f32 %v3224, 1.442695
      %v3255 = vpow.pop %v3254
      %v3256 = vmul.f32 %v3225, 1.442695
      %v3257 = vpow.pop %v3256
      %3258 = vadd.xlane.f32.xlu0 %v3227
      %v3259 = vpop.xlane.xlu0 %3258
      %3260 = vadd.xlane.f32.xlu0 %v3229
      %v3261 = vpop.xlane.xlu0 %3260
      %3262 = vadd.xlane.f32.xlu0 %v3231
      %v3263 = vpop.xlane.xlu0 %3262
      %3264 = vadd.xlane.f32.xlu0 %v3233
      %v3265 = vpop.xlane.xlu0 %3264
      %3266 = vadd.xlane.f32.xlu0 %v3235
      %v3267 = vpop.xlane.xlu0 %3266
      %3268 = vadd.xlane.f32.xlu0 %v3237
      %v3269 = vpop.xlane.xlu0 %3268
      %3270 = vadd.xlane.f32.xlu0 %v3239
      %v3271 = vpop.xlane.xlu0 %3270
      %3272 = vadd.xlane.f32.xlu0 %v3241
      %v3273 = vpop.xlane.xlu0 %3272
      %3274 = vadd.xlane.f32.xlu0 %v3243
      %v3275 = vpop.xlane.xlu0 %3274
      %3276 = vadd.xlane.f32.xlu0 %v3245
      %v3277 = vpop.xlane.xlu0 %3276
      %3278 = vadd.xlane.f32.xlu0 %v3247
      %v3279 = vpop.xlane.xlu0 %3278
      %3280 = vadd.xlane.f32.xlu0 %v3249
      %v3281 = vpop.xlane.xlu0 %3280
      %3282 = vadd.xlane.f32.xlu0 %v3251
      %v3283 = vpop.xlane.xlu0 %3282
      %3284 = vadd.xlane.f32.xlu0 %v3253
      %v3285 = vpop.xlane.xlu0 %3284
      %3286 = vadd.xlane.f32.xlu0 %v3255
      %v3287 = vpop.xlane.xlu0 %3286
      %3288 = vadd.xlane.f32.xlu0 %v3257
      %v3289 = vpop.xlane.xlu0 %3288
      %v3290 = vrcp.pop %v3259
      %v3291 = vrcp.pop %v3261
      %v3292 = vrcp.pop %v3263
      %v3293 = vrcp.pop %v3265
      %v3294 = vrcp.pop %v3267
      %v3295 = vrcp.pop %v3269
      %v3296 = vrcp.pop %v3271
      %v3297 = vrcp.pop %v3273
      %v3298 = vrcp.pop %v3275
      %v3299 = vrcp.pop %v3277
      %v3300 = vrcp.pop %v3279
      %v3301 = vrcp.pop %v3281
      %v3302 = vrcp.pop %v3283
      %v3303 = vrcp.pop %v3285
      %v3304 = vrcp.pop %v3287
      %v3305 = vrcp.pop %v3289
      %v3306 = vmul.f32 %v3227, %v3290
      %v3307 = vmul.f32 %v3229, %v3291
      %v3308 = vmul.f32 %v3231, %v3292
      %v3309 = vmul.f32 %v3233, %v3293
      %v3310 = vmul.f32 %v3235, %v3294
      %v3311 = vmul.f32 %v3237, %v3295
      %v3312 = vmul.f32 %v3239, %v3296
      %v3313 = vmul.f32 %v3241, %v3297
      %v3314 = vmul.f32 %v3243, %v3298
      %v3315 = vmul.f32 %v3245, %v3299
      %v3316 = vmul.f32 %v3247, %v3300
      %v3317 = vmul.f32 %v3249, %v3301
      %v3318 = vmul.f32 %v3251, %v3302
      %v3319 = vmul.f32 %v3253, %v3303
      %v3320 = vmul.f32 %v3255, %v3304
      %v3321 = vmul.f32 %v3257, %v3305
      %3338 = vrot.lane.b32.xlu0 %v2857, 112
      %v3339 = vpop.permute.xlu0 %3338
      %3340 = vrot.lane.b32.xlu0 %v2858, 112
      %v3341 = vpop.permute.xlu0 %3340
      %3342 = vrot.lane.b32.xlu0 %v2859, 112
      %v3343 = vpop.permute.xlu0 %3342
      %3344 = vrot.lane.b32.xlu0 %v2860, 112
      %v3345 = vpop.permute.xlu0 %3344
      %3346 = vrot.lane.b32.xlu0 %v2861, 112
      %v3347 = vpop.permute.xlu0 %3346
      %3348 = vrot.lane.b32.xlu0 %v2862, 112
      %v3349 = vpop.permute.xlu0 %3348
      %3350 = vrot.lane.b32.xlu0 %v2863, 112
      %v3351 = vpop.permute.xlu0 %3350
      %3352 = vrot.lane.b32.xlu0 %v2864, 112
      %v3353 = vpop.permute.xlu0 %3352
      %3354 = vrot.lane.b32.xlu0 %v2865, 112
      %v3355 = vpop.permute.xlu0 %3354
      %3356 = vrot.lane.b32.xlu0 %v2866, 112
      %v3357 = vpop.permute.xlu0 %3356
      %3358 = vrot.lane.b32.xlu0 %v2867, 112
      %v3359 = vpop.permute.xlu0 %3358
      %3360 = vrot.lane.b32.xlu0 %v2868, 112
      %v3361 = vpop.permute.xlu0 %3360
      %3362 = vrot.lane.b32.xlu0 %v2869, 112
      %v3363 = vpop.permute.xlu0 %3362
      %3364 = vrot.lane.b32.xlu0 %v2870, 112
      %v3365 = vpop.permute.xlu0 %3364
      %3366 = vrot.lane.b32.xlu0 %v2871, 112
      %v3367 = vpop.permute.xlu0 %3366
      %3368 = vrot.lane.b32.xlu0 %v2872, 112
      %v3369 = vpop.permute.xlu0 %3368
      %3386 = vmatprep.subr.mxu0 0.0
      %3387 = vmatpush1.msra.mxu0 %v3369
      %3388 = vmatprep.subr.mxu0 0.0
      %3389 = vmatpush1.msra.mxu0 %v3367
      %3390 = vmatprep.subr.mxu0 0.0
      %3391 = vmatpush1.msra.mxu0 %v3365
      %3392 = vmatprep.subr.mxu0 0.0
      %3393 = vmatpush1.msra.mxu0 %v3363
      %3394 = vmatprep.subr.mxu0 0.0
      %3395 = vmatpush1.msra.mxu0 %v3361
      %3396 = vmatprep.subr.mxu0 0.0
      %3397 = vmatpush1.msra.mxu0 %v3359
      %3398 = vmatprep.subr.mxu0 0.0
      %3399 = vmatpush1.msra.mxu0 %v3357
      %3400 = vmatprep.subr.mxu0 0.0
      %3401 = vmatpush1.msra.mxu0 %v3355
      %3402 = vmatprep.subr.mxu0 0.0
      %3403 = vmatpush1.msra.mxu0 %v3353
      %3404 = vmatprep.subr.mxu0 0.0
      %3405 = vmatpush1.msra.mxu0 %v3351
      %3406 = vmatprep.subr.mxu0 0.0
      %3407 = vmatpush1.msra.mxu0 %v3349
      %3408 = vmatprep.subr.mxu0 0.0
      %3409 = vmatpush1.msra.mxu0 %v3347
      %3410 = vmatprep.subr.mxu0 0.0
      %3411 = vmatpush1.msra.mxu0 %v3345
      %3412 = vmatprep.subr.mxu0 0.0
      %3413 = vmatpush1.msra.mxu0 %v3343
      %3414 = vmatprep.subr.mxu0 0.0
      %3415 = vmatpush1.msra.mxu0 %v3341
      %3416 = vmatprep.subr.mxu0 0.0
      %3417 = vmatpush1.msra.mxu0 %v3339
      %3418 = vmatprep.subr.mxu0 0.0
      %3419 = vmatpush2.msra.mxu0 0.0
      %3420 = vmatprep.subr.mxu0 0.0
      %3421 = vmatpush2.msra.mxu0 0.0
      %3422 = vmatprep.subr.mxu0 0.0
      %3423 = vmatpush2.msra.mxu0 0.0
      %3424 = vmatprep.subr.mxu0 0.0
      %3425 = vmatpush2.msra.mxu0 0.0
      %3426 = vmatprep.subr.mxu0 0.0
      %3427 = vmatpush2.msra.mxu0 0.0
      %3428 = vmatprep.subr.mxu0 0.0
      %3429 = vmatpush2.msra.mxu0 0.0
      %3430 = vmatprep.subr.mxu0 0.0
      %3431 = vmatpush2.msra.mxu0 0.0
      %3432 = vmatprep.subr.mxu0 0.0
      %3433 = vmatpush2.msra.mxu0 0.0
      %3434 = vmatprep.subr.mxu0 0.0
      %3435 = vmatpush2.msra.mxu0 0.0
      %3436 = vmatprep.subr.mxu0 0.0
      %3437 = vmatpush2.msra.mxu0 0.0
      %3438 = vmatprep.subr.mxu0 0.0
      %3439 = vmatpush2.msra.mxu0 0.0
      %3440 = vmatprep.subr.mxu0 0.0
      %3441 = vmatpush2.msra.mxu0 0.0
      %3442 = vmatprep.subr.mxu0 0.0
      %3443 = vmatpush2.msra.mxu0 0.0
      %3444 = vmatprep.subr.mxu0 0.0
      %3445 = vmatpush2.msra.mxu0 0.0
      %3446 = vmatprep.subr.mxu0 0.0
      %3447 = vmatpush2.msra.mxu0 0.0
      %3448 = vmatprep.subr.mxu0 0.0
      %3449 = vmatpush2.msra.mxu0 0.0
      %3450 = vmatprep.mubr.f32.mxu0 0.0
      %3451 = vmatmul.mubr.f32.gmra.mxu0 %v3306
      %v3452 = vpop.f32.mrf.mxu0
      %v3453 = vadd.f32 0.0, %v3452
      %v3454 = vpop.f32.mrf.mxu0
      %3455 = vmatprep.mubr.f32.mxu0 0.0
      %3456 = vmatmul.mubr.f32.gmra.mxu0 %v3307
      %v3457 = vpop.f32.mrf.mxu0
      %v3458 = vadd.f32 0.0, %v3457
      %v3459 = vpop.f32.mrf.mxu0
      %3460 = vmatprep.mubr.f32.mxu0 0.0
      %3461 = vmatmul.mubr.f32.gmra.mxu0 %v3308
      %v3462 = vpop.f32.mrf.mxu0
      %v3463 = vadd.f32 0.0, %v3462
      %v3464 = vpop.f32.mrf.mxu0
      %3465 = vmatprep.mubr.f32.mxu0 0.0
      %3466 = vmatmul.mubr.f32.gmra.mxu0 %v3309
      %v3467 = vpop.f32.mrf.mxu0
      %v3468 = vadd.f32 0.0, %v3467
      %v3469 = vpop.f32.mrf.mxu0
      %3470 = vmatprep.mubr.f32.mxu0 0.0
      %3471 = vmatmul.mubr.f32.gmra.mxu0 %v3310
      %v3472 = vpop.f32.mrf.mxu0
      %v3473 = vadd.f32 0.0, %v3472
      %v3474 = vpop.f32.mrf.mxu0
      %3475 = vmatprep.mubr.f32.mxu0 0.0
      %3476 = vmatmul.mubr.f32.gmra.mxu0 %v3311
      %v3477 = vpop.f32.mrf.mxu0
      %v3478 = vadd.f32 0.0, %v3477
      %v3479 = vpop.f32.mrf.mxu0
      %3480 = vmatprep.mubr.f32.mxu0 0.0
      %3481 = vmatmul.mubr.f32.gmra.mxu0 %v3312
      %v3482 = vpop.f32.mrf.mxu0
      %v3483 = vadd.f32 0.0, %v3482
      %v3484 = vpop.f32.mrf.mxu0
      %3485 = vmatprep.mubr.f32.mxu0 0.0
      %3486 = vmatmul.mubr.f32.gmra.mxu0 %v3313
      %v3487 = vpop.f32.mrf.mxu0
      %v3488 = vadd.f32 0.0, %v3487
      %v3489 = vpop.f32.mrf.mxu0
      %3490 = vmatprep.mubr.f32.mxu0 0.0
      %3491 = vmatmul.mubr.f32.gmra.mxu0 %v3314
      %v3492 = vpop.f32.mrf.mxu0
      %v3493 = vadd.f32 0.0, %v3492
      %v3494 = vpop.f32.mrf.mxu0
      %3495 = vmatprep.mubr.f32.mxu0 0.0
      %3496 = vmatmul.mubr.f32.gmra.mxu0 %v3315
      %v3497 = vpop.f32.mrf.mxu0
      %v3498 = vadd.f32 0.0, %v3497
      %v3499 = vpop.f32.mrf.mxu0
      %3500 = vmatprep.mubr.f32.mxu0 0.0
      %3501 = vmatmul.mubr.f32.gmra.mxu0 %v3316
      %v3502 = vpop.f32.mrf.mxu0
      %v3503 = vadd.f32 0.0, %v3502
      %v3504 = vpop.f32.mrf.mxu0
      %3505 = vmatprep.mubr.f32.mxu0 0.0
      %3506 = vmatmul.mubr.f32.gmra.mxu0 %v3317
      %v3507 = vpop.f32.mrf.mxu0
      %v3508 = vadd.f32 0.0, %v3507
      %v3509 = vpop.f32.mrf.mxu0
      %3510 = vmatprep.mubr.f32.mxu0 0.0
      %3511 = vmatmul.mubr.f32.gmra.mxu0 %v3318
      %v3512 = vpop.f32.mrf.mxu0
      %v3513 = vadd.f32 0.0, %v3512
      %v3514 = vpop.f32.mrf.mxu0
      %3515 = vmatprep.mubr.f32.mxu0 0.0
      %3516 = vmatmul.mubr.f32.gmra.mxu0 %v3319
      %v3517 = vpop.f32.mrf.mxu0
      %v3518 = vadd.f32 0.0, %v3517
      %v3519 = vpop.f32.mrf.mxu0
      %3520 = vmatprep.mubr.f32.mxu0 0.0
      %3521 = vmatmul.mubr.f32.gmra.mxu0 %v3320
      %v3522 = vpop.f32.mrf.mxu0
      %v3523 = vadd.f32 0.0, %v3522
      %v3524 = vpop.f32.mrf.mxu0
      %3525 = vmatprep.mubr.f32.mxu0 0.0
      %3526 = vmatmul.mubr.f32.gmra.mxu0 %v3321
      %v3527 = vpop.f32.mrf.mxu0
      %v3528 = vadd.f32 0.0, %v3527
      %v3529 = vpop.f32.mrf.mxu0
      %3530 = vdwg.mxu0
      %v3531 = vld [vmem:[#allocation4] sm:$0xff]
      %v3532 = vld [vmem:[#allocation4 + $0x8] sm:$0xff]
      %v3533 = vld [vmem:[#allocation4 + $0x10] sm:$0xff]
      %v3534 = vld [vmem:[#allocation4 + $0x18] sm:$0xff]
      %v3535 = vld [vmem:[#allocation4 + $0x20] sm:$0xff]
      %v3536 = vld [vmem:[#allocation4 + $0x28] sm:$0xff]
      %v3537 = vld [vmem:[#allocation4 + $0x30] sm:$0xff]
      %v3538 = vld [vmem:[#allocation4 + $0x38] sm:$0xff]
      %v3539 = vld [vmem:[#allocation4 + $0x40] sm:$0xff]
      %v3540 = vld [vmem:[#allocation4 + $0x48] sm:$0xff]
      %v3541 = vld [vmem:[#allocation4 + $0x50] sm:$0xff]
      %v3542 = vld [vmem:[#allocation4 + $0x58] sm:$0xff]
      %v3543 = vld [vmem:[#allocation4 + $0x60] sm:$0xff]
      %v3544 = vld [vmem:[#allocation4 + $0x68] sm:$0xff]
      %v3545 = vld [vmem:[#allocation4 + $0x70] sm:$0xff]
      %v3546 = vld [vmem:[#allocation4 + $0x78] sm:$0xff]
      %v3547 = vld [vmem:[%s6 + $0x10] sm:$0xff]
      %v3549 = vsel %vm1120, %v3453, 0
      %v3552 = vsel %vm1120, %v3458, 0
      %v3555 = vsel %vm1120, %v3463, 0
      %v3558 = vsel %vm1120, %v3468, 0
      %v3561 = vsel %vm1120, %v3473, 0
      %v3564 = vsel %vm1120, %v3478, 0
      %v3567 = vsel %vm1120, %v3483, 0
      %v3570 = vsel %vm1120, %v3488, 0
      %v3573 = vsel %vm1120, %v3493, 0
      %v3576 = vsel %vm1120, %v3498, 0
      %v3579 = vsel %vm1120, %v3503, 0
      %v3582 = vsel %vm1120, %v3508, 0
      %v3585 = vsel %vm1120, %v3513, 0
      %v3588 = vsel %vm1120, %v3518, 0
      %v3591 = vsel %vm1120, %v3523, 0
      %v3594 = vsel %vm1120, %v3528, 0
      %3596 = vmatprep.subr.mxu0 0.0
      %3597 = vmatpush1.msra.mxu0 0.0
      %3598 = vmatprep.subr.mxu0 0.0
      %3599 = vmatpush1.msra.mxu0 0.0
      %3600 = vmatprep.subr.mxu0 0.0
      %3601 = vmatpush1.msra.mxu0 0.0
      %3602 = vmatprep.subr.mxu0 0.0
      %3603 = vmatpush1.msra.mxu0 0.0
      %3604 = vmatprep.subr.mxu0 0.0
      %3605 = vmatpush1.msra.mxu0 0.0
      %3606 = vmatprep.subr.mxu0 0.0
      %3607 = vmatpush1.msra.mxu0 0.0
      %3608 = vmatprep.subr.mxu0 0.0
      %3609 = vmatpush1.msra.mxu0 0.0
      %3610 = vmatprep.subr.mxu0 0.0
      %3611 = vmatpush1.msra.mxu0 0.0
      %3612 = vmatprep.subr.mxu0 0.0
      %3613 = vmatpush1.msra.mxu0 0.0
      %3614 = vmatprep.subr.mxu0 0.0
      %3615 = vmatpush1.msra.mxu0 0.0
      %3616 = vmatprep.subr.mxu0 0.0
      %3617 = vmatpush1.msra.mxu0 0.0
      %3618 = vmatprep.subr.mxu0 0.0
      %3619 = vmatpush1.msra.mxu0 0.0
      %3620 = vmatprep.subr.mxu0 0.0
      %3621 = vmatpush1.msra.mxu0 0.0
      %3622 = vmatprep.subr.mxu0 0.0
      %3623 = vmatpush1.msra.mxu0 0.0
      %3624 = vmatprep.subr.mxu0 0.0
      %3625 = vmatpush1.msra.mxu0 0.0
      %3626 = vmatprep.subr.mxu0 0.0
      %3627 = vmatpush1.msra.mxu0 %v3547
      %3628 = vmatprep.subr.mxu0 0.0
      %3629 = vmatpush2.msra.mxu0 0.0
      %3630 = vmatprep.subr.mxu0 0.0
      %3631 = vmatpush2.msra.mxu0 0.0
      %3632 = vmatprep.subr.mxu0 0.0
      %3633 = vmatpush2.msra.mxu0 0.0
      %3634 = vmatprep.subr.mxu0 0.0
      %3635 = vmatpush2.msra.mxu0 0.0
      %3636 = vmatprep.subr.mxu0 0.0
      %3637 = vmatpush2.msra.mxu0 0.0
      %3638 = vmatprep.subr.mxu0 0.0
      %3639 = vmatpush2.msra.mxu0 0.0
      %3640 = vmatprep.subr.mxu0 0.0
      %3641 = vmatpush2.msra.mxu0 0.0
      %3642 = vmatprep.subr.mxu0 0.0
      %3643 = vmatpush2.msra.mxu0 0.0
      %3644 = vmatprep.subr.mxu0 0.0
      %3645 = vmatpush2.msra.mxu0 0.0
      %3646 = vmatprep.subr.mxu0 0.0
      %3647 = vmatpush2.msra.mxu0 0.0
      %3648 = vmatprep.subr.mxu0 0.0
      %3649 = vmatpush2.msra.mxu0 0.0
      %3650 = vmatprep.subr.mxu0 0.0
      %3651 = vmatpush2.msra.mxu0 0.0
      %3652 = vmatprep.subr.mxu0 0.0
      %3653 = vmatpush2.msra.mxu0 0.0
      %3654 = vmatprep.subr.mxu0 0.0
      %3655 = vmatpush2.msra.mxu0 0.0
      %3656 = vmatprep.subr.mxu0 0.0
      %3657 = vmatpush2.msra.mxu0 0.0
      %3658 = vmatprep.subr.mxu0 0.0
      %3659 = vmatpush2.msra.mxu0 0.0
      %3660 = vmatprep.mubr.f32.mxu0 0.0
      %3661 = vmatmul.mubr.f32.gmra.mxu0 %v3549
      %v3662 = vpop.f32.mrf.mxu0
      %v3663 = vadd.f32 0.0, %v3662
      %v3664 = vpop.f32.mrf.mxu0
      %3665 = vmatprep.mubr.f32.mxu0 0.0
      %3666 = vmatmul.mubr.f32.gmra.mxu0 %v3552
      %v3667 = vpop.f32.mrf.mxu0
      %v3668 = vadd.f32 0.0, %v3667
      %v3669 = vpop.f32.mrf.mxu0
      %3670 = vmatprep.mubr.f32.mxu0 0.0
      %3671 = vmatmul.mubr.f32.gmra.mxu0 %v3555
      %v3672 = vpop.f32.mrf.mxu0
      %v3673 = vadd.f32 0.0, %v3672
      %v3674 = vpop.f32.mrf.mxu0
      %3675 = vmatprep.mubr.f32.mxu0 0.0
      %3676 = vmatmul.mubr.f32.gmra.mxu0 %v3558
      %v3677 = vpop.f32.mrf.mxu0
      %v3678 = vadd.f32 0.0, %v3677
      %v3679 = vpop.f32.mrf.mxu0
      %3680 = vmatprep.mubr.f32.mxu0 0.0
      %3681 = vmatmul.mubr.f32.gmra.mxu0 %v3561
      %v3682 = vpop.f32.mrf.mxu0
      %v3683 = vadd.f32 0.0, %v3682
      %v3684 = vpop.f32.mrf.mxu0
      %3685 = vmatprep.mubr.f32.mxu0 0.0
      %3686 = vmatmul.mubr.f32.gmra.mxu0 %v3564
      %v3687 = vpop.f32.mrf.mxu0
      %v3688 = vadd.f32 0.0, %v3687
      %v3689 = vpop.f32.mrf.mxu0
      %3690 = vmatprep.mubr.f32.mxu0 0.0
      %3691 = vmatmul.mubr.f32.gmra.mxu0 %v3567
      %v3692 = vpop.f32.mrf.mxu0
      %v3693 = vadd.f32 0.0, %v3692
      %v3694 = vpop.f32.mrf.mxu0
      %3695 = vmatprep.mubr.f32.mxu0 0.0
      %3696 = vmatmul.mubr.f32.gmra.mxu0 %v3570
      %v3697 = vpop.f32.mrf.mxu0
      %v3698 = vadd.f32 0.0, %v3697
      %v3699 = vpop.f32.mrf.mxu0
      %3700 = vmatprep.mubr.f32.mxu0 0.0
      %3701 = vmatmul.mubr.f32.gmra.mxu0 %v3573
      %v3702 = vpop.f32.mrf.mxu0
      %v3703 = vadd.f32 0.0, %v3702
      %v3704 = vpop.f32.mrf.mxu0
      %3705 = vmatprep.mubr.f32.mxu0 0.0
      %3706 = vmatmul.mubr.f32.gmra.mxu0 %v3576
      %v3707 = vpop.f32.mrf.mxu0
      %v3708 = vadd.f32 0.0, %v3707
      %v3709 = vpop.f32.mrf.mxu0
      %3710 = vmatprep.mubr.f32.mxu0 0.0
      %3711 = vmatmul.mubr.f32.gmra.mxu0 %v3579
      %v3712 = vpop.f32.mrf.mxu0
      %v3713 = vadd.f32 0.0, %v3712
      %v3714 = vpop.f32.mrf.mxu0
      %3715 = vmatprep.mubr.f32.mxu0 0.0
      %3716 = vmatmul.mubr.f32.gmra.mxu0 %v3582
      %v3717 = vpop.f32.mrf.mxu0
      %v3718 = vadd.f32 0.0, %v3717
      %v3719 = vpop.f32.mrf.mxu0
      %3720 = vmatprep.mubr.f32.mxu0 0.0
      %3721 = vmatmul.mubr.f32.gmra.mxu0 %v3585
      %v3722 = vpop.f32.mrf.mxu0
      %v3723 = vadd.f32 0.0, %v3722
      %v3724 = vpop.f32.mrf.mxu0
      %3725 = vmatprep.mubr.f32.mxu0 0.0
      %3726 = vmatmul.mubr.f32.gmra.mxu0 %v3588
      %v3727 = vpop.f32.mrf.mxu0
      %v3728 = vadd.f32 0.0, %v3727
      %v3729 = vpop.f32.mrf.mxu0
      %3730 = vmatprep.mubr.f32.mxu0 0.0
      %3731 = vmatmul.mubr.f32.gmra.mxu0 %v3591
      %v3732 = vpop.f32.mrf.mxu0
      %v3733 = vadd.f32 0.0, %v3732
      %v3734 = vpop.f32.mrf.mxu0
      %3735 = vmatprep.mubr.f32.mxu0 0.0
      %3736 = vmatmul.mubr.f32.gmra.mxu0 %v3594
      %v3737 = vpop.f32.mrf.mxu0
      %v3738 = vadd.f32 0.0, %v3737
      %v3739 = vpop.f32.mrf.mxu0
      %3740 = vdwg.mxu0
      %v3741 = vadd.f32 %v3531, %v3663
      %v3742 = vadd.f32 %v3532, %v3668
      %v3743 = vadd.f32 %v3533, %v3673
      %v3744 = vadd.f32 %v3534, %v3678
      %v3745 = vadd.f32 %v3535, %v3683
      %v3746 = vadd.f32 %v3536, %v3688
      %v3747 = vadd.f32 %v3537, %v3693
      %v3748 = vadd.f32 %v3538, %v3698
      %v3749 = vadd.f32 %v3539, %v3703
      %v3750 = vadd.f32 %v3540, %v3708
      %v3751 = vadd.f32 %v3541, %v3713
      %v3752 = vadd.f32 %v3542, %v3718
      %v3753 = vadd.f32 %v3543, %v3723
      %v3754 = vadd.f32 %v3544, %v3728
      %v3755 = vadd.f32 %v3545, %v3733
      %v3756 = vadd.f32 %v3546, %v3738
      %3757 = vst.msk [vmem:[#allocation4] sm:$0xff] %vm855, %v3741
      %3758 = vst.msk [vmem:[#allocation4 + $0x8] sm:$0xff] %vm855, %v3742
      %3759 = vst.msk [vmem:[#allocation4 + $0x10] sm:$0xff] %vm855, %v3743
      %3760 = vst.msk [vmem:[#allocation4 + $0x18] sm:$0xff] %vm855, %v3744
      %3761 = vst.msk [vmem:[#allocation4 + $0x20] sm:$0xff] %vm855, %v3745
      %3762 = vst.msk [vmem:[#allocation4 + $0x28] sm:$0xff] %vm855, %v3746
      %3763 = vst.msk [vmem:[#allocation4 + $0x30] sm:$0xff] %vm855, %v3747
      %3764 = vst.msk [vmem:[#allocation4 + $0x38] sm:$0xff] %vm855, %v3748
      %3765 = vst.msk [vmem:[#allocation4 + $0x40] sm:$0xff] %vm855, %v3749
      %3766 = vst.msk [vmem:[#allocation4 + $0x48] sm:$0xff] %vm855, %v3750
      %3767 = vst.msk [vmem:[#allocation4 + $0x50] sm:$0xff] %vm855, %v3751
      %3768 = vst.msk [vmem:[#allocation4 + $0x58] sm:$0xff] %vm855, %v3752
      %3769 = vst.msk [vmem:[#allocation4 + $0x60] sm:$0xff] %vm855, %v3753
      %3770 = vst.msk [vmem:[#allocation4 + $0x68] sm:$0xff] %vm855, %v3754
      %3771 = vst.msk [vmem:[#allocation4 + $0x70] sm:$0xff] %vm855, %v3755
      %3772 = vst.msk [vmem:[#allocation4 + $0x78] sm:$0xff] %vm855, %v3756
      %v3773 = vld [vmem:[#allocation2] sm:$0xff]
      %v3774 = vld [vmem:[#allocation2 + $0x8] sm:$0xff]
      %v3775 = vld [vmem:[#allocation2 + $0x10] sm:$0xff]
      %v3776 = vld [vmem:[#allocation2 + $0x18] sm:$0xff]
      %v3777 = vld [vmem:[#allocation2 + $0x20] sm:$0xff]
      %v3778 = vld [vmem:[#allocation2 + $0x28] sm:$0xff]
      %v3779 = vld [vmem:[#allocation2 + $0x30] sm:$0xff]
      %v3780 = vld [vmem:[#allocation2 + $0x38] sm:$0xff]
      %v3781 = vld [vmem:[#allocation2 + $0x40] sm:$0xff]
      %v3782 = vld [vmem:[#allocation2 + $0x48] sm:$0xff]
      %v3783 = vld [vmem:[#allocation2 + $0x50] sm:$0xff]
      %v3784 = vld [vmem:[#allocation2 + $0x58] sm:$0xff]
      %v3785 = vld [vmem:[#allocation2 + $0x60] sm:$0xff]
      %v3786 = vld [vmem:[#allocation2 + $0x68] sm:$0xff]
      %v3787 = vld [vmem:[#allocation2 + $0x70] sm:$0xff]
      %v3788 = vld [vmem:[#allocation2 + $0x78] sm:$0xff]
      %v3789 = vld [vmem:[#allocation3] sm:$0xff]
      %v3790 = vld [vmem:[#allocation3 + $0x8] sm:$0xff]
      %v3791 = vld [vmem:[#allocation3 + $0x10] sm:$0xff]
      %v3792 = vld [vmem:[#allocation3 + $0x18] sm:$0xff]
      %v3793 = vld [vmem:[#allocation3 + $0x20] sm:$0xff]
      %v3794 = vld [vmem:[#allocation3 + $0x28] sm:$0xff]
      %v3795 = vld [vmem:[#allocation3 + $0x30] sm:$0xff]
      %v3796 = vld [vmem:[#allocation3 + $0x38] sm:$0xff]
      %v3797 = vld [vmem:[#allocation3 + $0x40] sm:$0xff]
      %v3798 = vld [vmem:[#allocation3 + $0x48] sm:$0xff]
      %v3799 = vld [vmem:[#allocation3 + $0x50] sm:$0xff]
      %v3800 = vld [vmem:[#allocation3 + $0x58] sm:$0xff]
      %v3801 = vld [vmem:[#allocation3 + $0x60] sm:$0xff]
      %v3802 = vld [vmem:[#allocation3 + $0x68] sm:$0xff]
      %v3803 = vld [vmem:[#allocation3 + $0x70] sm:$0xff]
      %v3804 = vld [vmem:[#allocation3 + $0x78] sm:$0xff]
      %3805 = vrot.lane.b32.xlu0 %v1010, 104
      %v3806 = vpop.permute.xlu0 %3805
      %3807 = vrot.lane.b32.xlu0 %v1015, 104
      %v3808 = vpop.permute.xlu0 %3807
      %3809 = vrot.lane.b32.xlu0 %v1020, 104
      %v3810 = vpop.permute.xlu0 %3809
      %3811 = vrot.lane.b32.xlu0 %v1025, 104
      %v3812 = vpop.permute.xlu0 %3811
      %3813 = vrot.lane.b32.xlu0 %v1030, 104
      %v3814 = vpop.permute.xlu0 %3813
      %3815 = vrot.lane.b32.xlu0 %v1035, 104
      %v3816 = vpop.permute.xlu0 %3815
      %3817 = vrot.lane.b32.xlu0 %v1040, 104
      %v3818 = vpop.permute.xlu0 %3817
      %3819 = vrot.lane.b32.xlu0 %v1045, 104
      %v3820 = vpop.permute.xlu0 %3819
      %3821 = vrot.lane.b32.xlu0 %v1050, 104
      %v3822 = vpop.permute.xlu0 %3821
      %3823 = vrot.lane.b32.xlu0 %v1055, 104
      %v3824 = vpop.permute.xlu0 %3823
      %3825 = vrot.lane.b32.xlu0 %v1060, 104
      %v3826 = vpop.permute.xlu0 %3825
      %3827 = vrot.lane.b32.xlu0 %v1065, 104
      %v3828 = vpop.permute.xlu0 %3827
      %3829 = vrot.lane.b32.xlu0 %v1070, 104
      %v3830 = vpop.permute.xlu0 %3829
      %3831 = vrot.lane.b32.xlu0 %v1075, 104
      %v3832 = vpop.permute.xlu0 %3831
      %3833 = vrot.lane.b32.xlu0 %v1080, 104
      %v3834 = vpop.permute.xlu0 %3833
      %3835 = vrot.lane.b32.xlu0 %v1085, 104
      %v3836 = vpop.permute.xlu0 %3835
      %3853 = vrot.lane.b32.xlu0 %v3773, 104
      %v3854 = vpop.permute.xlu0 %3853
      %3855 = vrot.lane.b32.xlu0 %v3774, 104
      %v3856 = vpop.permute.xlu0 %3855
      %3857 = vrot.lane.b32.xlu0 %v3775, 104
      %v3858 = vpop.permute.xlu0 %3857
      %3859 = vrot.lane.b32.xlu0 %v3776, 104
      %v3860 = vpop.permute.xlu0 %3859
      %3861 = vrot.lane.b32.xlu0 %v3777, 104
      %v3862 = vpop.permute.xlu0 %3861
      %3863 = vrot.lane.b32.xlu0 %v3778, 104
      %v3864 = vpop.permute.xlu0 %3863
      %3865 = vrot.lane.b32.xlu0 %v3779, 104
      %v3866 = vpop.permute.xlu0 %3865
      %3867 = vrot.lane.b32.xlu0 %v3780, 104
      %v3868 = vpop.permute.xlu0 %3867
      %3869 = vrot.lane.b32.xlu0 %v3781, 104
      %v3870 = vpop.permute.xlu0 %3869
      %3871 = vrot.lane.b32.xlu0 %v3782, 104
      %v3872 = vpop.permute.xlu0 %3871
      %3873 = vrot.lane.b32.xlu0 %v3783, 104
      %v3874 = vpop.permute.xlu0 %3873
      %3875 = vrot.lane.b32.xlu0 %v3784, 104
      %v3876 = vpop.permute.xlu0 %3875
      %3877 = vrot.lane.b32.xlu0 %v3785, 104
      %v3878 = vpop.permute.xlu0 %3877
      %3879 = vrot.lane.b32.xlu0 %v3786, 104
      %v3880 = vpop.permute.xlu0 %3879
      %3881 = vrot.lane.b32.xlu0 %v3787, 104
      %v3882 = vpop.permute.xlu0 %3881
      %3883 = vrot.lane.b32.xlu0 %v3788, 104
      %v3884 = vpop.permute.xlu0 %3883
      %v3885 = vsel %vm1120, %v3806, 0
      %v3887 = vsel %vm1120, %v3808, 0
      %v3889 = vsel %vm1120, %v3810, 0
      %v3891 = vsel %vm1120, %v3812, 0
      %v3893 = vsel %vm1120, %v3814, 0
      %v3895 = vsel %vm1120, %v3816, 0
      %v3897 = vsel %vm1120, %v3818, 0
      %v3899 = vsel %vm1120, %v3820, 0
      %v3901 = vsel %vm1120, %v3822, 0
      %v3903 = vsel %vm1120, %v3824, 0
      %v3905 = vsel %vm1120, %v3826, 0
      %v3907 = vsel %vm1120, %v3828, 0
      %v3909 = vsel %vm1120, %v3830, 0
      %v3911 = vsel %vm1120, %v3832, 0
      %v3913 = vsel %vm1120, %v3834, 0
      %v3915 = vsel %vm1120, %v3836, 0
      %v3917 = vsel %vm1120, %v3854, 0
      %v3919 = vsel %vm1120, %v3856, 0
      %v3921 = vsel %vm1120, %v3858, 0
      %v3923 = vsel %vm1120, %v3860, 0
      %v3925 = vsel %vm1120, %v3862, 0
      %v3927 = vsel %vm1120, %v3864, 0
      %v3929 = vsel %vm1120, %v3866, 0
      %v3931 = vsel %vm1120, %v3868, 0
      %v3933 = vsel %vm1120, %v3870, 0
      %v3935 = vsel %vm1120, %v3872, 0
      %v3937 = vsel %vm1120, %v3874, 0
      %v3939 = vsel %vm1120, %v3876, 0
      %v3941 = vsel %vm1120, %v3878, 0
      %v3943 = vsel %vm1120, %v3880, 0
      %v3945 = vsel %vm1120, %v3882, 0
      %v3947 = vsel %vm1120, %v3884, 0
      %3949 = vmatprep.subr.mxu0 0.0
      %3950 = vmatpush1.xpose.msra.mxu0 %v3947
      %3951 = vmatprep.subr.mxu0 0.0
      %3952 = vmatpush1.xpose.msra.mxu0 %v3945
      %3953 = vmatprep.subr.mxu0 0.0
      %3954 = vmatpush1.xpose.msra.mxu0 %v3943
      %3955 = vmatprep.subr.mxu0 0.0
      %3956 = vmatpush1.xpose.msra.mxu0 %v3941
      %3957 = vmatprep.subr.mxu0 0.0
      %3958 = vmatpush1.xpose.msra.mxu0 %v3939
      %3959 = vmatprep.subr.mxu0 0.0
      %3960 = vmatpush1.xpose.msra.mxu0 %v3937
      %3961 = vmatprep.subr.mxu0 0.0
      %3962 = vmatpush1.xpose.msra.mxu0 %v3935
      %3963 = vmatprep.subr.mxu0 0.0
      %3964 = vmatpush1.xpose.msra.mxu0 %v3933
      %3965 = vmatprep.subr.mxu0 0.0
      %3966 = vmatpush1.xpose.msra.mxu0 %v3931
      %3967 = vmatprep.subr.mxu0 0.0
      %3968 = vmatpush1.xpose.msra.mxu0 %v3929
      %3969 = vmatprep.subr.mxu0 0.0
      %3970 = vmatpush1.xpose.msra.mxu0 %v3927
      %3971 = vmatprep.subr.mxu0 0.0
      %3972 = vmatpush1.xpose.msra.mxu0 %v3925
      %3973 = vmatprep.subr.mxu0 0.0
      %3974 = vmatpush1.xpose.msra.mxu0 %v3923
      %3975 = vmatprep.subr.mxu0 0.0
      %3976 = vmatpush1.xpose.msra.mxu0 %v3921
      %3977 = vmatprep.subr.mxu0 0.0
      %3978 = vmatpush1.xpose.msra.mxu0 %v3919
      %3979 = vmatprep.subr.mxu0 0.0
      %3980 = vmatpush1.xpose.msra.mxu0 %v3917
      %3981 = vmatprep.subr.mxu0 0.0
      %3982 = vmatpush2.xpose.msra.mxu0 0.0
      %3983 = vmatprep.subr.mxu0 0.0
      %3984 = vmatpush2.xpose.msra.mxu0 0.0
      %3985 = vmatprep.subr.mxu0 0.0
      %3986 = vmatpush2.xpose.msra.mxu0 0.0
      %3987 = vmatprep.subr.mxu0 0.0
      %3988 = vmatpush2.xpose.msra.mxu0 0.0
      %3989 = vmatprep.subr.mxu0 0.0
      %3990 = vmatpush2.xpose.msra.mxu0 0.0
      %3991 = vmatprep.subr.mxu0 0.0
      %3992 = vmatpush2.xpose.msra.mxu0 0.0
      %3993 = vmatprep.subr.mxu0 0.0
      %3994 = vmatpush2.xpose.msra.mxu0 0.0
      %3995 = vmatprep.subr.mxu0 0.0
      %3996 = vmatpush2.xpose.msra.mxu0 0.0
      %3997 = vmatprep.subr.mxu0 0.0
      %3998 = vmatpush2.xpose.msra.mxu0 0.0
      %3999 = vmatprep.subr.mxu0 0.0
      %4000 = vmatpush2.xpose.msra.mxu0 0.0
      %4001 = vmatprep.subr.mxu0 0.0
      %4002 = vmatpush2.xpose.msra.mxu0 0.0
      %4003 = vmatprep.subr.mxu0 0.0
      %4004 = vmatpush2.xpose.msra.mxu0 0.0
      %4005 = vmatprep.subr.mxu0 0.0
      %4006 = vmatpush2.xpose.msra.mxu0 0.0
      %4007 = vmatprep.subr.mxu0 0.0
      %4008 = vmatpush2.xpose.msra.mxu0 0.0
      %4009 = vmatprep.subr.mxu0 0.0
      %4010 = vmatpush2.xpose.msra.mxu0 0.0
      %4011 = vmatprep.subr.mxu0 0.0
      %4012 = vmatpush2.xpose.msra.mxu0 0.0
      %4013 = vmatprep.mubr.f32.mxu0 0.0
      %4014 = vmatmul.mubr.f32.gmra.mxu0 %v3885
      %v4015 = vpop.f32.mrf.mxu0
      %v4016 = vadd.f32 0.0, %v4015
      %v4017 = vpop.f32.mrf.mxu0
      %4018 = vmatprep.mubr.f32.mxu0 0.0
      %4019 = vmatmul.mubr.f32.gmra.mxu0 %v3887
      %v4020 = vpop.f32.mrf.mxu0
      %v4021 = vadd.f32 0.0, %v4020
      %v4022 = vpop.f32.mrf.mxu0
      %4023 = vmatprep.mubr.f32.mxu0 0.0
      %4024 = vmatmul.mubr.f32.gmra.mxu0 %v3889
      %v4025 = vpop.f32.mrf.mxu0
      %v4026 = vadd.f32 0.0, %v4025
      %v4027 = vpop.f32.mrf.mxu0
      %4028 = vmatprep.mubr.f32.mxu0 0.0
      %4029 = vmatmul.mubr.f32.gmra.mxu0 %v3891
      %v4030 = vpop.f32.mrf.mxu0
      %v4031 = vadd.f32 0.0, %v4030
      %v4032 = vpop.f32.mrf.mxu0
      %4033 = vmatprep.mubr.f32.mxu0 0.0
      %4034 = vmatmul.mubr.f32.gmra.mxu0 %v3893
      %v4035 = vpop.f32.mrf.mxu0
      %v4036 = vadd.f32 0.0, %v4035
      %v4037 = vpop.f32.mrf.mxu0
      %4038 = vmatprep.mubr.f32.mxu0 0.0
      %4039 = vmatmul.mubr.f32.gmra.mxu0 %v3895
      %v4040 = vpop.f32.mrf.mxu0
      %v4041 = vadd.f32 0.0, %v4040
      %v4042 = vpop.f32.mrf.mxu0
      %4043 = vmatprep.mubr.f32.mxu0 0.0
      %4044 = vmatmul.mubr.f32.gmra.mxu0 %v3897
      %v4045 = vpop.f32.mrf.mxu0
      %v4046 = vadd.f32 0.0, %v4045
      %v4047 = vpop.f32.mrf.mxu0
      %4048 = vmatprep.mubr.f32.mxu0 0.0
      %4049 = vmatmul.mubr.f32.gmra.mxu0 %v3899
      %v4050 = vpop.f32.mrf.mxu0
      %v4051 = vadd.f32 0.0, %v4050
      %v4052 = vpop.f32.mrf.mxu0
      %4053 = vmatprep.mubr.f32.mxu0 0.0
      %4054 = vmatmul.mubr.f32.gmra.mxu0 %v3901
      %v4055 = vpop.f32.mrf.mxu0
      %v4056 = vadd.f32 0.0, %v4055
      %v4057 = vpop.f32.mrf.mxu0
      %4058 = vmatprep.mubr.f32.mxu0 0.0
      %4059 = vmatmul.mubr.f32.gmra.mxu0 %v3903
      %v4060 = vpop.f32.mrf.mxu0
      %v4061 = vadd.f32 0.0, %v4060
      %v4062 = vpop.f32.mrf.mxu0
      %4063 = vmatprep.mubr.f32.mxu0 0.0
      %4064 = vmatmul.mubr.f32.gmra.mxu0 %v3905
      %v4065 = vpop.f32.mrf.mxu0
      %v4066 = vadd.f32 0.0, %v4065
      %v4067 = vpop.f32.mrf.mxu0
      %4068 = vmatprep.mubr.f32.mxu0 0.0
      %4069 = vmatmul.mubr.f32.gmra.mxu0 %v3907
      %v4070 = vpop.f32.mrf.mxu0
      %v4071 = vadd.f32 0.0, %v4070
      %v4072 = vpop.f32.mrf.mxu0
      %4073 = vmatprep.mubr.f32.mxu0 0.0
      %4074 = vmatmul.mubr.f32.gmra.mxu0 %v3909
      %v4075 = vpop.f32.mrf.mxu0
      %v4076 = vadd.f32 0.0, %v4075
      %v4077 = vpop.f32.mrf.mxu0
      %4078 = vmatprep.mubr.f32.mxu0 0.0
      %4079 = vmatmul.mubr.f32.gmra.mxu0 %v3911
      %v4080 = vpop.f32.mrf.mxu0
      %v4081 = vadd.f32 0.0, %v4080
      %v4082 = vpop.f32.mrf.mxu0
      %4083 = vmatprep.mubr.f32.mxu0 0.0
      %4084 = vmatmul.mubr.f32.gmra.mxu0 %v3913
      %v4085 = vpop.f32.mrf.mxu0
      %v4086 = vadd.f32 0.0, %v4085
      %v4087 = vpop.f32.mrf.mxu0
      %4088 = vmatprep.mubr.f32.mxu0 0.0
      %4089 = vmatmul.mubr.f32.gmra.mxu0 %v3915
      %v4090 = vpop.f32.mrf.mxu0
      %v4091 = vadd.f32 0.0, %v4090
      %v4092 = vpop.f32.mrf.mxu0
      %4093 = vdwg.mxu0
      %v4094 = vsel %vm874, %v4016, -1e+30
      %v4095 = vsel %vm874, %v4021, -1e+30
      %v4096 = vsel %vm874, %v4026, -1e+30
      %v4097 = vsel %vm874, %v4031, -1e+30
      %v4098 = vsel %vm874, %v4036, -1e+30
      %v4099 = vsel %vm874, %v4041, -1e+30
      %v4100 = vsel %vm874, %v4046, -1e+30
      %v4101 = vsel %vm874, %v4051, -1e+30
      %v4102 = vsel %vm874, %v4056, -1e+30
      %v4103 = vsel %vm874, %v4061, -1e+30
      %v4104 = vsel %vm874, %v4066, -1e+30
      %v4105 = vsel %vm874, %v4071, -1e+30
      %v4106 = vsel %vm874, %v4076, -1e+30
      %v4107 = vsel %vm874, %v4081, -1e+30
      %v4108 = vsel %vm874, %v4086, -1e+30
      %v4109 = vsel %vm874, %v4091, -1e+30
      %4110 = vmax.xlane.f32.xlu0 %v4094
      %v4111 = vpop.xlane.xlu0 %4110
      %4112 = vmax.xlane.f32.xlu0 %v4095
      %v4113 = vpop.xlane.xlu0 %4112
      %4114 = vmax.xlane.f32.xlu0 %v4096
      %v4115 = vpop.xlane.xlu0 %4114
      %4116 = vmax.xlane.f32.xlu0 %v4097
      %v4117 = vpop.xlane.xlu0 %4116
      %4118 = vmax.xlane.f32.xlu0 %v4098
      %v4119 = vpop.xlane.xlu0 %4118
      %4120 = vmax.xlane.f32.xlu0 %v4099
      %v4121 = vpop.xlane.xlu0 %4120
      %4122 = vmax.xlane.f32.xlu0 %v4100
      %v4123 = vpop.xlane.xlu0 %4122
      %4124 = vmax.xlane.f32.xlu0 %v4101
      %v4125 = vpop.xlane.xlu0 %4124
      %4126 = vmax.xlane.f32.xlu0 %v4102
      %v4127 = vpop.xlane.xlu0 %4126
      %4128 = vmax.xlane.f32.xlu0 %v4103
      %v4129 = vpop.xlane.xlu0 %4128
      %4130 = vmax.xlane.f32.xlu0 %v4104
      %v4131 = vpop.xlane.xlu0 %4130
      %4132 = vmax.xlane.f32.xlu0 %v4105
      %v4133 = vpop.xlane.xlu0 %4132
      %4134 = vmax.xlane.f32.xlu0 %v4106
      %v4135 = vpop.xlane.xlu0 %4134
      %4136 = vmax.xlane.f32.xlu0 %v4107
      %v4137 = vpop.xlane.xlu0 %4136
      %4138 = vmax.xlane.f32.xlu0 %v4108
      %v4139 = vpop.xlane.xlu0 %4138
      %4140 = vmax.xlane.f32.xlu0 %v4109
      %v4141 = vpop.xlane.xlu0 %4140
      %v4142 = vsub.f32 %v4094, %v4111
      %v4143 = vsub.f32 %v4095, %v4113
      %v4144 = vsub.f32 %v4096, %v4115
      %v4145 = vsub.f32 %v4097, %v4117
      %v4146 = vsub.f32 %v4098, %v4119
      %v4147 = vsub.f32 %v4099, %v4121
      %v4148 = vsub.f32 %v4100, %v4123
      %v4149 = vsub.f32 %v4101, %v4125
      %v4150 = vsub.f32 %v4102, %v4127
      %v4151 = vsub.f32 %v4103, %v4129
      %v4152 = vsub.f32 %v4104, %v4131
      %v4153 = vsub.f32 %v4105, %v4133
      %v4154 = vsub.f32 %v4106, %v4135
      %v4155 = vsub.f32 %v4107, %v4137
      %v4156 = vsub.f32 %v4108, %v4139
      %v4157 = vsub.f32 %v4109, %v4141
      %v4158 = vmul.f32 %v4142, 1.442695
      %v4159 = vpow.pop %v4158
      %v4160 = vmul.f32 %v4143, 1.442695
      %v4161 = vpow.pop %v4160
      %v4162 = vmul.f32 %v4144, 1.442695
      %v4163 = vpow.pop %v4162
      %v4164 = vmul.f32 %v4145, 1.442695
      %v4165 = vpow.pop %v4164
      %v4166 = vmul.f32 %v4146, 1.442695
      %v4167 = vpow.pop %v4166
      %v4168 = vmul.f32 %v4147, 1.442695
      %v4169 = vpow.pop %v4168
      %v4170 = vmul.f32 %v4148, 1.442695
      %v4171 = vpow.pop %v4170
      %v4172 = vmul.f32 %v4149, 1.442695
      %v4173 = vpow.pop %v4172
      %v4174 = vmul.f32 %v4150, 1.442695
      %v4175 = vpow.pop %v4174
      %v4176 = vmul.f32 %v4151, 1.442695
      %v4177 = vpow.pop %v4176
      %v4178 = vmul.f32 %v4152, 1.442695
      %v4179 = vpow.pop %v4178
      %v4180 = vmul.f32 %v4153, 1.442695
      %v4181 = vpow.pop %v4180
      %v4182 = vmul.f32 %v4154, 1.442695
      %v4183 = vpow.pop %v4182
      %v4184 = vmul.f32 %v4155, 1.442695
      %v4185 = vpow.pop %v4184
      %v4186 = vmul.f32 %v4156, 1.442695
      %v4187 = vpow.pop %v4186
      %v4188 = vmul.f32 %v4157, 1.442695
      %v4189 = vpow.pop %v4188
      %4190 = vadd.xlane.f32.xlu0 %v4159
      %v4191 = vpop.xlane.xlu0 %4190
      %4192 = vadd.xlane.f32.xlu0 %v4161
      %v4193 = vpop.xlane.xlu0 %4192
      %4194 = vadd.xlane.f32.xlu0 %v4163
      %v4195 = vpop.xlane.xlu0 %4194
      %4196 = vadd.xlane.f32.xlu0 %v4165
      %v4197 = vpop.xlane.xlu0 %4196
      %4198 = vadd.xlane.f32.xlu0 %v4167
      %v4199 = vpop.xlane.xlu0 %4198
      %4200 = vadd.xlane.f32.xlu0 %v4169
      %v4201 = vpop.xlane.xlu0 %4200
      %4202 = vadd.xlane.f32.xlu0 %v4171
      %v4203 = vpop.xlane.xlu0 %4202
      %4204 = vadd.xlane.f32.xlu0 %v4173
      %v4205 = vpop.xlane.xlu0 %4204
      %4206 = vadd.xlane.f32.xlu0 %v4175
      %v4207 = vpop.xlane.xlu0 %4206
      %4208 = vadd.xlane.f32.xlu0 %v4177
      %v4209 = vpop.xlane.xlu0 %4208
      %4210 = vadd.xlane.f32.xlu0 %v4179
      %v4211 = vpop.xlane.xlu0 %4210
      %4212 = vadd.xlane.f32.xlu0 %v4181
      %v4213 = vpop.xlane.xlu0 %4212
      %4214 = vadd.xlane.f32.xlu0 %v4183
      %v4215 = vpop.xlane.xlu0 %4214
      %4216 = vadd.xlane.f32.xlu0 %v4185
      %v4217 = vpop.xlane.xlu0 %4216
      %4218 = vadd.xlane.f32.xlu0 %v4187
      %v4219 = vpop.xlane.xlu0 %4218
      %4220 = vadd.xlane.f32.xlu0 %v4189
      %v4221 = vpop.xlane.xlu0 %4220
      %v4222 = vrcp.pop %v4191
      %v4223 = vrcp.pop %v4193
      %v4224 = vrcp.pop %v4195
      %v4225 = vrcp.pop %v4197
      %v4226 = vrcp.pop %v4199
      %v4227 = vrcp.pop %v4201
      %v4228 = vrcp.pop %v4203
      %v4229 = vrcp.pop %v4205
      %v4230 = vrcp.pop %v4207
      %v4231 = vrcp.pop %v4209
      %v4232 = vrcp.pop %v4211
      %v4233 = vrcp.pop %v4213
      %v4234 = vrcp.pop %v4215
      %v4235 = vrcp.pop %v4217
      %v4236 = vrcp.pop %v4219
      %v4237 = vrcp.pop %v4221
      %v4238 = vmul.f32 %v4159, %v4222
      %v4239 = vmul.f32 %v4161, %v4223
      %v4240 = vmul.f32 %v4163, %v4224
      %v4241 = vmul.f32 %v4165, %v4225
      %v4242 = vmul.f32 %v4167, %v4226
      %v4243 = vmul.f32 %v4169, %v4227
      %v4244 = vmul.f32 %v4171, %v4228
      %v4245 = vmul.f32 %v4173, %v4229
      %v4246 = vmul.f32 %v4175, %v4230
      %v4247 = vmul.f32 %v4177, %v4231
      %v4248 = vmul.f32 %v4179, %v4232
      %v4249 = vmul.f32 %v4181, %v4233
      %v4250 = vmul.f32 %v4183, %v4234
      %v4251 = vmul.f32 %v4185, %v4235
      %v4252 = vmul.f32 %v4187, %v4236
      %v4253 = vmul.f32 %v4189, %v4237
      %4270 = vrot.lane.b32.xlu0 %v3789, 104
      %v4271 = vpop.permute.xlu0 %4270
      %4272 = vrot.lane.b32.xlu0 %v3790, 104
      %v4273 = vpop.permute.xlu0 %4272
      %4274 = vrot.lane.b32.xlu0 %v3791, 104
      %v4275 = vpop.permute.xlu0 %4274
      %4276 = vrot.lane.b32.xlu0 %v3792, 104
      %v4277 = vpop.permute.xlu0 %4276
      %4278 = vrot.lane.b32.xlu0 %v3793, 104
      %v4279 = vpop.permute.xlu0 %4278
      %4280 = vrot.lane.b32.xlu0 %v3794, 104
      %v4281 = vpop.permute.xlu0 %4280
      %4282 = vrot.lane.b32.xlu0 %v3795, 104
      %v4283 = vpop.permute.xlu0 %4282
      %4284 = vrot.lane.b32.xlu0 %v3796, 104
      %v4285 = vpop.permute.xlu0 %4284
      %4286 = vrot.lane.b32.xlu0 %v3797, 104
      %v4287 = vpop.permute.xlu0 %4286
      %4288 = vrot.lane.b32.xlu0 %v3798, 104
      %v4289 = vpop.permute.xlu0 %4288
      %4290 = vrot.lane.b32.xlu0 %v3799, 104
      %v4291 = vpop.permute.xlu0 %4290
      %4292 = vrot.lane.b32.xlu0 %v3800, 104
      %v4293 = vpop.permute.xlu0 %4292
      %4294 = vrot.lane.b32.xlu0 %v3801, 104
      %v4295 = vpop.permute.xlu0 %4294
      %4296 = vrot.lane.b32.xlu0 %v3802, 104
      %v4297 = vpop.permute.xlu0 %4296
      %4298 = vrot.lane.b32.xlu0 %v3803, 104
      %v4299 = vpop.permute.xlu0 %4298
      %4300 = vrot.lane.b32.xlu0 %v3804, 104
      %v4301 = vpop.permute.xlu0 %4300
      %4318 = vmatprep.subr.mxu0 0.0
      %4319 = vmatpush1.msra.mxu0 %v4301
      %4320 = vmatprep.subr.mxu0 0.0
      %4321 = vmatpush1.msra.mxu0 %v4299
      %4322 = vmatprep.subr.mxu0 0.0
      %4323 = vmatpush1.msra.mxu0 %v4297
      %4324 = vmatprep.subr.mxu0 0.0
      %4325 = vmatpush1.msra.mxu0 %v4295
      %4326 = vmatprep.subr.mxu0 0.0
      %4327 = vmatpush1.msra.mxu0 %v4293
      %4328 = vmatprep.subr.mxu0 0.0
      %4329 = vmatpush1.msra.mxu0 %v4291
      %4330 = vmatprep.subr.mxu0 0.0
      %4331 = vmatpush1.msra.mxu0 %v4289
      %4332 = vmatprep.subr.mxu0 0.0
      %4333 = vmatpush1.msra.mxu0 %v4287
      %4334 = vmatprep.subr.mxu0 0.0
      %4335 = vmatpush1.msra.mxu0 %v4285
      %4336 = vmatprep.subr.mxu0 0.0
      %4337 = vmatpush1.msra.mxu0 %v4283
      %4338 = vmatprep.subr.mxu0 0.0
      %4339 = vmatpush1.msra.mxu0 %v4281
      %4340 = vmatprep.subr.mxu0 0.0
      %4341 = vmatpush1.msra.mxu0 %v4279
      %4342 = vmatprep.subr.mxu0 0.0
      %4343 = vmatpush1.msra.mxu0 %v4277
      %4344 = vmatprep.subr.mxu0 0.0
      %4345 = vmatpush1.msra.mxu0 %v4275
      %4346 = vmatprep.subr.mxu0 0.0
      %4347 = vmatpush1.msra.mxu0 %v4273
      %4348 = vmatprep.subr.mxu0 0.0
      %4349 = vmatpush1.msra.mxu0 %v4271
      %4350 = vmatprep.subr.mxu0 0.0
      %4351 = vmatpush2.msra.mxu0 0.0
      %4352 = vmatprep.subr.mxu0 0.0
      %4353 = vmatpush2.msra.mxu0 0.0
      %4354 = vmatprep.subr.mxu0 0.0
      %4355 = vmatpush2.msra.mxu0 0.0
      %4356 = vmatprep.subr.mxu0 0.0
      %4357 = vmatpush2.msra.mxu0 0.0
      %4358 = vmatprep.subr.mxu0 0.0
      %4359 = vmatpush2.msra.mxu0 0.0
      %4360 = vmatprep.subr.mxu0 0.0
      %4361 = vmatpush2.msra.mxu0 0.0
      %4362 = vmatprep.subr.mxu0 0.0
      %4363 = vmatpush2.msra.mxu0 0.0
      %4364 = vmatprep.subr.mxu0 0.0
      %4365 = vmatpush2.msra.mxu0 0.0
      %4366 = vmatprep.subr.mxu0 0.0
      %4367 = vmatpush2.msra.mxu0 0.0
      %4368 = vmatprep.subr.mxu0 0.0
      %4369 = vmatpush2.msra.mxu0 0.0
      %4370 = vmatprep.subr.mxu0 0.0
      %4371 = vmatpush2.msra.mxu0 0.0
      %4372 = vmatprep.subr.mxu0 0.0
      %4373 = vmatpush2.msra.mxu0 0.0
      %4374 = vmatprep.subr.mxu0 0.0
      %4375 = vmatpush2.msra.mxu0 0.0
      %4376 = vmatprep.subr.mxu0 0.0
      %4377 = vmatpush2.msra.mxu0 0.0
      %4378 = vmatprep.subr.mxu0 0.0
      %4379 = vmatpush2.msra.mxu0 0.0
      %4380 = vmatprep.subr.mxu0 0.0
      %4381 = vmatpush2.msra.mxu0 0.0
      %4382 = vmatprep.mubr.f32.mxu0 0.0
      %4383 = vmatmul.mubr.f32.gmra.mxu0 %v4238
      %v4384 = vpop.f32.mrf.mxu0
      %v4385 = vadd.f32 0.0, %v4384
      %v4386 = vpop.f32.mrf.mxu0
      %4387 = vmatprep.mubr.f32.mxu0 0.0
      %4388 = vmatmul.mubr.f32.gmra.mxu0 %v4239
      %v4389 = vpop.f32.mrf.mxu0
      %v4390 = vadd.f32 0.0, %v4389
      %v4391 = vpop.f32.mrf.mxu0
      %4392 = vmatprep.mubr.f32.mxu0 0.0
      %4393 = vmatmul.mubr.f32.gmra.mxu0 %v4240
      %v4394 = vpop.f32.mrf.mxu0
      %v4395 = vadd.f32 0.0, %v4394
      %v4396 = vpop.f32.mrf.mxu0
      %4397 = vmatprep.mubr.f32.mxu0 0.0
      %4398 = vmatmul.mubr.f32.gmra.mxu0 %v4241
      %v4399 = vpop.f32.mrf.mxu0
      %v4400 = vadd.f32 0.0, %v4399
      %v4401 = vpop.f32.mrf.mxu0
      %4402 = vmatprep.mubr.f32.mxu0 0.0
      %4403 = vmatmul.mubr.f32.gmra.mxu0 %v4242
      %v4404 = vpop.f32.mrf.mxu0
      %v4405 = vadd.f32 0.0, %v4404
      %v4406 = vpop.f32.mrf.mxu0
      %4407 = vmatprep.mubr.f32.mxu0 0.0
      %4408 = vmatmul.mubr.f32.gmra.mxu0 %v4243
      %v4409 = vpop.f32.mrf.mxu0
      %v4410 = vadd.f32 0.0, %v4409
      %v4411 = vpop.f32.mrf.mxu0
      %4412 = vmatprep.mubr.f32.mxu0 0.0
      %4413 = vmatmul.mubr.f32.gmra.mxu0 %v4244
      %v4414 = vpop.f32.mrf.mxu0
      %v4415 = vadd.f32 0.0, %v4414
      %v4416 = vpop.f32.mrf.mxu0
      %4417 = vmatprep.mubr.f32.mxu0 0.0
      %4418 = vmatmul.mubr.f32.gmra.mxu0 %v4245
      %v4419 = vpop.f32.mrf.mxu0
      %v4420 = vadd.f32 0.0, %v4419
      %v4421 = vpop.f32.mrf.mxu0
      %4422 = vmatprep.mubr.f32.mxu0 0.0
      %4423 = vmatmul.mubr.f32.gmra.mxu0 %v4246
      %v4424 = vpop.f32.mrf.mxu0
      %v4425 = vadd.f32 0.0, %v4424
      %v4426 = vpop.f32.mrf.mxu0
      %4427 = vmatprep.mubr.f32.mxu0 0.0
      %4428 = vmatmul.mubr.f32.gmra.mxu0 %v4247
      %v4429 = vpop.f32.mrf.mxu0
      %v4430 = vadd.f32 0.0, %v4429
      %v4431 = vpop.f32.mrf.mxu0
      %4432 = vmatprep.mubr.f32.mxu0 0.0
      %4433 = vmatmul.mubr.f32.gmra.mxu0 %v4248
      %v4434 = vpop.f32.mrf.mxu0
      %v4435 = vadd.f32 0.0, %v4434
      %v4436 = vpop.f32.mrf.mxu0
      %4437 = vmatprep.mubr.f32.mxu0 0.0
      %4438 = vmatmul.mubr.f32.gmra.mxu0 %v4249
      %v4439 = vpop.f32.mrf.mxu0
      %v4440 = vadd.f32 0.0, %v4439
      %v4441 = vpop.f32.mrf.mxu0
      %4442 = vmatprep.mubr.f32.mxu0 0.0
      %4443 = vmatmul.mubr.f32.gmra.mxu0 %v4250
      %v4444 = vpop.f32.mrf.mxu0
      %v4445 = vadd.f32 0.0, %v4444
      %v4446 = vpop.f32.mrf.mxu0
      %4447 = vmatprep.mubr.f32.mxu0 0.0
      %4448 = vmatmul.mubr.f32.gmra.mxu0 %v4251
      %v4449 = vpop.f32.mrf.mxu0
      %v4450 = vadd.f32 0.0, %v4449
      %v4451 = vpop.f32.mrf.mxu0
      %4452 = vmatprep.mubr.f32.mxu0 0.0
      %4453 = vmatmul.mubr.f32.gmra.mxu0 %v4252
      %v4454 = vpop.f32.mrf.mxu0
      %v4455 = vadd.f32 0.0, %v4454
      %v4456 = vpop.f32.mrf.mxu0
      %4457 = vmatprep.mubr.f32.mxu0 0.0
      %4458 = vmatmul.mubr.f32.gmra.mxu0 %v4253
      %v4459 = vpop.f32.mrf.mxu0
      %v4460 = vadd.f32 0.0, %v4459
      %v4461 = vpop.f32.mrf.mxu0
      %4462 = vdwg.mxu0
      %v4463 = vld [vmem:[#allocation4] sm:$0xff]
      %v4464 = vld [vmem:[#allocation4 + $0x8] sm:$0xff]
      %v4465 = vld [vmem:[#allocation4 + $0x10] sm:$0xff]
      %v4466 = vld [vmem:[#allocation4 + $0x18] sm:$0xff]
      %v4467 = vld [vmem:[#allocation4 + $0x20] sm:$0xff]
      %v4468 = vld [vmem:[#allocation4 + $0x28] sm:$0xff]
      %v4469 = vld [vmem:[#allocation4 + $0x30] sm:$0xff]
      %v4470 = vld [vmem:[#allocation4 + $0x38] sm:$0xff]
      %v4471 = vld [vmem:[#allocation4 + $0x40] sm:$0xff]
      %v4472 = vld [vmem:[#allocation4 + $0x48] sm:$0xff]
      %v4473 = vld [vmem:[#allocation4 + $0x50] sm:$0xff]
      %v4474 = vld [vmem:[#allocation4 + $0x58] sm:$0xff]
      %v4475 = vld [vmem:[#allocation4 + $0x60] sm:$0xff]
      %v4476 = vld [vmem:[#allocation4 + $0x68] sm:$0xff]
      %v4477 = vld [vmem:[#allocation4 + $0x70] sm:$0xff]
      %v4478 = vld [vmem:[#allocation4 + $0x78] sm:$0xff]
      %v4479 = vld [vmem:[%s6 + $0x18] sm:$0xff]
      %v4481 = vsel %vm1120, %v4385, 0
      %v4484 = vsel %vm1120, %v4390, 0
      %v4487 = vsel %vm1120, %v4395, 0
      %v4490 = vsel %vm1120, %v4400, 0
      %v4493 = vsel %vm1120, %v4405, 0
      %v4496 = vsel %vm1120, %v4410, 0
      %v4499 = vsel %vm1120, %v4415, 0
      %v4502 = vsel %vm1120, %v4420, 0
      %v4505 = vsel %vm1120, %v4425, 0
      %v4508 = vsel %vm1120, %v4430, 0
      %v4511 = vsel %vm1120, %v4435, 0
      %v4514 = vsel %vm1120, %v4440, 0
      %v4517 = vsel %vm1120, %v4445, 0
      %v4520 = vsel %vm1120, %v4450, 0
      %v4523 = vsel %vm1120, %v4455, 0
      %v4526 = vsel %vm1120, %v4460, 0
      %4528 = vmatprep.subr.mxu0 0.0
      %4529 = vmatpush1.msra.mxu0 0.0
      %4530 = vmatprep.subr.mxu0 0.0
      %4531 = vmatpush1.msra.mxu0 0.0
      %4532 = vmatprep.subr.mxu0 0.0
      %4533 = vmatpush1.msra.mxu0 0.0
      %4534 = vmatprep.subr.mxu0 0.0
      %4535 = vmatpush1.msra.mxu0 0.0
      %4536 = vmatprep.subr.mxu0 0.0
      %4537 = vmatpush1.msra.mxu0 0.0
      %4538 = vmatprep.subr.mxu0 0.0
      %4539 = vmatpush1.msra.mxu0 0.0
      %4540 = vmatprep.subr.mxu0 0.0
      %4541 = vmatpush1.msra.mxu0 0.0
      %4542 = vmatprep.subr.mxu0 0.0
      %4543 = vmatpush1.msra.mxu0 0.0
      %4544 = vmatprep.subr.mxu0 0.0
      %4545 = vmatpush1.msra.mxu0 0.0
      %4546 = vmatprep.subr.mxu0 0.0
      %4547 = vmatpush1.msra.mxu0 0.0
      %4548 = vmatprep.subr.mxu0 0.0
      %4549 = vmatpush1.msra.mxu0 0.0
      %4550 = vmatprep.subr.mxu0 0.0
      %4551 = vmatpush1.msra.mxu0 0.0
      %4552 = vmatprep.subr.mxu0 0.0
      %4553 = vmatpush1.msra.mxu0 0.0
      %4554 = vmatprep.subr.mxu0 0.0
      %4555 = vmatpush1.msra.mxu0 0.0
      %4556 = vmatprep.subr.mxu0 0.0
      %4557 = vmatpush1.msra.mxu0 0.0
      %4558 = vmatprep.subr.mxu0 0.0
      %4559 = vmatpush1.msra.mxu0 %v4479
      %4560 = vmatprep.subr.mxu0 0.0
      %4561 = vmatpush2.msra.mxu0 0.0
      %4562 = vmatprep.subr.mxu0 0.0
      %4563 = vmatpush2.msra.mxu0 0.0
      %4564 = vmatprep.subr.mxu0 0.0
      %4565 = vmatpush2.msra.mxu0 0.0
      %4566 = vmatprep.subr.mxu0 0.0
      %4567 = vmatpush2.msra.mxu0 0.0
      %4568 = vmatprep.subr.mxu0 0.0
      %4569 = vmatpush2.msra.mxu0 0.0
      %4570 = vmatprep.subr.mxu0 0.0
      %4571 = vmatpush2.msra.mxu0 0.0
      %4572 = vmatprep.subr.mxu0 0.0
      %4573 = vmatpush2.msra.mxu0 0.0
      %4574 = vmatprep.subr.mxu0 0.0
      %4575 = vmatpush2.msra.mxu0 0.0
      %4576 = vmatprep.subr.mxu0 0.0
      %4577 = vmatpush2.msra.mxu0 0.0
      %4578 = vmatprep.subr.mxu0 0.0
      %4579 = vmatpush2.msra.mxu0 0.0
      %4580 = vmatprep.subr.mxu0 0.0
      %4581 = vmatpush2.msra.mxu0 0.0
      %4582 = vmatprep.subr.mxu0 0.0
      %4583 = vmatpush2.msra.mxu0 0.0
      %4584 = vmatprep.subr.mxu0 0.0
      %4585 = vmatpush2.msra.mxu0 0.0
      %4586 = vmatprep.subr.mxu0 0.0
      %4587 = vmatpush2.msra.mxu0 0.0
      %4588 = vmatprep.subr.mxu0 0.0
      %4589 = vmatpush2.msra.mxu0 0.0
      %4590 = vmatprep.subr.mxu0 0.0
      %4591 = vmatpush2.msra.mxu0 0.0
      %4592 = vmatprep.mubr.f32.mxu0 0.0
      %4593 = vmatmul.mubr.f32.gmra.mxu0 %v4481
      %v4594 = vpop.f32.mrf.mxu0
      %v4595 = vadd.f32 0.0, %v4594
      %v4596 = vpop.f32.mrf.mxu0
      %4597 = vmatprep.mubr.f32.mxu0 0.0
      %4598 = vmatmul.mubr.f32.gmra.mxu0 %v4484
      %v4599 = vpop.f32.mrf.mxu0
      %v4600 = vadd.f32 0.0, %v4599
      %v4601 = vpop.f32.mrf.mxu0
      %4602 = vmatprep.mubr.f32.mxu0 0.0
      %4603 = vmatmul.mubr.f32.gmra.mxu0 %v4487
      %v4604 = vpop.f32.mrf.mxu0
      %v4605 = vadd.f32 0.0, %v4604
      %v4606 = vpop.f32.mrf.mxu0
      %4607 = vmatprep.mubr.f32.mxu0 0.0
      %4608 = vmatmul.mubr.f32.gmra.mxu0 %v4490
      %v4609 = vpop.f32.mrf.mxu0
      %v4610 = vadd.f32 0.0, %v4609
      %v4611 = vpop.f32.mrf.mxu0
      %4612 = vmatprep.mubr.f32.mxu0 0.0
      %4613 = vmatmul.mubr.f32.gmra.mxu0 %v4493
      %v4614 = vpop.f32.mrf.mxu0
      %v4615 = vadd.f32 0.0, %v4614
      %v4616 = vpop.f32.mrf.mxu0
      %4617 = vmatprep.mubr.f32.mxu0 0.0
      %4618 = vmatmul.mubr.f32.gmra.mxu0 %v4496
      %v4619 = vpop.f32.mrf.mxu0
      %v4620 = vadd.f32 0.0, %v4619
      %v4621 = vpop.f32.mrf.mxu0
      %4622 = vmatprep.mubr.f32.mxu0 0.0
      %4623 = vmatmul.mubr.f32.gmra.mxu0 %v4499
      %v4624 = vpop.f32.mrf.mxu0
      %v4625 = vadd.f32 0.0, %v4624
      %v4626 = vpop.f32.mrf.mxu0
      %4627 = vmatprep.mubr.f32.mxu0 0.0
      %4628 = vmatmul.mubr.f32.gmra.mxu0 %v4502
      %v4629 = vpop.f32.mrf.mxu0
      %v4630 = vadd.f32 0.0, %v4629
      %v4631 = vpop.f32.mrf.mxu0
      %4632 = vmatprep.mubr.f32.mxu0 0.0
      %4633 = vmatmul.mubr.f32.gmra.mxu0 %v4505
      %v4634 = vpop.f32.mrf.mxu0
      %v4635 = vadd.f32 0.0, %v4634
      %v4636 = vpop.f32.mrf.mxu0
      %4637 = vmatprep.mubr.f32.mxu0 0.0
      %4638 = vmatmul.mubr.f32.gmra.mxu0 %v4508
      %v4639 = vpop.f32.mrf.mxu0
      %v4640 = vadd.f32 0.0, %v4639
      %v4641 = vpop.f32.mrf.mxu0
      %4642 = vmatprep.mubr.f32.mxu0 0.0
      %4643 = vmatmul.mubr.f32.gmra.mxu0 %v4511
      %v4644 = vpop.f32.mrf.mxu0
      %v4645 = vadd.f32 0.0, %v4644
      %v4646 = vpop.f32.mrf.mxu0
      %4647 = vmatprep.mubr.f32.mxu0 0.0
      %4648 = vmatmul.mubr.f32.gmra.mxu0 %v4514
      %v4649 = vpop.f32.mrf.mxu0
      %v4650 = vadd.f32 0.0, %v4649
      %v4651 = vpop.f32.mrf.mxu0
      %4652 = vmatprep.mubr.f32.mxu0 0.0
      %4653 = vmatmul.mubr.f32.gmra.mxu0 %v4517
      %v4654 = vpop.f32.mrf.mxu0
      %v4655 = vadd.f32 0.0, %v4654
      %v4656 = vpop.f32.mrf.mxu0
      %4657 = vmatprep.mubr.f32.mxu0 0.0
      %4658 = vmatmul.mubr.f32.gmra.mxu0 %v4520
      %v4659 = vpop.f32.mrf.mxu0
      %v4660 = vadd.f32 0.0, %v4659
      %v4661 = vpop.f32.mrf.mxu0
      %4662 = vmatprep.mubr.f32.mxu0 0.0
      %4663 = vmatmul.mubr.f32.gmra.mxu0 %v4523
      %v4664 = vpop.f32.mrf.mxu0
      %v4665 = vadd.f32 0.0, %v4664
      %v4666 = vpop.f32.mrf.mxu0
      %4667 = vmatprep.mubr.f32.mxu0 0.0
      %4668 = vmatmul.mubr.f32.gmra.mxu0 %v4526
      %v4669 = vpop.f32.mrf.mxu0
      %v4670 = vadd.f32 0.0, %v4669
      %v4671 = vpop.f32.mrf.mxu0
      %4672 = vdwg.mxu0
      %v4673 = vadd.f32 %v4463, %v4595
      %v4674 = vadd.f32 %v4464, %v4600
      %v4675 = vadd.f32 %v4465, %v4605
      %v4676 = vadd.f32 %v4466, %v4610
      %v4677 = vadd.f32 %v4467, %v4615
      %v4678 = vadd.f32 %v4468, %v4620
      %v4679 = vadd.f32 %v4469, %v4625
      %v4680 = vadd.f32 %v4470, %v4630
      %v4681 = vadd.f32 %v4471, %v4635
      %v4682 = vadd.f32 %v4472, %v4640
      %v4683 = vadd.f32 %v4473, %v4645
      %v4684 = vadd.f32 %v4474, %v4650
      %v4685 = vadd.f32 %v4475, %v4655
      %v4686 = vadd.f32 %v4476, %v4660
      %v4687 = vadd.f32 %v4477, %v4665
      %v4688 = vadd.f32 %v4478, %v4670
      %4689 = vst.msk [vmem:[#allocation4] sm:$0xff] %vm855, %v4673
      %4690 = vst.msk [vmem:[#allocation4 + $0x8] sm:$0xff] %vm855, %v4674
      %4691 = vst.msk [vmem:[#allocation4 + $0x10] sm:$0xff] %vm855, %v4675
      %4692 = vst.msk [vmem:[#allocation4 + $0x18] sm:$0xff] %vm855, %v4676
      %4693 = vst.msk [vmem:[#allocation4 + $0x20] sm:$0xff] %vm855, %v4677
      %4694 = vst.msk [vmem:[#allocation4 + $0x28] sm:$0xff] %vm855, %v4678
      %4695 = vst.msk [vmem:[#allocation4 + $0x30] sm:$0xff] %vm855, %v4679
      %4696 = vst.msk [vmem:[#allocation4 + $0x38] sm:$0xff] %vm855, %v4680
      %4697 = vst.msk [vmem:[#allocation4 + $0x40] sm:$0xff] %vm855, %v4681
      %4698 = vst.msk [vmem:[#allocation4 + $0x48] sm:$0xff] %vm855, %v4682
      %4699 = vst.msk [vmem:[#allocation4 + $0x50] sm:$0xff] %vm855, %v4683
      %4700 = vst.msk [vmem:[#allocation4 + $0x58] sm:$0xff] %vm855, %v4684
      %4701 = vst.msk [vmem:[#allocation4 + $0x60] sm:$0xff] %vm855, %v4685
      %4702 = vst.msk [vmem:[#allocation4 + $0x68] sm:$0xff] %vm855, %v4686
      %4703 = vst.msk [vmem:[#allocation4 + $0x70] sm:$0xff] %vm855, %v4687
      %4704 = vst.msk [vmem:[#allocation4 + $0x78] sm:$0xff] %vm855, %v4688
      %v4705 = vld [vmem:[#allocation4] sm:$0xff]
      %v4706 = vld [vmem:[#allocation4 + $0x8] sm:$0xff]
      %v4707 = vld [vmem:[#allocation4 + $0x10] sm:$0xff]
      %v4708 = vld [vmem:[#allocation4 + $0x18] sm:$0xff]
      %v4709 = vld [vmem:[#allocation4 + $0x20] sm:$0xff]
      %v4710 = vld [vmem:[#allocation4 + $0x28] sm:$0xff]
      %v4711 = vld [vmem:[#allocation4 + $0x30] sm:$0xff]
      %v4712 = vld [vmem:[#allocation4 + $0x38] sm:$0xff]
      %v4713 = vld [vmem:[#allocation4 + $0x40] sm:$0xff]
      %v4714 = vld [vmem:[#allocation4 + $0x48] sm:$0xff]
      %v4715 = vld [vmem:[#allocation4 + $0x50] sm:$0xff]
      %v4716 = vld [vmem:[#allocation4 + $0x58] sm:$0xff]
      %v4717 = vld [vmem:[#allocation4 + $0x60] sm:$0xff]
      %v4718 = vld [vmem:[#allocation4 + $0x68] sm:$0xff]
      %v4719 = vld [vmem:[#allocation4 + $0x70] sm:$0xff]
      %v4720 = vld [vmem:[#allocation4 + $0x78] sm:$0xff]
      %4721 = vst.msk [vmem:[%s383] sm:$0xff] %vm855, %v4705
      %4722 = vst.msk [vmem:[%s383 + $0x8] sm:$0xff] %vm855, %v4706
      %4723 = vst.msk [vmem:[%s383 + $0x10] sm:$0xff] %vm855, %v4707
      %4724 = vst.msk [vmem:[%s383 + $0x18] sm:$0xff] %vm855, %v4708
      %4725 = vst.msk [vmem:[%s383 + $0x20] sm:$0xff] %vm855, %v4709
      %4726 = vst.msk [vmem:[%s383 + $0x28] sm:$0xff] %vm855, %v4710
      %4727 = vst.msk [vmem:[%s383 + $0x30] sm:$0xff] %vm855, %v4711
      %4728 = vst.msk [vmem:[%s383 + $0x38] sm:$0xff] %vm855, %v4712
      %4729 = vst.msk [vmem:[%s383 + $0x40] sm:$0xff] %vm855, %v4713
      %4730 = vst.msk [vmem:[%s383 + $0x48] sm:$0xff] %vm855, %v4714
      %4731 = vst.msk [vmem:[%s383 + $0x50] sm:$0xff] %vm855, %v4715
      %4732 = vst.msk [vmem:[%s383 + $0x58] sm:$0xff] %vm855, %v4716
      %4733 = vst.msk [vmem:[%s383 + $0x60] sm:$0xff] %vm855, %v4717
      %4734 = vst.msk [vmem:[%s383 + $0x68] sm:$0xff] %vm855, %v4718
      %4735 = vst.msk [vmem:[%s383 + $0x70] sm:$0xff] %vm855, %v4719
      %4736 = vst.msk [vmem:[%s383 + $0x78] sm:$0xff] %vm855, %v4720
      %s4737 = smul.u32 16, %s24
      %p4738 = scmp.lt.s32.totalorder %s23, 1
      %s4739 = scalar_select %p4738, %s23, 1
      %p4740 = scmp.lt.s32.totalorder %s4737, 15
      %s4741 = scalar_select %p4740, %s4737, 15
      %s4742 = smul.addr %s4739, 16
      %s4743 = sadd.s32 %s4741, %s4742
      %s4744 = smul.addr %s4743, 8
      %s4745 = scalar_lea.vmem %s8, %s4744
      // Predicated region
      $region57: #{tpu_custom_call.1} parent=51 // pred_check
        %p4746 = pneg %p236
      $region58: #{tpu_custom_call.1} parent=51 // pred_check_branch
        %4748 = sbr.rel (%p4746) target = $region60
      $region59: #{tpu_custom_call.1} parent=51 // pred_region
        %s4749 = smul.u32 16, %s24
      $region60: #{tpu_custom_call.1} parent=51 // pred_fallthru
        _
    $region52: #{tpu_custom_call.1} parent=5 // pred_fallthru
      _
    %p4750 = scmp.le.s32.totalorder 2, %s14
    // Predicated region
    $region61: #{tpu_custom_call.1} parent=5 // pred_check
      %p4751 = pneg %p4750
    $region62: #{tpu_custom_call.1} parent=5 // pred_check_branch
      %4753 = sbr.rel (%p4751) target = $region64
    $region63: #{tpu_custom_call.1} parent=5 // pred_region
      %s4754 = ssub.s32 %s14, 2
      // Predicated region
      $region65: #{tpu_custom_call.1} parent=63 // pred_check
        %p4755 = pneg %p242
      $region66: #{tpu_custom_call.1} parent=63 // pred_check_branch
        %4757 = sbr.rel (%p4755) target = $region68
      $region67: #{tpu_custom_call.1} parent=63 // pred_region
        %s4758 = smul.u32 16, %s26
        %p4759 = scmp.lt.s32.totalorder %s25, 1
        %s4760 = scalar_select %p4759, %s25, 1
        %p4761 = scmp.lt.s32.totalorder %s4758, 15
        %s4762 = scalar_select %p4761, %s4758, 15
        %s4763 = smul.addr %s4760, 16
        %s4764 = sadd.s32 %s4762, %s4763
        %s4765 = smul.addr %s4764, 8
        %s4766 = scalar_lea.vmem %s8, %s4765
      $region68: #{tpu_custom_call.1} parent=63 // pred_fallthru
        _
    $region64: #{tpu_custom_call.1} parent=5 // pred_fallthru
      _
  $region6: #{tpu_custom_call.1} parent=0 // loop_footer
    %s18 = sadd.s32 1, %s14
  $region7: #{tpu_custom_call.1} parent=0 // loop_footer_branch
    %13 = sbr.rel target = $region3
  $region8: #{tpu_custom_call.1} parent=0 // loop_exit
    _

</llo_original>
